<compile_context>
chip_gen: v6e
topology: v6e:2x2x1
jax: 0.10.0
libtpu: 0.0.40
codegen_flags: <defaults>
</compile_context>

<pallas_src>
import jax
import jax.numpy as jnp
from jax import lax
from jax.experimental import pallas as pl
from jax.experimental.pallas import tpu as pltpu

# Problem size. C must be >= 16 for the ChannelAttention bottleneck (C // 16).
N, H, W, C = 2, 16, 16, 32
CR = C // 16                 # channel-attention bottleneck width
KS = 3                       # residual conv kernel size
SK = 7                       # spatial-attention kernel size
BN_EPS = 1e-5

# MXU operand dtype.  Set to jnp.bfloat16 on v6e/v7x for ~2x MXU throughput
# (f32 accumulation is kept either way).
MXU_DTYPE = jnp.float32
TOL = 1e-3 if MXU_DTYPE == jnp.float32 else 1e-2


def residual_block_kernel(x_ref, w1_ref, bn1s_ref, bn1b_ref,
                          w2_ref, bn2s_ref, bn2b_ref,
                          fc1t_ref, fc2_ref, ksp_ref, out_ref):
    f32 = jnp.float32
    x = x_ref[0]                                          # (H*W, C) pixel-major

    # ---- roll + mask based row shifts (no padded scratch, no zero fills) ----
    def make_row_shift(nrows):
        ridx = lax.broadcasted_iota(jnp.int32, (nrows, 1), 0)

        def shift(m, s):
            # result[i] = m[i + s] for 0 <= i + s < nrows, else 0.
            if s == 0:
                return m
            rolled = pltpu.roll(m, (-s) % nrows, axis=0)
            if s > 0:
                keep = (ridx < (nrows - s)).astype(m.dtype)
            else:
                keep = (ridx >= (-s)).astype(m.dtype)
            return rolled * keep

        return shift

    shift_hw = make_row_shift(H * W)     # shifts of pixel-major slabs
    shift_h = make_row_shift(H)          # shifts of (H, ...) spatial maps

    # x-boundary masks for the +-1 pixel (lane-group) shifts.
    xcol = lax.broadcasted_iota(jnp.int32, (H * W, 1), 0) % W
    m_xm = (xcol != 0).astype(f32)            # pixel x-1 exists
    m_xp = (xcol != (W - 1)).astype(f32)      # pixel x+1 exists

    def conv3x3(a, w_ref):
        # a: (H*W, C) f32.  w_ref: (KS, KS*C, C) weights, lanes ordered (kx, ci).
        # Pack the 3 x-taps into the contraction (K = 3C): 3 matmuls instead
        # of 9; fold the y-taps in with aligned +-W row shifts of the outputs.
        xm = shift_hw(a, -1) * m_xm                        # in(y, x-1, :)
        xp = shift_hw(a, +1) * m_xp                        # in(y, x+1, :)
        patch = jnp.concatenate([xm, a, xp], axis=1).astype(MXU_DTYPE)  # (H*W, 3C)
        t = [jnp.dot(patch, w_ref[ky], preferred_element_type=f32)
             for ky in range(KS)]                          # each (H*W, C)
        return shift_hw(t[0], -W) + t[1] + shift_hw(t[2], +W)

    # conv1 -> bn1 -> relu ; conv2 -> bn2  (BN folded to scale/bias, f32 VPU)
    h1 = jnp.maximum(conv3x3(x, w1_ref) * bn1s_ref[...] + bn1b_ref[...], 0.0)
    out2 = conv3x3(h1, w2_ref) * bn2s_ref[...] + bn2b_ref[...]

    # ---- CBAM channel attention (tiny: pure f32 VPU, no MXU round trips) ----
    avg_p = jnp.mean(out2, axis=0, keepdims=True)          # (1, C)
    max_p = jnp.max(out2, axis=0, keepdims=True)           # (1, C)

    def shared_mlp(p):                                     # p: (1, C)
        h = jnp.maximum(jnp.sum(p * fc1t_ref[...], axis=1, keepdims=True), 0.0)
        return jnp.sum(h * fc2_ref[...], axis=0, keepdims=True)   # (1, C)

    ca = jax.nn.sigmoid(shared_mlp(avg_p) + shared_mlp(max_p))    # (1, C)
    z = ca * out2                                          # att = 1 + z

    # ---- CBAM spatial attention as a single small matmul -------------------
    z3 = z.reshape(H, W, C)
    avg_map = 1.0 + jnp.mean(z3, axis=-1)                  # (H, W)
    max_map = 1.0 + jnp.max(z3, axis=-1)                   # (H, W)
    g = jnp.concatenate([avg_map, max_map], axis=1)        # (H, 2W)
    gy = jnp.concatenate([shift_h(g, dy - SK // 2) for dy in range(SK)],
                         axis=1).astype(MXU_DTYPE)         # (H, SK*2W)
    sa = jax.nn.sigmoid(jnp.dot(gy, ksp_ref[...],
                                preferred_element_type=f32))      # (H, W)

    # ---- residual add + final relu, assembled lane-dense (H, W*C) ----------
    pre = (z + x + 1.0).reshape(H, W, C)    # channel att + residual + the "1+"
    pieces = [pre[:, xw, :] + jnp.broadcast_to(sa[:, xw:xw + 1], (H, C))
              for xw in range(W)]
    out_ref[0] = jnp.maximum(jnp.concatenate(pieces, axis=1), 0.0)  # (H, W*C)


def _fold_bn(gamma, beta, mean, var):
    scale = gamma / jnp.sqrt(var + BN_EPS)
    bias = beta - mean * scale
    return scale.reshape(1, C), bias.reshape(1, C)


def _spatial_conv_matrix(w_avg, w_max):
    """Banded (SK*2*W, W) matrix turning the 7x7, 2->1 spatial-attention conv
    into a single matmul on the (H, SK*2W) stack of row-shifted [avg|max] maps.
    Row (dy*2 + c)*W + u, column x holds w_c[dy, u - x + 3] (zero outside)."""
    blocks = []
    for dy in range(SK):
        for wmat in (w_avg, w_max):
            k = jnp.zeros((W, W), jnp.float32)
            for dx in range(SK):
                k = k + wmat[dy, dx] * jnp.eye(W, W, k=SK // 2 - dx,
                                               dtype=jnp.float32)
            blocks.append(k)
    return jnp.concatenate(blocks, axis=0)                  # (SK*2*W, W)


@jax.jit
def residual_block_forward(x_nchw, params):
    x = jnp.transpose(x_nchw, (0, 2, 3, 1)).astype(jnp.float32)   # NHWC
    x_pm = x.reshape(N, H * W, C)                                 # pixel-major

    bn1s, bn1b = _fold_bn(params["bn1_gamma"], params["bn1_beta"],
                          params["bn1_mean"], params["bn1_var"])
    bn2s, bn2b = _fold_bn(params["bn2_gamma"], params["bn2_beta"],
                          params["bn2_mean"], params["bn2_var"])

    w1 = params["w1"].reshape(KS, KS * C, C).astype(MXU_DTYPE)    # (ky,(kx,ci),co)
    w2 = params["w2"].reshape(KS, KS * C, C).astype(MXU_DTYPE)
    fc1t = params["fc1"].T                                        # (CR, C)
    fc2 = params["fc2"]                                           # (CR, C)
    ksp = _spatial_conv_matrix(params["sa_w_avg"],
                               params["sa_w_max"]).astype(MXU_DTYPE)

    def full(shape):
        return pl.BlockSpec(shape, lambda n: (0,) * len(shape))

    out = pl.pallas_call(
        residual_block_kernel,
        out_shape=jax.ShapeDtypeStruct((N, H, W * C), jnp.float32),
        grid=(N,),                                   # one image per program
        in_specs=[
            pl.BlockSpec((1, H * W, C), lambda n: (n, 0, 0)),
            full(w1.shape), full(bn1s.shape), full(bn1b.shape),
            full(w2.shape), full(bn2s.shape), full(bn2b.shape),
            full(fc1t.shape), full(fc2.shape), full(ksp.shape),
        ],
        out_specs=pl.BlockSpec((1, H, W * C), lambda n: (n, 0, 0)),
        compiler_params=pltpu.CompilerParams(
            dimension_semantics=("parallel",)),      # megacore / v7x 2nd TC
    )(x_pm, w1, bn1s, bn1b, w2, bn2s, bn2b, fc1t, fc2, ksp)

    return jnp.transpose(out.reshape(N, H, W, C), (0, 3, 1, 2))   # back to NCHW


def reference_forward(x_nchw, params):
    """Pure-JAX reference (lax convs), using the same MXU operand dtype."""
    dn = ("NHWC", "HWIO", "NHWC")
    hi = lax.Precision.HIGHEST
    f32 = jnp.float32
    x = jnp.transpose(x_nchw, (0, 2, 3, 1)).astype(f32)
    bn1s, bn1b = _fold_bn(params["bn1_gamma"], params["bn1_beta"],
                          params["bn1_mean"], params["bn1_var"])
    bn2s, bn2b = _fold_bn(params["bn2_gamma"], params["bn2_beta"],
                          params["bn2_mean"], params["bn2_var"])
    c1 = lax.conv_general_dilated(
        x.astype(MXU_DTYPE), params["w1"].astype(MXU_DTYPE), (1, 1),
        [(1, 1), (1, 1)], dimension_numbers=dn, precision=hi,
        preferred_element_type=f32)
    o1 = jnp.maximum(c1 * bn1s + bn1b, 0.0)
    c2 = lax.conv_general_dilated(
        o1.astype(MXU_DTYPE), params["w2"].astype(MXU_DTYPE), (1, 1),
        [(1, 1), (1, 1)], dimension_numbers=dn, precision=hi,
        preferred_element_type=f32)
    o2 = c2 * bn2s + bn2b
    avg_p = jnp.mean(o2, axis=(1, 2))
    max_p = jnp.max(o2, axis=(1, 2))

    def mlp(p):
        h = jnp.maximum(jnp.dot(p, params["fc1"], precision=hi), 0.0)
        return jnp.dot(h, params["fc2"], precision=hi)

    ca = jax.nn.sigmoid(mlp(avg_p) + mlp(max_p))
    att = 1.0 + ca[:, None, None, :] * o2
    sp_in = jnp.concatenate([jnp.mean(att, -1, keepdims=True),
                             jnp.max(att, -1, keepdims=True)], axis=-1)
    sa_w = jnp.stack([params["sa_w_avg"], params["sa_w_max"]], axis=-1)[..., None]
    sp = lax.conv_general_dilated(
        sp_in.astype(MXU_DTYPE), sa_w.astype(MXU_DTYPE), (1, 1),
        [(3, 3), (3, 3)], dimension_numbers=dn, precision=hi,
        preferred_element_type=f32)
    att = att + jax.nn.sigmoid(sp)
    out = jnp.maximum(att + x, 0.0)
    return jnp.transpose(out, (0, 3, 1, 2))


def init_params(key):
    ks = jax.random.split(key, 12)
    p = {
        "w1": 0.1 * jax.random.normal(ks[0], (KS, KS, C, C), jnp.float32),
        "w2": 0.1 * jax.random.normal(ks[1], (KS, KS, C, C), jnp.float32),
        "bn1_gamma": 1.0 + 0.1 * jax.random.normal(ks[2], (C,), jnp.float32),
        "bn1_beta": 0.1 * jax.random.normal(ks[3], (C,), jnp.float32),
        "bn1_mean": 0.1 * jax.random.normal(ks[4], (C,), jnp.float32),
        "bn1_var": jax.random.uniform(ks[5], (C,), jnp.float32, 0.5, 1.5),
        "bn2_gamma": 1.0 + 0.1 * jax.random.normal(ks[6], (C,), jnp.float32),
        "bn2_beta": 0.1 * jax.random.normal(ks[7], (C,), jnp.float32),
        "bn2_mean": 0.1 * jax.random.normal(ks[8], (C,), jnp.float32),
        "bn2_var": jax.random.uniform(ks[9], (C,), jnp.float32, 0.5, 1.5),
        "fc1": 0.2 * jax.random.normal(ks[10], (C, CR), jnp.float32),
        "fc2": 0.2 * jax.random.normal(ks[11], (CR, C), jnp.float32),
    }
    sa = 0.1 * jax.random.normal(jax.random.fold_in(key, 99), (SK, SK, 2),
                                 jnp.float32)
    p["sa_w_avg"] = sa[..., 0]   # channel 0 of cat([avg, max])
    p["sa_w_max"] = sa[..., 1]
    return p


if __name__ == "__main__":
    key = jax.random.PRNGKey(0)
    params = init_params(key)
    x = jax.random.normal(jax.random.fold_in(key, 1), (N, C, H, W), jnp.float32)

    out = jax.block_until_ready(residual_block_forward(x, params))
    ref = jax.block_until_ready(reference_forward(x, params))

    err = float(jnp.max(jnp.abs(out - ref)))
    assert out.shape == (N, C, H, W), out.shape
    # TOL = 1e-3 for the f32 MXU-operand path; 1e-2 if MXU_DTYPE is flipped to
    # bfloat16 (intermediate activations get independently re-quantized).
    assert err < TOL, f"mismatch, max abs err={err}"
    print("KERNEL_OK")
</pallas_src>

<mosaic_0001>
module attributes {stable_mosaic.version = 11 : i64} {
  func.func @residual_block_kernel(%arg0: i32, %arg1: memref<1x256x32xf32, #tpu.memory_space<vmem>>, %arg2: memref<3x96x32xf32, #tpu.memory_space<vmem>>, %arg3: memref<1x32xf32, #tpu.memory_space<vmem>>, %arg4: memref<1x32xf32, #tpu.memory_space<vmem>>, %arg5: memref<3x96x32xf32, #tpu.memory_space<vmem>>, %arg6: memref<1x32xf32, #tpu.memory_space<vmem>>, %arg7: memref<1x32xf32, #tpu.memory_space<vmem>>, %arg8: memref<2x32xf32, #tpu.memory_space<vmem>>, %arg9: memref<2x32xf32, #tpu.memory_space<vmem>>, %arg10: memref<224x16xf32, #tpu.memory_space<vmem>>, %arg11: memref<1x16x512xf32, #tpu.memory_space<vmem>>) attributes {dimension_semantics = [#tpu.dimension_semantics<parallel>], iteration_bounds = array<i64: 2>, scalar_prefetch = 0 : i64, scratch_operands = 0 : i64, tpu.core_type = #tpu.core_type<tc>, window_params = [{transform_indices = @transform_0, window_bounds = array<i64: 1, 256, 32>}, {pipeline_mode = #tpu.pipeline_mode<synchronous>, transform_indices = @transform_1, window_bounds = array<i64: 3, 96, 32>}, {pipeline_mode = #tpu.pipeline_mode<synchronous>, transform_indices = @transform_2, window_bounds = array<i64: 1, 32>}, {pipeline_mode = #tpu.pipeline_mode<synchronous>, transform_indices = @transform_3, window_bounds = array<i64: 1, 32>}, {pipeline_mode = #tpu.pipeline_mode<synchronous>, transform_indices = @transform_4, window_bounds = array<i64: 3, 96, 32>}, {pipeline_mode = #tpu.pipeline_mode<synchronous>, transform_indices = @transform_5, window_bounds = array<i64: 1, 32>}, {pipeline_mode = #tpu.pipeline_mode<synchronous>, transform_indices = @transform_6, window_bounds = array<i64: 1, 32>}, {pipeline_mode = #tpu.pipeline_mode<synchronous>, transform_indices = @transform_7, window_bounds = array<i64: 2, 32>}, {pipeline_mode = #tpu.pipeline_mode<synchronous>, transform_indices = @transform_8, window_bounds = array<i64: 2, 32>}, {pipeline_mode = #tpu.pipeline_mode<synchronous>, transform_indices = @transform_9, window_bounds = array<i64: 224, 16>}, {transform_indices = @transform_10, window_bounds = array<i64: 1, 16, 512>}]} {
    %c0 = arith.constant 0 : index
    %c0_0 = arith.constant 0 : index
    %c0_1 = arith.constant 0 : index
    %0 = vector.load %arg1[%c0, %c0_0, %c0_1] : memref<1x256x32xf32, #tpu.memory_space<vmem>>, vector<1x256x32xf32>
    %1 = vector.shape_cast %0 : vector<1x256x32xf32> to vector<256x32xf32>
    %2 = tpu.iota {dimensions = array<i32: 0>} : vector<256x1xi32>
    %3 = tpu.iota {dimensions = array<i32: 0>} : vector<16x1xi32>
    %4 = tpu.iota {dimensions = array<i32: 0>} : vector<256x1xi32>
    %c16_i32 = arith.constant 16 : i32
    %c0_i32 = arith.constant 0 : i32
    %5 = arith.cmpi eq, %c16_i32, %c0_i32 : i32
    %c1_i32 = arith.constant 1 : i32
    %6 = arith.select %5, %c1_i32, %c16_i32 : i32
    %7 = vector.broadcast %6 : i32 to vector<256x1xi32>
    %8 = arith.remsi %4, %7 : vector<256x1xi32>
    %c0_i32_2 = arith.constant 0 : i32
    %9 = vector.broadcast %c0_i32_2 : i32 to vector<256x1xi32>
    %10 = arith.cmpi ne, %8, %9 : vector<256x1xi32>
    %c0_i32_3 = arith.constant 0 : i32
    %11 = vector.broadcast %c0_i32_3 : i32 to vector<256x1xi32>
    %12 = arith.cmpi slt, %8, %11 : vector<256x1xi32>
    %c0_i32_4 = arith.constant 0 : i32
    %13 = arith.cmpi slt, %6, %c0_i32_4 : i32
    %14 = vector.broadcast %13 : i1 to vector<256x1xi1>
    %15 = vector.broadcast %14 : vector<256x1xi1> to vector<256x1xi1>
    %16 = arith.xori %12, %15 : vector<256x1xi1>
    %17 = arith.andi %16, %10 : vector<256x1xi1>
    %18 = vector.broadcast %6 : i32 to vector<256x1xi32>
    %19 = arith.addi %8, %18 : vector<256x1xi32>
    %20 = arith.select %17, %19, %8 : vector<256x1xi1>, vector<256x1xi32>
    %c0_i32_5 = arith.constant 0 : i32
    %21 = vector.broadcast %c0_i32_5 : i32 to vector<256x1xi32>
    %22 = arith.cmpi ne, %20, %21 : vector<256x1xi32>
    %23 = arith.extui %22 : vector<256x1xi1> to vector<256x1xi32>
    %24 = arith.sitofp %23 : vector<256x1xi32> to vector<256x1xf32>
    %c15_i32 = arith.constant 15 : i32
    %25 = vector.broadcast %c15_i32 : i32 to vector<256x1xi32>
    %26 = arith.cmpi ne, %20, %25 : vector<256x1xi32>
    %27 = arith.extui %26 : vector<256x1xi1> to vector<256x1xi32>
    %28 = arith.sitofp %27 : vector<256x1xi32> to vector<256x1xf32>
    %c1_i32_6 = arith.constant 1 : i32
    %29 = tpu.dynamic_rotate %1 by %c1_i32_6 dim 0 : vector<256x32xf32>, i32 -> vector<256x32xf32>
    %c1_i32_7 = arith.constant 1 : i32
    %30 = vector.broadcast %c1_i32_7 : i32 to vector<256x1xi32>
    %31 = arith.cmpi sge, %2, %30 : vector<256x1xi32>
    %32 = arith.extui %31 : vector<256x1xi1> to vector<256x1xi32>
    %33 = arith.sitofp %32 : vector<256x1xi32> to vector<256x1xf32>
    %34 = vector.broadcast %33 : vector<256x1xf32> to vector<256x32xf32>
    %35 = arith.mulf %29, %34 : vector<256x32xf32>
    %36 = vector.broadcast %24 : vector<256x1xf32> to vector<256x32xf32>
    %37 = arith.mulf %35, %36 : vector<256x32xf32>
    %c255_i32 = arith.constant 255 : i32
    %38 = tpu.dynamic_rotate %1 by %c255_i32 dim 0 : vector<256x32xf32>, i32 -> vector<256x32xf32>
    %c255_i32_8 = arith.constant 255 : i32
    %39 = vector.broadcast %c255_i32_8 : i32 to vector<256x1xi32>
    %40 = arith.cmpi slt, %2, %39 : vector<256x1xi32>
    %41 = arith.extui %40 : vector<256x1xi1> to vector<256x1xi32>
    %42 = arith.sitofp %41 : vector<256x1xi32> to vector<256x1xf32>
    %43 = vector.broadcast %42 : vector<256x1xf32> to vector<256x32xf32>
    %44 = arith.mulf %38, %43 : vector<256x32xf32>
    %45 = vector.broadcast %28 : vector<256x1xf32> to vector<256x32xf32>
    %46 = arith.mulf %44, %45 : vector<256x32xf32>
    %47 = tpu.concatenate %37, %1, %46 in 1 : vector<256x32xf32>, vector<256x32xf32>, vector<256x32xf32> -> vector<256x96xf32>
    %c0_9 = arith.constant 0 : index
    %c0_10 = arith.constant 0 : index
    %c0_11 = arith.constant 0 : index
    %48 = vector.load %arg2[%c0_9, %c0_10, %c0_11] : memref<3x96x32xf32, #tpu.memory_space<vmem>>, vector<1x96x32xf32>
    %49 = vector.shape_cast %48 : vector<1x96x32xf32> to vector<96x32xf32>
    %cst = arith.constant dense<0.000000e+00> : vector<256x32xf32>
    %50 = tpu.matmul %47, %49, %cst {dimension_numbers = #tpu.dot_dimension_numbers<[1], [0], [0], [1], [0, 0, 1, 1], [], []>} : vector<256x96xf32>, vector<96x32xf32>, vector<256x32xf32> -> vector<256x32xf32>
    %c1 = arith.constant 1 : index
    %c0_12 = arith.constant 0 : index
    %c0_13 = arith.constant 0 : index
    %51 = vector.load %arg2[%c1, %c0_12, %c0_13] : memref<3x96x32xf32, #tpu.memory_space<vmem>>, vector<1x96x32xf32>
    %52 = vector.shape_cast %51 : vector<1x96x32xf32> to vector<96x32xf32>
    %cst_14 = arith.constant dense<0.000000e+00> : vector<256x32xf32>
    %53 = tpu.matmul %47, %52, %cst_14 {dimension_numbers = #tpu.dot_dimension_numbers<[1], [0], [0], [1], [0, 0, 1, 1], [], []>} : vector<256x96xf32>, vector<96x32xf32>, vector<256x32xf32> -> vector<256x32xf32>
    %c2 = arith.constant 2 : index
    %c0_15 = arith.constant 0 : index
    %c0_16 = arith.constant 0 : index
    %54 = vector.load %arg2[%c2, %c0_15, %c0_16] : memref<3x96x32xf32, #tpu.memory_space<vmem>>, vector<1x96x32xf32>
    %55 = vector.shape_cast %54 : vector<1x96x32xf32> to vector<96x32xf32>
    %cst_17 = arith.constant dense<0.000000e+00> : vector<256x32xf32>
    %56 = tpu.matmul %47, %55, %cst_17 {dimension_numbers = #tpu.dot_dimension_numbers<[1], [0], [0], [1], [0, 0, 1, 1], [], []>} : vector<256x96xf32>, vector<96x32xf32>, vector<256x32xf32> -> vector<256x32xf32>
    %c16_i32_18 = arith.constant 16 : i32
    %57 = tpu.dynamic_rotate %50 by %c16_i32_18 dim 0 : vector<256x32xf32>, i32 -> vector<256x32xf32>
    %c16_i32_19 = arith.constant 16 : i32
    %58 = vector.broadcast %c16_i32_19 : i32 to vector<256x1xi32>
    %59 = arith.cmpi sge, %2, %58 : vector<256x1xi32>
    %60 = arith.extui %59 : vector<256x1xi1> to vector<256x1xi32>
    %61 = arith.sitofp %60 : vector<256x1xi32> to vector<256x1xf32>
    %62 = vector.broadcast %61 : vector<256x1xf32> to vector<256x32xf32>
    %63 = arith.mulf %57, %62 : vector<256x32xf32>
    %64 = arith.addf %63, %53 : vector<256x32xf32>
    %c240_i32 = arith.constant 240 : i32
    %65 = tpu.dynamic_rotate %56 by %c240_i32 dim 0 : vector<256x32xf32>, i32 -> vector<256x32xf32>
    %c240_i32_20 = arith.constant 240 : i32
    %66 = vector.broadcast %c240_i32_20 : i32 to vector<256x1xi32>
    %67 = arith.cmpi slt, %2, %66 : vector<256x1xi32>
    %68 = arith.extui %67 : vector<256x1xi1> to vector<256x1xi32>
    %69 = arith.sitofp %68 : vector<256x1xi32> to vector<256x1xf32>
    %70 = vector.broadcast %69 : vector<256x1xf32> to vector<256x32xf32>
    %71 = arith.mulf %65, %70 : vector<256x32xf32>
    %72 = arith.addf %64, %71 : vector<256x32xf32>
    %c0_21 = arith.constant 0 : index
    %c0_22 = arith.constant 0 : index
    %73 = vector.load %arg3[%c0_21, %c0_22] : memref<1x32xf32, #tpu.memory_space<vmem>>, vector<1x32xf32>
    %74 = vector.broadcast %73 : vector<1x32xf32> to vector<256x32xf32>
    %75 = arith.mulf %72, %74 : vector<256x32xf32>
    %c0_23 = arith.constant 0 : index
    %c0_24 = arith.constant 0 : index
    %76 = vector.load %arg4[%c0_23, %c0_24] : memref<1x32xf32, #tpu.memory_space<vmem>>, vector<1x32xf32>
    %77 = vector.broadcast %76 : vector<1x32xf32> to vector<256x32xf32>
    %78 = arith.addf %75, %77 : vector<256x32xf32>
    %cst_25 = arith.constant 0.000000e+00 : f32
    %79 = vector.broadcast %cst_25 : f32 to vector<256x32xf32>
    %80 = arith.maximumf %78, %79 : vector<256x32xf32>
    %c1_i32_26 = arith.constant 1 : i32
    %81 = tpu.dynamic_rotate %80 by %c1_i32_26 dim 0 : vector<256x32xf32>, i32 -> vector<256x32xf32>
    %c1_i32_27 = arith.constant 1 : i32
    %82 = vector.broadcast %c1_i32_27 : i32 to vector<256x1xi32>
    %83 = arith.cmpi sge, %2, %82 : vector<256x1xi32>
    %84 = arith.extui %83 : vector<256x1xi1> to vector<256x1xi32>
    %85 = arith.sitofp %84 : vector<256x1xi32> to vector<256x1xf32>
    %86 = vector.broadcast %85 : vector<256x1xf32> to vector<256x32xf32>
    %87 = arith.mulf %81, %86 : vector<256x32xf32>
    %88 = vector.broadcast %24 : vector<256x1xf32> to vector<256x32xf32>
    %89 = arith.mulf %87, %88 : vector<256x32xf32>
    %c255_i32_28 = arith.constant 255 : i32
    %90 = tpu.dynamic_rotate %80 by %c255_i32_28 dim 0 : vector<256x32xf32>, i32 -> vector<256x32xf32>
    %c255_i32_29 = arith.constant 255 : i32
    %91 = vector.broadcast %c255_i32_29 : i32 to vector<256x1xi32>
    %92 = arith.cmpi slt, %2, %91 : vector<256x1xi32>
    %93 = arith.extui %92 : vector<256x1xi1> to vector<256x1xi32>
    %94 = arith.sitofp %93 : vector<256x1xi32> to vector<256x1xf32>
    %95 = vector.broadcast %94 : vector<256x1xf32> to vector<256x32xf32>
    %96 = arith.mulf %90, %95 : vector<256x32xf32>
    %97 = vector.broadcast %28 : vector<256x1xf32> to vector<256x32xf32>
    %98 = arith.mulf %96, %97 : vector<256x32xf32>
    %99 = tpu.concatenate %89, %80, %98 in 1 : vector<256x32xf32>, vector<256x32xf32>, vector<256x32xf32> -> vector<256x96xf32>
    %c0_30 = arith.constant 0 : index
    %c0_31 = arith.constant 0 : index
    %c0_32 = arith.constant 0 : index
    %100 = vector.load %arg5[%c0_30, %c0_31, %c0_32] : memref<3x96x32xf32, #tpu.memory_space<vmem>>, vector<1x96x32xf32>
    %101 = vector.shape_cast %100 : vector<1x96x32xf32> to vector<96x32xf32>
    %cst_33 = arith.constant dense<0.000000e+00> : vector<256x32xf32>
    %102 = tpu.matmul %99, %101, %cst_33 {dimension_numbers = #tpu.dot_dimension_numbers<[1], [0], [0], [1], [0, 0, 1, 1], [], []>} : vector<256x96xf32>, vector<96x32xf32>, vector<256x32xf32> -> vector<256x32xf32>
    %c1_34 = arith.constant 1 : index
    %c0_35 = arith.constant 0 : index
    %c0_36 = arith.constant 0 : index
    %103 = vector.load %arg5[%c1_34, %c0_35, %c0_36] : memref<3x96x32xf32, #tpu.memory_space<vmem>>, vector<1x96x32xf32>
    %104 = vector.shape_cast %103 : vector<1x96x32xf32> to vector<96x32xf32>
    %cst_37 = arith.constant dense<0.000000e+00> : vector<256x32xf32>
    %105 = tpu.matmul %99, %104, %cst_37 {dimension_numbers = #tpu.dot_dimension_numbers<[1], [0], [0], [1], [0, 0, 1, 1], [], []>} : vector<256x96xf32>, vector<96x32xf32>, vector<256x32xf32> -> vector<256x32xf32>
    %c2_38 = arith.constant 2 : index
    %c0_39 = arith.constant 0 : index
    %c0_40 = arith.constant 0 : index
    %106 = vector.load %arg5[%c2_38, %c0_39, %c0_40] : memref<3x96x32xf32, #tpu.memory_space<vmem>>, vector<1x96x32xf32>
    %107 = vector.shape_cast %106 : vector<1x96x32xf32> to vector<96x32xf32>
    %cst_41 = arith.constant dense<0.000000e+00> : vector<256x32xf32>
    %108 = tpu.matmul %99, %107, %cst_41 {dimension_numbers = #tpu.dot_dimension_numbers<[1], [0], [0], [1], [0, 0, 1, 1], [], []>} : vector<256x96xf32>, vector<96x32xf32>, vector<256x32xf32> -> vector<256x32xf32>
    %c16_i32_42 = arith.constant 16 : i32
    %109 = tpu.dynamic_rotate %102 by %c16_i32_42 dim 0 : vector<256x32xf32>, i32 -> vector<256x32xf32>
    %c16_i32_43 = arith.constant 16 : i32
    %110 = vector.broadcast %c16_i32_43 : i32 to vector<256x1xi32>
    %111 = arith.cmpi sge, %2, %110 : vector<256x1xi32>
    %112 = arith.extui %111 : vector<256x1xi1> to vector<256x1xi32>
    %113 = arith.sitofp %112 : vector<256x1xi32> to vector<256x1xf32>
    %114 = vector.broadcast %113 : vector<256x1xf32> to vector<256x32xf32>
    %115 = arith.mulf %109, %114 : vector<256x32xf32>
    %116 = arith.addf %115, %105 : vector<256x32xf32>
    %c240_i32_44 = arith.constant 240 : i32
    %117 = tpu.dynamic_rotate %108 by %c240_i32_44 dim 0 : vector<256x32xf32>, i32 -> vector<256x32xf32>
    %c240_i32_45 = arith.constant 240 : i32
    %118 = vector.broadcast %c240_i32_45 : i32 to vector<256x1xi32>
    %119 = arith.cmpi slt, %2, %118 : vector<256x1xi32>
    %120 = arith.extui %119 : vector<256x1xi1> to vector<256x1xi32>
    %121 = arith.sitofp %120 : vector<256x1xi32> to vector<256x1xf32>
    %122 = vector.broadcast %121 : vector<256x1xf32> to vector<256x32xf32>
    %123 = arith.mulf %117, %122 : vector<256x32xf32>
    %124 = arith.addf %116, %123 : vector<256x32xf32>
    %c0_46 = arith.constant 0 : index
    %c0_47 = arith.constant 0 : index
    %125 = vector.load %arg6[%c0_46, %c0_47] : memref<1x32xf32, #tpu.memory_space<vmem>>, vector<1x32xf32>
    %126 = vector.broadcast %125 : vector<1x32xf32> to vector<256x32xf32>
    %127 = arith.mulf %124, %126 : vector<256x32xf32>
    %c0_48 = arith.constant 0 : index
    %c0_49 = arith.constant 0 : index
    %128 = vector.load %arg7[%c0_48, %c0_49] : memref<1x32xf32, #tpu.memory_space<vmem>>, vector<1x32xf32>
    %129 = vector.broadcast %128 : vector<1x32xf32> to vector<256x32xf32>
    %130 = arith.addf %127, %129 : vector<256x32xf32>
    %cst_50 = arith.constant dense<0.000000e+00> : vector<32xf32>
    %131 = vector.multi_reduction <add>, %130, %cst_50 [0] : vector<256x32xf32> to vector<32xf32>
    %132 = vector.shape_cast %131 : vector<32xf32> to vector<1x32xf32>
    %cst_51 = arith.constant 2.560000e+02 : f32
    %133 = vector.broadcast %cst_51 : f32 to vector<1x32xf32>
    %134 = arith.divf %132, %133 : vector<1x32xf32>
    %cst_52 = arith.constant dense<0xFF800000> : vector<32xf32>
    %135 = vector.multi_reduction <maximumf>, %130, %cst_52 [0] : vector<256x32xf32> to vector<32xf32>
    %136 = vector.shape_cast %135 : vector<32xf32> to vector<1x32xf32>
    %c0_53 = arith.constant 0 : index
    %c0_54 = arith.constant 0 : index
    %137 = vector.load %arg8[%c0_53, %c0_54] : memref<2x32xf32, #tpu.memory_space<vmem>>, vector<2x32xf32>
    %138 = vector.broadcast %134 : vector<1x32xf32> to vector<2x32xf32>
    %139 = arith.mulf %138, %137 : vector<2x32xf32>
    %cst_55 = arith.constant dense<0.000000e+00> : vector<2xf32>
    %140 = vector.multi_reduction <add>, %139, %cst_55 [1] : vector<2x32xf32> to vector<2xf32>
    %141 = vector.shape_cast %140 : vector<2xf32> to vector<2x1xf32>
    %cst_56 = arith.constant 0.000000e+00 : f32
    %142 = vector.broadcast %cst_56 : f32 to vector<2x1xf32>
    %143 = arith.maximumf %141, %142 : vector<2x1xf32>
    %c0_57 = arith.constant 0 : index
    %c0_58 = arith.constant 0 : index
    %144 = vector.load %arg9[%c0_57, %c0_58] : memref<2x32xf32, #tpu.memory_space<vmem>>, vector<2x32xf32>
    %145 = vector.broadcast %143 : vector<2x1xf32> to vector<2x32xf32>
    %146 = arith.mulf %145, %144 : vector<2x32xf32>
    %cst_59 = arith.constant dense<0.000000e+00> : vector<32xf32>
    %147 = vector.multi_reduction <add>, %146, %cst_59 [0] : vector<2x32xf32> to vector<32xf32>
    %148 = vector.shape_cast %147 : vector<32xf32> to vector<1x32xf32>
    %c0_60 = arith.constant 0 : index
    %c0_61 = arith.constant 0 : index
    %149 = vector.load %arg8[%c0_60, %c0_61] : memref<2x32xf32, #tpu.memory_space<vmem>>, vector<2x32xf32>
    %150 = vector.broadcast %136 : vector<1x32xf32> to vector<2x32xf32>
    %151 = arith.mulf %150, %149 : vector<2x32xf32>
    %cst_62 = arith.constant dense<0.000000e+00> : vector<2xf32>
    %152 = vector.multi_reduction <add>, %151, %cst_62 [1] : vector<2x32xf32> to vector<2xf32>
    %153 = vector.shape_cast %152 : vector<2xf32> to vector<2x1xf32>
    %cst_63 = arith.constant 0.000000e+00 : f32
    %154 = vector.broadcast %cst_63 : f32 to vector<2x1xf32>
    %155 = arith.maximumf %153, %154 : vector<2x1xf32>
    %c0_64 = arith.constant 0 : index
    %c0_65 = arith.constant 0 : index
    %156 = vector.load %arg9[%c0_64, %c0_65] : memref<2x32xf32, #tpu.memory_space<vmem>>, vector<2x32xf32>
    %157 = vector.broadcast %155 : vector<2x1xf32> to vector<2x32xf32>
    %158 = arith.mulf %157, %156 : vector<2x32xf32>
    %cst_66 = arith.constant dense<0.000000e+00> : vector<32xf32>
    %159 = vector.multi_reduction <add>, %158, %cst_66 [0] : vector<2x32xf32> to vector<32xf32>
    %160 = vector.shape_cast %159 : vector<32xf32> to vector<1x32xf32>
    %161 = arith.addf %148, %160 : vector<1x32xf32>
    %162 = arith.negf %161 : vector<1x32xf32>
    %163 = math.exp %162 : vector<1x32xf32>
    %cst_67 = arith.constant 1.000000e+00 : f32
    %164 = vector.broadcast %cst_67 : f32 to vector<1x32xf32>
    %165 = arith.addf %164, %163 : vector<1x32xf32>
    %166 = arith.divf %164, %165 : vector<1x32xf32>
    %167 = vector.broadcast %166 : vector<1x32xf32> to vector<256x32xf32>
    %168 = arith.mulf %167, %130 : vector<256x32xf32>
    %169 = vector.shape_cast %168 : vector<256x32xf32> to vector<16x16x32xf32>
    %cst_68 = arith.constant dense<0.000000e+00> : vector<16x16xf32>
    %170 = vector.multi_reduction <add>, %169, %cst_68 [2] : vector<16x16x32xf32> to vector<16x16xf32>
    %cst_69 = arith.constant 3.200000e+01 : f32
    %171 = vector.broadcast %cst_69 : f32 to vector<16x16xf32>
    %172 = arith.divf %170, %171 : vector<16x16xf32>
    %cst_70 = arith.constant 1.000000e+00 : f32
    %173 = vector.broadcast %cst_70 : f32 to vector<16x16xf32>
    %174 = arith.addf %173, %172 : vector<16x16xf32>
    %cst_71 = arith.constant dense<0xFF800000> : vector<16x16xf32>
    %175 = vector.multi_reduction <maximumf>, %169, %cst_71 [2] : vector<16x16x32xf32> to vector<16x16xf32>
    %cst_72 = arith.constant 1.000000e+00 : f32
    %176 = vector.broadcast %cst_72 : f32 to vector<16x16xf32>
    %177 = arith.addf %176, %175 : vector<16x16xf32>
    %178 = tpu.concatenate %174, %177 in 1 : vector<16x16xf32>, vector<16x16xf32> -> vector<16x32xf32>
    %c3_i32 = arith.constant 3 : i32
    %179 = tpu.dynamic_rotate %178 by %c3_i32 dim 0 : vector<16x32xf32>, i32 -> vector<16x32xf32>
    %c3_i32_73 = arith.constant 3 : i32
    %180 = vector.broadcast %c3_i32_73 : i32 to vector<16x1xi32>
    %181 = arith.cmpi sge, %3, %180 : vector<16x1xi32>
    %182 = arith.extui %181 : vector<16x1xi1> to vector<16x1xi32>
    %183 = arith.sitofp %182 : vector<16x1xi32> to vector<16x1xf32>
    %184 = vector.broadcast %183 : vector<16x1xf32> to vector<16x32xf32>
    %185 = arith.mulf %179, %184 : vector<16x32xf32>
    %c2_i32 = arith.constant 2 : i32
    %186 = tpu.dynamic_rotate %178 by %c2_i32 dim 0 : vector<16x32xf32>, i32 -> vector<16x32xf32>
    %c2_i32_74 = arith.constant 2 : i32
    %187 = vector.broadcast %c2_i32_74 : i32 to vector<16x1xi32>
    %188 = arith.cmpi sge, %3, %187 : vector<16x1xi32>
    %189 = arith.extui %188 : vector<16x1xi1> to vector<16x1xi32>
    %190 = arith.sitofp %189 : vector<16x1xi32> to vector<16x1xf32>
    %191 = vector.broadcast %190 : vector<16x1xf32> to vector<16x32xf32>
    %192 = arith.mulf %186, %191 : vector<16x32xf32>
    %c1_i32_75 = arith.constant 1 : i32
    %193 = tpu.dynamic_rotate %178 by %c1_i32_75 dim 0 : vector<16x32xf32>, i32 -> vector<16x32xf32>
    %c1_i32_76 = arith.constant 1 : i32
    %194 = vector.broadcast %c1_i32_76 : i32 to vector<16x1xi32>
    %195 = arith.cmpi sge, %3, %194 : vector<16x1xi32>
    %196 = arith.extui %195 : vector<16x1xi1> to vector<16x1xi32>
    %197 = arith.sitofp %196 : vector<16x1xi32> to vector<16x1xf32>
    %198 = vector.broadcast %197 : vector<16x1xf32> to vector<16x32xf32>
    %199 = arith.mulf %193, %198 : vector<16x32xf32>
    %c15_i32_77 = arith.constant 15 : i32
    %200 = tpu.dynamic_rotate %178 by %c15_i32_77 dim 0 : vector<16x32xf32>, i32 -> vector<16x32xf32>
    %c15_i32_78 = arith.constant 15 : i32
    %201 = vector.broadcast %c15_i32_78 : i32 to vector<16x1xi32>
    %202 = arith.cmpi slt, %3, %201 : vector<16x1xi32>
    %203 = arith.extui %202 : vector<16x1xi1> to vector<16x1xi32>
    %204 = arith.sitofp %203 : vector<16x1xi32> to vector<16x1xf32>
    %205 = vector.broadcast %204 : vector<16x1xf32> to vector<16x32xf32>
    %206 = arith.mulf %200, %205 : vector<16x32xf32>
    %c14_i32 = arith.constant 14 : i32
    %207 = tpu.dynamic_rotate %178 by %c14_i32 dim 0 : vector<16x32xf32>, i32 -> vector<16x32xf32>
    %c14_i32_79 = arith.constant 14 : i32
    %208 = vector.broadcast %c14_i32_79 : i32 to vector<16x1xi32>
    %209 = arith.cmpi slt, %3, %208 : vector<16x1xi32>
    %210 = arith.extui %209 : vector<16x1xi1> to vector<16x1xi32>
    %211 = arith.sitofp %210 : vector<16x1xi32> to vector<16x1xf32>
    %212 = vector.broadcast %211 : vector<16x1xf32> to vector<16x32xf32>
    %213 = arith.mulf %207, %212 : vector<16x32xf32>
    %c13_i32 = arith.constant 13 : i32
    %214 = tpu.dynamic_rotate %178 by %c13_i32 dim 0 : vector<16x32xf32>, i32 -> vector<16x32xf32>
    %c13_i32_80 = arith.constant 13 : i32
    %215 = vector.broadcast %c13_i32_80 : i32 to vector<16x1xi32>
    %216 = arith.cmpi slt, %3, %215 : vector<16x1xi32>
    %217 = arith.extui %216 : vector<16x1xi1> to vector<16x1xi32>
    %218 = arith.sitofp %217 : vector<16x1xi32> to vector<16x1xf32>
    %219 = vector.broadcast %218 : vector<16x1xf32> to vector<16x32xf32>
    %220 = arith.mulf %214, %219 : vector<16x32xf32>
    %221 = tpu.concatenate %185, %192, %199, %178, %206, %213, %220 in 1 : vector<16x32xf32>, vector<16x32xf32>, vector<16x32xf32>, vector<16x32xf32>, vector<16x32xf32>, vector<16x32xf32>, vector<16x32xf32> -> vector<16x224xf32>
    %c0_81 = arith.constant 0 : index
    %c0_82 = arith.constant 0 : index
    %222 = vector.load %arg10[%c0_81, %c0_82] : memref<224x16xf32, #tpu.memory_space<vmem>>, vector<224x16xf32>
    %cst_83 = arith.constant dense<0.000000e+00> : vector<16x16xf32>
    %223 = tpu.matmul %221, %222, %cst_83 {dimension_numbers = #tpu.dot_dimension_numbers<[1], [0], [0], [1], [0, 0, 1, 1], [], []>} : vector<16x224xf32>, vector<224x16xf32>, vector<16x16xf32> -> vector<16x16xf32>
    %224 = arith.negf %223 : vector<16x16xf32>
    %225 = math.exp %224 : vector<16x16xf32>
    %cst_84 = arith.constant 1.000000e+00 : f32
    %226 = vector.broadcast %cst_84 : f32 to vector<16x16xf32>
    %227 = arith.addf %226, %225 : vector<16x16xf32>
    %228 = arith.divf %226, %227 : vector<16x16xf32>
    %229 = arith.addf %168, %1 : vector<256x32xf32>
    %cst_85 = arith.constant 1.000000e+00 : f32
    %230 = vector.broadcast %cst_85 : f32 to vector<256x32xf32>
    %231 = arith.addf %229, %230 : vector<256x32xf32>
    %232 = vector.shape_cast %231 : vector<256x32xf32> to vector<16x16x32xf32>
    %233 = vector.extract_strided_slice %232 {offsets = [0, 0, 0], sizes = [16, 1, 32], strides = [1, 1, 1]} : vector<16x16x32xf32> to vector<16x1x32xf32>
    %234 = vector.shape_cast %233 : vector<16x1x32xf32> to vector<16x32xf32>
    %235 = vector.extract_strided_slice %228 {offsets = [0, 0], sizes = [16, 1], strides = [1, 1]} : vector<16x16xf32> to vector<16x1xf32>
    %236 = vector.shape_cast %235 : vector<16x1xf32> to vector<16x1xf32>
    %237 = vector.broadcast %236 : vector<16x1xf32> to vector<16x32xf32>
    %238 = arith.addf %234, %237 : vector<16x32xf32>
    %239 = vector.extract_strided_slice %232 {offsets = [0, 1, 0], sizes = [16, 1, 32], strides = [1, 1, 1]} : vector<16x16x32xf32> to vector<16x1x32xf32>
    %240 = vector.shape_cast %239 : vector<16x1x32xf32> to vector<16x32xf32>
    %241 = vector.extract_strided_slice %228 {offsets = [0, 1], sizes = [16, 1], strides = [1, 1]} : vector<16x16xf32> to vector<16x1xf32>
    %242 = vector.shape_cast %241 : vector<16x1xf32> to vector<16x1xf32>
    %243 = vector.broadcast %242 : vector<16x1xf32> to vector<16x32xf32>
    %244 = arith.addf %240, %243 : vector<16x32xf32>
    %245 = vector.extract_strided_slice %232 {offsets = [0, 2, 0], sizes = [16, 1, 32], strides = [1, 1, 1]} : vector<16x16x32xf32> to vector<16x1x32xf32>
    %246 = vector.shape_cast %245 : vector<16x1x32xf32> to vector<16x32xf32>
    %247 = vector.extract_strided_slice %228 {offsets = [0, 2], sizes = [16, 1], strides = [1, 1]} : vector<16x16xf32> to vector<16x1xf32>
    %248 = vector.shape_cast %247 : vector<16x1xf32> to vector<16x1xf32>
    %249 = vector.broadcast %248 : vector<16x1xf32> to vector<16x32xf32>
    %250 = arith.addf %246, %249 : vector<16x32xf32>
    %251 = vector.extract_strided_slice %232 {offsets = [0, 3, 0], sizes = [16, 1, 32], strides = [1, 1, 1]} : vector<16x16x32xf32> to vector<16x1x32xf32>
    %252 = vector.shape_cast %251 : vector<16x1x32xf32> to vector<16x32xf32>
    %253 = vector.extract_strided_slice %228 {offsets = [0, 3], sizes = [16, 1], strides = [1, 1]} : vector<16x16xf32> to vector<16x1xf32>
    %254 = vector.shape_cast %253 : vector<16x1xf32> to vector<16x1xf32>
    %255 = vector.broadcast %254 : vector<16x1xf32> to vector<16x32xf32>
    %256 = arith.addf %252, %255 : vector<16x32xf32>
    %257 = vector.extract_strided_slice %232 {offsets = [0, 4, 0], sizes = [16, 1, 32], strides = [1, 1, 1]} : vector<16x16x32xf32> to vector<16x1x32xf32>
    %258 = vector.shape_cast %257 : vector<16x1x32xf32> to vector<16x32xf32>
    %259 = vector.extract_strided_slice %228 {offsets = [0, 4], sizes = [16, 1], strides = [1, 1]} : vector<16x16xf32> to vector<16x1xf32>
    %260 = vector.shape_cast %259 : vector<16x1xf32> to vector<16x1xf32>
    %261 = vector.broadcast %260 : vector<16x1xf32> to vector<16x32xf32>
    %262 = arith.addf %258, %261 : vector<16x32xf32>
    %263 = vector.extract_strided_slice %232 {offsets = [0, 5, 0], sizes = [16, 1, 32], strides = [1, 1, 1]} : vector<16x16x32xf32> to vector<16x1x32xf32>
    %264 = vector.shape_cast %263 : vector<16x1x32xf32> to vector<16x32xf32>
    %265 = vector.extract_strided_slice %228 {offsets = [0, 5], sizes = [16, 1], strides = [1, 1]} : vector<16x16xf32> to vector<16x1xf32>
    %266 = vector.shape_cast %265 : vector<16x1xf32> to vector<16x1xf32>
    %267 = vector.broadcast %266 : vector<16x1xf32> to vector<16x32xf32>
    %268 = arith.addf %264, %267 : vector<16x32xf32>
    %269 = vector.extract_strided_slice %232 {offsets = [0, 6, 0], sizes = [16, 1, 32], strides = [1, 1, 1]} : vector<16x16x32xf32> to vector<16x1x32xf32>
    %270 = vector.shape_cast %269 : vector<16x1x32xf32> to vector<16x32xf32>
    %271 = vector.extract_strided_slice %228 {offsets = [0, 6], sizes = [16, 1], strides = [1, 1]} : vector<16x16xf32> to vector<16x1xf32>
    %272 = vector.shape_cast %271 : vector<16x1xf32> to vector<16x1xf32>
    %273 = vector.broadcast %272 : vector<16x1xf32> to vector<16x32xf32>
    %274 = arith.addf %270, %273 : vector<16x32xf32>
    %275 = vector.extract_strided_slice %232 {offsets = [0, 7, 0], sizes = [16, 1, 32], strides = [1, 1, 1]} : vector<16x16x32xf32> to vector<16x1x32xf32>
    %276 = vector.shape_cast %275 : vector<16x1x32xf32> to vector<16x32xf32>
    %277 = vector.extract_strided_slice %228 {offsets = [0, 7], sizes = [16, 1], strides = [1, 1]} : vector<16x16xf32> to vector<16x1xf32>
    %278 = vector.shape_cast %277 : vector<16x1xf32> to vector<16x1xf32>
    %279 = vector.broadcast %278 : vector<16x1xf32> to vector<16x32xf32>
    %280 = arith.addf %276, %279 : vector<16x32xf32>
    %281 = vector.extract_strided_slice %232 {offsets = [0, 8, 0], sizes = [16, 1, 32], strides = [1, 1, 1]} : vector<16x16x32xf32> to vector<16x1x32xf32>
    %282 = vector.shape_cast %281 : vector<16x1x32xf32> to vector<16x32xf32>
    %283 = vector.extract_strided_slice %228 {offsets = [0, 8], sizes = [16, 1], strides = [1, 1]} : vector<16x16xf32> to vector<16x1xf32>
    %284 = vector.shape_cast %283 : vector<16x1xf32> to vector<16x1xf32>
    %285 = vector.broadcast %284 : vector<16x1xf32> to vector<16x32xf32>
    %286 = arith.addf %282, %285 : vector<16x32xf32>
    %287 = vector.extract_strided_slice %232 {offsets = [0, 9, 0], sizes = [16, 1, 32], strides = [1, 1, 1]} : vector<16x16x32xf32> to vector<16x1x32xf32>
    %288 = vector.shape_cast %287 : vector<16x1x32xf32> to vector<16x32xf32>
    %289 = vector.extract_strided_slice %228 {offsets = [0, 9], sizes = [16, 1], strides = [1, 1]} : vector<16x16xf32> to vector<16x1xf32>
    %290 = vector.shape_cast %289 : vector<16x1xf32> to vector<16x1xf32>
    %291 = vector.broadcast %290 : vector<16x1xf32> to vector<16x32xf32>
    %292 = arith.addf %288, %291 : vector<16x32xf32>
    %293 = vector.extract_strided_slice %232 {offsets = [0, 10, 0], sizes = [16, 1, 32], strides = [1, 1, 1]} : vector<16x16x32xf32> to vector<16x1x32xf32>
    %294 = vector.shape_cast %293 : vector<16x1x32xf32> to vector<16x32xf32>
    %295 = vector.extract_strided_slice %228 {offsets = [0, 10], sizes = [16, 1], strides = [1, 1]} : vector<16x16xf32> to vector<16x1xf32>
    %296 = vector.shape_cast %295 : vector<16x1xf32> to vector<16x1xf32>
    %297 = vector.broadcast %296 : vector<16x1xf32> to vector<16x32xf32>
    %298 = arith.addf %294, %297 : vector<16x32xf32>
    %299 = vector.extract_strided_slice %232 {offsets = [0, 11, 0], sizes = [16, 1, 32], strides = [1, 1, 1]} : vector<16x16x32xf32> to vector<16x1x32xf32>
    %300 = vector.shape_cast %299 : vector<16x1x32xf32> to vector<16x32xf32>
    %301 = vector.extract_strided_slice %228 {offsets = [0, 11], sizes = [16, 1], strides = [1, 1]} : vector<16x16xf32> to vector<16x1xf32>
    %302 = vector.shape_cast %301 : vector<16x1xf32> to vector<16x1xf32>
    %303 = vector.broadcast %302 : vector<16x1xf32> to vector<16x32xf32>
    %304 = arith.addf %300, %303 : vector<16x32xf32>
    %305 = vector.extract_strided_slice %232 {offsets = [0, 12, 0], sizes = [16, 1, 32], strides = [1, 1, 1]} : vector<16x16x32xf32> to vector<16x1x32xf32>
    %306 = vector.shape_cast %305 : vector<16x1x32xf32> to vector<16x32xf32>
    %307 = vector.extract_strided_slice %228 {offsets = [0, 12], sizes = [16, 1], strides = [1, 1]} : vector<16x16xf32> to vector<16x1xf32>
    %308 = vector.shape_cast %307 : vector<16x1xf32> to vector<16x1xf32>
    %309 = vector.broadcast %308 : vector<16x1xf32> to vector<16x32xf32>
    %310 = arith.addf %306, %309 : vector<16x32xf32>
    %311 = vector.extract_strided_slice %232 {offsets = [0, 13, 0], sizes = [16, 1, 32], strides = [1, 1, 1]} : vector<16x16x32xf32> to vector<16x1x32xf32>
    %312 = vector.shape_cast %311 : vector<16x1x32xf32> to vector<16x32xf32>
    %313 = vector.extract_strided_slice %228 {offsets = [0, 13], sizes = [16, 1], strides = [1, 1]} : vector<16x16xf32> to vector<16x1xf32>
    %314 = vector.shape_cast %313 : vector<16x1xf32> to vector<16x1xf32>
    %315 = vector.broadcast %314 : vector<16x1xf32> to vector<16x32xf32>
    %316 = arith.addf %312, %315 : vector<16x32xf32>
    %317 = vector.extract_strided_slice %232 {offsets = [0, 14, 0], sizes = [16, 1, 32], strides = [1, 1, 1]} : vector<16x16x32xf32> to vector<16x1x32xf32>
    %318 = vector.shape_cast %317 : vector<16x1x32xf32> to vector<16x32xf32>
    %319 = vector.extract_strided_slice %228 {offsets = [0, 14], sizes = [16, 1], strides = [1, 1]} : vector<16x16xf32> to vector<16x1xf32>
    %320 = vector.shape_cast %319 : vector<16x1xf32> to vector<16x1xf32>
    %321 = vector.broadcast %320 : vector<16x1xf32> to vector<16x32xf32>
    %322 = arith.addf %318, %321 : vector<16x32xf32>
    %323 = vector.extract_strided_slice %232 {offsets = [0, 15, 0], sizes = [16, 1, 32], strides = [1, 1, 1]} : vector<16x16x32xf32> to vector<16x1x32xf32>
    %324 = vector.shape_cast %323 : vector<16x1x32xf32> to vector<16x32xf32>
    %325 = vector.extract_strided_slice %228 {offsets = [0, 15], sizes = [16, 1], strides = [1, 1]} : vector<16x16xf32> to vector<16x1xf32>
    %326 = vector.shape_cast %325 : vector<16x1xf32> to vector<16x1xf32>
    %327 = vector.broadcast %326 : vector<16x1xf32> to vector<16x32xf32>
    %328 = arith.addf %324, %327 : vector<16x32xf32>
    %329 = tpu.concatenate %238, %244, %250, %256, %262, %268, %274, %280, %286, %292, %298, %304, %310, %316, %322, %328 in 1 : vector<16x32xf32>, vector<16x32xf32>, vector<16x32xf32>, vector<16x32xf32>, vector<16x32xf32>, vector<16x32xf32>, vector<16x32xf32>, vector<16x32xf32>, vector<16x32xf32>, vector<16x32xf32>, vector<16x32xf32>, vector<16x32xf32>, vector<16x32xf32>, vector<16x32xf32>, vector<16x32xf32>, vector<16x32xf32> -> vector<16x512xf32>
    %cst_86 = arith.constant 0.000000e+00 : f32
    %330 = vector.broadcast %cst_86 : f32 to vector<16x512xf32>
    %331 = arith.maximumf %329, %330 : vector<16x512xf32>
    %c0_87 = arith.constant 0 : index
    %c0_88 = arith.constant 0 : index
    %c0_89 = arith.constant 0 : index
    %332 = vector.load %arg11[%c0_87, %c0_88, %c0_89] : memref<1x16x512xf32, #tpu.memory_space<vmem>>, vector<1x16x512xf32>
    %333 = vector.shape_cast %332 : vector<1x16x512xf32> to vector<16x512xf32>
    %334 = vector.shape_cast %331 : vector<16x512xf32> to vector<1x16x512xf32>
    tpu.vector_store %arg11[%c0_87, %c0_88, %c0_89], %334 {strides = array<i32>} : memref<1x16x512xf32, #tpu.memory_space<vmem>>, vector<1x16x512xf32>,
    return
  }
  func.func @transform_0(%arg0: i32) -> (i32, i32, i32) {
    %c0_i32 = arith.constant 0 : i32
    %c0_i32_0 = arith.constant 0 : i32
    %c0_i32_1 = arith.constant 0 : i32
    return %arg0, %c0_i32, %c0_i32_0 : i32, i32, i32
  }
  func.func @transform_1(%arg0: i32) -> (i32, i32, i32) {
    %c0_i32 = arith.constant 0 : i32
    %c0_i32_0 = arith.constant 0 : i32
    %c0_i32_1 = arith.constant 0 : i32
    %c0_i32_2 = arith.constant 0 : i32
    return %c0_i32, %c0_i32_0, %c0_i32_1 : i32, i32, i32
  }
  func.func @transform_2(%arg0: i32) -> (i32, i32) {
    %c0_i32 = arith.constant 0 : i32
    %c0_i32_0 = arith.constant 0 : i32
    %c0_i32_1 = arith.constant 0 : i32
    return %c0_i32, %c0_i32_0 : i32, i32
  }
  func.func @transform_3(%arg0: i32) -> (i32, i32) {
    %c0_i32 = arith.constant 0 : i32
    %c0_i32_0 = arith.constant 0 : i32
    %c0_i32_1 = arith.constant 0 : i32
    return %c0_i32, %c0_i32_0 : i32, i32
  }
  func.func @transform_4(%arg0: i32) -> (i32, i32, i32) {
    %c0_i32 = arith.constant 0 : i32
    %c0_i32_0 = arith.constant 0 : i32
    %c0_i32_1 = arith.constant 0 : i32
    %c0_i32_2 = arith.constant 0 : i32
    return %c0_i32, %c0_i32_0, %c0_i32_1 : i32, i32, i32
  }
  func.func @transform_5(%arg0: i32) -> (i32, i32) {
    %c0_i32 = arith.constant 0 : i32
    %c0_i32_0 = arith.constant 0 : i32
    %c0_i32_1 = arith.constant 0 : i32
    return %c0_i32, %c0_i32_0 : i32, i32
  }
  func.func @transform_6(%arg0: i32) -> (i32, i32) {
    %c0_i32 = arith.constant 0 : i32
    %c0_i32_0 = arith.constant 0 : i32
    %c0_i32_1 = arith.constant 0 : i32
    return %c0_i32, %c0_i32_0 : i32, i32
  }
  func.func @transform_7(%arg0: i32) -> (i32, i32) {
    %c0_i32 = arith.constant 0 : i32
    %c0_i32_0 = arith.constant 0 : i32
    %c0_i32_1 = arith.constant 0 : i32
    return %c0_i32, %c0_i32_0 : i32, i32
  }
  func.func @transform_8(%arg0: i32) -> (i32, i32) {
    %c0_i32 = arith.constant 0 : i32
    %c0_i32_0 = arith.constant 0 : i32
    %c0_i32_1 = arith.constant 0 : i32
    return %c0_i32, %c0_i32_0 : i32, i32
  }
  func.func @transform_9(%arg0: i32) -> (i32, i32) {
    %c0_i32 = arith.constant 0 : i32
    %c0_i32_0 = arith.constant 0 : i32
    %c0_i32_1 = arith.constant 0 : i32
    return %c0_i32, %c0_i32_0 : i32, i32
  }
  func.func @transform_10(%arg0: i32) -> (i32, i32, i32) {
    %c0_i32 = arith.constant 0 : i32
    %c0_i32_0 = arith.constant 0 : i32
    %c0_i32_1 = arith.constant 0 : i32
    return %arg0, %c0_i32, %c0_i32_0 : i32, i32, i32
  }
}

</mosaic_0001>

<llo_original>
// kernel: residual_block_forward.1
$region0: #{residual_block_forward.1}
  #allocation0 [shape = 'u32[]', space=smem, size = 0x4, offset = 0x4, fixed_abs, tag = 'smem constant byte address 0x4 - core index']
  #allocation1 [shape = 'u32[144,128]{1,0:T(1,128)}', space=vmem, size = 0x12000, scoped, tag = 'internal scratch']
  %s0 = inlined_call_operand.vmem [shape: f32[2,256,32], index: 0, kind: input, shape index: {}]
  %s1 = inlined_call_operand.vmem [shape: f32[3,96,32], index: 1, kind: input, shape index: {}]
  %s2 = inlined_call_operand.vmem [shape: f32[1,32], index: 2, kind: input, shape index: {}]
  %s3 = inlined_call_operand.vmem [shape: f32[1,32], index: 3, kind: input, shape index: {}]
  %s4 = inlined_call_operand.vmem [shape: f32[3,96,32], index: 4, kind: input, shape index: {}]
  %s5 = inlined_call_operand.vmem [shape: f32[1,32], index: 5, kind: input, shape index: {}]
  %s6 = inlined_call_operand.vmem [shape: f32[1,32], index: 6, kind: input, shape index: {}]
  %s7 = inlined_call_operand.vmem [shape: f32[2,32], index: 7, kind: input, shape index: {}]
  %s8 = inlined_call_operand.vmem [shape: f32[2,32], index: 8, kind: input, shape index: {}]
  %s9 = inlined_call_operand.vmem [shape: f32[224,16], index: 9, kind: input, shape index: {}]
  %s10 = inlined_call_operand.vmem [shape: f32[2,16,512], index: 10, kind: output, shape index: {}]
  %s11 = sld [smem:[#allocation0]]
  $region73: #{residual_block_forward.1} parent=0
    _
  %s13 = ssub.s32 1, %s11
  %s14 = scalar_select 0, %s13, %s11
  loop: start=0, step=1, limit=4
  $region2: #{residual_block_forward.1} parent=0 // loop_pre_header
    _
  $region3: #{residual_block_forward.1} parent=0 // loop_header
    %s16 = sphi 0, %s20
    %p17 = scmp.ge.s32.totalorder %s16, 4
    %s26 = sphi 0, %s28
    %s29 = sphi 0, %s26
    %s30 = sphi 0, %s29
    %s46 = sphi 0, %s30
    %s50 = sphi 0, %s50
    %s52 = sphi 0, %s50
    %s53 = sphi 0, %s52
    %s67 = sphi 0, %s53
    %s71 = sphi 0, %s71
    %s73 = sphi 0, %s71
    %s74 = sphi 0, %s73
    %s88 = sphi 0, %s74
    %s92 = sphi 0, %s92
    %s94 = sphi 0, %s92
    %s95 = sphi 0, %s94
    %s109 = sphi 0, %s95
    %s113 = sphi 0, %s113
    %s115 = sphi 0, %s113
    %s116 = sphi 0, %s115
    %s130 = sphi 0, %s116
    %s134 = sphi 0, %s134
    %s136 = sphi 0, %s134
    %s137 = sphi 0, %s136
    %s151 = sphi 0, %s137
    %s155 = sphi 0, %s155
    %s157 = sphi 0, %s155
    %s158 = sphi 0, %s157
    %s172 = sphi 0, %s158
    %s176 = sphi 0, %s176
    %s178 = sphi 0, %s176
    %s179 = sphi 0, %s178
    %s193 = sphi 0, %s179
    %s197 = sphi 0, %s197
    %s199 = sphi 0, %s197
    %s200 = sphi 0, %s199
    %s214 = sphi 0, %s200
    %s218 = sphi 0, %s218
    %s220 = sphi 0, %s218
    %s221 = sphi 0, %s220
    %s235 = sphi 0, %s221
    %s241 = sphi 0, %s243
    %s244 = sphi 0, %s241
    %s245 = sphi 0, %s244
    %s261 = sphi 0, %s245
  $region4: #{residual_block_forward.1} parent=0 // loop_header_branch
    %19 = sbr.rel (%p17) target = $region8
  $region5: #{residual_block_forward.1} parent=0 // loop_body
    %s21 = ssub.s32 %s16, 1
    %s22 = ssub.s32 %s16, 2
    %s23 = sadd.s32 %s16, 1
    %s24 = ssub.s32 %s16, %s23
    %p25 = scmp.eq.s32.totalorder %s24, 0
    %s27 = sadd.s32 %s26, 1
    %s28 = scalar_select %p25, %s26, %s27
    %p31 = pneg %p25
    %p32 = scmp.eq.s32.totalorder %s16, 1
    %p33 = por %p31, %p32
    %p34 = scmp.ne.s32.totalorder %s26, %s29
    %p35 = scmp.eq.s32.totalorder %s16, 0
    %p36 = por %p34, %p35
    %p37 = scmp.ne.s32.totalorder %s26, %s29
    %p38 = scmp.eq.s32.totalorder %s21, 1
    %p39 = por %p37, %p38
    %p40 = scmp.ne.s32.totalorder %s29, %s30
    %p41 = scmp.eq.s32.totalorder %s21, 0
    %p42 = por %p40, %p41
    %p43 = scmp.ne.s32.totalorder %s29, %s30
    %p44 = scmp.eq.s32.totalorder %s22, 1
    %p45 = por %p43, %p44
    %p47 = scmp.ne.s32.totalorder %s30, %s46
    %p48 = scmp.eq.s32.totalorder %s22, 0
    %p49 = por %p47, %p48
    %s51 = sadd.s32 %s50, 1
    %p54 = scmp.eq.s32.totalorder %s16, 1
    %p55 = scmp.ne.s32.totalorder %s50, %s52
    %p56 = scmp.eq.s32.totalorder %s16, 0
    %p57 = por %p55, %p56
    %p58 = scmp.ne.s32.totalorder %s50, %s52
    %p59 = scmp.eq.s32.totalorder %s21, 1
    %p60 = por %p58, %p59
    %p61 = scmp.ne.s32.totalorder %s52, %s53
    %p62 = scmp.eq.s32.totalorder %s21, 0
    %p63 = por %p61, %p62
    %p64 = scmp.ne.s32.totalorder %s52, %s53
    %p65 = scmp.eq.s32.totalorder %s22, 1
    %p66 = por %p64, %p65
    %p68 = scmp.ne.s32.totalorder %s53, %s67
    %p69 = scmp.eq.s32.totalorder %s22, 0
    %p70 = por %p68, %p69
    %s72 = sadd.s32 %s71, 1
    %p75 = scmp.eq.s32.totalorder %s16, 1
    %p76 = scmp.ne.s32.totalorder %s71, %s73
    %p77 = scmp.eq.s32.totalorder %s16, 0
    %p78 = por %p76, %p77
    %p79 = scmp.ne.s32.totalorder %s71, %s73
    %p80 = scmp.eq.s32.totalorder %s21, 1
    %p81 = por %p79, %p80
    %p82 = scmp.ne.s32.totalorder %s73, %s74
    %p83 = scmp.eq.s32.totalorder %s21, 0
    %p84 = por %p82, %p83
    %p85 = scmp.ne.s32.totalorder %s73, %s74
    %p86 = scmp.eq.s32.totalorder %s22, 1
    %p87 = por %p85, %p86
    %p89 = scmp.ne.s32.totalorder %s74, %s88
    %p90 = scmp.eq.s32.totalorder %s22, 0
    %p91 = por %p89, %p90
    %s93 = sadd.s32 %s92, 1
    %p96 = scmp.eq.s32.totalorder %s16, 1
    %p97 = scmp.ne.s32.totalorder %s92, %s94
    %p98 = scmp.eq.s32.totalorder %s16, 0
    %p99 = por %p97, %p98
    %p100 = scmp.ne.s32.totalorder %s92, %s94
    %p101 = scmp.eq.s32.totalorder %s21, 1
    %p102 = por %p100, %p101
    %p103 = scmp.ne.s32.totalorder %s94, %s95
    %p104 = scmp.eq.s32.totalorder %s21, 0
    %p105 = por %p103, %p104
    %p106 = scmp.ne.s32.totalorder %s94, %s95
    %p107 = scmp.eq.s32.totalorder %s22, 1
    %p108 = por %p106, %p107
    %p110 = scmp.ne.s32.totalorder %s95, %s109
    %p111 = scmp.eq.s32.totalorder %s22, 0
    %p112 = por %p110, %p111
    %s114 = sadd.s32 %s113, 1
    %p117 = scmp.eq.s32.totalorder %s16, 1
    %p118 = scmp.ne.s32.totalorder %s113, %s115
    %p119 = scmp.eq.s32.totalorder %s16, 0
    %p120 = por %p118, %p119
    %p121 = scmp.ne.s32.totalorder %s113, %s115
    %p122 = scmp.eq.s32.totalorder %s21, 1
    %p123 = por %p121, %p122
    %p124 = scmp.ne.s32.totalorder %s115, %s116
    %p125 = scmp.eq.s32.totalorder %s21, 0
    %p126 = por %p124, %p125
    %p127 = scmp.ne.s32.totalorder %s115, %s116
    %p128 = scmp.eq.s32.totalorder %s22, 1
    %p129 = por %p127, %p128
    %p131 = scmp.ne.s32.totalorder %s116, %s130
    %p132 = scmp.eq.s32.totalorder %s22, 0
    %p133 = por %p131, %p132
    %s135 = sadd.s32 %s134, 1
    %p138 = scmp.eq.s32.totalorder %s16, 1
    %p139 = scmp.ne.s32.totalorder %s134, %s136
    %p140 = scmp.eq.s32.totalorder %s16, 0
    %p141 = por %p139, %p140
    %p142 = scmp.ne.s32.totalorder %s134, %s136
    %p143 = scmp.eq.s32.totalorder %s21, 1
    %p144 = por %p142, %p143
    %p145 = scmp.ne.s32.totalorder %s136, %s137
    %p146 = scmp.eq.s32.totalorder %s21, 0
    %p147 = por %p145, %p146
    %p148 = scmp.ne.s32.totalorder %s136, %s137
    %p149 = scmp.eq.s32.totalorder %s22, 1
    %p150 = por %p148, %p149
    %p152 = scmp.ne.s32.totalorder %s137, %s151
    %p153 = scmp.eq.s32.totalorder %s22, 0
    %p154 = por %p152, %p153
    %s156 = sadd.s32 %s155, 1
    %p159 = scmp.eq.s32.totalorder %s16, 1
    %p160 = scmp.ne.s32.totalorder %s155, %s157
    %p161 = scmp.eq.s32.totalorder %s16, 0
    %p162 = por %p160, %p161
    %p163 = scmp.ne.s32.totalorder %s155, %s157
    %p164 = scmp.eq.s32.totalorder %s21, 1
    %p165 = por %p163, %p164
    %p166 = scmp.ne.s32.totalorder %s157, %s158
    %p167 = scmp.eq.s32.totalorder %s21, 0
    %p168 = por %p166, %p167
    %p169 = scmp.ne.s32.totalorder %s157, %s158
    %p170 = scmp.eq.s32.totalorder %s22, 1
    %p171 = por %p169, %p170
    %p173 = scmp.ne.s32.totalorder %s158, %s172
    %p174 = scmp.eq.s32.totalorder %s22, 0
    %p175 = por %p173, %p174
    %s177 = sadd.s32 %s176, 1
    %p180 = scmp.eq.s32.totalorder %s16, 1
    %p181 = scmp.ne.s32.totalorder %s176, %s178
    %p182 = scmp.eq.s32.totalorder %s16, 0
    %p183 = por %p181, %p182
    %p184 = scmp.ne.s32.totalorder %s176, %s178
    %p185 = scmp.eq.s32.totalorder %s21, 1
    %p186 = por %p184, %p185
    %p187 = scmp.ne.s32.totalorder %s178, %s179
    %p188 = scmp.eq.s32.totalorder %s21, 0
    %p189 = por %p187, %p188
    %p190 = scmp.ne.s32.totalorder %s178, %s179
    %p191 = scmp.eq.s32.totalorder %s22, 1
    %p192 = por %p190, %p191
    %p194 = scmp.ne.s32.totalorder %s179, %s193
    %p195 = scmp.eq.s32.totalorder %s22, 0
    %p196 = por %p194, %p195
    %s198 = sadd.s32 %s197, 1
    %p201 = scmp.eq.s32.totalorder %s16, 1
    %p202 = scmp.ne.s32.totalorder %s197, %s199
    %p203 = scmp.eq.s32.totalorder %s16, 0
    %p204 = por %p202, %p203
    %p205 = scmp.ne.s32.totalorder %s197, %s199
    %p206 = scmp.eq.s32.totalorder %s21, 1
    %p207 = por %p205, %p206
    %p208 = scmp.ne.s32.totalorder %s199, %s200
    %p209 = scmp.eq.s32.totalorder %s21, 0
    %p210 = por %p208, %p209
    %p211 = scmp.ne.s32.totalorder %s199, %s200
    %p212 = scmp.eq.s32.totalorder %s22, 1
    %p213 = por %p211, %p212
    %p215 = scmp.ne.s32.totalorder %s200, %s214
    %p216 = scmp.eq.s32.totalorder %s22, 0
    %p217 = por %p215, %p216
    %s219 = sadd.s32 %s218, 1
    %p222 = scmp.eq.s32.totalorder %s16, 1
    %p223 = scmp.ne.s32.totalorder %s218, %s220
    %p224 = scmp.eq.s32.totalorder %s16, 0
    %p225 = por %p223, %p224
    %p226 = scmp.ne.s32.totalorder %s218, %s220
    %p227 = scmp.eq.s32.totalorder %s21, 1
    %p228 = por %p226, %p227
    %p229 = scmp.ne.s32.totalorder %s220, %s221
    %p230 = scmp.eq.s32.totalorder %s21, 0
    %p231 = por %p229, %p230
    %p232 = scmp.ne.s32.totalorder %s220, %s221
    %p233 = scmp.eq.s32.totalorder %s22, 1
    %p234 = por %p232, %p233
    %p236 = scmp.ne.s32.totalorder %s221, %s235
    %p237 = scmp.eq.s32.totalorder %s22, 0
    %p238 = por %p236, %p237
    %s239 = ssub.s32 %s16, %s23
    %p240 = scmp.eq.s32.totalorder %s239, 0
    %s242 = sadd.s32 %s241, 1
    %s243 = scalar_select %p240, %s241, %s242
    %p246 = pneg %p240
    %p247 = scmp.eq.s32.totalorder %s16, 1
    %p248 = por %p246, %p247
    %p249 = scmp.ne.s32.totalorder %s241, %s244
    %p250 = scmp.eq.s32.totalorder %s16, 0
    %p251 = por %p249, %p250
    %p252 = scmp.ne.s32.totalorder %s241, %s244
    %p253 = scmp.eq.s32.totalorder %s21, 1
    %p254 = por %p252, %p253
    %p255 = scmp.ne.s32.totalorder %s244, %s245
    %p256 = scmp.eq.s32.totalorder %s21, 0
    %p257 = por %p255, %p256
    %p258 = scmp.ne.s32.totalorder %s244, %s245
    %p259 = scmp.eq.s32.totalorder %s22, 1
    %p260 = por %p258, %p259
    %p262 = scmp.ne.s32.totalorder %s245, %s261
    %p263 = scmp.eq.s32.totalorder %s22, 0
    %p264 = por %p262, %p263
    %p265 = scmp.le.s32.totalorder 1, %s16
    %p266 = scmp.lt.s32.totalorder %s16, 3
    %p267 = pnand %p265, %p266
    %p268 = pneg %p267
    // Predicated region
    $region9: #{residual_block_forward.1} parent=5 // pred_check
      _
    $region10: #{residual_block_forward.1} parent=5 // pred_check_branch
      %270 = sbr.rel (%p267) target = $region12
    $region11: #{residual_block_forward.1} parent=5 // pred_region
      %s271 = ssub.s32 %s16, 1
      // Predicated region
      $region13: #{residual_block_forward.1} parent=11 // pred_check
        %p272 = pneg %p63
      $region14: #{residual_block_forward.1} parent=11 // pred_check_branch
        %274 = sbr.rel (%p272) target = $region16
      $region15: #{residual_block_forward.1} parent=11 // pred_region
        _
      $region16: #{residual_block_forward.1} parent=11 // pred_fallthru
        _
      // Predicated region
      $region17: #{residual_block_forward.1} parent=11 // pred_check
        %p275 = pneg %p84
      $region18: #{residual_block_forward.1} parent=11 // pred_check_branch
        %277 = sbr.rel (%p275) target = $region20
      $region19: #{residual_block_forward.1} parent=11 // pred_region
        _
      $region20: #{residual_block_forward.1} parent=11 // pred_fallthru
        _
      // Predicated region
      $region21: #{residual_block_forward.1} parent=11 // pred_check
        %p278 = pneg %p105
      $region22: #{residual_block_forward.1} parent=11 // pred_check_branch
        %280 = sbr.rel (%p278) target = $region24
      $region23: #{residual_block_forward.1} parent=11 // pred_region
        _
      $region24: #{residual_block_forward.1} parent=11 // pred_fallthru
        _
      // Predicated region
      $region25: #{residual_block_forward.1} parent=11 // pred_check
        %p281 = pneg %p126
      $region26: #{residual_block_forward.1} parent=11 // pred_check_branch
        %283 = sbr.rel (%p281) target = $region28
      $region27: #{residual_block_forward.1} parent=11 // pred_region
        _
      $region28: #{residual_block_forward.1} parent=11 // pred_fallthru
        _
      // Predicated region
      $region29: #{residual_block_forward.1} parent=11 // pred_check
        %p284 = pneg %p147
      $region30: #{residual_block_forward.1} parent=11 // pred_check_branch
        %286 = sbr.rel (%p284) target = $region32
      $region31: #{residual_block_forward.1} parent=11 // pred_region
        _
      $region32: #{residual_block_forward.1} parent=11 // pred_fallthru
        _
      // Predicated region
      $region33: #{residual_block_forward.1} parent=11 // pred_check
        %p287 = pneg %p168
      $region34: #{residual_block_forward.1} parent=11 // pred_check_branch
        %289 = sbr.rel (%p287) target = $region36
      $region35: #{residual_block_forward.1} parent=11 // pred_region
        _
      $region36: #{residual_block_forward.1} parent=11 // pred_fallthru
        _
      // Predicated region
      $region37: #{residual_block_forward.1} parent=11 // pred_check
        %p290 = pneg %p189
      $region38: #{residual_block_forward.1} parent=11 // pred_check_branch
        %292 = sbr.rel (%p290) target = $region40
      $region39: #{residual_block_forward.1} parent=11 // pred_region
        _
      $region40: #{residual_block_forward.1} parent=11 // pred_fallthru
        _
      // Predicated region
      $region41: #{residual_block_forward.1} parent=11 // pred_check
        %p293 = pneg %p210
      $region42: #{residual_block_forward.1} parent=11 // pred_check_branch
        %295 = sbr.rel (%p293) target = $region44
      $region43: #{residual_block_forward.1} parent=11 // pred_region
        _
      $region44: #{residual_block_forward.1} parent=11 // pred_fallthru
        _
      // Predicated region
      $region45: #{residual_block_forward.1} parent=11 // pred_check
        %p296 = pneg %p231
      $region46: #{residual_block_forward.1} parent=11 // pred_check_branch
        %298 = sbr.rel (%p296) target = $region48
      $region47: #{residual_block_forward.1} parent=11 // pred_region
        _
      $region48: #{residual_block_forward.1} parent=11 // pred_fallthru
        _
    $region12: #{residual_block_forward.1} parent=5 // pred_fallthru
      _
    %p299 = scmp.lt.s32.totalorder %s16, 2
    // Predicated region
    $region49: #{residual_block_forward.1} parent=5 // pred_check
      %p300 = pneg %p299
    $region50: #{residual_block_forward.1} parent=5 // pred_check_branch
      %302 = sbr.rel (%p300) target = $region52
    $region51: #{residual_block_forward.1} parent=5 // pred_region
      // Predicated region
      $region53: #{residual_block_forward.1} parent=51 // pred_check
        %p303 = pneg %p36
      $region54: #{residual_block_forward.1} parent=51 // pred_check_branch
        %305 = sbr.rel (%p303) target = $region56
      $region55: #{residual_block_forward.1} parent=51 // pred_region
        %p306 = scmp.lt.s32.totalorder %s16, 1
        %s307 = scalar_select %p306, %s16, 1
        %s308 = smul.addr %s307, 32
        %s309 = smul.addr %s308, 8
        %s310 = scalar_lea.vmem %s0, %s309
      $region56: #{residual_block_forward.1} parent=51 // pred_fallthru
        _
    $region52: #{residual_block_forward.1} parent=5 // pred_fallthru
      _
    %p311 = scmp.le.s32.totalorder 1, %s16
    %p312 = scmp.lt.s32.totalorder %s16, 3
    %p313 = pnand %p311, %p312
    %p314 = pneg %p313
    // Predicated region
    $region57: #{residual_block_forward.1} parent=5 // pred_check
      _
    $region58: #{residual_block_forward.1} parent=5 // pred_check_branch
      %316 = sbr.rel (%p313) target = $region60
    $region59: #{residual_block_forward.1} parent=5 // pred_region
      %s317 = ssub.s32 %s16, 1
      %p318 = scmp.lt.s32.totalorder %s21, 1
      %s319 = scalar_select %p318, %s21, 1
      %s320 = smul.addr %s319, 32
      %s321 = smul.addr %s320, 8
      %s322 = scalar_lea.vmem %s0, %s321
      %p323 = pneg %p42
      %p324 = pneg %p39
      %p325 = pneg %p63
      %p326 = pneg %p60
      %p327 = pneg %p84
      %p328 = pneg %p81
      %p329 = pneg %p105
      %p330 = pneg %p102
      %p331 = pneg %p126
      %p332 = pneg %p123
      %p333 = pneg %p147
      %p334 = pneg %p144
      %p335 = pneg %p168
      %p336 = pneg %p165
      %p337 = pneg %p189
      %p338 = pneg %p186
      %p339 = pneg %p210
      %p340 = pneg %p207
      %p341 = pneg %p231
      %p342 = pneg %p228
      %p343 = pneg %p257
      %p344 = pneg %p254
      %p345 = scmp.lt.s32.totalorder %s21, 1
      %s346 = scalar_select %p345, %s21, 1
      %s347 = smul.addr %s346, 8
      %s348 = smul.addr %s347, 8
      %s349 = scalar_lea.vmem %s10, %s348
      %p350 = scmp.lt.s32.totalorder %s21, 1
      %s351 = scalar_select %p350, %s21, 1
      %s352 = smul.addr %s351, 32
      %s353 = smul.addr %s352, 8
      %s354 = scalar_lea.vmem %s0, %s353
      %p355 = scmp.lt.s32.totalorder %s21, 1
      %s356 = scalar_select %p355, %s21, 1
      %s357 = smul.addr %s356, 8
      %s358 = smul.addr %s357, 8
      %s359 = scalar_lea.vmem %s10, %s358
      %v360 = vld [vmem:[%s354] sm:$0xff]
      %v361 = vld [vmem:[%s354 + $0x8] sm:$0xff]
      %v362 = vld [vmem:[%s354 + $0x10] sm:$0xff]
      %v363 = vld [vmem:[%s354 + $0x18] sm:$0xff]
      %v364 = vld [vmem:[%s354 + $0x20] sm:$0xff]
      %v365 = vld [vmem:[%s354 + $0x28] sm:$0xff]
      %v366 = vld [vmem:[%s354 + $0x30] sm:$0xff]
      %v367 = vld [vmem:[%s354 + $0x38] sm:$0xff]
      %v368 = vld [vmem:[%s354 + $0x40] sm:$0xff]
      %v369 = vld [vmem:[%s354 + $0x48] sm:$0xff]
      %v370 = vld [vmem:[%s354 + $0x50] sm:$0xff]
      %v371 = vld [vmem:[%s354 + $0x58] sm:$0xff]
      %v372 = vld [vmem:[%s354 + $0x60] sm:$0xff]
      %v373 = vld [vmem:[%s354 + $0x68] sm:$0xff]
      %v374 = vld [vmem:[%s354 + $0x70] sm:$0xff]
      %v375 = vld [vmem:[%s354 + $0x78] sm:$0xff]
      %v376 = vld [vmem:[%s354 + $0x80] sm:$0xff]
      %v377 = vld [vmem:[%s354 + $0x88] sm:$0xff]
      %v378 = vld [vmem:[%s354 + $0x90] sm:$0xff]
      %v379 = vld [vmem:[%s354 + $0x98] sm:$0xff]
      %v380 = vld [vmem:[%s354 + $0xa0] sm:$0xff]
      %v381 = vld [vmem:[%s354 + $0xa8] sm:$0xff]
      %v382 = vld [vmem:[%s354 + $0xb0] sm:$0xff]
      %v383 = vld [vmem:[%s354 + $0xb8] sm:$0xff]
      %v384 = vld [vmem:[%s354 + $0xc0] sm:$0xff]
      %v385 = vld [vmem:[%s354 + $0xc8] sm:$0xff]
      %v386 = vld [vmem:[%s354 + $0xd0] sm:$0xff]
      %v387 = vld [vmem:[%s354 + $0xd8] sm:$0xff]
      %v388 = vld [vmem:[%s354 + $0xe0] sm:$0xff]
      %v389 = vld [vmem:[%s354 + $0xe8] sm:$0xff]
      %v390 = vld [vmem:[%s354 + $0xf0] sm:$0xff]
      %v391 = vld [vmem:[%s354 + $0xf8] sm:$0xff]
      %v392 = vlaneseq
      %v393 = vshrl.u32 %v392, 7
      %v394 = vadd.s32 %v393, 8
      %v395 = vadd.s32 %v393, 16
      %v396 = vadd.s32 %v393, 24
      %v397 = vadd.s32 %v393, 32
      %v398 = vadd.s32 %v393, 40
      %v399 = vadd.s32 %v393, 48
      %v400 = vadd.s32 %v393, 56
      %v401 = vadd.s32 %v393, 64
      %v402 = vadd.s32 %v393, 72
      %v403 = vadd.s32 %v393, 80
      %v404 = vadd.s32 %v393, 88
      %v405 = vadd.s32 %v393, 96
      %v406 = vadd.s32 %v393, 104
      %v407 = vadd.s32 %v393, 112
      %v408 = vadd.s32 %v393, 120
      %v409 = vadd.s32 %v393, 128
      %v410 = vadd.s32 %v393, 136
      %v411 = vadd.s32 %v393, 144
      %v412 = vadd.s32 %v393, 152
      %v413 = vadd.s32 %v393, 160
      %v414 = vadd.s32 %v393, 168
      %v415 = vadd.s32 %v393, 176
      %v416 = vadd.s32 %v393, 184
      %v417 = vadd.s32 %v393, 192
      %v418 = vadd.s32 %v393, 200
      %v419 = vadd.s32 %v393, 208
      %v420 = vadd.s32 %v393, 216
      %v421 = vadd.s32 %v393, 224
      %v422 = vadd.s32 %v393, 232
      %v423 = vadd.s32 %v393, 240
      %v424 = vadd.s32 %v393, 248
      %vm425 = vcmp.lt.s32.totalorder %v393, 0
      %v426 = vsub.s32 0, %v393
      %v427 = vsel %vm425, %v426, %v393
      %v428 = vshrl.u32 %v427, 4
      %v429 = vand.u32 %v427, 15
      %v430 = vsub.s32 0, %v429
      %v431 = vsel %vm425, %v430, %v429
      %vm432 = vcmp.lt.s32.totalorder %v394, 0
      %v433 = vsub.s32 0, %v394
      %v434 = vsel %vm432, %v433, %v394
      %v435 = vshrl.u32 %v434, 4
      %v436 = vand.u32 %v434, 15
      %v437 = vsub.s32 0, %v436
      %v438 = vsel %vm432, %v437, %v436
      %vm439 = vcmp.lt.s32.totalorder %v395, 0
      %v440 = vsub.s32 0, %v395
      %v441 = vsel %vm439, %v440, %v395
      %v442 = vshrl.u32 %v441, 4
      %v443 = vand.u32 %v441, 15
      %v444 = vsub.s32 0, %v443
      %v445 = vsel %vm439, %v444, %v443
      %vm446 = vcmp.lt.s32.totalorder %v396, 0
      %v447 = vsub.s32 0, %v396
      %v448 = vsel %vm446, %v447, %v396
      %v449 = vshrl.u32 %v448, 4
      %v450 = vand.u32 %v448, 15
      %v451 = vsub.s32 0, %v450
      %v452 = vsel %vm446, %v451, %v450
      %vm453 = vcmp.lt.s32.totalorder %v397, 0
      %v454 = vsub.s32 0, %v397
      %v455 = vsel %vm453, %v454, %v397
      %v456 = vshrl.u32 %v455, 4
      %v457 = vand.u32 %v455, 15
      %v458 = vsub.s32 0, %v457
      %v459 = vsel %vm453, %v458, %v457
      %vm460 = vcmp.lt.s32.totalorder %v398, 0
      %v461 = vsub.s32 0, %v398
      %v462 = vsel %vm460, %v461, %v398
      %v463 = vshrl.u32 %v462, 4
      %v464 = vand.u32 %v462, 15
      %v465 = vsub.s32 0, %v464
      %v466 = vsel %vm460, %v465, %v464
      %vm467 = vcmp.lt.s32.totalorder %v399, 0
      %v468 = vsub.s32 0, %v399
      %v469 = vsel %vm467, %v468, %v399
      %v470 = vshrl.u32 %v469, 4
      %v471 = vand.u32 %v469, 15
      %v472 = vsub.s32 0, %v471
      %v473 = vsel %vm467, %v472, %v471
      %vm474 = vcmp.lt.s32.totalorder %v400, 0
      %v475 = vsub.s32 0, %v400
      %v476 = vsel %vm474, %v475, %v400
      %v477 = vshrl.u32 %v476, 4
      %v478 = vand.u32 %v476, 15
      %v479 = vsub.s32 0, %v478
      %v480 = vsel %vm474, %v479, %v478
      %vm481 = vcmp.lt.s32.totalorder %v401, 0
      %v482 = vsub.s32 0, %v401
      %v483 = vsel %vm481, %v482, %v401
      %v484 = vshrl.u32 %v483, 4
      %v485 = vand.u32 %v483, 15
      %v486 = vsub.s32 0, %v485
      %v487 = vsel %vm481, %v486, %v485
      %vm488 = vcmp.lt.s32.totalorder %v402, 0
      %v489 = vsub.s32 0, %v402
      %v490 = vsel %vm488, %v489, %v402
      %v491 = vshrl.u32 %v490, 4
      %v492 = vand.u32 %v490, 15
      %v493 = vsub.s32 0, %v492
      %v494 = vsel %vm488, %v493, %v492
      %vm495 = vcmp.lt.s32.totalorder %v403, 0
      %v496 = vsub.s32 0, %v403
      %v497 = vsel %vm495, %v496, %v403
      %v498 = vshrl.u32 %v497, 4
      %v499 = vand.u32 %v497, 15
      %v500 = vsub.s32 0, %v499
      %v501 = vsel %vm495, %v500, %v499
      %vm502 = vcmp.lt.s32.totalorder %v404, 0
      %v503 = vsub.s32 0, %v404
      %v504 = vsel %vm502, %v503, %v404
      %v505 = vshrl.u32 %v504, 4
      %v506 = vand.u32 %v504, 15
      %v507 = vsub.s32 0, %v506
      %v508 = vsel %vm502, %v507, %v506
      %vm509 = vcmp.lt.s32.totalorder %v405, 0
      %v510 = vsub.s32 0, %v405
      %v511 = vsel %vm509, %v510, %v405
      %v512 = vshrl.u32 %v511, 4
      %v513 = vand.u32 %v511, 15
      %v514 = vsub.s32 0, %v513
      %v515 = vsel %vm509, %v514, %v513
      %vm516 = vcmp.lt.s32.totalorder %v406, 0
      %v517 = vsub.s32 0, %v406
      %v518 = vsel %vm516, %v517, %v406
      %v519 = vshrl.u32 %v518, 4
      %v520 = vand.u32 %v518, 15
      %v521 = vsub.s32 0, %v520
      %v522 = vsel %vm516, %v521, %v520
      %vm523 = vcmp.lt.s32.totalorder %v407, 0
      %v524 = vsub.s32 0, %v407
      %v525 = vsel %vm523, %v524, %v407
      %v526 = vshrl.u32 %v525, 4
      %v527 = vand.u32 %v525, 15
      %v528 = vsub.s32 0, %v527
      %v529 = vsel %vm523, %v528, %v527
      %vm530 = vcmp.lt.s32.totalorder %v408, 0
      %v531 = vsub.s32 0, %v408
      %v532 = vsel %vm530, %v531, %v408
      %v533 = vshrl.u32 %v532, 4
      %v534 = vand.u32 %v532, 15
      %v535 = vsub.s32 0, %v534
      %v536 = vsel %vm530, %v535, %v534
      %vm537 = vcmp.lt.s32.totalorder %v409, 0
      %v538 = vsub.s32 0, %v409
      %v539 = vsel %vm537, %v538, %v409
      %v540 = vshrl.u32 %v539, 4
      %v541 = vand.u32 %v539, 15
      %v542 = vsub.s32 0, %v541
      %v543 = vsel %vm537, %v542, %v541
      %vm544 = vcmp.lt.s32.totalorder %v410, 0
      %v545 = vsub.s32 0, %v410
      %v546 = vsel %vm544, %v545, %v410
      %v547 = vshrl.u32 %v546, 4
      %v548 = vand.u32 %v546, 15
      %v549 = vsub.s32 0, %v548
      %v550 = vsel %vm544, %v549, %v548
      %vm551 = vcmp.lt.s32.totalorder %v411, 0
      %v552 = vsub.s32 0, %v411
      %v553 = vsel %vm551, %v552, %v411
      %v554 = vshrl.u32 %v553, 4
      %v555 = vand.u32 %v553, 15
      %v556 = vsub.s32 0, %v555
      %v557 = vsel %vm551, %v556, %v555
      %vm558 = vcmp.lt.s32.totalorder %v412, 0
      %v559 = vsub.s32 0, %v412
      %v560 = vsel %vm558, %v559, %v412
      %v561 = vshrl.u32 %v560, 4
      %v562 = vand.u32 %v560, 15
      %v563 = vsub.s32 0, %v562
      %v564 = vsel %vm558, %v563, %v562
      %vm565 = vcmp.lt.s32.totalorder %v413, 0
      %v566 = vsub.s32 0, %v413
      %v567 = vsel %vm565, %v566, %v413
      %v568 = vshrl.u32 %v567, 4
      %v569 = vand.u32 %v567, 15
      %v570 = vsub.s32 0, %v569
      %v571 = vsel %vm565, %v570, %v569
      %vm572 = vcmp.lt.s32.totalorder %v414, 0
      %v573 = vsub.s32 0, %v414
      %v574 = vsel %vm572, %v573, %v414
      %v575 = vshrl.u32 %v574, 4
      %v576 = vand.u32 %v574, 15
      %v577 = vsub.s32 0, %v576
      %v578 = vsel %vm572, %v577, %v576
      %vm579 = vcmp.lt.s32.totalorder %v415, 0
      %v580 = vsub.s32 0, %v415
      %v581 = vsel %vm579, %v580, %v415
      %v582 = vshrl.u32 %v581, 4
      %v583 = vand.u32 %v581, 15
      %v584 = vsub.s32 0, %v583
      %v585 = vsel %vm579, %v584, %v583
      %vm586 = vcmp.lt.s32.totalorder %v416, 0
      %v587 = vsub.s32 0, %v416
      %v588 = vsel %vm586, %v587, %v416
      %v589 = vshrl.u32 %v588, 4
      %v590 = vand.u32 %v588, 15
      %v591 = vsub.s32 0, %v590
      %v592 = vsel %vm586, %v591, %v590
      %vm593 = vcmp.lt.s32.totalorder %v417, 0
      %v594 = vsub.s32 0, %v417
      %v595 = vsel %vm593, %v594, %v417
      %v596 = vshrl.u32 %v595, 4
      %v597 = vand.u32 %v595, 15
      %v598 = vsub.s32 0, %v597
      %v599 = vsel %vm593, %v598, %v597
      %vm600 = vcmp.lt.s32.totalorder %v418, 0
      %v601 = vsub.s32 0, %v418
      %v602 = vsel %vm600, %v601, %v418
      %v603 = vshrl.u32 %v602, 4
      %v604 = vand.u32 %v602, 15
      %v605 = vsub.s32 0, %v604
      %v606 = vsel %vm600, %v605, %v604
      %vm607 = vcmp.lt.s32.totalorder %v419, 0
      %v608 = vsub.s32 0, %v419
      %v609 = vsel %vm607, %v608, %v419
      %v610 = vshrl.u32 %v609, 4
      %v611 = vand.u32 %v609, 15
      %v612 = vsub.s32 0, %v611
      %v613 = vsel %vm607, %v612, %v611
      %vm614 = vcmp.lt.s32.totalorder %v420, 0
      %v615 = vsub.s32 0, %v420
      %v616 = vsel %vm614, %v615, %v420
      %v617 = vshrl.u32 %v616, 4
      %v618 = vand.u32 %v616, 15
      %v619 = vsub.s32 0, %v618
      %v620 = vsel %vm614, %v619, %v618
      %vm621 = vcmp.lt.s32.totalorder %v421, 0
      %v622 = vsub.s32 0, %v421
      %v623 = vsel %vm621, %v622, %v421
      %v624 = vshrl.u32 %v623, 4
      %v625 = vand.u32 %v623, 15
      %v626 = vsub.s32 0, %v625
      %v627 = vsel %vm621, %v626, %v625
      %vm628 = vcmp.lt.s32.totalorder %v422, 0
      %v629 = vsub.s32 0, %v422
      %v630 = vsel %vm628, %v629, %v422
      %v631 = vshrl.u32 %v630, 4
      %v632 = vand.u32 %v630, 15
      %v633 = vsub.s32 0, %v632
      %v634 = vsel %vm628, %v633, %v632
      %vm635 = vcmp.lt.s32.totalorder %v423, 0
      %v636 = vsub.s32 0, %v423
      %v637 = vsel %vm635, %v636, %v423
      %v638 = vshrl.u32 %v637, 4
      %v639 = vand.u32 %v637, 15
      %v640 = vsub.s32 0, %v639
      %v641 = vsel %vm635, %v640, %v639
      %vm642 = vcmp.lt.s32.totalorder %v424, 0
      %v643 = vsub.s32 0, %v424
      %v644 = vsel %vm642, %v643, %v424
      %v645 = vshrl.u32 %v644, 4
      %v646 = vand.u32 %v644, 15
      %v647 = vsub.s32 0, %v646
      %v648 = vsel %vm642, %v647, %v646
      %vm649 = vcmp.ne.s32.totalorder %v431, 0
      %vm650 = vcmp.ne.s32.totalorder %v438, 0
      %vm651 = vcmp.ne.s32.totalorder %v445, 0
      %vm652 = vcmp.ne.s32.totalorder %v452, 0
      %vm653 = vcmp.ne.s32.totalorder %v459, 0
      %vm654 = vcmp.ne.s32.totalorder %v466, 0
      %vm655 = vcmp.ne.s32.totalorder %v473, 0
      %vm656 = vcmp.ne.s32.totalorder %v480, 0
      %vm657 = vcmp.ne.s32.totalorder %v487, 0
      %vm658 = vcmp.ne.s32.totalorder %v494, 0
      %vm659 = vcmp.ne.s32.totalorder %v501, 0
      %vm660 = vcmp.ne.s32.totalorder %v508, 0
      %vm661 = vcmp.ne.s32.totalorder %v515, 0
      %vm662 = vcmp.ne.s32.totalorder %v522, 0
      %vm663 = vcmp.ne.s32.totalorder %v529, 0
      %vm664 = vcmp.ne.s32.totalorder %v536, 0
      %vm665 = vcmp.ne.s32.totalorder %v543, 0
      %vm666 = vcmp.ne.s32.totalorder %v550, 0
      %vm667 = vcmp.ne.s32.totalorder %v557, 0
      %vm668 = vcmp.ne.s32.totalorder %v564, 0
      %vm669 = vcmp.ne.s32.totalorder %v571, 0
      %vm670 = vcmp.ne.s32.totalorder %v578, 0
      %vm671 = vcmp.ne.s32.totalorder %v585, 0
      %vm672 = vcmp.ne.s32.totalorder %v592, 0
      %vm673 = vcmp.ne.s32.totalorder %v599, 0
      %vm674 = vcmp.ne.s32.totalorder %v606, 0
      %vm675 = vcmp.ne.s32.totalorder %v613, 0
      %vm676 = vcmp.ne.s32.totalorder %v620, 0
      %vm677 = vcmp.ne.s32.totalorder %v627, 0
      %vm678 = vcmp.ne.s32.totalorder %v634, 0
      %vm679 = vcmp.ne.s32.totalorder %v641, 0
      %vm680 = vcmp.ne.s32.totalorder %v648, 0
      %vm681 = vcmp.lt.s32.totalorder %v431, 0
      %vm682 = vcmp.lt.s32.totalorder %v438, 0
      %vm683 = vcmp.lt.s32.totalorder %v445, 0
      %vm684 = vcmp.lt.s32.totalorder %v452, 0
      %vm685 = vcmp.lt.s32.totalorder %v459, 0
      %vm686 = vcmp.lt.s32.totalorder %v466, 0
      %vm687 = vcmp.lt.s32.totalorder %v473, 0
      %vm688 = vcmp.lt.s32.totalorder %v480, 0
      %vm689 = vcmp.lt.s32.totalorder %v487, 0
      %vm690 = vcmp.lt.s32.totalorder %v494, 0
      %vm691 = vcmp.lt.s32.totalorder %v501, 0
      %vm692 = vcmp.lt.s32.totalorder %v508, 0
      %vm693 = vcmp.lt.s32.totalorder %v515, 0
      %vm694 = vcmp.lt.s32.totalorder %v522, 0
      %vm695 = vcmp.lt.s32.totalorder %v529, 0
      %vm696 = vcmp.lt.s32.totalorder %v536, 0
      %vm697 = vcmp.lt.s32.totalorder %v543, 0
      %vm698 = vcmp.lt.s32.totalorder %v550, 0
      %vm699 = vcmp.lt.s32.totalorder %v557, 0
      %vm700 = vcmp.lt.s32.totalorder %v564, 0
      %vm701 = vcmp.lt.s32.totalorder %v571, 0
      %vm702 = vcmp.lt.s32.totalorder %v578, 0
      %vm703 = vcmp.lt.s32.totalorder %v585, 0
      %vm704 = vcmp.lt.s32.totalorder %v592, 0
      %vm705 = vcmp.lt.s32.totalorder %v599, 0
      %vm706 = vcmp.lt.s32.totalorder %v606, 0
      %vm707 = vcmp.lt.s32.totalorder %v613, 0
      %vm708 = vcmp.lt.s32.totalorder %v620, 0
      %vm709 = vcmp.lt.s32.totalorder %v627, 0
      %vm710 = vcmp.lt.s32.totalorder %v634, 0
      %vm711 = vcmp.lt.s32.totalorder %v641, 0
      %vm712 = vcmp.lt.s32.totalorder %v648, 0
      %vm713 = vmand %vm681, %vm649
      %vm714 = vmand %vm682, %vm650
      %vm715 = vmand %vm683, %vm651
      %vm716 = vmand %vm684, %vm652
      %vm717 = vmand %vm685, %vm653
      %vm718 = vmand %vm686, %vm654
      %vm719 = vmand %vm687, %vm655
      %vm720 = vmand %vm688, %vm656
      %vm721 = vmand %vm689, %vm657
      %vm722 = vmand %vm690, %vm658
      %vm723 = vmand %vm691, %vm659
      %vm724 = vmand %vm692, %vm660
      %vm725 = vmand %vm693, %vm661
      %vm726 = vmand %vm694, %vm662
      %vm727 = vmand %vm695, %vm663
      %vm728 = vmand %vm696, %vm664
      %vm729 = vmand %vm697, %vm665
      %vm730 = vmand %vm698, %vm666
      %vm731 = vmand %vm699, %vm667
      %vm732 = vmand %vm700, %vm668
      %vm733 = vmand %vm701, %vm669
      %vm734 = vmand %vm702, %vm670
      %vm735 = vmand %vm703, %vm671
      %vm736 = vmand %vm704, %vm672
      %vm737 = vmand %vm705, %vm673
      %vm738 = vmand %vm706, %vm674
      %vm739 = vmand %vm707, %vm675
      %vm740 = vmand %vm708, %vm676
      %vm741 = vmand %vm709, %vm677
      %vm742 = vmand %vm710, %vm678
      %vm743 = vmand %vm711, %vm679
      %vm744 = vmand %vm712, %vm680
      %v745 = vadd.s32 %v431, 16
      %v746 = vadd.s32 %v438, 16
      %v747 = vadd.s32 %v445, 16
      %v748 = vadd.s32 %v452, 16
      %v749 = vadd.s32 %v459, 16
      %v750 = vadd.s32 %v466, 16
      %v751 = vadd.s32 %v473, 16
      %v752 = vadd.s32 %v480, 16
      %v753 = vadd.s32 %v487, 16
      %v754 = vadd.s32 %v494, 16
      %v755 = vadd.s32 %v501, 16
      %v756 = vadd.s32 %v508, 16
      %v757 = vadd.s32 %v515, 16
      %v758 = vadd.s32 %v522, 16
      %v759 = vadd.s32 %v529, 16
      %v760 = vadd.s32 %v536, 16
      %v761 = vadd.s32 %v543, 16
      %v762 = vadd.s32 %v550, 16
      %v763 = vadd.s32 %v557, 16
      %v764 = vadd.s32 %v564, 16
      %v765 = vadd.s32 %v571, 16
      %v766 = vadd.s32 %v578, 16
      %v767 = vadd.s32 %v585, 16
      %v768 = vadd.s32 %v592, 16
      %v769 = vadd.s32 %v599, 16
      %v770 = vadd.s32 %v606, 16
      %v771 = vadd.s32 %v613, 16
      %v772 = vadd.s32 %v620, 16
      %v773 = vadd.s32 %v627, 16
      %v774 = vadd.s32 %v634, 16
      %v775 = vadd.s32 %v641, 16
      %v776 = vadd.s32 %v648, 16
      %v777 = vsel %vm713, %v745, %v431
      %v778 = vsel %vm714, %v746, %v438
      %v779 = vsel %vm715, %v747, %v445
      %v780 = vsel %vm716, %v748, %v452
      %v781 = vsel %vm717, %v749, %v459
      %v782 = vsel %vm718, %v750, %v466
      %v783 = vsel %vm719, %v751, %v473
      %v784 = vsel %vm720, %v752, %v480
      %v785 = vsel %vm721, %v753, %v487
      %v786 = vsel %vm722, %v754, %v494
      %v787 = vsel %vm723, %v755, %v501
      %v788 = vsel %vm724, %v756, %v508
      %v789 = vsel %vm725, %v757, %v515
      %v790 = vsel %vm726, %v758, %v522
      %v791 = vsel %vm727, %v759, %v529
      %v792 = vsel %vm728, %v760, %v536
      %v793 = vsel %vm729, %v761, %v543
      %v794 = vsel %vm730, %v762, %v550
      %v795 = vsel %vm731, %v763, %v557
      %v796 = vsel %vm732, %v764, %v564
      %v797 = vsel %vm733, %v765, %v571
      %v798 = vsel %vm734, %v766, %v578
      %v799 = vsel %vm735, %v767, %v585
      %v800 = vsel %vm736, %v768, %v592
      %v801 = vsel %vm737, %v769, %v599
      %v802 = vsel %vm738, %v770, %v606
      %v803 = vsel %vm739, %v771, %v613
      %v804 = vsel %vm740, %v772, %v620
      %v805 = vsel %vm741, %v773, %v627
      %v806 = vsel %vm742, %v774, %v634
      %v807 = vsel %vm743, %v775, %v641
      %v808 = vsel %vm744, %v776, %v648
      %vm809 = vcmp.ne.s32.totalorder %v777, 0
      %vm810 = vcmp.ne.s32.totalorder %v778, 0
      %vm811 = vcmp.ne.s32.totalorder %v779, 0
      %vm812 = vcmp.ne.s32.totalorder %v780, 0
      %vm813 = vcmp.ne.s32.totalorder %v781, 0
      %vm814 = vcmp.ne.s32.totalorder %v782, 0
      %vm815 = vcmp.ne.s32.totalorder %v783, 0
      %vm816 = vcmp.ne.s32.totalorder %v784, 0
      %vm817 = vcmp.ne.s32.totalorder %v785, 0
      %vm818 = vcmp.ne.s32.totalorder %v786, 0
      %vm819 = vcmp.ne.s32.totalorder %v787, 0
      %vm820 = vcmp.ne.s32.totalorder %v788, 0
      %vm821 = vcmp.ne.s32.totalorder %v789, 0
      %vm822 = vcmp.ne.s32.totalorder %v790, 0
      %vm823 = vcmp.ne.s32.totalorder %v791, 0
      %vm824 = vcmp.ne.s32.totalorder %v792, 0
      %vm825 = vcmp.ne.s32.totalorder %v793, 0
      %vm826 = vcmp.ne.s32.totalorder %v794, 0
      %vm827 = vcmp.ne.s32.totalorder %v795, 0
      %vm828 = vcmp.ne.s32.totalorder %v796, 0
      %vm829 = vcmp.ne.s32.totalorder %v797, 0
      %vm830 = vcmp.ne.s32.totalorder %v798, 0
      %vm831 = vcmp.ne.s32.totalorder %v799, 0
      %vm832 = vcmp.ne.s32.totalorder %v800, 0
      %vm833 = vcmp.ne.s32.totalorder %v801, 0
      %vm834 = vcmp.ne.s32.totalorder %v802, 0
      %vm835 = vcmp.ne.s32.totalorder %v803, 0
      %vm836 = vcmp.ne.s32.totalorder %v804, 0
      %vm837 = vcmp.ne.s32.totalorder %v805, 0
      %vm838 = vcmp.ne.s32.totalorder %v806, 0
      %vm839 = vcmp.ne.s32.totalorder %v807, 0
      %vm840 = vcmp.ne.s32.totalorder %v808, 0
      %v841 = vsel %vm809, 1, 0
      %v842 = vsel %vm810, 1, 0
      %v843 = vsel %vm811, 1, 0
      %v844 = vsel %vm812, 1, 0
      %v845 = vsel %vm813, 1, 0
      %v846 = vsel %vm814, 1, 0
      %v847 = vsel %vm815, 1, 0
      %v848 = vsel %vm816, 1, 0
      %v849 = vsel %vm817, 1, 0
      %v850 = vsel %vm818, 1, 0
      %v851 = vsel %vm819, 1, 0
      %v852 = vsel %vm820, 1, 0
      %v853 = vsel %vm821, 1, 0
      %v854 = vsel %vm822, 1, 0
      %v855 = vsel %vm823, 1, 0
      %v856 = vsel %vm824, 1, 0
      %v857 = vsel %vm825, 1, 0
      %v858 = vsel %vm826, 1, 0
      %v859 = vsel %vm827, 1, 0
      %v860 = vsel %vm828, 1, 0
      %v861 = vsel %vm829, 1, 0
      %v862 = vsel %vm830, 1, 0
      %v863 = vsel %vm831, 1, 0
      %v864 = vsel %vm832, 1, 0
      %v865 = vsel %vm833, 1, 0
      %v866 = vsel %vm834, 1, 0
      %v867 = vsel %vm835, 1, 0
      %v868 = vsel %vm836, 1, 0
      %v869 = vsel %vm837, 1, 0
      %v870 = vsel %vm838, 1, 0
      %v871 = vsel %vm839, 1, 0
      %v872 = vsel %vm840, 1, 0
      %v873 = vcvt.s32.f32 %v841
      %v874 = vcvt.s32.f32 %v842
      %v875 = vcvt.s32.f32 %v843
      %v876 = vcvt.s32.f32 %v844
      %v877 = vcvt.s32.f32 %v845
      %v878 = vcvt.s32.f32 %v846
      %v879 = vcvt.s32.f32 %v847
      %v880 = vcvt.s32.f32 %v848
      %v881 = vcvt.s32.f32 %v849
      %v882 = vcvt.s32.f32 %v850
      %v883 = vcvt.s32.f32 %v851
      %v884 = vcvt.s32.f32 %v852
      %v885 = vcvt.s32.f32 %v853
      %v886 = vcvt.s32.f32 %v854
      %v887 = vcvt.s32.f32 %v855
      %v888 = vcvt.s32.f32 %v856
      %v889 = vcvt.s32.f32 %v857
      %v890 = vcvt.s32.f32 %v858
      %v891 = vcvt.s32.f32 %v859
      %v892 = vcvt.s32.f32 %v860
      %v893 = vcvt.s32.f32 %v861
      %v894 = vcvt.s32.f32 %v862
      %v895 = vcvt.s32.f32 %v863
      %v896 = vcvt.s32.f32 %v864
      %v897 = vcvt.s32.f32 %v865
      %v898 = vcvt.s32.f32 %v866
      %v899 = vcvt.s32.f32 %v867
      %v900 = vcvt.s32.f32 %v868
      %v901 = vcvt.s32.f32 %v869
      %v902 = vcvt.s32.f32 %v870
      %v903 = vcvt.s32.f32 %v871
      %v904 = vcvt.s32.f32 %v872
      %vm905 = vcmp.ne.s32.totalorder %v777, 15
      %vm906 = vcmp.ne.s32.totalorder %v778, 15
      %vm907 = vcmp.ne.s32.totalorder %v779, 15
      %vm908 = vcmp.ne.s32.totalorder %v780, 15
      %vm909 = vcmp.ne.s32.totalorder %v781, 15
      %vm910 = vcmp.ne.s32.totalorder %v782, 15
      %vm911 = vcmp.ne.s32.totalorder %v783, 15
      %vm912 = vcmp.ne.s32.totalorder %v784, 15
      %vm913 = vcmp.ne.s32.totalorder %v785, 15
      %vm914 = vcmp.ne.s32.totalorder %v786, 15
      %vm915 = vcmp.ne.s32.totalorder %v787, 15
      %vm916 = vcmp.ne.s32.totalorder %v788, 15
      %vm917 = vcmp.ne.s32.totalorder %v789, 15
      %vm918 = vcmp.ne.s32.totalorder %v790, 15
      %vm919 = vcmp.ne.s32.totalorder %v791, 15
      %vm920 = vcmp.ne.s32.totalorder %v792, 15
      %vm921 = vcmp.ne.s32.totalorder %v793, 15
      %vm922 = vcmp.ne.s32.totalorder %v794, 15
      %vm923 = vcmp.ne.s32.totalorder %v795, 15
      %vm924 = vcmp.ne.s32.totalorder %v796, 15
      %vm925 = vcmp.ne.s32.totalorder %v797, 15
      %vm926 = vcmp.ne.s32.totalorder %v798, 15
      %vm927 = vcmp.ne.s32.totalorder %v799, 15
      %vm928 = vcmp.ne.s32.totalorder %v800, 15
      %vm929 = vcmp.ne.s32.totalorder %v801, 15
      %vm930 = vcmp.ne.s32.totalorder %v802, 15
      %vm931 = vcmp.ne.s32.totalorder %v803, 15
      %vm932 = vcmp.ne.s32.totalorder %v804, 15
      %vm933 = vcmp.ne.s32.totalorder %v805, 15
      %vm934 = vcmp.ne.s32.totalorder %v806, 15
      %vm935 = vcmp.ne.s32.totalorder %v807, 15
      %vm936 = vcmp.ne.s32.totalorder %v808, 15
      %v937 = vsel %vm905, 1, 0
      %v938 = vsel %vm906, 1, 0
      %v939 = vsel %vm907, 1, 0
      %v940 = vsel %vm908, 1, 0
      %v941 = vsel %vm909, 1, 0
      %v942 = vsel %vm910, 1, 0
      %v943 = vsel %vm911, 1, 0
      %v944 = vsel %vm912, 1, 0
      %v945 = vsel %vm913, 1, 0
      %v946 = vsel %vm914, 1, 0
      %v947 = vsel %vm915, 1, 0
      %v948 = vsel %vm916, 1, 0
      %v949 = vsel %vm917, 1, 0
      %v950 = vsel %vm918, 1, 0
      %v951 = vsel %vm919, 1, 0
      %v952 = vsel %vm920, 1, 0
      %v953 = vsel %vm921, 1, 0
      %v954 = vsel %vm922, 1, 0
      %v955 = vsel %vm923, 1, 0
      %v956 = vsel %vm924, 1, 0
      %v957 = vsel %vm925, 1, 0
      %v958 = vsel %vm926, 1, 0
      %v959 = vsel %vm927, 1, 0
      %v960 = vsel %vm928, 1, 0
      %v961 = vsel %vm929, 1, 0
      %v962 = vsel %vm930, 1, 0
      %v963 = vsel %vm931, 1, 0
      %v964 = vsel %vm932, 1, 0
      %v965 = vsel %vm933, 1, 0
      %v966 = vsel %vm934, 1, 0
      %v967 = vsel %vm935, 1, 0
      %v968 = vsel %vm936, 1, 0
      %v969 = vcvt.s32.f32 %v937
      %v970 = vcvt.s32.f32 %v938
      %v971 = vcvt.s32.f32 %v939
      %v972 = vcvt.s32.f32 %v940
      %v973 = vcvt.s32.f32 %v941
      %v974 = vcvt.s32.f32 %v942
      %v975 = vcvt.s32.f32 %v943
      %v976 = vcvt.s32.f32 %v944
      %v977 = vcvt.s32.f32 %v945
      %v978 = vcvt.s32.f32 %v946
      %v979 = vcvt.s32.f32 %v947
      %v980 = vcvt.s32.f32 %v948
      %v981 = vcvt.s32.f32 %v949
      %v982 = vcvt.s32.f32 %v950
      %v983 = vcvt.s32.f32 %v951
      %v984 = vcvt.s32.f32 %v952
      %v985 = vcvt.s32.f32 %v953
      %v986 = vcvt.s32.f32 %v954
      %v987 = vcvt.s32.f32 %v955
      %v988 = vcvt.s32.f32 %v956
      %v989 = vcvt.s32.f32 %v957
      %v990 = vcvt.s32.f32 %v958
      %v991 = vcvt.s32.f32 %v959
      %v992 = vcvt.s32.f32 %v960
      %v993 = vcvt.s32.f32 %v961
      %v994 = vcvt.s32.f32 %v962
      %v995 = vcvt.s32.f32 %v963
      %v996 = vcvt.s32.f32 %v964
      %v997 = vcvt.s32.f32 %v965
      %v998 = vcvt.s32.f32 %v966
      %v999 = vcvt.s32.f32 %v967
      %v1000 = vcvt.s32.f32 %v968
      %v1001 = vrot.slane %v360, 7
      %v1002 = vrot.slane %v361, 7
      %v1003 = vrot.slane %v362, 7
      %v1004 = vrot.slane %v363, 7
      %v1005 = vrot.slane %v364, 7
      %v1006 = vrot.slane %v365, 7
      %v1007 = vrot.slane %v366, 7
      %v1008 = vrot.slane %v367, 7
      %v1009 = vrot.slane %v368, 7
      %v1010 = vrot.slane %v369, 7
      %v1011 = vrot.slane %v370, 7
      %v1012 = vrot.slane %v371, 7
      %v1013 = vrot.slane %v372, 7
      %v1014 = vrot.slane %v373, 7
      %v1015 = vrot.slane %v374, 7
      %v1016 = vrot.slane %v375, 7
      %v1017 = vrot.slane %v376, 7
      %v1018 = vrot.slane %v377, 7
      %v1019 = vrot.slane %v378, 7
      %v1020 = vrot.slane %v379, 7
      %v1021 = vrot.slane %v380, 7
      %v1022 = vrot.slane %v381, 7
      %v1023 = vrot.slane %v382, 7
      %v1024 = vrot.slane %v383, 7
      %v1025 = vrot.slane %v384, 7
      %v1026 = vrot.slane %v385, 7
      %v1027 = vrot.slane %v386, 7
      %v1028 = vrot.slane %v387, 7
      %v1029 = vrot.slane %v388, 7
      %v1030 = vrot.slane %v389, 7
      %v1031 = vrot.slane %v390, 7
      %v1032 = vrot.slane %v391, 7
      %vm1033 = vcmp.lt.s32.totalorder %v393, 1
      %v1034 = vsel %vm1033, %v1031, %v1032
      %v1035 = vsel %vm1033, %v1030, %v1031
      %v1036 = vsel %vm1033, %v1029, %v1030
      %v1037 = vsel %vm1033, %v1028, %v1029
      %v1038 = vsel %vm1033, %v1027, %v1028
      %v1039 = vsel %vm1033, %v1026, %v1027
      %v1040 = vsel %vm1033, %v1025, %v1026
      %v1041 = vsel %vm1033, %v1024, %v1025
      %v1042 = vsel %vm1033, %v1023, %v1024
      %v1043 = vsel %vm1033, %v1022, %v1023
      %v1044 = vsel %vm1033, %v1021, %v1022
      %v1045 = vsel %vm1033, %v1020, %v1021
      %v1046 = vsel %vm1033, %v1019, %v1020
      %v1047 = vsel %vm1033, %v1018, %v1019
      %v1048 = vsel %vm1033, %v1017, %v1018
      %v1049 = vsel %vm1033, %v1016, %v1017
      %v1050 = vsel %vm1033, %v1015, %v1016
      %v1051 = vsel %vm1033, %v1014, %v1015
      %v1052 = vsel %vm1033, %v1013, %v1014
      %v1053 = vsel %vm1033, %v1012, %v1013
      %v1054 = vsel %vm1033, %v1011, %v1012
      %v1055 = vsel %vm1033, %v1010, %v1011
      %v1056 = vsel %vm1033, %v1009, %v1010
      %v1057 = vsel %vm1033, %v1008, %v1009
      %v1058 = vsel %vm1033, %v1007, %v1008
      %v1059 = vsel %vm1033, %v1006, %v1007
      %v1060 = vsel %vm1033, %v1005, %v1006
      %v1061 = vsel %vm1033, %v1004, %v1005
      %v1062 = vsel %vm1033, %v1003, %v1004
      %v1063 = vsel %vm1033, %v1002, %v1003
      %v1064 = vsel %vm1033, %v1001, %v1002
      %v1065 = vsel %vm1033, %v1032, %v1001
      %vm1066 = vcmp.ge.s32.totalorder %v393, 1
      %vm1067 = vcmp.ge.s32.totalorder %v394, 1
      %vm1068 = vcmp.ge.s32.totalorder %v395, 1
      %vm1069 = vcmp.ge.s32.totalorder %v396, 1
      %vm1070 = vcmp.ge.s32.totalorder %v397, 1
      %vm1071 = vcmp.ge.s32.totalorder %v398, 1
      %vm1072 = vcmp.ge.s32.totalorder %v399, 1
      %vm1073 = vcmp.ge.s32.totalorder %v400, 1
      %vm1074 = vcmp.ge.s32.totalorder %v401, 1
      %vm1075 = vcmp.ge.s32.totalorder %v402, 1
      %vm1076 = vcmp.ge.s32.totalorder %v403, 1
      %vm1077 = vcmp.ge.s32.totalorder %v404, 1
      %vm1078 = vcmp.ge.s32.totalorder %v405, 1
      %vm1079 = vcmp.ge.s32.totalorder %v406, 1
      %vm1080 = vcmp.ge.s32.totalorder %v407, 1
      %vm1081 = vcmp.ge.s32.totalorder %v408, 1
      %vm1082 = vcmp.ge.s32.totalorder %v409, 1
      %vm1083 = vcmp.ge.s32.totalorder %v410, 1
      %vm1084 = vcmp.ge.s32.totalorder %v411, 1
      %vm1085 = vcmp.ge.s32.totalorder %v412, 1
      %vm1086 = vcmp.ge.s32.totalorder %v413, 1
      %vm1087 = vcmp.ge.s32.totalorder %v414, 1
      %vm1088 = vcmp.ge.s32.totalorder %v415, 1
      %vm1089 = vcmp.ge.s32.totalorder %v416, 1
      %vm1090 = vcmp.ge.s32.totalorder %v417, 1
      %vm1091 = vcmp.ge.s32.totalorder %v418, 1
      %vm1092 = vcmp.ge.s32.totalorder %v419, 1
      %vm1093 = vcmp.ge.s32.totalorder %v420, 1
      %vm1094 = vcmp.ge.s32.totalorder %v421, 1
      %vm1095 = vcmp.ge.s32.totalorder %v422, 1
      %vm1096 = vcmp.ge.s32.totalorder %v423, 1
      %vm1097 = vcmp.ge.s32.totalorder %v424, 1
      %v1098 = vsel %vm1066, 1, 0
      %v1099 = vsel %vm1067, 1, 0
      %v1100 = vsel %vm1068, 1, 0
      %v1101 = vsel %vm1069, 1, 0
      %v1102 = vsel %vm1070, 1, 0
      %v1103 = vsel %vm1071, 1, 0
      %v1104 = vsel %vm1072, 1, 0
      %v1105 = vsel %vm1073, 1, 0
      %v1106 = vsel %vm1074, 1, 0
      %v1107 = vsel %vm1075, 1, 0
      %v1108 = vsel %vm1076, 1, 0
      %v1109 = vsel %vm1077, 1, 0
      %v1110 = vsel %vm1078, 1, 0
      %v1111 = vsel %vm1079, 1, 0
      %v1112 = vsel %vm1080, 1, 0
      %v1113 = vsel %vm1081, 1, 0
      %v1114 = vsel %vm1082, 1, 0
      %v1115 = vsel %vm1083, 1, 0
      %v1116 = vsel %vm1084, 1, 0
      %v1117 = vsel %vm1085, 1, 0
      %v1118 = vsel %vm1086, 1, 0
      %v1119 = vsel %vm1087, 1, 0
      %v1120 = vsel %vm1088, 1, 0
      %v1121 = vsel %vm1089, 1, 0
      %v1122 = vsel %vm1090, 1, 0
      %v1123 = vsel %vm1091, 1, 0
      %v1124 = vsel %vm1092, 1, 0
      %v1125 = vsel %vm1093, 1, 0
      %v1126 = vsel %vm1094, 1, 0
      %v1127 = vsel %vm1095, 1, 0
      %v1128 = vsel %vm1096, 1, 0
      %v1129 = vsel %vm1097, 1, 0
      %v1130 = vcvt.s32.f32 %v1098
      %v1131 = vcvt.s32.f32 %v1099
      %v1132 = vcvt.s32.f32 %v1100
      %v1133 = vcvt.s32.f32 %v1101
      %v1134 = vcvt.s32.f32 %v1102
      %v1135 = vcvt.s32.f32 %v1103
      %v1136 = vcvt.s32.f32 %v1104
      %v1137 = vcvt.s32.f32 %v1105
      %v1138 = vcvt.s32.f32 %v1106
      %v1139 = vcvt.s32.f32 %v1107
      %v1140 = vcvt.s32.f32 %v1108
      %v1141 = vcvt.s32.f32 %v1109
      %v1142 = vcvt.s32.f32 %v1110
      %v1143 = vcvt.s32.f32 %v1111
      %v1144 = vcvt.s32.f32 %v1112
      %v1145 = vcvt.s32.f32 %v1113
      %v1146 = vcvt.s32.f32 %v1114
      %v1147 = vcvt.s32.f32 %v1115
      %v1148 = vcvt.s32.f32 %v1116
      %v1149 = vcvt.s32.f32 %v1117
      %v1150 = vcvt.s32.f32 %v1118
      %v1151 = vcvt.s32.f32 %v1119
      %v1152 = vcvt.s32.f32 %v1120
      %v1153 = vcvt.s32.f32 %v1121
      %v1154 = vcvt.s32.f32 %v1122
      %v1155 = vcvt.s32.f32 %v1123
      %v1156 = vcvt.s32.f32 %v1124
      %v1157 = vcvt.s32.f32 %v1125
      %v1158 = vcvt.s32.f32 %v1126
      %v1159 = vcvt.s32.f32 %v1127
      %v1160 = vcvt.s32.f32 %v1128
      %v1161 = vcvt.s32.f32 %v1129
      %v1162 = vmul.f32 %v1065, %v1130
      %v1163 = vmul.f32 %v1064, %v1131
      %v1164 = vmul.f32 %v1063, %v1132
      %v1165 = vmul.f32 %v1062, %v1133
      %v1166 = vmul.f32 %v1061, %v1134
      %v1167 = vmul.f32 %v1060, %v1135
      %v1168 = vmul.f32 %v1059, %v1136
      %v1169 = vmul.f32 %v1058, %v1137
      %v1170 = vmul.f32 %v1057, %v1138
      %v1171 = vmul.f32 %v1056, %v1139
      %v1172 = vmul.f32 %v1055, %v1140
      %v1173 = vmul.f32 %v1054, %v1141
      %v1174 = vmul.f32 %v1053, %v1142
      %v1175 = vmul.f32 %v1052, %v1143
      %v1176 = vmul.f32 %v1051, %v1144
      %v1177 = vmul.f32 %v1050, %v1145
      %v1178 = vmul.f32 %v1049, %v1146
      %v1179 = vmul.f32 %v1048, %v1147
      %v1180 = vmul.f32 %v1047, %v1148
      %v1181 = vmul.f32 %v1046, %v1149
      %v1182 = vmul.f32 %v1045, %v1150
      %v1183 = vmul.f32 %v1044, %v1151
      %v1184 = vmul.f32 %v1043, %v1152
      %v1185 = vmul.f32 %v1042, %v1153
      %v1186 = vmul.f32 %v1041, %v1154
      %v1187 = vmul.f32 %v1040, %v1155
      %v1188 = vmul.f32 %v1039, %v1156
      %v1189 = vmul.f32 %v1038, %v1157
      %v1190 = vmul.f32 %v1037, %v1158
      %v1191 = vmul.f32 %v1036, %v1159
      %v1192 = vmul.f32 %v1035, %v1160
      %v1193 = vmul.f32 %v1034, %v1161
      %v1194 = vmul.f32 %v1162, %v873
      %v1195 = vmul.f32 %v1163, %v874
      %v1196 = vmul.f32 %v1164, %v875
      %v1197 = vmul.f32 %v1165, %v876
      %v1198 = vmul.f32 %v1166, %v877
      %v1199 = vmul.f32 %v1167, %v878
      %v1200 = vmul.f32 %v1168, %v879
      %v1201 = vmul.f32 %v1169, %v880
      %v1202 = vmul.f32 %v1170, %v881
      %v1203 = vmul.f32 %v1171, %v882
      %v1204 = vmul.f32 %v1172, %v883
      %v1205 = vmul.f32 %v1173, %v884
      %v1206 = vmul.f32 %v1174, %v885
      %v1207 = vmul.f32 %v1175, %v886
      %v1208 = vmul.f32 %v1176, %v887
      %v1209 = vmul.f32 %v1177, %v888
      %v1210 = vmul.f32 %v1178, %v889
      %v1211 = vmul.f32 %v1179, %v890
      %v1212 = vmul.f32 %v1180, %v891
      %v1213 = vmul.f32 %v1181, %v892
      %v1214 = vmul.f32 %v1182, %v893
      %v1215 = vmul.f32 %v1183, %v894
      %v1216 = vmul.f32 %v1184, %v895
      %v1217 = vmul.f32 %v1185, %v896
      %v1218 = vmul.f32 %v1186, %v897
      %v1219 = vmul.f32 %v1187, %v898
      %v1220 = vmul.f32 %v1188, %v899
      %v1221 = vmul.f32 %v1189, %v900
      %v1222 = vmul.f32 %v1190, %v901
      %v1223 = vmul.f32 %v1191, %v902
      %v1224 = vmul.f32 %v1192, %v903
      %v1225 = vmul.f32 %v1193, %v904
      %v1226 = vrot.slane %v360, 1
      %v1227 = vrot.slane %v361, 1
      %v1228 = vrot.slane %v362, 1
      %v1229 = vrot.slane %v363, 1
      %v1230 = vrot.slane %v364, 1
      %v1231 = vrot.slane %v365, 1
      %v1232 = vrot.slane %v366, 1
      %v1233 = vrot.slane %v367, 1
      %v1234 = vrot.slane %v368, 1
      %v1235 = vrot.slane %v369, 1
      %v1236 = vrot.slane %v370, 1
      %v1237 = vrot.slane %v371, 1
      %v1238 = vrot.slane %v372, 1
      %v1239 = vrot.slane %v373, 1
      %v1240 = vrot.slane %v374, 1
      %v1241 = vrot.slane %v375, 1
      %v1242 = vrot.slane %v376, 1
      %v1243 = vrot.slane %v377, 1
      %v1244 = vrot.slane %v378, 1
      %v1245 = vrot.slane %v379, 1
      %v1246 = vrot.slane %v380, 1
      %v1247 = vrot.slane %v381, 1
      %v1248 = vrot.slane %v382, 1
      %v1249 = vrot.slane %v383, 1
      %v1250 = vrot.slane %v384, 1
      %v1251 = vrot.slane %v385, 1
      %v1252 = vrot.slane %v386, 1
      %v1253 = vrot.slane %v387, 1
      %v1254 = vrot.slane %v388, 1
      %v1255 = vrot.slane %v389, 1
      %v1256 = vrot.slane %v390, 1
      %v1257 = vrot.slane %v391, 1
      %vm1258 = vcmp.lt.s32.totalorder %v393, 7
      %v1259 = vsel %vm1258, %v1256, %v1257
      %v1260 = vsel %vm1258, %v1255, %v1256
      %v1261 = vsel %vm1258, %v1254, %v1255
      %v1262 = vsel %vm1258, %v1253, %v1254
      %v1263 = vsel %vm1258, %v1252, %v1253
      %v1264 = vsel %vm1258, %v1251, %v1252
      %v1265 = vsel %vm1258, %v1250, %v1251
      %v1266 = vsel %vm1258, %v1249, %v1250
      %v1267 = vsel %vm1258, %v1248, %v1249
      %v1268 = vsel %vm1258, %v1247, %v1248
      %v1269 = vsel %vm1258, %v1246, %v1247
      %v1270 = vsel %vm1258, %v1245, %v1246
      %v1271 = vsel %vm1258, %v1244, %v1245
      %v1272 = vsel %vm1258, %v1243, %v1244
      %v1273 = vsel %vm1258, %v1242, %v1243
      %v1274 = vsel %vm1258, %v1241, %v1242
      %v1275 = vsel %vm1258, %v1240, %v1241
      %v1276 = vsel %vm1258, %v1239, %v1240
      %v1277 = vsel %vm1258, %v1238, %v1239
      %v1278 = vsel %vm1258, %v1237, %v1238
      %v1279 = vsel %vm1258, %v1236, %v1237
      %v1280 = vsel %vm1258, %v1235, %v1236
      %v1281 = vsel %vm1258, %v1234, %v1235
      %v1282 = vsel %vm1258, %v1233, %v1234
      %v1283 = vsel %vm1258, %v1232, %v1233
      %v1284 = vsel %vm1258, %v1231, %v1232
      %v1285 = vsel %vm1258, %v1230, %v1231
      %v1286 = vsel %vm1258, %v1229, %v1230
      %v1287 = vsel %vm1258, %v1228, %v1229
      %v1288 = vsel %vm1258, %v1227, %v1228
      %v1289 = vsel %vm1258, %v1226, %v1227
      %v1290 = vsel %vm1258, %v1257, %v1226
      %vm1291 = vcmp.lt.s32.totalorder %v393, 255
      %vm1292 = vcmp.lt.s32.totalorder %v394, 255
      %vm1293 = vcmp.lt.s32.totalorder %v395, 255
      %vm1294 = vcmp.lt.s32.totalorder %v396, 255
      %vm1295 = vcmp.lt.s32.totalorder %v397, 255
      %vm1296 = vcmp.lt.s32.totalorder %v398, 255
      %vm1297 = vcmp.lt.s32.totalorder %v399, 255
      %vm1298 = vcmp.lt.s32.totalorder %v400, 255
      %vm1299 = vcmp.lt.s32.totalorder %v401, 255
      %vm1300 = vcmp.lt.s32.totalorder %v402, 255
      %vm1301 = vcmp.lt.s32.totalorder %v403, 255
      %vm1302 = vcmp.lt.s32.totalorder %v404, 255
      %vm1303 = vcmp.lt.s32.totalorder %v405, 255
      %vm1304 = vcmp.lt.s32.totalorder %v406, 255
      %vm1305 = vcmp.lt.s32.totalorder %v407, 255
      %vm1306 = vcmp.lt.s32.totalorder %v408, 255
      %vm1307 = vcmp.lt.s32.totalorder %v409, 255
      %vm1308 = vcmp.lt.s32.totalorder %v410, 255
      %vm1309 = vcmp.lt.s32.totalorder %v411, 255
      %vm1310 = vcmp.lt.s32.totalorder %v412, 255
      %vm1311 = vcmp.lt.s32.totalorder %v413, 255
      %vm1312 = vcmp.lt.s32.totalorder %v414, 255
      %vm1313 = vcmp.lt.s32.totalorder %v415, 255
      %vm1314 = vcmp.lt.s32.totalorder %v416, 255
      %vm1315 = vcmp.lt.s32.totalorder %v417, 255
      %vm1316 = vcmp.lt.s32.totalorder %v418, 255
      %vm1317 = vcmp.lt.s32.totalorder %v419, 255
      %vm1318 = vcmp.lt.s32.totalorder %v420, 255
      %vm1319 = vcmp.lt.s32.totalorder %v421, 255
      %vm1320 = vcmp.lt.s32.totalorder %v422, 255
      %vm1321 = vcmp.lt.s32.totalorder %v423, 255
      %vm1322 = vcmp.lt.s32.totalorder %v424, 255
      %v1323 = vsel %vm1291, 1, 0
      %v1324 = vsel %vm1292, 1, 0
      %v1325 = vsel %vm1293, 1, 0
      %v1326 = vsel %vm1294, 1, 0
      %v1327 = vsel %vm1295, 1, 0
      %v1328 = vsel %vm1296, 1, 0
      %v1329 = vsel %vm1297, 1, 0
      %v1330 = vsel %vm1298, 1, 0
      %v1331 = vsel %vm1299, 1, 0
      %v1332 = vsel %vm1300, 1, 0
      %v1333 = vsel %vm1301, 1, 0
      %v1334 = vsel %vm1302, 1, 0
      %v1335 = vsel %vm1303, 1, 0
      %v1336 = vsel %vm1304, 1, 0
      %v1337 = vsel %vm1305, 1, 0
      %v1338 = vsel %vm1306, 1, 0
      %v1339 = vsel %vm1307, 1, 0
      %v1340 = vsel %vm1308, 1, 0
      %v1341 = vsel %vm1309, 1, 0
      %v1342 = vsel %vm1310, 1, 0
      %v1343 = vsel %vm1311, 1, 0
      %v1344 = vsel %vm1312, 1, 0
      %v1345 = vsel %vm1313, 1, 0
      %v1346 = vsel %vm1314, 1, 0
      %v1347 = vsel %vm1315, 1, 0
      %v1348 = vsel %vm1316, 1, 0
      %v1349 = vsel %vm1317, 1, 0
      %v1350 = vsel %vm1318, 1, 0
      %v1351 = vsel %vm1319, 1, 0
      %v1352 = vsel %vm1320, 1, 0
      %v1353 = vsel %vm1321, 1, 0
      %v1354 = vsel %vm1322, 1, 0
      %v1355 = vcvt.s32.f32 %v1323
      %v1356 = vcvt.s32.f32 %v1324
      %v1357 = vcvt.s32.f32 %v1325
      %v1358 = vcvt.s32.f32 %v1326
      %v1359 = vcvt.s32.f32 %v1327
      %v1360 = vcvt.s32.f32 %v1328
      %v1361 = vcvt.s32.f32 %v1329
      %v1362 = vcvt.s32.f32 %v1330
      %v1363 = vcvt.s32.f32 %v1331
      %v1364 = vcvt.s32.f32 %v1332
      %v1365 = vcvt.s32.f32 %v1333
      %v1366 = vcvt.s32.f32 %v1334
      %v1367 = vcvt.s32.f32 %v1335
      %v1368 = vcvt.s32.f32 %v1336
      %v1369 = vcvt.s32.f32 %v1337
      %v1370 = vcvt.s32.f32 %v1338
      %v1371 = vcvt.s32.f32 %v1339
      %v1372 = vcvt.s32.f32 %v1340
      %v1373 = vcvt.s32.f32 %v1341
      %v1374 = vcvt.s32.f32 %v1342
      %v1375 = vcvt.s32.f32 %v1343
      %v1376 = vcvt.s32.f32 %v1344
      %v1377 = vcvt.s32.f32 %v1345
      %v1378 = vcvt.s32.f32 %v1346
      %v1379 = vcvt.s32.f32 %v1347
      %v1380 = vcvt.s32.f32 %v1348
      %v1381 = vcvt.s32.f32 %v1349
      %v1382 = vcvt.s32.f32 %v1350
      %v1383 = vcvt.s32.f32 %v1351
      %v1384 = vcvt.s32.f32 %v1352
      %v1385 = vcvt.s32.f32 %v1353
      %v1386 = vcvt.s32.f32 %v1354
      %v1387 = vmul.f32 %v1289, %v1355
      %v1388 = vmul.f32 %v1288, %v1356
      %v1389 = vmul.f32 %v1287, %v1357
      %v1390 = vmul.f32 %v1286, %v1358
      %v1391 = vmul.f32 %v1285, %v1359
      %v1392 = vmul.f32 %v1284, %v1360
      %v1393 = vmul.f32 %v1283, %v1361
      %v1394 = vmul.f32 %v1282, %v1362
      %v1395 = vmul.f32 %v1281, %v1363
      %v1396 = vmul.f32 %v1280, %v1364
      %v1397 = vmul.f32 %v1279, %v1365
      %v1398 = vmul.f32 %v1278, %v1366
      %v1399 = vmul.f32 %v1277, %v1367
      %v1400 = vmul.f32 %v1276, %v1368
      %v1401 = vmul.f32 %v1275, %v1369
      %v1402 = vmul.f32 %v1274, %v1370
      %v1403 = vmul.f32 %v1273, %v1371
      %v1404 = vmul.f32 %v1272, %v1372
      %v1405 = vmul.f32 %v1271, %v1373
      %v1406 = vmul.f32 %v1270, %v1374
      %v1407 = vmul.f32 %v1269, %v1375
      %v1408 = vmul.f32 %v1268, %v1376
      %v1409 = vmul.f32 %v1267, %v1377
      %v1410 = vmul.f32 %v1266, %v1378
      %v1411 = vmul.f32 %v1265, %v1379
      %v1412 = vmul.f32 %v1264, %v1380
      %v1413 = vmul.f32 %v1263, %v1381
      %v1414 = vmul.f32 %v1262, %v1382
      %v1415 = vmul.f32 %v1261, %v1383
      %v1416 = vmul.f32 %v1260, %v1384
      %v1417 = vmul.f32 %v1259, %v1385
      %v1418 = vmul.f32 %v1290, %v1386
      %v1419 = vmul.f32 %v1387, %v969
      %v1420 = vmul.f32 %v1388, %v970
      %v1421 = vmul.f32 %v1389, %v971
      %v1422 = vmul.f32 %v1390, %v972
      %v1423 = vmul.f32 %v1391, %v973
      %v1424 = vmul.f32 %v1392, %v974
      %v1425 = vmul.f32 %v1393, %v975
      %v1426 = vmul.f32 %v1394, %v976
      %v1427 = vmul.f32 %v1395, %v977
      %v1428 = vmul.f32 %v1396, %v978
      %v1429 = vmul.f32 %v1397, %v979
      %v1430 = vmul.f32 %v1398, %v980
      %v1431 = vmul.f32 %v1399, %v981
      %v1432 = vmul.f32 %v1400, %v982
      %v1433 = vmul.f32 %v1401, %v983
      %v1434 = vmul.f32 %v1402, %v984
      %v1435 = vmul.f32 %v1403, %v985
      %v1436 = vmul.f32 %v1404, %v986
      %v1437 = vmul.f32 %v1405, %v987
      %v1438 = vmul.f32 %v1406, %v988
      %v1439 = vmul.f32 %v1407, %v989
      %v1440 = vmul.f32 %v1408, %v990
      %v1441 = vmul.f32 %v1409, %v991
      %v1442 = vmul.f32 %v1410, %v992
      %v1443 = vmul.f32 %v1411, %v993
      %v1444 = vmul.f32 %v1412, %v994
      %v1445 = vmul.f32 %v1413, %v995
      %v1446 = vmul.f32 %v1414, %v996
      %v1447 = vmul.f32 %v1415, %v997
      %v1448 = vmul.f32 %v1416, %v998
      %v1449 = vmul.f32 %v1417, %v999
      %v1450 = vmul.f32 %v1418, %v1000
      %1483 = vrot.lane.b32.xlu0 %v360, 32
      %v1484 = vpop.permute.xlu0 %1483
      %1485 = vrot.lane.b32.xlu0 %v361, 32
      %v1486 = vpop.permute.xlu0 %1485
      %1487 = vrot.lane.b32.xlu0 %v362, 32
      %v1488 = vpop.permute.xlu0 %1487
      %1489 = vrot.lane.b32.xlu0 %v363, 32
      %v1490 = vpop.permute.xlu0 %1489
      %1491 = vrot.lane.b32.xlu0 %v364, 32
      %v1492 = vpop.permute.xlu0 %1491
      %1493 = vrot.lane.b32.xlu0 %v365, 32
      %v1494 = vpop.permute.xlu0 %1493
      %1495 = vrot.lane.b32.xlu0 %v366, 32
      %v1496 = vpop.permute.xlu0 %1495
      %1497 = vrot.lane.b32.xlu0 %v367, 32
      %v1498 = vpop.permute.xlu0 %1497
      %1499 = vrot.lane.b32.xlu0 %v368, 32
      %v1500 = vpop.permute.xlu0 %1499
      %1501 = vrot.lane.b32.xlu0 %v369, 32
      %v1502 = vpop.permute.xlu0 %1501
      %1503 = vrot.lane.b32.xlu0 %v370, 32
      %v1504 = vpop.permute.xlu0 %1503
      %1505 = vrot.lane.b32.xlu0 %v371, 32
      %v1506 = vpop.permute.xlu0 %1505
      %1507 = vrot.lane.b32.xlu0 %v372, 32
      %v1508 = vpop.permute.xlu0 %1507
      %1509 = vrot.lane.b32.xlu0 %v373, 32
      %v1510 = vpop.permute.xlu0 %1509
      %1511 = vrot.lane.b32.xlu0 %v374, 32
      %v1512 = vpop.permute.xlu0 %1511
      %1513 = vrot.lane.b32.xlu0 %v375, 32
      %v1514 = vpop.permute.xlu0 %1513
      %1515 = vrot.lane.b32.xlu0 %v376, 32
      %v1516 = vpop.permute.xlu0 %1515
      %1517 = vrot.lane.b32.xlu0 %v377, 32
      %v1518 = vpop.permute.xlu0 %1517
      %1519 = vrot.lane.b32.xlu0 %v378, 32
      %v1520 = vpop.permute.xlu0 %1519
      %1521 = vrot.lane.b32.xlu0 %v379, 32
      %v1522 = vpop.permute.xlu0 %1521
      %1523 = vrot.lane.b32.xlu0 %v380, 32
      %v1524 = vpop.permute.xlu0 %1523
      %1525 = vrot.lane.b32.xlu0 %v381, 32
      %v1526 = vpop.permute.xlu0 %1525
      %1527 = vrot.lane.b32.xlu0 %v382, 32
      %v1528 = vpop.permute.xlu0 %1527
      %1529 = vrot.lane.b32.xlu0 %v383, 32
      %v1530 = vpop.permute.xlu0 %1529
      %1531 = vrot.lane.b32.xlu0 %v384, 32
      %v1532 = vpop.permute.xlu0 %1531
      %1533 = vrot.lane.b32.xlu0 %v385, 32
      %v1534 = vpop.permute.xlu0 %1533
      %1535 = vrot.lane.b32.xlu0 %v386, 32
      %v1536 = vpop.permute.xlu0 %1535
      %1537 = vrot.lane.b32.xlu0 %v387, 32
      %v1538 = vpop.permute.xlu0 %1537
      %1539 = vrot.lane.b32.xlu0 %v388, 32
      %v1540 = vpop.permute.xlu0 %1539
      %1541 = vrot.lane.b32.xlu0 %v389, 32
      %v1542 = vpop.permute.xlu0 %1541
      %1543 = vrot.lane.b32.xlu0 %v390, 32
      %v1544 = vpop.permute.xlu0 %1543
      %1545 = vrot.lane.b32.xlu0 %v391, 32
      %v1546 = vpop.permute.xlu0 %1545
      %1611 = vrot.lane.b32.xlu0 %v1419, 64
      %v1612 = vpop.permute.xlu0 %1611
      %1613 = vrot.lane.b32.xlu0 %v1420, 64
      %v1614 = vpop.permute.xlu0 %1613
      %1615 = vrot.lane.b32.xlu0 %v1421, 64
      %v1616 = vpop.permute.xlu0 %1615
      %1617 = vrot.lane.b32.xlu0 %v1422, 64
      %v1618 = vpop.permute.xlu0 %1617
      %1619 = vrot.lane.b32.xlu0 %v1423, 64
      %v1620 = vpop.permute.xlu0 %1619
      %1621 = vrot.lane.b32.xlu0 %v1424, 64
      %v1622 = vpop.permute.xlu0 %1621
      %1623 = vrot.lane.b32.xlu0 %v1425, 64
      %v1624 = vpop.permute.xlu0 %1623
      %1625 = vrot.lane.b32.xlu0 %v1426, 64
      %v1626 = vpop.permute.xlu0 %1625
      %1627 = vrot.lane.b32.xlu0 %v1427, 64
      %v1628 = vpop.permute.xlu0 %1627
      %1629 = vrot.lane.b32.xlu0 %v1428, 64
      %v1630 = vpop.permute.xlu0 %1629
      %1631 = vrot.lane.b32.xlu0 %v1429, 64
      %v1632 = vpop.permute.xlu0 %1631
      %1633 = vrot.lane.b32.xlu0 %v1430, 64
      %v1634 = vpop.permute.xlu0 %1633
      %1635 = vrot.lane.b32.xlu0 %v1431, 64
      %v1636 = vpop.permute.xlu0 %1635
      %1637 = vrot.lane.b32.xlu0 %v1432, 64
      %v1638 = vpop.permute.xlu0 %1637
      %1639 = vrot.lane.b32.xlu0 %v1433, 64
      %v1640 = vpop.permute.xlu0 %1639
      %1641 = vrot.lane.b32.xlu0 %v1434, 64
      %v1642 = vpop.permute.xlu0 %1641
      %1643 = vrot.lane.b32.xlu0 %v1435, 64
      %v1644 = vpop.permute.xlu0 %1643
      %1645 = vrot.lane.b32.xlu0 %v1436, 64
      %v1646 = vpop.permute.xlu0 %1645
      %1647 = vrot.lane.b32.xlu0 %v1437, 64
      %v1648 = vpop.permute.xlu0 %1647
      %1649 = vrot.lane.b32.xlu0 %v1438, 64
      %v1650 = vpop.permute.xlu0 %1649
      %1651 = vrot.lane.b32.xlu0 %v1439, 64
      %v1652 = vpop.permute.xlu0 %1651
      %1653 = vrot.lane.b32.xlu0 %v1440, 64
      %v1654 = vpop.permute.xlu0 %1653
      %1655 = vrot.lane.b32.xlu0 %v1441, 64
      %v1656 = vpop.permute.xlu0 %1655
      %1657 = vrot.lane.b32.xlu0 %v1442, 64
      %v1658 = vpop.permute.xlu0 %1657
      %1659 = vrot.lane.b32.xlu0 %v1443, 64
      %v1660 = vpop.permute.xlu0 %1659
      %1661 = vrot.lane.b32.xlu0 %v1444, 64
      %v1662 = vpop.permute.xlu0 %1661
      %1663 = vrot.lane.b32.xlu0 %v1445, 64
      %v1664 = vpop.permute.xlu0 %1663
      %1665 = vrot.lane.b32.xlu0 %v1446, 64
      %v1666 = vpop.permute.xlu0 %1665
      %1667 = vrot.lane.b32.xlu0 %v1447, 64
      %v1668 = vpop.permute.xlu0 %1667
      %1669 = vrot.lane.b32.xlu0 %v1448, 64
      %v1670 = vpop.permute.xlu0 %1669
      %1671 = vrot.lane.b32.xlu0 %v1449, 64
      %v1672 = vpop.permute.xlu0 %1671
      %1673 = vrot.lane.b32.xlu0 %v1450, 64
      %v1674 = vpop.permute.xlu0 %1673
      %vm1707 = vcmask 261120
      %v1708 = vsel %vm1707, %v1194, %v1484
      %v1709 = vsel %vm1707, %v1195, %v1486
      %v1710 = vsel %vm1707, %v1196, %v1488
      %v1711 = vsel %vm1707, %v1197, %v1490
      %v1712 = vsel %vm1707, %v1198, %v1492
      %v1713 = vsel %vm1707, %v1199, %v1494
      %v1714 = vsel %vm1707, %v1200, %v1496
      %v1715 = vsel %vm1707, %v1201, %v1498
      %v1716 = vsel %vm1707, %v1202, %v1500
      %v1717 = vsel %vm1707, %v1203, %v1502
      %v1718 = vsel %vm1707, %v1204, %v1504
      %v1719 = vsel %vm1707, %v1205, %v1506
      %v1720 = vsel %vm1707, %v1206, %v1508
      %v1721 = vsel %vm1707, %v1207, %v1510
      %v1722 = vsel %vm1707, %v1208, %v1512
      %v1723 = vsel %vm1707, %v1209, %v1514
      %v1724 = vsel %vm1707, %v1210, %v1516
      %v1725 = vsel %vm1707, %v1211, %v1518
      %v1726 = vsel %vm1707, %v1212, %v1520
      %v1727 = vsel %vm1707, %v1213, %v1522
      %v1728 = vsel %vm1707, %v1214, %v1524
      %v1729 = vsel %vm1707, %v1215, %v1526
      %v1730 = vsel %vm1707, %v1216, %v1528
      %v1731 = vsel %vm1707, %v1217, %v1530
      %v1732 = vsel %vm1707, %v1218, %v1532
      %v1733 = vsel %vm1707, %v1219, %v1534
      %v1734 = vsel %vm1707, %v1220, %v1536
      %v1735 = vsel %vm1707, %v1221, %v1538
      %v1736 = vsel %vm1707, %v1222, %v1540
      %v1737 = vsel %vm1707, %v1223, %v1542
      %v1738 = vsel %vm1707, %v1224, %v1544
      %v1739 = vsel %vm1707, %v1225, %v1546
      %vm1740 = vcmask 523264
      %v1741 = vsel %vm1740, %v1708, %v1612
      %v1742 = vsel %vm1740, %v1709, %v1614
      %v1743 = vsel %vm1740, %v1710, %v1616
      %v1744 = vsel %vm1740, %v1711, %v1618
      %v1745 = vsel %vm1740, %v1712, %v1620
      %v1746 = vsel %vm1740, %v1713, %v1622
      %v1747 = vsel %vm1740, %v1714, %v1624
      %v1748 = vsel %vm1740, %v1715, %v1626
      %v1749 = vsel %vm1740, %v1716, %v1628
      %v1750 = vsel %vm1740, %v1717, %v1630
      %v1751 = vsel %vm1740, %v1718, %v1632
      %v1752 = vsel %vm1740, %v1719, %v1634
      %v1753 = vsel %vm1740, %v1720, %v1636
      %v1754 = vsel %vm1740, %v1721, %v1638
      %v1755 = vsel %vm1740, %v1722, %v1640
      %v1756 = vsel %vm1740, %v1723, %v1642
      %v1757 = vsel %vm1740, %v1724, %v1644
      %v1758 = vsel %vm1740, %v1725, %v1646
      %v1759 = vsel %vm1740, %v1726, %v1648
      %v1760 = vsel %vm1740, %v1727, %v1650
      %v1761 = vsel %vm1740, %v1728, %v1652
      %v1762 = vsel %vm1740, %v1729, %v1654
      %v1763 = vsel %vm1740, %v1730, %v1656
      %v1764 = vsel %vm1740, %v1731, %v1658
      %v1765 = vsel %vm1740, %v1732, %v1660
      %v1766 = vsel %vm1740, %v1733, %v1662
      %v1767 = vsel %vm1740, %v1734, %v1664
      %v1768 = vsel %vm1740, %v1735, %v1666
      %v1769 = vsel %vm1740, %v1736, %v1668
      %v1770 = vsel %vm1740, %v1737, %v1670
      %v1771 = vsel %vm1740, %v1738, %v1672
      %v1772 = vsel %vm1740, %v1739, %v1674
      %v1773 = vld [vmem:[%s1] sm:$0xff]
      %v1774 = vld [vmem:[%s1 + $0x8] sm:$0xff]
      %v1775 = vld [vmem:[%s1 + $0x10] sm:$0xff]
      %v1776 = vld [vmem:[%s1 + $0x18] sm:$0xff]
      %v1777 = vld [vmem:[%s1 + $0x20] sm:$0xff]
      %v1778 = vld [vmem:[%s1 + $0x28] sm:$0xff]
      %v1779 = vld [vmem:[%s1 + $0x30] sm:$0xff]
      %v1780 = vld [vmem:[%s1 + $0x38] sm:$0xff]
      %v1781 = vld [vmem:[%s1 + $0x40] sm:$0xff]
      %v1782 = vld [vmem:[%s1 + $0x48] sm:$0xff]
      %v1783 = vld [vmem:[%s1 + $0x50] sm:$0xff]
      %v1784 = vld [vmem:[%s1 + $0x58] sm:$0xff]
      %vm1785 = vcmask 785408
      %v1787 = vsel %vm1785, %v1741, 0
      %v1790 = vsel %vm1785, %v1742, 0
      %v1793 = vsel %vm1785, %v1743, 0
      %v1796 = vsel %vm1785, %v1744, 0
      %v1799 = vsel %vm1785, %v1745, 0
      %v1802 = vsel %vm1785, %v1746, 0
      %v1805 = vsel %vm1785, %v1747, 0
      %v1808 = vsel %vm1785, %v1748, 0
      %v1811 = vsel %vm1785, %v1749, 0
      %v1814 = vsel %vm1785, %v1750, 0
      %v1817 = vsel %vm1785, %v1751, 0
      %v1820 = vsel %vm1785, %v1752, 0
      %v1823 = vsel %vm1785, %v1753, 0
      %v1826 = vsel %vm1785, %v1754, 0
      %v1829 = vsel %vm1785, %v1755, 0
      %v1832 = vsel %vm1785, %v1756, 0
      %v1835 = vsel %vm1785, %v1757, 0
      %v1838 = vsel %vm1785, %v1758, 0
      %v1841 = vsel %vm1785, %v1759, 0
      %v1844 = vsel %vm1785, %v1760, 0
      %v1847 = vsel %vm1785, %v1761, 0
      %v1850 = vsel %vm1785, %v1762, 0
      %v1853 = vsel %vm1785, %v1763, 0
      %v1856 = vsel %vm1785, %v1764, 0
      %v1859 = vsel %vm1785, %v1765, 0
      %v1862 = vsel %vm1785, %v1766, 0
      %v1865 = vsel %vm1785, %v1767, 0
      %v1868 = vsel %vm1785, %v1768, 0
      %v1871 = vsel %vm1785, %v1769, 0
      %v1874 = vsel %vm1785, %v1770, 0
      %v1877 = vsel %vm1785, %v1771, 0
      %v1880 = vsel %vm1785, %v1772, 0
      %1882 = vmatprep.subr.mxu0 0.0
      %1883 = vmatpush1.msra.mxu0 0.0
      %1884 = vmatprep.subr.mxu0 0.0
      %1885 = vmatpush1.msra.mxu0 0.0
      %1886 = vmatprep.subr.mxu0 0.0
      %1887 = vmatpush1.msra.mxu0 0.0
      %1888 = vmatprep.subr.mxu0 0.0
      %1889 = vmatpush1.msra.mxu0 0.0
      %1890 = vmatprep.subr.mxu0 0.0
      %1891 = vmatpush1.msra.mxu0 %v1784
      %1892 = vmatprep.subr.mxu0 0.0
      %1893 = vmatpush1.msra.mxu0 %v1783
      %1894 = vmatprep.subr.mxu0 0.0
      %1895 = vmatpush1.msra.mxu0 %v1782
      %1896 = vmatprep.subr.mxu0 0.0
      %1897 = vmatpush1.msra.mxu0 %v1781
      %1898 = vmatprep.subr.mxu0 0.0
      %1899 = vmatpush1.msra.mxu0 %v1780
      %1900 = vmatprep.subr.mxu0 0.0
      %1901 = vmatpush1.msra.mxu0 %v1779
      %1902 = vmatprep.subr.mxu0 0.0
      %1903 = vmatpush1.msra.mxu0 %v1778
      %1904 = vmatprep.subr.mxu0 0.0
      %1905 = vmatpush1.msra.mxu0 %v1777
      %1906 = vmatprep.subr.mxu0 0.0
      %1907 = vmatpush1.msra.mxu0 %v1776
      %1908 = vmatprep.subr.mxu0 0.0
      %1909 = vmatpush1.msra.mxu0 %v1775
      %1910 = vmatprep.subr.mxu0 0.0
      %1911 = vmatpush1.msra.mxu0 %v1774
      %1912 = vmatprep.subr.mxu0 0.0
      %1913 = vmatpush1.msra.mxu0 %v1773
      %1914 = vmatprep.subr.mxu0 0.0
      %1915 = vmatpush2.msra.mxu0 0.0
      %1916 = vmatprep.subr.mxu0 0.0
      %1917 = vmatpush2.msra.mxu0 0.0
      %1918 = vmatprep.subr.mxu0 0.0
      %1919 = vmatpush2.msra.mxu0 0.0
      %1920 = vmatprep.subr.mxu0 0.0
      %1921 = vmatpush2.msra.mxu0 0.0
      %1922 = vmatprep.subr.mxu0 0.0
      %1923 = vmatpush2.msra.mxu0 0.0
      %1924 = vmatprep.subr.mxu0 0.0
      %1925 = vmatpush2.msra.mxu0 0.0
      %1926 = vmatprep.subr.mxu0 0.0
      %1927 = vmatpush2.msra.mxu0 0.0
      %1928 = vmatprep.subr.mxu0 0.0
      %1929 = vmatpush2.msra.mxu0 0.0
      %1930 = vmatprep.subr.mxu0 0.0
      %1931 = vmatpush2.msra.mxu0 0.0
      %1932 = vmatprep.subr.mxu0 0.0
      %1933 = vmatpush2.msra.mxu0 0.0
      %1934 = vmatprep.subr.mxu0 0.0
      %1935 = vmatpush2.msra.mxu0 0.0
      %1936 = vmatprep.subr.mxu0 0.0
      %1937 = vmatpush2.msra.mxu0 0.0
      %1938 = vmatprep.subr.mxu0 0.0
      %1939 = vmatpush2.msra.mxu0 0.0
      %1940 = vmatprep.subr.mxu0 0.0
      %1941 = vmatpush2.msra.mxu0 0.0
      %1942 = vmatprep.subr.mxu0 0.0
      %1943 = vmatpush2.msra.mxu0 0.0
      %1944 = vmatprep.subr.mxu0 0.0
      %1945 = vmatpush2.msra.mxu0 0.0
      %1946 = vmatprep.mubr.f32.mxu0 0.0
      %1947 = vmatmul.mubr.f32.gmra.mxu0 %v1787
      %v1948 = vpop.f32.mrf.mxu0
      %v1949 = vadd.f32 0.0, %v1948
      %v1950 = vpop.f32.mrf.mxu0
      %1951 = vmatprep.mubr.f32.mxu0 0.0
      %1952 = vmatmul.mubr.f32.gmra.mxu0 %v1790
      %v1953 = vpop.f32.mrf.mxu0
      %v1954 = vadd.f32 0.0, %v1953
      %v1955 = vpop.f32.mrf.mxu0
      %1956 = vmatprep.mubr.f32.mxu0 0.0
      %1957 = vmatmul.mubr.f32.gmra.mxu0 %v1793
      %v1958 = vpop.f32.mrf.mxu0
      %v1959 = vadd.f32 0.0, %v1958
      %v1960 = vpop.f32.mrf.mxu0
      %1961 = vmatprep.mubr.f32.mxu0 0.0
      %1962 = vmatmul.mubr.f32.gmra.mxu0 %v1796
      %v1963 = vpop.f32.mrf.mxu0
      %v1964 = vadd.f32 0.0, %v1963
      %v1965 = vpop.f32.mrf.mxu0
      %1966 = vmatprep.mubr.f32.mxu0 0.0
      %1967 = vmatmul.mubr.f32.gmra.mxu0 %v1799
      %v1968 = vpop.f32.mrf.mxu0
      %v1969 = vadd.f32 0.0, %v1968
      %v1970 = vpop.f32.mrf.mxu0
      %1971 = vmatprep.mubr.f32.mxu0 0.0
      %1972 = vmatmul.mubr.f32.gmra.mxu0 %v1802
      %v1973 = vpop.f32.mrf.mxu0
      %v1974 = vadd.f32 0.0, %v1973
      %v1975 = vpop.f32.mrf.mxu0
      %1976 = vmatprep.mubr.f32.mxu0 0.0
      %1977 = vmatmul.mubr.f32.gmra.mxu0 %v1805
      %v1978 = vpop.f32.mrf.mxu0
      %v1979 = vadd.f32 0.0, %v1978
      %v1980 = vpop.f32.mrf.mxu0
      %1981 = vmatprep.mubr.f32.mxu0 0.0
      %1982 = vmatmul.mubr.f32.gmra.mxu0 %v1808
      %v1983 = vpop.f32.mrf.mxu0
      %v1984 = vadd.f32 0.0, %v1983
      %v1985 = vpop.f32.mrf.mxu0
      %1986 = vmatprep.mubr.f32.mxu0 0.0
      %1987 = vmatmul.mubr.f32.gmra.mxu0 %v1811
      %v1988 = vpop.f32.mrf.mxu0
      %v1989 = vadd.f32 0.0, %v1988
      %v1990 = vpop.f32.mrf.mxu0
      %1991 = vmatprep.mubr.f32.mxu0 0.0
      %1992 = vmatmul.mubr.f32.gmra.mxu0 %v1814
      %v1993 = vpop.f32.mrf.mxu0
      %v1994 = vadd.f32 0.0, %v1993
      %v1995 = vpop.f32.mrf.mxu0
      %1996 = vmatprep.mubr.f32.mxu0 0.0
      %1997 = vmatmul.mubr.f32.gmra.mxu0 %v1817
      %v1998 = vpop.f32.mrf.mxu0
      %v1999 = vadd.f32 0.0, %v1998
      %v2000 = vpop.f32.mrf.mxu0
      %2001 = vmatprep.mubr.f32.mxu0 0.0
      %2002 = vmatmul.mubr.f32.gmra.mxu0 %v1820
      %v2003 = vpop.f32.mrf.mxu0
      %v2004 = vadd.f32 0.0, %v2003
      %v2005 = vpop.f32.mrf.mxu0
      %2006 = vmatprep.mubr.f32.mxu0 0.0
      %2007 = vmatmul.mubr.f32.gmra.mxu0 %v1823
      %v2008 = vpop.f32.mrf.mxu0
      %v2009 = vadd.f32 0.0, %v2008
      %v2010 = vpop.f32.mrf.mxu0
      %2011 = vmatprep.mubr.f32.mxu0 0.0
      %2012 = vmatmul.mubr.f32.gmra.mxu0 %v1826
      %v2013 = vpop.f32.mrf.mxu0
      %v2014 = vadd.f32 0.0, %v2013
      %v2015 = vpop.f32.mrf.mxu0
      %2016 = vmatprep.mubr.f32.mxu0 0.0
      %2017 = vmatmul.mubr.f32.gmra.mxu0 %v1829
      %v2018 = vpop.f32.mrf.mxu0
      %v2019 = vadd.f32 0.0, %v2018
      %v2020 = vpop.f32.mrf.mxu0
      %2021 = vmatprep.mubr.f32.mxu0 0.0
      %2022 = vmatmul.mubr.f32.gmra.mxu0 %v1832
      %v2023 = vpop.f32.mrf.mxu0
      %v2024 = vadd.f32 0.0, %v2023
      %v2025 = vpop.f32.mrf.mxu0
      %2026 = vmatprep.mubr.f32.mxu0 0.0
      %2027 = vmatmul.mubr.f32.gmra.mxu0 %v1835
      %v2028 = vpop.f32.mrf.mxu0
      %v2029 = vadd.f32 0.0, %v2028
      %v2030 = vpop.f32.mrf.mxu0
      %2031 = vmatprep.mubr.f32.mxu0 0.0
      %2032 = vmatmul.mubr.f32.gmra.mxu0 %v1838
      %v2033 = vpop.f32.mrf.mxu0
      %v2034 = vadd.f32 0.0, %v2033
      %v2035 = vpop.f32.mrf.mxu0
      %2036 = vmatprep.mubr.f32.mxu0 0.0
      %2037 = vmatmul.mubr.f32.gmra.mxu0 %v1841
      %v2038 = vpop.f32.mrf.mxu0
      %v2039 = vadd.f32 0.0, %v2038
      %v2040 = vpop.f32.mrf.mxu0
      %2041 = vmatprep.mubr.f32.mxu0 0.0
      %2042 = vmatmul.mubr.f32.gmra.mxu0 %v1844
      %v2043 = vpop.f32.mrf.mxu0
      %v2044 = vadd.f32 0.0, %v2043
      %v2045 = vpop.f32.mrf.mxu0
      %2046 = vmatprep.mubr.f32.mxu0 0.0
      %2047 = vmatmul.mubr.f32.gmra.mxu0 %v1847
      %v2048 = vpop.f32.mrf.mxu0
      %v2049 = vadd.f32 0.0, %v2048
      %v2050 = vpop.f32.mrf.mxu0
      %2051 = vmatprep.mubr.f32.mxu0 0.0
      %2052 = vmatmul.mubr.f32.gmra.mxu0 %v1850
      %v2053 = vpop.f32.mrf.mxu0
      %v2054 = vadd.f32 0.0, %v2053
      %v2055 = vpop.f32.mrf.mxu0
      %2056 = vmatprep.mubr.f32.mxu0 0.0
      %2057 = vmatmul.mubr.f32.gmra.mxu0 %v1853
      %v2058 = vpop.f32.mrf.mxu0
      %v2059 = vadd.f32 0.0, %v2058
      %v2060 = vpop.f32.mrf.mxu0
      %2061 = vmatprep.mubr.f32.mxu0 0.0
      %2062 = vmatmul.mubr.f32.gmra.mxu0 %v1856
      %v2063 = vpop.f32.mrf.mxu0
      %v2064 = vadd.f32 0.0, %v2063
      %v2065 = vpop.f32.mrf.mxu0
      %2066 = vmatprep.mubr.f32.mxu0 0.0
      %2067 = vmatmul.mubr.f32.gmra.mxu0 %v1859
      %v2068 = vpop.f32.mrf.mxu0
      %v2069 = vadd.f32 0.0, %v2068
      %v2070 = vpop.f32.mrf.mxu0
      %2071 = vmatprep.mubr.f32.mxu0 0.0
      %2072 = vmatmul.mubr.f32.gmra.mxu0 %v1862
      %v2073 = vpop.f32.mrf.mxu0
      %v2074 = vadd.f32 0.0, %v2073
      %v2075 = vpop.f32.mrf.mxu0
      %2076 = vmatprep.mubr.f32.mxu0 0.0
      %2077 = vmatmul.mubr.f32.gmra.mxu0 %v1865
      %v2078 = vpop.f32.mrf.mxu0
      %v2079 = vadd.f32 0.0, %v2078
      %v2080 = vpop.f32.mrf.mxu0
      %2081 = vmatprep.mubr.f32.mxu0 0.0
      %2082 = vmatmul.mubr.f32.gmra.mxu0 %v1868
      %v2083 = vpop.f32.mrf.mxu0
      %v2084 = vadd.f32 0.0, %v2083
      %v2085 = vpop.f32.mrf.mxu0
      %2086 = vmatprep.mubr.f32.mxu0 0.0
      %2087 = vmatmul.mubr.f32.gmra.mxu0 %v1871
      %v2088 = vpop.f32.mrf.mxu0
      %v2089 = vadd.f32 0.0, %v2088
      %v2090 = vpop.f32.mrf.mxu0
      %2091 = vmatprep.mubr.f32.mxu0 0.0
      %2092 = vmatmul.mubr.f32.gmra.mxu0 %v1874
      %v2093 = vpop.f32.mrf.mxu0
      %v2094 = vadd.f32 0.0, %v2093
      %v2095 = vpop.f32.mrf.mxu0
      %2096 = vmatprep.mubr.f32.mxu0 0.0
      %2097 = vmatmul.mubr.f32.gmra.mxu0 %v1877
      %v2098 = vpop.f32.mrf.mxu0
      %v2099 = vadd.f32 0.0, %v2098
      %v2100 = vpop.f32.mrf.mxu0
      %2101 = vmatprep.mubr.f32.mxu0 0.0
      %2102 = vmatmul.mubr.f32.gmra.mxu0 %v1880
      %v2103 = vpop.f32.mrf.mxu0
      %v2104 = vadd.f32 0.0, %v2103
      %v2105 = vpop.f32.mrf.mxu0
      %2106 = vdwg.mxu0
      %s2107 = scalar_lea.vmem %s1, 96
      %v2108 = vld [vmem:[%s2107] sm:$0xff]
      %v2109 = vld [vmem:[%s2107 + $0x8] sm:$0xff]
      %v2110 = vld [vmem:[%s2107 + $0x10] sm:$0xff]
      %v2111 = vld [vmem:[%s2107 + $0x18] sm:$0xff]
      %v2112 = vld [vmem:[%s2107 + $0x20] sm:$0xff]
      %v2113 = vld [vmem:[%s2107 + $0x28] sm:$0xff]
      %v2114 = vld [vmem:[%s2107 + $0x30] sm:$0xff]
      %v2115 = vld [vmem:[%s2107 + $0x38] sm:$0xff]
      %v2116 = vld [vmem:[%s2107 + $0x40] sm:$0xff]
      %v2117 = vld [vmem:[%s2107 + $0x48] sm:$0xff]
      %v2118 = vld [vmem:[%s2107 + $0x50] sm:$0xff]
      %v2119 = vld [vmem:[%s2107 + $0x58] sm:$0xff]
      %2120 = vmatprep.subr.mxu0 0.0
      %2121 = vmatpush1.msra.mxu0 0.0
      %2122 = vmatprep.subr.mxu0 0.0
      %2123 = vmatpush1.msra.mxu0 0.0
      %2124 = vmatprep.subr.mxu0 0.0
      %2125 = vmatpush1.msra.mxu0 0.0
      %2126 = vmatprep.subr.mxu0 0.0
      %2127 = vmatpush1.msra.mxu0 0.0
      %2128 = vmatprep.subr.mxu0 0.0
      %2129 = vmatpush1.msra.mxu0 %v2119
      %2130 = vmatprep.subr.mxu0 0.0
      %2131 = vmatpush1.msra.mxu0 %v2118
      %2132 = vmatprep.subr.mxu0 0.0
      %2133 = vmatpush1.msra.mxu0 %v2117
      %2134 = vmatprep.subr.mxu0 0.0
      %2135 = vmatpush1.msra.mxu0 %v2116
      %2136 = vmatprep.subr.mxu0 0.0
      %2137 = vmatpush1.msra.mxu0 %v2115
      %2138 = vmatprep.subr.mxu0 0.0
      %2139 = vmatpush1.msra.mxu0 %v2114
      %2140 = vmatprep.subr.mxu0 0.0
      %2141 = vmatpush1.msra.mxu0 %v2113
      %2142 = vmatprep.subr.mxu0 0.0
      %2143 = vmatpush1.msra.mxu0 %v2112
      %2144 = vmatprep.subr.mxu0 0.0
      %2145 = vmatpush1.msra.mxu0 %v2111
      %2146 = vmatprep.subr.mxu0 0.0
      %2147 = vmatpush1.msra.mxu0 %v2110
      %2148 = vmatprep.subr.mxu0 0.0
      %2149 = vmatpush1.msra.mxu0 %v2109
      %2150 = vmatprep.subr.mxu0 0.0
      %2151 = vmatpush1.msra.mxu0 %v2108
      %2152 = vmatprep.subr.mxu0 0.0
      %2153 = vmatpush2.msra.mxu0 0.0
      %2154 = vmatprep.subr.mxu0 0.0
      %2155 = vmatpush2.msra.mxu0 0.0
      %2156 = vmatprep.subr.mxu0 0.0
      %2157 = vmatpush2.msra.mxu0 0.0
      %2158 = vmatprep.subr.mxu0 0.0
      %2159 = vmatpush2.msra.mxu0 0.0
      %2160 = vmatprep.subr.mxu0 0.0
      %2161 = vmatpush2.msra.mxu0 0.0
      %2162 = vmatprep.subr.mxu0 0.0
      %2163 = vmatpush2.msra.mxu0 0.0
      %2164 = vmatprep.subr.mxu0 0.0
      %2165 = vmatpush2.msra.mxu0 0.0
      %2166 = vmatprep.subr.mxu0 0.0
      %2167 = vmatpush2.msra.mxu0 0.0
      %2168 = vmatprep.subr.mxu0 0.0
      %2169 = vmatpush2.msra.mxu0 0.0
      %2170 = vmatprep.subr.mxu0 0.0
      %2171 = vmatpush2.msra.mxu0 0.0
      %2172 = vmatprep.subr.mxu0 0.0
      %2173 = vmatpush2.msra.mxu0 0.0
      %2174 = vmatprep.subr.mxu0 0.0
      %2175 = vmatpush2.msra.mxu0 0.0
      %2176 = vmatprep.subr.mxu0 0.0
      %2177 = vmatpush2.msra.mxu0 0.0
      %2178 = vmatprep.subr.mxu0 0.0
      %2179 = vmatpush2.msra.mxu0 0.0
      %2180 = vmatprep.subr.mxu0 0.0
      %2181 = vmatpush2.msra.mxu0 0.0
      %2182 = vmatprep.subr.mxu0 0.0
      %2183 = vmatpush2.msra.mxu0 0.0
      %2184 = vmatprep.mubr.f32.mxu0 0.0
      %2185 = vmatmul.mubr.f32.gmra.mxu0 %v1787
      %v2186 = vpop.f32.mrf.mxu0
      %v2187 = vadd.f32 0.0, %v2186
      %v2188 = vpop.f32.mrf.mxu0
      %2189 = vmatprep.mubr.f32.mxu0 0.0
      %2190 = vmatmul.mubr.f32.gmra.mxu0 %v1790
      %v2191 = vpop.f32.mrf.mxu0
      %v2192 = vadd.f32 0.0, %v2191
      %v2193 = vpop.f32.mrf.mxu0
      %2194 = vmatprep.mubr.f32.mxu0 0.0
      %2195 = vmatmul.mubr.f32.gmra.mxu0 %v1793
      %v2196 = vpop.f32.mrf.mxu0
      %v2197 = vadd.f32 0.0, %v2196
      %v2198 = vpop.f32.mrf.mxu0
      %2199 = vmatprep.mubr.f32.mxu0 0.0
      %2200 = vmatmul.mubr.f32.gmra.mxu0 %v1796
      %v2201 = vpop.f32.mrf.mxu0
      %v2202 = vadd.f32 0.0, %v2201
      %v2203 = vpop.f32.mrf.mxu0
      %2204 = vmatprep.mubr.f32.mxu0 0.0
      %2205 = vmatmul.mubr.f32.gmra.mxu0 %v1799
      %v2206 = vpop.f32.mrf.mxu0
      %v2207 = vadd.f32 0.0, %v2206
      %v2208 = vpop.f32.mrf.mxu0
      %2209 = vmatprep.mubr.f32.mxu0 0.0
      %2210 = vmatmul.mubr.f32.gmra.mxu0 %v1802
      %v2211 = vpop.f32.mrf.mxu0
      %v2212 = vadd.f32 0.0, %v2211
      %v2213 = vpop.f32.mrf.mxu0
      %2214 = vmatprep.mubr.f32.mxu0 0.0
      %2215 = vmatmul.mubr.f32.gmra.mxu0 %v1805
      %v2216 = vpop.f32.mrf.mxu0
      %v2217 = vadd.f32 0.0, %v2216
      %v2218 = vpop.f32.mrf.mxu0
      %2219 = vmatprep.mubr.f32.mxu0 0.0
      %2220 = vmatmul.mubr.f32.gmra.mxu0 %v1808
      %v2221 = vpop.f32.mrf.mxu0
      %v2222 = vadd.f32 0.0, %v2221
      %v2223 = vpop.f32.mrf.mxu0
      %2224 = vmatprep.mubr.f32.mxu0 0.0
      %2225 = vmatmul.mubr.f32.gmra.mxu0 %v1811
      %v2226 = vpop.f32.mrf.mxu0
      %v2227 = vadd.f32 0.0, %v2226
      %v2228 = vpop.f32.mrf.mxu0
      %2229 = vmatprep.mubr.f32.mxu0 0.0
      %2230 = vmatmul.mubr.f32.gmra.mxu0 %v1814
      %v2231 = vpop.f32.mrf.mxu0
      %v2232 = vadd.f32 0.0, %v2231
      %v2233 = vpop.f32.mrf.mxu0
      %2234 = vmatprep.mubr.f32.mxu0 0.0
      %2235 = vmatmul.mubr.f32.gmra.mxu0 %v1817
      %v2236 = vpop.f32.mrf.mxu0
      %v2237 = vadd.f32 0.0, %v2236
      %v2238 = vpop.f32.mrf.mxu0
      %2239 = vmatprep.mubr.f32.mxu0 0.0
      %2240 = vmatmul.mubr.f32.gmra.mxu0 %v1820
      %v2241 = vpop.f32.mrf.mxu0
      %v2242 = vadd.f32 0.0, %v2241
      %v2243 = vpop.f32.mrf.mxu0
      %2244 = vmatprep.mubr.f32.mxu0 0.0
      %2245 = vmatmul.mubr.f32.gmra.mxu0 %v1823
      %v2246 = vpop.f32.mrf.mxu0
      %v2247 = vadd.f32 0.0, %v2246
      %v2248 = vpop.f32.mrf.mxu0
      %2249 = vmatprep.mubr.f32.mxu0 0.0
      %2250 = vmatmul.mubr.f32.gmra.mxu0 %v1826
      %v2251 = vpop.f32.mrf.mxu0
      %v2252 = vadd.f32 0.0, %v2251
      %v2253 = vpop.f32.mrf.mxu0
      %2254 = vmatprep.mubr.f32.mxu0 0.0
      %2255 = vmatmul.mubr.f32.gmra.mxu0 %v1829
      %v2256 = vpop.f32.mrf.mxu0
      %v2257 = vadd.f32 0.0, %v2256
      %v2258 = vpop.f32.mrf.mxu0
      %2259 = vmatprep.mubr.f32.mxu0 0.0
      %2260 = vmatmul.mubr.f32.gmra.mxu0 %v1832
      %v2261 = vpop.f32.mrf.mxu0
      %v2262 = vadd.f32 0.0, %v2261
      %v2263 = vpop.f32.mrf.mxu0
      %2264 = vmatprep.mubr.f32.mxu0 0.0
      %2265 = vmatmul.mubr.f32.gmra.mxu0 %v1835
      %v2266 = vpop.f32.mrf.mxu0
      %v2267 = vadd.f32 0.0, %v2266
      %v2268 = vpop.f32.mrf.mxu0
      %2269 = vmatprep.mubr.f32.mxu0 0.0
      %2270 = vmatmul.mubr.f32.gmra.mxu0 %v1838
      %v2271 = vpop.f32.mrf.mxu0
      %v2272 = vadd.f32 0.0, %v2271
      %v2273 = vpop.f32.mrf.mxu0
      %2274 = vmatprep.mubr.f32.mxu0 0.0
      %2275 = vmatmul.mubr.f32.gmra.mxu0 %v1841
      %v2276 = vpop.f32.mrf.mxu0
      %v2277 = vadd.f32 0.0, %v2276
      %v2278 = vpop.f32.mrf.mxu0
      %2279 = vmatprep.mubr.f32.mxu0 0.0
      %2280 = vmatmul.mubr.f32.gmra.mxu0 %v1844
      %v2281 = vpop.f32.mrf.mxu0
      %v2282 = vadd.f32 0.0, %v2281
      %v2283 = vpop.f32.mrf.mxu0
      %2284 = vmatprep.mubr.f32.mxu0 0.0
      %2285 = vmatmul.mubr.f32.gmra.mxu0 %v1847
      %v2286 = vpop.f32.mrf.mxu0
      %v2287 = vadd.f32 0.0, %v2286
      %v2288 = vpop.f32.mrf.mxu0
      %2289 = vmatprep.mubr.f32.mxu0 0.0
      %2290 = vmatmul.mubr.f32.gmra.mxu0 %v1850
      %v2291 = vpop.f32.mrf.mxu0
      %v2292 = vadd.f32 0.0, %v2291
      %v2293 = vpop.f32.mrf.mxu0
      %2294 = vmatprep.mubr.f32.mxu0 0.0
      %2295 = vmatmul.mubr.f32.gmra.mxu0 %v1853
      %v2296 = vpop.f32.mrf.mxu0
      %v2297 = vadd.f32 0.0, %v2296
      %v2298 = vpop.f32.mrf.mxu0
      %2299 = vmatprep.mubr.f32.mxu0 0.0
      %2300 = vmatmul.mubr.f32.gmra.mxu0 %v1856
      %v2301 = vpop.f32.mrf.mxu0
      %v2302 = vadd.f32 0.0, %v2301
      %v2303 = vpop.f32.mrf.mxu0
      %2304 = vmatprep.mubr.f32.mxu0 0.0
      %2305 = vmatmul.mubr.f32.gmra.mxu0 %v1859
      %v2306 = vpop.f32.mrf.mxu0
      %v2307 = vadd.f32 0.0, %v2306
      %v2308 = vpop.f32.mrf.mxu0
      %2309 = vmatprep.mubr.f32.mxu0 0.0
      %2310 = vmatmul.mubr.f32.gmra.mxu0 %v1862
      %v2311 = vpop.f32.mrf.mxu0
      %v2312 = vadd.f32 0.0, %v2311
      %v2313 = vpop.f32.mrf.mxu0
      %2314 = vmatprep.mubr.f32.mxu0 0.0
      %2315 = vmatmul.mubr.f32.gmra.mxu0 %v1865
      %v2316 = vpop.f32.mrf.mxu0
      %v2317 = vadd.f32 0.0, %v2316
      %v2318 = vpop.f32.mrf.mxu0
      %2319 = vmatprep.mubr.f32.mxu0 0.0
      %2320 = vmatmul.mubr.f32.gmra.mxu0 %v1868
      %v2321 = vpop.f32.mrf.mxu0
      %v2322 = vadd.f32 0.0, %v2321
      %v2323 = vpop.f32.mrf.mxu0
      %2324 = vmatprep.mubr.f32.mxu0 0.0
      %2325 = vmatmul.mubr.f32.gmra.mxu0 %v1871
      %v2326 = vpop.f32.mrf.mxu0
      %v2327 = vadd.f32 0.0, %v2326
      %v2328 = vpop.f32.mrf.mxu0
      %2329 = vmatprep.mubr.f32.mxu0 0.0
      %2330 = vmatmul.mubr.f32.gmra.mxu0 %v1874
      %v2331 = vpop.f32.mrf.mxu0
      %v2332 = vadd.f32 0.0, %v2331
      %v2333 = vpop.f32.mrf.mxu0
      %2334 = vmatprep.mubr.f32.mxu0 0.0
      %2335 = vmatmul.mubr.f32.gmra.mxu0 %v1877
      %v2336 = vpop.f32.mrf.mxu0
      %v2337 = vadd.f32 0.0, %v2336
      %v2338 = vpop.f32.mrf.mxu0
      %2339 = vmatprep.mubr.f32.mxu0 0.0
      %2340 = vmatmul.mubr.f32.gmra.mxu0 %v1880
      %v2341 = vpop.f32.mrf.mxu0
      %v2342 = vadd.f32 0.0, %v2341
      %v2343 = vpop.f32.mrf.mxu0
      %2344 = vdwg.mxu0
      %s2345 = scalar_lea.vmem %s1, 192
      %v2346 = vld [vmem:[%s2345] sm:$0xff]
      %v2347 = vld [vmem:[%s2345 + $0x8] sm:$0xff]
      %v2348 = vld [vmem:[%s2345 + $0x10] sm:$0xff]
      %v2349 = vld [vmem:[%s2345 + $0x18] sm:$0xff]
      %v2350 = vld [vmem:[%s2345 + $0x20] sm:$0xff]
      %v2351 = vld [vmem:[%s2345 + $0x28] sm:$0xff]
      %v2352 = vld [vmem:[%s2345 + $0x30] sm:$0xff]
      %v2353 = vld [vmem:[%s2345 + $0x38] sm:$0xff]
      %v2354 = vld [vmem:[%s2345 + $0x40] sm:$0xff]
      %v2355 = vld [vmem:[%s2345 + $0x48] sm:$0xff]
      %v2356 = vld [vmem:[%s2345 + $0x50] sm:$0xff]
      %v2357 = vld [vmem:[%s2345 + $0x58] sm:$0xff]
      %2358 = vmatprep.subr.mxu0 0.0
      %2359 = vmatpush1.msra.mxu0 0.0
      %2360 = vmatprep.subr.mxu0 0.0
      %2361 = vmatpush1.msra.mxu0 0.0
      %2362 = vmatprep.subr.mxu0 0.0
      %2363 = vmatpush1.msra.mxu0 0.0
      %2364 = vmatprep.subr.mxu0 0.0
      %2365 = vmatpush1.msra.mxu0 0.0
      %2366 = vmatprep.subr.mxu0 0.0
      %2367 = vmatpush1.msra.mxu0 %v2357
      %2368 = vmatprep.subr.mxu0 0.0
      %2369 = vmatpush1.msra.mxu0 %v2356
      %2370 = vmatprep.subr.mxu0 0.0
      %2371 = vmatpush1.msra.mxu0 %v2355
      %2372 = vmatprep.subr.mxu0 0.0
      %2373 = vmatpush1.msra.mxu0 %v2354
      %2374 = vmatprep.subr.mxu0 0.0
      %2375 = vmatpush1.msra.mxu0 %v2353
      %2376 = vmatprep.subr.mxu0 0.0
      %2377 = vmatpush1.msra.mxu0 %v2352
      %2378 = vmatprep.subr.mxu0 0.0
      %2379 = vmatpush1.msra.mxu0 %v2351
      %2380 = vmatprep.subr.mxu0 0.0
      %2381 = vmatpush1.msra.mxu0 %v2350
      %2382 = vmatprep.subr.mxu0 0.0
      %2383 = vmatpush1.msra.mxu0 %v2349
      %2384 = vmatprep.subr.mxu0 0.0
      %2385 = vmatpush1.msra.mxu0 %v2348
      %2386 = vmatprep.subr.mxu0 0.0
      %2387 = vmatpush1.msra.mxu0 %v2347
      %2388 = vmatprep.subr.mxu0 0.0
      %2389 = vmatpush1.msra.mxu0 %v2346
      %2390 = vmatprep.subr.mxu0 0.0
      %2391 = vmatpush2.msra.mxu0 0.0
      %2392 = vmatprep.subr.mxu0 0.0
      %2393 = vmatpush2.msra.mxu0 0.0
      %2394 = vmatprep.subr.mxu0 0.0
      %2395 = vmatpush2.msra.mxu0 0.0
      %2396 = vmatprep.subr.mxu0 0.0
      %2397 = vmatpush2.msra.mxu0 0.0
      %2398 = vmatprep.subr.mxu0 0.0
      %2399 = vmatpush2.msra.mxu0 0.0
      %2400 = vmatprep.subr.mxu0 0.0
      %2401 = vmatpush2.msra.mxu0 0.0
      %2402 = vmatprep.subr.mxu0 0.0
      %2403 = vmatpush2.msra.mxu0 0.0
      %2404 = vmatprep.subr.mxu0 0.0
      %2405 = vmatpush2.msra.mxu0 0.0
      %2406 = vmatprep.subr.mxu0 0.0
      %2407 = vmatpush2.msra.mxu0 0.0
      %2408 = vmatprep.subr.mxu0 0.0
      %2409 = vmatpush2.msra.mxu0 0.0
      %2410 = vmatprep.subr.mxu0 0.0
      %2411 = vmatpush2.msra.mxu0 0.0
      %2412 = vmatprep.subr.mxu0 0.0
      %2413 = vmatpush2.msra.mxu0 0.0
      %2414 = vmatprep.subr.mxu0 0.0
      %2415 = vmatpush2.msra.mxu0 0.0
      %2416 = vmatprep.subr.mxu0 0.0
      %2417 = vmatpush2.msra.mxu0 0.0
      %2418 = vmatprep.subr.mxu0 0.0
      %2419 = vmatpush2.msra.mxu0 0.0
      %2420 = vmatprep.subr.mxu0 0.0
      %2421 = vmatpush2.msra.mxu0 0.0
      %2422 = vmatprep.mubr.f32.mxu0 0.0
      %2423 = vmatmul.mubr.f32.gmra.mxu0 %v1787
      %v2424 = vpop.f32.mrf.mxu0
      %v2425 = vadd.f32 0.0, %v2424
      %v2426 = vpop.f32.mrf.mxu0
      %2427 = vmatprep.mubr.f32.mxu0 0.0
      %2428 = vmatmul.mubr.f32.gmra.mxu0 %v1790
      %v2429 = vpop.f32.mrf.mxu0
      %v2430 = vadd.f32 0.0, %v2429
      %v2431 = vpop.f32.mrf.mxu0
      %2432 = vmatprep.mubr.f32.mxu0 0.0
      %2433 = vmatmul.mubr.f32.gmra.mxu0 %v1793
      %v2434 = vpop.f32.mrf.mxu0
      %v2435 = vadd.f32 0.0, %v2434
      %v2436 = vpop.f32.mrf.mxu0
      %2437 = vmatprep.mubr.f32.mxu0 0.0
      %2438 = vmatmul.mubr.f32.gmra.mxu0 %v1796
      %v2439 = vpop.f32.mrf.mxu0
      %v2440 = vadd.f32 0.0, %v2439
      %v2441 = vpop.f32.mrf.mxu0
      %2442 = vmatprep.mubr.f32.mxu0 0.0
      %2443 = vmatmul.mubr.f32.gmra.mxu0 %v1799
      %v2444 = vpop.f32.mrf.mxu0
      %v2445 = vadd.f32 0.0, %v2444
      %v2446 = vpop.f32.mrf.mxu0
      %2447 = vmatprep.mubr.f32.mxu0 0.0
      %2448 = vmatmul.mubr.f32.gmra.mxu0 %v1802
      %v2449 = vpop.f32.mrf.mxu0
      %v2450 = vadd.f32 0.0, %v2449
      %v2451 = vpop.f32.mrf.mxu0
      %2452 = vmatprep.mubr.f32.mxu0 0.0
      %2453 = vmatmul.mubr.f32.gmra.mxu0 %v1805
      %v2454 = vpop.f32.mrf.mxu0
      %v2455 = vadd.f32 0.0, %v2454
      %v2456 = vpop.f32.mrf.mxu0
      %2457 = vmatprep.mubr.f32.mxu0 0.0
      %2458 = vmatmul.mubr.f32.gmra.mxu0 %v1808
      %v2459 = vpop.f32.mrf.mxu0
      %v2460 = vadd.f32 0.0, %v2459
      %v2461 = vpop.f32.mrf.mxu0
      %2462 = vmatprep.mubr.f32.mxu0 0.0
      %2463 = vmatmul.mubr.f32.gmra.mxu0 %v1811
      %v2464 = vpop.f32.mrf.mxu0
      %v2465 = vadd.f32 0.0, %v2464
      %v2466 = vpop.f32.mrf.mxu0
      %2467 = vmatprep.mubr.f32.mxu0 0.0
      %2468 = vmatmul.mubr.f32.gmra.mxu0 %v1814
      %v2469 = vpop.f32.mrf.mxu0
      %v2470 = vadd.f32 0.0, %v2469
      %v2471 = vpop.f32.mrf.mxu0
      %2472 = vmatprep.mubr.f32.mxu0 0.0
      %2473 = vmatmul.mubr.f32.gmra.mxu0 %v1817
      %v2474 = vpop.f32.mrf.mxu0
      %v2475 = vadd.f32 0.0, %v2474
      %v2476 = vpop.f32.mrf.mxu0
      %2477 = vmatprep.mubr.f32.mxu0 0.0
      %2478 = vmatmul.mubr.f32.gmra.mxu0 %v1820
      %v2479 = vpop.f32.mrf.mxu0
      %v2480 = vadd.f32 0.0, %v2479
      %v2481 = vpop.f32.mrf.mxu0
      %2482 = vmatprep.mubr.f32.mxu0 0.0
      %2483 = vmatmul.mubr.f32.gmra.mxu0 %v1823
      %v2484 = vpop.f32.mrf.mxu0
      %v2485 = vadd.f32 0.0, %v2484
      %v2486 = vpop.f32.mrf.mxu0
      %2487 = vmatprep.mubr.f32.mxu0 0.0
      %2488 = vmatmul.mubr.f32.gmra.mxu0 %v1826
      %v2489 = vpop.f32.mrf.mxu0
      %v2490 = vadd.f32 0.0, %v2489
      %v2491 = vpop.f32.mrf.mxu0
      %2492 = vmatprep.mubr.f32.mxu0 0.0
      %2493 = vmatmul.mubr.f32.gmra.mxu0 %v1829
      %v2494 = vpop.f32.mrf.mxu0
      %v2495 = vadd.f32 0.0, %v2494
      %v2496 = vpop.f32.mrf.mxu0
      %2497 = vmatprep.mubr.f32.mxu0 0.0
      %2498 = vmatmul.mubr.f32.gmra.mxu0 %v1832
      %v2499 = vpop.f32.mrf.mxu0
      %v2500 = vadd.f32 0.0, %v2499
      %v2501 = vpop.f32.mrf.mxu0
      %2502 = vmatprep.mubr.f32.mxu0 0.0
      %2503 = vmatmul.mubr.f32.gmra.mxu0 %v1835
      %v2504 = vpop.f32.mrf.mxu0
      %v2505 = vadd.f32 0.0, %v2504
      %v2506 = vpop.f32.mrf.mxu0
      %2507 = vmatprep.mubr.f32.mxu0 0.0
      %2508 = vmatmul.mubr.f32.gmra.mxu0 %v1838
      %v2509 = vpop.f32.mrf.mxu0
      %v2510 = vadd.f32 0.0, %v2509
      %v2511 = vpop.f32.mrf.mxu0
      %2512 = vmatprep.mubr.f32.mxu0 0.0
      %2513 = vmatmul.mubr.f32.gmra.mxu0 %v1841
      %v2514 = vpop.f32.mrf.mxu0
      %v2515 = vadd.f32 0.0, %v2514
      %v2516 = vpop.f32.mrf.mxu0
      %2517 = vmatprep.mubr.f32.mxu0 0.0
      %2518 = vmatmul.mubr.f32.gmra.mxu0 %v1844
      %v2519 = vpop.f32.mrf.mxu0
      %v2520 = vadd.f32 0.0, %v2519
      %v2521 = vpop.f32.mrf.mxu0
      %2522 = vmatprep.mubr.f32.mxu0 0.0
      %2523 = vmatmul.mubr.f32.gmra.mxu0 %v1847
      %v2524 = vpop.f32.mrf.mxu0
      %v2525 = vadd.f32 0.0, %v2524
      %v2526 = vpop.f32.mrf.mxu0
      %2527 = vmatprep.mubr.f32.mxu0 0.0
      %2528 = vmatmul.mubr.f32.gmra.mxu0 %v1850
      %v2529 = vpop.f32.mrf.mxu0
      %v2530 = vadd.f32 0.0, %v2529
      %v2531 = vpop.f32.mrf.mxu0
      %2532 = vmatprep.mubr.f32.mxu0 0.0
      %2533 = vmatmul.mubr.f32.gmra.mxu0 %v1853
      %v2534 = vpop.f32.mrf.mxu0
      %v2535 = vadd.f32 0.0, %v2534
      %v2536 = vpop.f32.mrf.mxu0
      %2537 = vmatprep.mubr.f32.mxu0 0.0
      %2538 = vmatmul.mubr.f32.gmra.mxu0 %v1856
      %v2539 = vpop.f32.mrf.mxu0
      %v2540 = vadd.f32 0.0, %v2539
      %v2541 = vpop.f32.mrf.mxu0
      %2542 = vmatprep.mubr.f32.mxu0 0.0
      %2543 = vmatmul.mubr.f32.gmra.mxu0 %v1859
      %v2544 = vpop.f32.mrf.mxu0
      %v2545 = vadd.f32 0.0, %v2544
      %v2546 = vpop.f32.mrf.mxu0
      %2547 = vmatprep.mubr.f32.mxu0 0.0
      %2548 = vmatmul.mubr.f32.gmra.mxu0 %v1862
      %v2549 = vpop.f32.mrf.mxu0
      %v2550 = vadd.f32 0.0, %v2549
      %v2551 = vpop.f32.mrf.mxu0
      %2552 = vmatprep.mubr.f32.mxu0 0.0
      %2553 = vmatmul.mubr.f32.gmra.mxu0 %v1865
      %v2554 = vpop.f32.mrf.mxu0
      %v2555 = vadd.f32 0.0, %v2554
      %v2556 = vpop.f32.mrf.mxu0
      %2557 = vmatprep.mubr.f32.mxu0 0.0
      %2558 = vmatmul.mubr.f32.gmra.mxu0 %v1868
      %v2559 = vpop.f32.mrf.mxu0
      %v2560 = vadd.f32 0.0, %v2559
      %v2561 = vpop.f32.mrf.mxu0
      %2562 = vmatprep.mubr.f32.mxu0 0.0
      %2563 = vmatmul.mubr.f32.gmra.mxu0 %v1871
      %v2564 = vpop.f32.mrf.mxu0
      %v2565 = vadd.f32 0.0, %v2564
      %v2566 = vpop.f32.mrf.mxu0
      %2567 = vmatprep.mubr.f32.mxu0 0.0
      %2568 = vmatmul.mubr.f32.gmra.mxu0 %v1874
      %v2569 = vpop.f32.mrf.mxu0
      %v2570 = vadd.f32 0.0, %v2569
      %v2571 = vpop.f32.mrf.mxu0
      %2572 = vmatprep.mubr.f32.mxu0 0.0
      %2573 = vmatmul.mubr.f32.gmra.mxu0 %v1877
      %v2574 = vpop.f32.mrf.mxu0
      %v2575 = vadd.f32 0.0, %v2574
      %v2576 = vpop.f32.mrf.mxu0
      %2577 = vmatprep.mubr.f32.mxu0 0.0
      %2578 = vmatmul.mubr.f32.gmra.mxu0 %v1880
      %v2579 = vpop.f32.mrf.mxu0
      %v2580 = vadd.f32 0.0, %v2579
      %v2581 = vpop.f32.mrf.mxu0
      %2582 = vdwg.mxu0
      %vm2583 = vcmp.ge.s32.totalorder %v393, 16
      %vm2584 = vcmp.ge.s32.totalorder %v394, 16
      %vm2585 = vcmp.ge.s32.totalorder %v395, 16
      %vm2586 = vcmp.ge.s32.totalorder %v396, 16
      %vm2587 = vcmp.ge.s32.totalorder %v397, 16
      %vm2588 = vcmp.ge.s32.totalorder %v398, 16
      %vm2589 = vcmp.ge.s32.totalorder %v399, 16
      %vm2590 = vcmp.ge.s32.totalorder %v400, 16
      %vm2591 = vcmp.ge.s32.totalorder %v401, 16
      %vm2592 = vcmp.ge.s32.totalorder %v402, 16
      %vm2593 = vcmp.ge.s32.totalorder %v403, 16
      %vm2594 = vcmp.ge.s32.totalorder %v404, 16
      %vm2595 = vcmp.ge.s32.totalorder %v405, 16
      %vm2596 = vcmp.ge.s32.totalorder %v406, 16
      %vm2597 = vcmp.ge.s32.totalorder %v407, 16
      %vm2598 = vcmp.ge.s32.totalorder %v408, 16
      %vm2599 = vcmp.ge.s32.totalorder %v409, 16
      %vm2600 = vcmp.ge.s32.totalorder %v410, 16
      %vm2601 = vcmp.ge.s32.totalorder %v411, 16
      %vm2602 = vcmp.ge.s32.totalorder %v412, 16
      %vm2603 = vcmp.ge.s32.totalorder %v413, 16
      %vm2604 = vcmp.ge.s32.totalorder %v414, 16
      %vm2605 = vcmp.ge.s32.totalorder %v415, 16
      %vm2606 = vcmp.ge.s32.totalorder %v416, 16
      %vm2607 = vcmp.ge.s32.totalorder %v417, 16
      %vm2608 = vcmp.ge.s32.totalorder %v418, 16
      %vm2609 = vcmp.ge.s32.totalorder %v419, 16
      %vm2610 = vcmp.ge.s32.totalorder %v420, 16
      %vm2611 = vcmp.ge.s32.totalorder %v421, 16
      %vm2612 = vcmp.ge.s32.totalorder %v422, 16
      %vm2613 = vcmp.ge.s32.totalorder %v423, 16
      %vm2614 = vcmp.ge.s32.totalorder %v424, 16
      %v2615 = vsel %vm2583, 1, 0
      %v2616 = vsel %vm2584, 1, 0
      %v2617 = vsel %vm2585, 1, 0
      %v2618 = vsel %vm2586, 1, 0
      %v2619 = vsel %vm2587, 1, 0
      %v2620 = vsel %vm2588, 1, 0
      %v2621 = vsel %vm2589, 1, 0
      %v2622 = vsel %vm2590, 1, 0
      %v2623 = vsel %vm2591, 1, 0
      %v2624 = vsel %vm2592, 1, 0
      %v2625 = vsel %vm2593, 1, 0
      %v2626 = vsel %vm2594, 1, 0
      %v2627 = vsel %vm2595, 1, 0
      %v2628 = vsel %vm2596, 1, 0
      %v2629 = vsel %vm2597, 1, 0
      %v2630 = vsel %vm2598, 1, 0
      %v2631 = vsel %vm2599, 1, 0
      %v2632 = vsel %vm2600, 1, 0
      %v2633 = vsel %vm2601, 1, 0
      %v2634 = vsel %vm2602, 1, 0
      %v2635 = vsel %vm2603, 1, 0
      %v2636 = vsel %vm2604, 1, 0
      %v2637 = vsel %vm2605, 1, 0
      %v2638 = vsel %vm2606, 1, 0
      %v2639 = vsel %vm2607, 1, 0
      %v2640 = vsel %vm2608, 1, 0
      %v2641 = vsel %vm2609, 1, 0
      %v2642 = vsel %vm2610, 1, 0
      %v2643 = vsel %vm2611, 1, 0
      %v2644 = vsel %vm2612, 1, 0
      %v2645 = vsel %vm2613, 1, 0
      %v2646 = vsel %vm2614, 1, 0
      %v2647 = vcvt.s32.f32 %v2615
      %v2648 = vcvt.s32.f32 %v2616
      %v2649 = vcvt.s32.f32 %v2617
      %v2650 = vcvt.s32.f32 %v2618
      %v2651 = vcvt.s32.f32 %v2619
      %v2652 = vcvt.s32.f32 %v2620
      %v2653 = vcvt.s32.f32 %v2621
      %v2654 = vcvt.s32.f32 %v2622
      %v2655 = vcvt.s32.f32 %v2623
      %v2656 = vcvt.s32.f32 %v2624
      %v2657 = vcvt.s32.f32 %v2625
      %v2658 = vcvt.s32.f32 %v2626
      %v2659 = vcvt.s32.f32 %v2627
      %v2660 = vcvt.s32.f32 %v2628
      %v2661 = vcvt.s32.f32 %v2629
      %v2662 = vcvt.s32.f32 %v2630
      %v2663 = vcvt.s32.f32 %v2631
      %v2664 = vcvt.s32.f32 %v2632
      %v2665 = vcvt.s32.f32 %v2633
      %v2666 = vcvt.s32.f32 %v2634
      %v2667 = vcvt.s32.f32 %v2635
      %v2668 = vcvt.s32.f32 %v2636
      %v2669 = vcvt.s32.f32 %v2637
      %v2670 = vcvt.s32.f32 %v2638
      %v2671 = vcvt.s32.f32 %v2639
      %v2672 = vcvt.s32.f32 %v2640
      %v2673 = vcvt.s32.f32 %v2641
      %v2674 = vcvt.s32.f32 %v2642
      %v2675 = vcvt.s32.f32 %v2643
      %v2676 = vcvt.s32.f32 %v2644
      %v2677 = vcvt.s32.f32 %v2645
      %v2678 = vcvt.s32.f32 %v2646
      %v2679 = vmul.f32 %v2099, %v2647
      %v2680 = vmul.f32 %v2104, %v2648
      %v2681 = vmul.f32 %v1949, %v2649
      %v2682 = vmul.f32 %v1954, %v2650
      %v2683 = vmul.f32 %v1959, %v2651
      %v2684 = vmul.f32 %v1964, %v2652
      %v2685 = vmul.f32 %v1969, %v2653
      %v2686 = vmul.f32 %v1974, %v2654
      %v2687 = vmul.f32 %v1979, %v2655
      %v2688 = vmul.f32 %v1984, %v2656
      %v2689 = vmul.f32 %v1989, %v2657
      %v2690 = vmul.f32 %v1994, %v2658
      %v2691 = vmul.f32 %v1999, %v2659
      %v2692 = vmul.f32 %v2004, %v2660
      %v2693 = vmul.f32 %v2009, %v2661
      %v2694 = vmul.f32 %v2014, %v2662
      %v2695 = vmul.f32 %v2019, %v2663
      %v2696 = vmul.f32 %v2024, %v2664
      %v2697 = vmul.f32 %v2029, %v2665
      %v2698 = vmul.f32 %v2034, %v2666
      %v2699 = vmul.f32 %v2039, %v2667
      %v2700 = vmul.f32 %v2044, %v2668
      %v2701 = vmul.f32 %v2049, %v2669
      %v2702 = vmul.f32 %v2054, %v2670
      %v2703 = vmul.f32 %v2059, %v2671
      %v2704 = vmul.f32 %v2064, %v2672
      %v2705 = vmul.f32 %v2069, %v2673
      %v2706 = vmul.f32 %v2074, %v2674
      %v2707 = vmul.f32 %v2079, %v2675
      %v2708 = vmul.f32 %v2084, %v2676
      %v2709 = vmul.f32 %v2089, %v2677
      %v2710 = vmul.f32 %v2094, %v2678
      %v2711 = vadd.f32 %v2679, %v2187
      %v2712 = vadd.f32 %v2680, %v2192
      %v2713 = vadd.f32 %v2681, %v2197
      %v2714 = vadd.f32 %v2682, %v2202
      %v2715 = vadd.f32 %v2683, %v2207
      %v2716 = vadd.f32 %v2684, %v2212
      %v2717 = vadd.f32 %v2685, %v2217
      %v2718 = vadd.f32 %v2686, %v2222
      %v2719 = vadd.f32 %v2687, %v2227
      %v2720 = vadd.f32 %v2688, %v2232
      %v2721 = vadd.f32 %v2689, %v2237
      %v2722 = vadd.f32 %v2690, %v2242
      %v2723 = vadd.f32 %v2691, %v2247
      %v2724 = vadd.f32 %v2692, %v2252
      %v2725 = vadd.f32 %v2693, %v2257
      %v2726 = vadd.f32 %v2694, %v2262
      %v2727 = vadd.f32 %v2695, %v2267
      %v2728 = vadd.f32 %v2696, %v2272
      %v2729 = vadd.f32 %v2697, %v2277
      %v2730 = vadd.f32 %v2698, %v2282
      %v2731 = vadd.f32 %v2699, %v2287
      %v2732 = vadd.f32 %v2700, %v2292
      %v2733 = vadd.f32 %v2701, %v2297
      %v2734 = vadd.f32 %v2702, %v2302
      %v2735 = vadd.f32 %v2703, %v2307
      %v2736 = vadd.f32 %v2704, %v2312
      %v2737 = vadd.f32 %v2705, %v2317
      %v2738 = vadd.f32 %v2706, %v2322
      %v2739 = vadd.f32 %v2707, %v2327
      %v2740 = vadd.f32 %v2708, %v2332
      %v2741 = vadd.f32 %v2709, %v2337
      %v2742 = vadd.f32 %v2710, %v2342
      %vm2743 = vcmp.lt.s32.totalorder %v393, 240
      %vm2744 = vcmp.lt.s32.totalorder %v394, 240
      %vm2745 = vcmp.lt.s32.totalorder %v395, 240
      %vm2746 = vcmp.lt.s32.totalorder %v396, 240
      %vm2747 = vcmp.lt.s32.totalorder %v397, 240
      %vm2748 = vcmp.lt.s32.totalorder %v398, 240
      %vm2749 = vcmp.lt.s32.totalorder %v399, 240
      %vm2750 = vcmp.lt.s32.totalorder %v400, 240
      %vm2751 = vcmp.lt.s32.totalorder %v401, 240
      %vm2752 = vcmp.lt.s32.totalorder %v402, 240
      %vm2753 = vcmp.lt.s32.totalorder %v403, 240
      %vm2754 = vcmp.lt.s32.totalorder %v404, 240
      %vm2755 = vcmp.lt.s32.totalorder %v405, 240
      %vm2756 = vcmp.lt.s32.totalorder %v406, 240
      %vm2757 = vcmp.lt.s32.totalorder %v407, 240
      %vm2758 = vcmp.lt.s32.totalorder %v408, 240
      %vm2759 = vcmp.lt.s32.totalorder %v409, 240
      %vm2760 = vcmp.lt.s32.totalorder %v410, 240
      %vm2761 = vcmp.lt.s32.totalorder %v411, 240
      %vm2762 = vcmp.lt.s32.totalorder %v412, 240
      %vm2763 = vcmp.lt.s32.totalorder %v413, 240
      %vm2764 = vcmp.lt.s32.totalorder %v414, 240
      %vm2765 = vcmp.lt.s32.totalorder %v415, 240
      %vm2766 = vcmp.lt.s32.totalorder %v416, 240
      %vm2767 = vcmp.lt.s32.totalorder %v417, 240
      %vm2768 = vcmp.lt.s32.totalorder %v418, 240
      %vm2769 = vcmp.lt.s32.totalorder %v419, 240
      %vm2770 = vcmp.lt.s32.totalorder %v420, 240
      %vm2771 = vcmp.lt.s32.totalorder %v421, 240
      %vm2772 = vcmp.lt.s32.totalorder %v422, 240
      %vm2773 = vcmp.lt.s32.totalorder %v423, 240
      %vm2774 = vcmp.lt.s32.totalorder %v424, 240
      %v2775 = vsel %vm2743, 1, 0
      %v2776 = vsel %vm2744, 1, 0
      %v2777 = vsel %vm2745, 1, 0
      %v2778 = vsel %vm2746, 1, 0
      %v2779 = vsel %vm2747, 1, 0
      %v2780 = vsel %vm2748, 1, 0
      %v2781 = vsel %vm2749, 1, 0
      %v2782 = vsel %vm2750, 1, 0
      %v2783 = vsel %vm2751, 1, 0
      %v2784 = vsel %vm2752, 1, 0
      %v2785 = vsel %vm2753, 1, 0
      %v2786 = vsel %vm2754, 1, 0
      %v2787 = vsel %vm2755, 1, 0
      %v2788 = vsel %vm2756, 1, 0
      %v2789 = vsel %vm2757, 1, 0
      %v2790 = vsel %vm2758, 1, 0
      %v2791 = vsel %vm2759, 1, 0
      %v2792 = vsel %vm2760, 1, 0
      %v2793 = vsel %vm2761, 1, 0
      %v2794 = vsel %vm2762, 1, 0
      %v2795 = vsel %vm2763, 1, 0
      %v2796 = vsel %vm2764, 1, 0
      %v2797 = vsel %vm2765, 1, 0
      %v2798 = vsel %vm2766, 1, 0
      %v2799 = vsel %vm2767, 1, 0
      %v2800 = vsel %vm2768, 1, 0
      %v2801 = vsel %vm2769, 1, 0
      %v2802 = vsel %vm2770, 1, 0
      %v2803 = vsel %vm2771, 1, 0
      %v2804 = vsel %vm2772, 1, 0
      %v2805 = vsel %vm2773, 1, 0
      %v2806 = vsel %vm2774, 1, 0
      %v2807 = vcvt.s32.f32 %v2775
      %v2808 = vcvt.s32.f32 %v2776
      %v2809 = vcvt.s32.f32 %v2777
      %v2810 = vcvt.s32.f32 %v2778
      %v2811 = vcvt.s32.f32 %v2779
      %v2812 = vcvt.s32.f32 %v2780
      %v2813 = vcvt.s32.f32 %v2781
      %v2814 = vcvt.s32.f32 %v2782
      %v2815 = vcvt.s32.f32 %v2783
      %v2816 = vcvt.s32.f32 %v2784
      %v2817 = vcvt.s32.f32 %v2785
      %v2818 = vcvt.s32.f32 %v2786
      %v2819 = vcvt.s32.f32 %v2787
      %v2820 = vcvt.s32.f32 %v2788
      %v2821 = vcvt.s32.f32 %v2789
      %v2822 = vcvt.s32.f32 %v2790
      %v2823 = vcvt.s32.f32 %v2791
      %v2824 = vcvt.s32.f32 %v2792
      %v2825 = vcvt.s32.f32 %v2793
      %v2826 = vcvt.s32.f32 %v2794
      %v2827 = vcvt.s32.f32 %v2795
      %v2828 = vcvt.s32.f32 %v2796
      %v2829 = vcvt.s32.f32 %v2797
      %v2830 = vcvt.s32.f32 %v2798
      %v2831 = vcvt.s32.f32 %v2799
      %v2832 = vcvt.s32.f32 %v2800
      %v2833 = vcvt.s32.f32 %v2801
      %v2834 = vcvt.s32.f32 %v2802
      %v2835 = vcvt.s32.f32 %v2803
      %v2836 = vcvt.s32.f32 %v2804
      %v2837 = vcvt.s32.f32 %v2805
      %v2838 = vcvt.s32.f32 %v2806
      %v2839 = vmul.f32 %v2435, %v2807
      %v2840 = vmul.f32 %v2440, %v2808
      %v2841 = vmul.f32 %v2445, %v2809
      %v2842 = vmul.f32 %v2450, %v2810
      %v2843 = vmul.f32 %v2455, %v2811
      %v2844 = vmul.f32 %v2460, %v2812
      %v2845 = vmul.f32 %v2465, %v2813
      %v2846 = vmul.f32 %v2470, %v2814
      %v2847 = vmul.f32 %v2475, %v2815
      %v2848 = vmul.f32 %v2480, %v2816
      %v2849 = vmul.f32 %v2485, %v2817
      %v2850 = vmul.f32 %v2490, %v2818
      %v2851 = vmul.f32 %v2495, %v2819
      %v2852 = vmul.f32 %v2500, %v2820
      %v2853 = vmul.f32 %v2505, %v2821
      %v2854 = vmul.f32 %v2510, %v2822
      %v2855 = vmul.f32 %v2515, %v2823
      %v2856 = vmul.f32 %v2520, %v2824
      %v2857 = vmul.f32 %v2525, %v2825
      %v2858 = vmul.f32 %v2530, %v2826
      %v2859 = vmul.f32 %v2535, %v2827
      %v2860 = vmul.f32 %v2540, %v2828
      %v2861 = vmul.f32 %v2545, %v2829
      %v2862 = vmul.f32 %v2550, %v2830
      %v2863 = vmul.f32 %v2555, %v2831
      %v2864 = vmul.f32 %v2560, %v2832
      %v2865 = vmul.f32 %v2565, %v2833
      %v2866 = vmul.f32 %v2570, %v2834
      %v2867 = vmul.f32 %v2575, %v2835
      %v2868 = vmul.f32 %v2580, %v2836
      %v2869 = vmul.f32 %v2425, %v2837
      %v2870 = vmul.f32 %v2430, %v2838
      %v2871 = vadd.f32 %v2711, %v2839
      %v2872 = vadd.f32 %v2712, %v2840
      %v2873 = vadd.f32 %v2713, %v2841
      %v2874 = vadd.f32 %v2714, %v2842
      %v2875 = vadd.f32 %v2715, %v2843
      %v2876 = vadd.f32 %v2716, %v2844
      %v2877 = vadd.f32 %v2717, %v2845
      %v2878 = vadd.f32 %v2718, %v2846
      %v2879 = vadd.f32 %v2719, %v2847
      %v2880 = vadd.f32 %v2720, %v2848
      %v2881 = vadd.f32 %v2721, %v2849
      %v2882 = vadd.f32 %v2722, %v2850
      %v2883 = vadd.f32 %v2723, %v2851
      %v2884 = vadd.f32 %v2724, %v2852
      %v2885 = vadd.f32 %v2725, %v2853
      %v2886 = vadd.f32 %v2726, %v2854
      %v2887 = vadd.f32 %v2727, %v2855
      %v2888 = vadd.f32 %v2728, %v2856
      %v2889 = vadd.f32 %v2729, %v2857
      %v2890 = vadd.f32 %v2730, %v2858
      %v2891 = vadd.f32 %v2731, %v2859
      %v2892 = vadd.f32 %v2732, %v2860
      %v2893 = vadd.f32 %v2733, %v2861
      %v2894 = vadd.f32 %v2734, %v2862
      %v2895 = vadd.f32 %v2735, %v2863
      %v2896 = vadd.f32 %v2736, %v2864
      %v2897 = vadd.f32 %v2737, %v2865
      %v2898 = vadd.f32 %v2738, %v2866
      %v2899 = vadd.f32 %v2739, %v2867
      %v2900 = vadd.f32 %v2740, %v2868
      %v2901 = vadd.f32 %v2741, %v2869
      %v2902 = vadd.f32 %v2742, %v2870
      %v2903 = vld [vmem:[%s2] sm:$0x1]
      %v2905 = vlaneseq
      %v2906 = vshrl.u32 %v2905, 7
      %v2907 = vsub.s32 0, %v2906
      %v2908 = vrot.slane %v2903, %v2907
      %v2910 = vmul.f32 %v2871, %v2908
      %v2911 = vmul.f32 %v2872, %v2908
      %v2912 = vmul.f32 %v2873, %v2908
      %v2913 = vmul.f32 %v2874, %v2908
      %v2914 = vmul.f32 %v2875, %v2908
      %v2915 = vmul.f32 %v2876, %v2908
      %v2916 = vmul.f32 %v2877, %v2908
      %v2917 = vmul.f32 %v2878, %v2908
      %v2918 = vmul.f32 %v2879, %v2908
      %v2919 = vmul.f32 %v2880, %v2908
      %v2920 = vmul.f32 %v2881, %v2908
      %v2921 = vmul.f32 %v2882, %v2908
      %v2922 = vmul.f32 %v2883, %v2908
      %v2923 = vmul.f32 %v2884, %v2908
      %v2924 = vmul.f32 %v2885, %v2908
      %v2925 = vmul.f32 %v2886, %v2908
      %v2926 = vmul.f32 %v2887, %v2908
      %v2927 = vmul.f32 %v2888, %v2908
      %v2928 = vmul.f32 %v2889, %v2908
      %v2929 = vmul.f32 %v2890, %v2908
      %v2930 = vmul.f32 %v2891, %v2908
      %v2931 = vmul.f32 %v2892, %v2908
      %v2932 = vmul.f32 %v2893, %v2908
      %v2933 = vmul.f32 %v2894, %v2908
      %v2934 = vmul.f32 %v2895, %v2908
      %v2935 = vmul.f32 %v2896, %v2908
      %v2936 = vmul.f32 %v2897, %v2908
      %v2937 = vmul.f32 %v2898, %v2908
      %v2938 = vmul.f32 %v2899, %v2908
      %v2939 = vmul.f32 %v2900, %v2908
      %v2940 = vmul.f32 %v2901, %v2908
      %v2941 = vmul.f32 %v2902, %v2908
      %v2942 = vld [vmem:[%s3] sm:$0x1]
      %v2944 = vlaneseq
      %v2945 = vshrl.u32 %v2944, 7
      %v2946 = vsub.s32 0, %v2945
      %v2947 = vrot.slane %v2942, %v2946
      %v2949 = vadd.f32 %v2910, %v2947
      %v2950 = vadd.f32 %v2911, %v2947
      %v2951 = vadd.f32 %v2912, %v2947
      %v2952 = vadd.f32 %v2913, %v2947
      %v2953 = vadd.f32 %v2914, %v2947
      %v2954 = vadd.f32 %v2915, %v2947
      %v2955 = vadd.f32 %v2916, %v2947
      %v2956 = vadd.f32 %v2917, %v2947
      %v2957 = vadd.f32 %v2918, %v2947
      %v2958 = vadd.f32 %v2919, %v2947
      %v2959 = vadd.f32 %v2920, %v2947
      %v2960 = vadd.f32 %v2921, %v2947
      %v2961 = vadd.f32 %v2922, %v2947
      %v2962 = vadd.f32 %v2923, %v2947
      %v2963 = vadd.f32 %v2924, %v2947
      %v2964 = vadd.f32 %v2925, %v2947
      %v2965 = vadd.f32 %v2926, %v2947
      %v2966 = vadd.f32 %v2927, %v2947
      %v2967 = vadd.f32 %v2928, %v2947
      %v2968 = vadd.f32 %v2929, %v2947
      %v2969 = vadd.f32 %v2930, %v2947
      %v2970 = vadd.f32 %v2931, %v2947
      %v2971 = vadd.f32 %v2932, %v2947
      %v2972 = vadd.f32 %v2933, %v2947
      %v2973 = vadd.f32 %v2934, %v2947
      %v2974 = vadd.f32 %v2935, %v2947
      %v2975 = vadd.f32 %v2936, %v2947
      %v2976 = vadd.f32 %v2937, %v2947
      %v2977 = vadd.f32 %v2938, %v2947
      %v2978 = vadd.f32 %v2939, %v2947
      %v2979 = vadd.f32 %v2940, %v2947
      %v2980 = vadd.f32 %v2941, %v2947
      %v2981 = vmax.f32 %v2949, 0.0
      %v2982 = vmax.f32 %v2950, 0.0
      %v2983 = vmax.f32 %v2951, 0.0
      %v2984 = vmax.f32 %v2952, 0.0
      %v2985 = vmax.f32 %v2953, 0.0
      %v2986 = vmax.f32 %v2954, 0.0
      %v2987 = vmax.f32 %v2955, 0.0
      %v2988 = vmax.f32 %v2956, 0.0
      %v2989 = vmax.f32 %v2957, 0.0
      %v2990 = vmax.f32 %v2958, 0.0
      %v2991 = vmax.f32 %v2959, 0.0
      %v2992 = vmax.f32 %v2960, 0.0
      %v2993 = vmax.f32 %v2961, 0.0
      %v2994 = vmax.f32 %v2962, 0.0
      %v2995 = vmax.f32 %v2963, 0.0
      %v2996 = vmax.f32 %v2964, 0.0
      %v2997 = vmax.f32 %v2965, 0.0
      %v2998 = vmax.f32 %v2966, 0.0
      %v2999 = vmax.f32 %v2967, 0.0
      %v3000 = vmax.f32 %v2968, 0.0
      %v3001 = vmax.f32 %v2969, 0.0
      %v3002 = vmax.f32 %v2970, 0.0
      %v3003 = vmax.f32 %v2971, 0.0
      %v3004 = vmax.f32 %v2972, 0.0
      %v3005 = vmax.f32 %v2973, 0.0
      %v3006 = vmax.f32 %v2974, 0.0
      %v3007 = vmax.f32 %v2975, 0.0
      %v3008 = vmax.f32 %v2976, 0.0
      %v3009 = vmax.f32 %v2977, 0.0
      %v3010 = vmax.f32 %v2978, 0.0
      %v3011 = vmax.f32 %v2979, 0.0
      %v3012 = vmax.f32 %v2980, 0.0
      %v3013 = vrot.slane %v2981, 7
      %v3014 = vrot.slane %v2982, 7
      %v3015 = vrot.slane %v2983, 7
      %v3016 = vrot.slane %v2984, 7
      %v3017 = vrot.slane %v2985, 7
      %v3018 = vrot.slane %v2986, 7
      %v3019 = vrot.slane %v2987, 7
      %v3020 = vrot.slane %v2988, 7
      %v3021 = vrot.slane %v2989, 7
      %v3022 = vrot.slane %v2990, 7
      %v3023 = vrot.slane %v2991, 7
      %v3024 = vrot.slane %v2992, 7
      %v3025 = vrot.slane %v2993, 7
      %v3026 = vrot.slane %v2994, 7
      %v3027 = vrot.slane %v2995, 7
      %v3028 = vrot.slane %v2996, 7
      %v3029 = vrot.slane %v2997, 7
      %v3030 = vrot.slane %v2998, 7
      %v3031 = vrot.slane %v2999, 7
      %v3032 = vrot.slane %v3000, 7
      %v3033 = vrot.slane %v3001, 7
      %v3034 = vrot.slane %v3002, 7
      %v3035 = vrot.slane %v3003, 7
      %v3036 = vrot.slane %v3004, 7
      %v3037 = vrot.slane %v3005, 7
      %v3038 = vrot.slane %v3006, 7
      %v3039 = vrot.slane %v3007, 7
      %v3040 = vrot.slane %v3008, 7
      %v3041 = vrot.slane %v3009, 7
      %v3042 = vrot.slane %v3010, 7
      %v3043 = vrot.slane %v3011, 7
      %v3044 = vrot.slane %v3012, 7
      %v3045 = vsel %vm1033, %v3043, %v3044
      %v3046 = vsel %vm1033, %v3042, %v3043
      %v3047 = vsel %vm1033, %v3041, %v3042
      %v3048 = vsel %vm1033, %v3040, %v3041
      %v3049 = vsel %vm1033, %v3039, %v3040
      %v3050 = vsel %vm1033, %v3038, %v3039
      %v3051 = vsel %vm1033, %v3037, %v3038
      %v3052 = vsel %vm1033, %v3036, %v3037
      %v3053 = vsel %vm1033, %v3035, %v3036
      %v3054 = vsel %vm1033, %v3034, %v3035
      %v3055 = vsel %vm1033, %v3033, %v3034
      %v3056 = vsel %vm1033, %v3032, %v3033
      %v3057 = vsel %vm1033, %v3031, %v3032
      %v3058 = vsel %vm1033, %v3030, %v3031
      %v3059 = vsel %vm1033, %v3029, %v3030
      %v3060 = vsel %vm1033, %v3028, %v3029
      %v3061 = vsel %vm1033, %v3027, %v3028
      %v3062 = vsel %vm1033, %v3026, %v3027
      %v3063 = vsel %vm1033, %v3025, %v3026
      %v3064 = vsel %vm1033, %v3024, %v3025
      %v3065 = vsel %vm1033, %v3023, %v3024
      %v3066 = vsel %vm1033, %v3022, %v3023
      %v3067 = vsel %vm1033, %v3021, %v3022
      %v3068 = vsel %vm1033, %v3020, %v3021
      %v3069 = vsel %vm1033, %v3019, %v3020
      %v3070 = vsel %vm1033, %v3018, %v3019
      %v3071 = vsel %vm1033, %v3017, %v3018
      %v3072 = vsel %vm1033, %v3016, %v3017
      %v3073 = vsel %vm1033, %v3015, %v3016
      %v3074 = vsel %vm1033, %v3014, %v3015
      %v3075 = vsel %vm1033, %v3013, %v3014
      %v3076 = vsel %vm1033, %v3044, %v3013
      %v3077 = vmul.f32 %v3076, %v1130
      %v3078 = vmul.f32 %v3075, %v1131
      %v3079 = vmul.f32 %v3074, %v1132
      %v3080 = vmul.f32 %v3073, %v1133
      %v3081 = vmul.f32 %v3072, %v1134
      %v3082 = vmul.f32 %v3071, %v1135
      %v3083 = vmul.f32 %v3070, %v1136
      %v3084 = vmul.f32 %v3069, %v1137
      %v3085 = vmul.f32 %v3068, %v1138
      %v3086 = vmul.f32 %v3067, %v1139
      %v3087 = vmul.f32 %v3066, %v1140
      %v3088 = vmul.f32 %v3065, %v1141
      %v3089 = vmul.f32 %v3064, %v1142
      %v3090 = vmul.f32 %v3063, %v1143
      %v3091 = vmul.f32 %v3062, %v1144
      %v3092 = vmul.f32 %v3061, %v1145
      %v3093 = vmul.f32 %v3060, %v1146
      %v3094 = vmul.f32 %v3059, %v1147
      %v3095 = vmul.f32 %v3058, %v1148
      %v3096 = vmul.f32 %v3057, %v1149
      %v3097 = vmul.f32 %v3056, %v1150
      %v3098 = vmul.f32 %v3055, %v1151
      %v3099 = vmul.f32 %v3054, %v1152
      %v3100 = vmul.f32 %v3053, %v1153
      %v3101 = vmul.f32 %v3052, %v1154
      %v3102 = vmul.f32 %v3051, %v1155
      %v3103 = vmul.f32 %v3050, %v1156
      %v3104 = vmul.f32 %v3049, %v1157
      %v3105 = vmul.f32 %v3048, %v1158
      %v3106 = vmul.f32 %v3047, %v1159
      %v3107 = vmul.f32 %v3046, %v1160
      %v3108 = vmul.f32 %v3045, %v1161
      %v3109 = vmul.f32 %v3077, %v873
      %v3110 = vmul.f32 %v3078, %v874
      %v3111 = vmul.f32 %v3079, %v875
      %v3112 = vmul.f32 %v3080, %v876
      %v3113 = vmul.f32 %v3081, %v877
      %v3114 = vmul.f32 %v3082, %v878
      %v3115 = vmul.f32 %v3083, %v879
      %v3116 = vmul.f32 %v3084, %v880
      %v3117 = vmul.f32 %v3085, %v881
      %v3118 = vmul.f32 %v3086, %v882
      %v3119 = vmul.f32 %v3087, %v883
      %v3120 = vmul.f32 %v3088, %v884
      %v3121 = vmul.f32 %v3089, %v885
      %v3122 = vmul.f32 %v3090, %v886
      %v3123 = vmul.f32 %v3091, %v887
      %v3124 = vmul.f32 %v3092, %v888
      %v3125 = vmul.f32 %v3093, %v889
      %v3126 = vmul.f32 %v3094, %v890
      %v3127 = vmul.f32 %v3095, %v891
      %v3128 = vmul.f32 %v3096, %v892
      %v3129 = vmul.f32 %v3097, %v893
      %v3130 = vmul.f32 %v3098, %v894
      %v3131 = vmul.f32 %v3099, %v895
      %v3132 = vmul.f32 %v3100, %v896
      %v3133 = vmul.f32 %v3101, %v897
      %v3134 = vmul.f32 %v3102, %v898
      %v3135 = vmul.f32 %v3103, %v899
      %v3136 = vmul.f32 %v3104, %v900
      %v3137 = vmul.f32 %v3105, %v901
      %v3138 = vmul.f32 %v3106, %v902
      %v3139 = vmul.f32 %v3107, %v903
      %v3140 = vmul.f32 %v3108, %v904
      %v3141 = vrot.slane %v2981, 1
      %v3142 = vrot.slane %v2982, 1
      %v3143 = vrot.slane %v2983, 1
      %v3144 = vrot.slane %v2984, 1
      %v3145 = vrot.slane %v2985, 1
      %v3146 = vrot.slane %v2986, 1
      %v3147 = vrot.slane %v2987, 1
      %v3148 = vrot.slane %v2988, 1
      %v3149 = vrot.slane %v2989, 1
      %v3150 = vrot.slane %v2990, 1
      %v3151 = vrot.slane %v2991, 1
      %v3152 = vrot.slane %v2992, 1
      %v3153 = vrot.slane %v2993, 1
      %v3154 = vrot.slane %v2994, 1
      %v3155 = vrot.slane %v2995, 1
      %v3156 = vrot.slane %v2996, 1
      %v3157 = vrot.slane %v2997, 1
      %v3158 = vrot.slane %v2998, 1
      %v3159 = vrot.slane %v2999, 1
      %v3160 = vrot.slane %v3000, 1
      %v3161 = vrot.slane %v3001, 1
      %v3162 = vrot.slane %v3002, 1
      %v3163 = vrot.slane %v3003, 1
      %v3164 = vrot.slane %v3004, 1
      %v3165 = vrot.slane %v3005, 1
      %v3166 = vrot.slane %v3006, 1
      %v3167 = vrot.slane %v3007, 1
      %v3168 = vrot.slane %v3008, 1
      %v3169 = vrot.slane %v3009, 1
      %v3170 = vrot.slane %v3010, 1
      %v3171 = vrot.slane %v3011, 1
      %v3172 = vrot.slane %v3012, 1
      %v3173 = vsel %vm1258, %v3171, %v3172
      %v3174 = vsel %vm1258, %v3170, %v3171
      %v3175 = vsel %vm1258, %v3169, %v3170
      %v3176 = vsel %vm1258, %v3168, %v3169
      %v3177 = vsel %vm1258, %v3167, %v3168
      %v3178 = vsel %vm1258, %v3166, %v3167
      %v3179 = vsel %vm1258, %v3165, %v3166
      %v3180 = vsel %vm1258, %v3164, %v3165
      %v3181 = vsel %vm1258, %v3163, %v3164
      %v3182 = vsel %vm1258, %v3162, %v3163
      %v3183 = vsel %vm1258, %v3161, %v3162
      %v3184 = vsel %vm1258, %v3160, %v3161
      %v3185 = vsel %vm1258, %v3159, %v3160
      %v3186 = vsel %vm1258, %v3158, %v3159
      %v3187 = vsel %vm1258, %v3157, %v3158
      %v3188 = vsel %vm1258, %v3156, %v3157
      %v3189 = vsel %vm1258, %v3155, %v3156
      %v3190 = vsel %vm1258, %v3154, %v3155
      %v3191 = vsel %vm1258, %v3153, %v3154
      %v3192 = vsel %vm1258, %v3152, %v3153
      %v3193 = vsel %vm1258, %v3151, %v3152
      %v3194 = vsel %vm1258, %v3150, %v3151
      %v3195 = vsel %vm1258, %v3149, %v3150
      %v3196 = vsel %vm1258, %v3148, %v3149
      %v3197 = vsel %vm1258, %v3147, %v3148
      %v3198 = vsel %vm1258, %v3146, %v3147
      %v3199 = vsel %vm1258, %v3145, %v3146
      %v3200 = vsel %vm1258, %v3144, %v3145
      %v3201 = vsel %vm1258, %v3143, %v3144
      %v3202 = vsel %vm1258, %v3142, %v3143
      %v3203 = vsel %vm1258, %v3141, %v3142
      %v3204 = vsel %vm1258, %v3172, %v3141
      %v3205 = vmul.f32 %v3203, %v1355
      %v3206 = vmul.f32 %v3202, %v1356
      %v3207 = vmul.f32 %v3201, %v1357
      %v3208 = vmul.f32 %v3200, %v1358
      %v3209 = vmul.f32 %v3199, %v1359
      %v3210 = vmul.f32 %v3198, %v1360
      %v3211 = vmul.f32 %v3197, %v1361
      %v3212 = vmul.f32 %v3196, %v1362
      %v3213 = vmul.f32 %v3195, %v1363
      %v3214 = vmul.f32 %v3194, %v1364
      %v3215 = vmul.f32 %v3193, %v1365
      %v3216 = vmul.f32 %v3192, %v1366
      %v3217 = vmul.f32 %v3191, %v1367
      %v3218 = vmul.f32 %v3190, %v1368
      %v3219 = vmul.f32 %v3189, %v1369
      %v3220 = vmul.f32 %v3188, %v1370
      %v3221 = vmul.f32 %v3187, %v1371
      %v3222 = vmul.f32 %v3186, %v1372
      %v3223 = vmul.f32 %v3185, %v1373
      %v3224 = vmul.f32 %v3184, %v1374
      %v3225 = vmul.f32 %v3183, %v1375
      %v3226 = vmul.f32 %v3182, %v1376
      %v3227 = vmul.f32 %v3181, %v1377
      %v3228 = vmul.f32 %v3180, %v1378
      %v3229 = vmul.f32 %v3179, %v1379
      %v3230 = vmul.f32 %v3178, %v1380
      %v3231 = vmul.f32 %v3177, %v1381
      %v3232 = vmul.f32 %v3176, %v1382
      %v3233 = vmul.f32 %v3175, %v1383
      %v3234 = vmul.f32 %v3174, %v1384
      %v3235 = vmul.f32 %v3173, %v1385
      %v3236 = vmul.f32 %v3204, %v1386
      %v3237 = vmul.f32 %v3205, %v969
      %v3238 = vmul.f32 %v3206, %v970
      %v3239 = vmul.f32 %v3207, %v971
      %v3240 = vmul.f32 %v3208, %v972
      %v3241 = vmul.f32 %v3209, %v973
      %v3242 = vmul.f32 %v3210, %v974
      %v3243 = vmul.f32 %v3211, %v975
      %v3244 = vmul.f32 %v3212, %v976
      %v3245 = vmul.f32 %v3213, %v977
      %v3246 = vmul.f32 %v3214, %v978
      %v3247 = vmul.f32 %v3215, %v979
      %v3248 = vmul.f32 %v3216, %v980
      %v3249 = vmul.f32 %v3217, %v981
      %v3250 = vmul.f32 %v3218, %v982
      %v3251 = vmul.f32 %v3219, %v983
      %v3252 = vmul.f32 %v3220, %v984
      %v3253 = vmul.f32 %v3221, %v985
      %v3254 = vmul.f32 %v3222, %v986
      %v3255 = vmul.f32 %v3223, %v987
      %v3256 = vmul.f32 %v3224, %v988
      %v3257 = vmul.f32 %v3225, %v989
      %v3258 = vmul.f32 %v3226, %v990
      %v3259 = vmul.f32 %v3227, %v991
      %v3260 = vmul.f32 %v3228, %v992
      %v3261 = vmul.f32 %v3229, %v993
      %v3262 = vmul.f32 %v3230, %v994
      %v3263 = vmul.f32 %v3231, %v995
      %v3264 = vmul.f32 %v3232, %v996
      %v3265 = vmul.f32 %v3233, %v997
      %v3266 = vmul.f32 %v3234, %v998
      %v3267 = vmul.f32 %v3235, %v999
      %v3268 = vmul.f32 %v3236, %v1000
      %3301 = vrot.lane.b32.xlu0 %v2981, 32
      %v3302 = vpop.permute.xlu0 %3301
      %3303 = vrot.lane.b32.xlu0 %v2982, 32
      %v3304 = vpop.permute.xlu0 %3303
      %3305 = vrot.lane.b32.xlu0 %v2983, 32
      %v3306 = vpop.permute.xlu0 %3305
      %3307 = vrot.lane.b32.xlu0 %v2984, 32
      %v3308 = vpop.permute.xlu0 %3307
      %3309 = vrot.lane.b32.xlu0 %v2985, 32
      %v3310 = vpop.permute.xlu0 %3309
      %3311 = vrot.lane.b32.xlu0 %v2986, 32
      %v3312 = vpop.permute.xlu0 %3311
      %3313 = vrot.lane.b32.xlu0 %v2987, 32
      %v3314 = vpop.permute.xlu0 %3313
      %3315 = vrot.lane.b32.xlu0 %v2988, 32
      %v3316 = vpop.permute.xlu0 %3315
      %3317 = vrot.lane.b32.xlu0 %v2989, 32
      %v3318 = vpop.permute.xlu0 %3317
      %3319 = vrot.lane.b32.xlu0 %v2990, 32
      %v3320 = vpop.permute.xlu0 %3319
      %3321 = vrot.lane.b32.xlu0 %v2991, 32
      %v3322 = vpop.permute.xlu0 %3321
      %3323 = vrot.lane.b32.xlu0 %v2992, 32
      %v3324 = vpop.permute.xlu0 %3323
      %3325 = vrot.lane.b32.xlu0 %v2993, 32
      %v3326 = vpop.permute.xlu0 %3325
      %3327 = vrot.lane.b32.xlu0 %v2994, 32
      %v3328 = vpop.permute.xlu0 %3327
      %3329 = vrot.lane.b32.xlu0 %v2995, 32
      %v3330 = vpop.permute.xlu0 %3329
      %3331 = vrot.lane.b32.xlu0 %v2996, 32
      %v3332 = vpop.permute.xlu0 %3331
      %3333 = vrot.lane.b32.xlu0 %v2997, 32
      %v3334 = vpop.permute.xlu0 %3333
      %3335 = vrot.lane.b32.xlu0 %v2998, 32
      %v3336 = vpop.permute.xlu0 %3335
      %3337 = vrot.lane.b32.xlu0 %v2999, 32
      %v3338 = vpop.permute.xlu0 %3337
      %3339 = vrot.lane.b32.xlu0 %v3000, 32
      %v3340 = vpop.permute.xlu0 %3339
      %3341 = vrot.lane.b32.xlu0 %v3001, 32
      %v3342 = vpop.permute.xlu0 %3341
      %3343 = vrot.lane.b32.xlu0 %v3002, 32
      %v3344 = vpop.permute.xlu0 %3343
      %3345 = vrot.lane.b32.xlu0 %v3003, 32
      %v3346 = vpop.permute.xlu0 %3345
      %3347 = vrot.lane.b32.xlu0 %v3004, 32
      %v3348 = vpop.permute.xlu0 %3347
      %3349 = vrot.lane.b32.xlu0 %v3005, 32
      %v3350 = vpop.permute.xlu0 %3349
      %3351 = vrot.lane.b32.xlu0 %v3006, 32
      %v3352 = vpop.permute.xlu0 %3351
      %3353 = vrot.lane.b32.xlu0 %v3007, 32
      %v3354 = vpop.permute.xlu0 %3353
      %3355 = vrot.lane.b32.xlu0 %v3008, 32
      %v3356 = vpop.permute.xlu0 %3355
      %3357 = vrot.lane.b32.xlu0 %v3009, 32
      %v3358 = vpop.permute.xlu0 %3357
      %3359 = vrot.lane.b32.xlu0 %v3010, 32
      %v3360 = vpop.permute.xlu0 %3359
      %3361 = vrot.lane.b32.xlu0 %v3011, 32
      %v3362 = vpop.permute.xlu0 %3361
      %3363 = vrot.lane.b32.xlu0 %v3012, 32
      %v3364 = vpop.permute.xlu0 %3363
      %3429 = vrot.lane.b32.xlu0 %v3237, 64
      %v3430 = vpop.permute.xlu0 %3429
      %3431 = vrot.lane.b32.xlu0 %v3238, 64
      %v3432 = vpop.permute.xlu0 %3431
      %3433 = vrot.lane.b32.xlu0 %v3239, 64
      %v3434 = vpop.permute.xlu0 %3433
      %3435 = vrot.lane.b32.xlu0 %v3240, 64
      %v3436 = vpop.permute.xlu0 %3435
      %3437 = vrot.lane.b32.xlu0 %v3241, 64
      %v3438 = vpop.permute.xlu0 %3437
      %3439 = vrot.lane.b32.xlu0 %v3242, 64
      %v3440 = vpop.permute.xlu0 %3439
      %3441 = vrot.lane.b32.xlu0 %v3243, 64
      %v3442 = vpop.permute.xlu0 %3441
      %3443 = vrot.lane.b32.xlu0 %v3244, 64
      %v3444 = vpop.permute.xlu0 %3443
      %3445 = vrot.lane.b32.xlu0 %v3245, 64
      %v3446 = vpop.permute.xlu0 %3445
      %3447 = vrot.lane.b32.xlu0 %v3246, 64
      %v3448 = vpop.permute.xlu0 %3447
      %3449 = vrot.lane.b32.xlu0 %v3247, 64
      %v3450 = vpop.permute.xlu0 %3449
      %3451 = vrot.lane.b32.xlu0 %v3248, 64
      %v3452 = vpop.permute.xlu0 %3451
      %3453 = vrot.lane.b32.xlu0 %v3249, 64
      %v3454 = vpop.permute.xlu0 %3453
      %3455 = vrot.lane.b32.xlu0 %v3250, 64
      %v3456 = vpop.permute.xlu0 %3455
      %3457 = vrot.lane.b32.xlu0 %v3251, 64
      %v3458 = vpop.permute.xlu0 %3457
      %3459 = vrot.lane.b32.xlu0 %v3252, 64
      %v3460 = vpop.permute.xlu0 %3459
      %3461 = vrot.lane.b32.xlu0 %v3253, 64
      %v3462 = vpop.permute.xlu0 %3461
      %3463 = vrot.lane.b32.xlu0 %v3254, 64
      %v3464 = vpop.permute.xlu0 %3463
      %3465 = vrot.lane.b32.xlu0 %v3255, 64
      %v3466 = vpop.permute.xlu0 %3465
      %3467 = vrot.lane.b32.xlu0 %v3256, 64
      %v3468 = vpop.permute.xlu0 %3467
      %3469 = vrot.lane.b32.xlu0 %v3257, 64
      %v3470 = vpop.permute.xlu0 %3469
      %3471 = vrot.lane.b32.xlu0 %v3258, 64
      %v3472 = vpop.permute.xlu0 %3471
      %3473 = vrot.lane.b32.xlu0 %v3259, 64
      %v3474 = vpop.permute.xlu0 %3473
      %3475 = vrot.lane.b32.xlu0 %v3260, 64
      %v3476 = vpop.permute.xlu0 %3475
      %3477 = vrot.lane.b32.xlu0 %v3261, 64
      %v3478 = vpop.permute.xlu0 %3477
      %3479 = vrot.lane.b32.xlu0 %v3262, 64
      %v3480 = vpop.permute.xlu0 %3479
      %3481 = vrot.lane.b32.xlu0 %v3263, 64
      %v3482 = vpop.permute.xlu0 %3481
      %3483 = vrot.lane.b32.xlu0 %v3264, 64
      %v3484 = vpop.permute.xlu0 %3483
      %3485 = vrot.lane.b32.xlu0 %v3265, 64
      %v3486 = vpop.permute.xlu0 %3485
      %3487 = vrot.lane.b32.xlu0 %v3266, 64
      %v3488 = vpop.permute.xlu0 %3487
      %3489 = vrot.lane.b32.xlu0 %v3267, 64
      %v3490 = vpop.permute.xlu0 %3489
      %3491 = vrot.lane.b32.xlu0 %v3268, 64
      %v3492 = vpop.permute.xlu0 %3491
      %v3525 = vsel %vm1707, %v3109, %v3302
      %v3526 = vsel %vm1707, %v3110, %v3304
      %v3527 = vsel %vm1707, %v3111, %v3306
      %v3528 = vsel %vm1707, %v3112, %v3308
      %v3529 = vsel %vm1707, %v3113, %v3310
      %v3530 = vsel %vm1707, %v3114, %v3312
      %v3531 = vsel %vm1707, %v3115, %v3314
      %v3532 = vsel %vm1707, %v3116, %v3316
      %v3533 = vsel %vm1707, %v3117, %v3318
      %v3534 = vsel %vm1707, %v3118, %v3320
      %v3535 = vsel %vm1707, %v3119, %v3322
      %v3536 = vsel %vm1707, %v3120, %v3324
      %v3537 = vsel %vm1707, %v3121, %v3326
      %v3538 = vsel %vm1707, %v3122, %v3328
      %v3539 = vsel %vm1707, %v3123, %v3330
      %v3540 = vsel %vm1707, %v3124, %v3332
      %v3541 = vsel %vm1707, %v3125, %v3334
      %v3542 = vsel %vm1707, %v3126, %v3336
      %v3543 = vsel %vm1707, %v3127, %v3338
      %v3544 = vsel %vm1707, %v3128, %v3340
      %v3545 = vsel %vm1707, %v3129, %v3342
      %v3546 = vsel %vm1707, %v3130, %v3344
      %v3547 = vsel %vm1707, %v3131, %v3346
      %v3548 = vsel %vm1707, %v3132, %v3348
      %v3549 = vsel %vm1707, %v3133, %v3350
      %v3550 = vsel %vm1707, %v3134, %v3352
      %v3551 = vsel %vm1707, %v3135, %v3354
      %v3552 = vsel %vm1707, %v3136, %v3356
      %v3553 = vsel %vm1707, %v3137, %v3358
      %v3554 = vsel %vm1707, %v3138, %v3360
      %v3555 = vsel %vm1707, %v3139, %v3362
      %v3556 = vsel %vm1707, %v3140, %v3364
      %v3557 = vsel %vm1740, %v3525, %v3430
      %v3558 = vsel %vm1740, %v3526, %v3432
      %v3559 = vsel %vm1740, %v3527, %v3434
      %v3560 = vsel %vm1740, %v3528, %v3436
      %v3561 = vsel %vm1740, %v3529, %v3438
      %v3562 = vsel %vm1740, %v3530, %v3440
      %v3563 = vsel %vm1740, %v3531, %v3442
      %v3564 = vsel %vm1740, %v3532, %v3444
      %v3565 = vsel %vm1740, %v3533, %v3446
      %v3566 = vsel %vm1740, %v3534, %v3448
      %v3567 = vsel %vm1740, %v3535, %v3450
      %v3568 = vsel %vm1740, %v3536, %v3452
      %v3569 = vsel %vm1740, %v3537, %v3454
      %v3570 = vsel %vm1740, %v3538, %v3456
      %v3571 = vsel %vm1740, %v3539, %v3458
      %v3572 = vsel %vm1740, %v3540, %v3460
      %v3573 = vsel %vm1740, %v3541, %v3462
      %v3574 = vsel %vm1740, %v3542, %v3464
      %v3575 = vsel %vm1740, %v3543, %v3466
      %v3576 = vsel %vm1740, %v3544, %v3468
      %v3577 = vsel %vm1740, %v3545, %v3470
      %v3578 = vsel %vm1740, %v3546, %v3472
      %v3579 = vsel %vm1740, %v3547, %v3474
      %v3580 = vsel %vm1740, %v3548, %v3476
      %v3581 = vsel %vm1740, %v3549, %v3478
      %v3582 = vsel %vm1740, %v3550, %v3480
      %v3583 = vsel %vm1740, %v3551, %v3482
      %v3584 = vsel %vm1740, %v3552, %v3484
      %v3585 = vsel %vm1740, %v3553, %v3486
      %v3586 = vsel %vm1740, %v3554, %v3488
      %v3587 = vsel %vm1740, %v3555, %v3490
      %v3588 = vsel %vm1740, %v3556, %v3492
      %v3589 = vld [vmem:[%s4] sm:$0xff]
      %v3590 = vld [vmem:[%s4 + $0x8] sm:$0xff]
      %v3591 = vld [vmem:[%s4 + $0x10] sm:$0xff]
      %v3592 = vld [vmem:[%s4 + $0x18] sm:$0xff]
      %v3593 = vld [vmem:[%s4 + $0x20] sm:$0xff]
      %v3594 = vld [vmem:[%s4 + $0x28] sm:$0xff]
      %v3595 = vld [vmem:[%s4 + $0x30] sm:$0xff]
      %v3596 = vld [vmem:[%s4 + $0x38] sm:$0xff]
      %v3597 = vld [vmem:[%s4 + $0x40] sm:$0xff]
      %v3598 = vld [vmem:[%s4 + $0x48] sm:$0xff]
      %v3599 = vld [vmem:[%s4 + $0x50] sm:$0xff]
      %v3600 = vld [vmem:[%s4 + $0x58] sm:$0xff]
      %v3602 = vsel %vm1785, %v3557, 0
      %v3605 = vsel %vm1785, %v3558, 0
      %v3608 = vsel %vm1785, %v3559, 0
      %v3611 = vsel %vm1785, %v3560, 0
      %v3614 = vsel %vm1785, %v3561, 0
      %v3617 = vsel %vm1785, %v3562, 0
      %v3620 = vsel %vm1785, %v3563, 0
      %v3623 = vsel %vm1785, %v3564, 0
      %v3626 = vsel %vm1785, %v3565, 0
      %v3629 = vsel %vm1785, %v3566, 0
      %v3632 = vsel %vm1785, %v3567, 0
      %v3635 = vsel %vm1785, %v3568, 0
      %v3638 = vsel %vm1785, %v3569, 0
      %v3641 = vsel %vm1785, %v3570, 0
      %v3644 = vsel %vm1785, %v3571, 0
      %v3647 = vsel %vm1785, %v3572, 0
      %v3650 = vsel %vm1785, %v3573, 0
      %v3653 = vsel %vm1785, %v3574, 0
      %v3656 = vsel %vm1785, %v3575, 0
      %v3659 = vsel %vm1785, %v3576, 0
      %v3662 = vsel %vm1785, %v3577, 0
      %v3665 = vsel %vm1785, %v3578, 0
      %v3668 = vsel %vm1785, %v3579, 0
      %v3671 = vsel %vm1785, %v3580, 0
      %v3674 = vsel %vm1785, %v3581, 0
      %v3677 = vsel %vm1785, %v3582, 0
      %v3680 = vsel %vm1785, %v3583, 0
      %v3683 = vsel %vm1785, %v3584, 0
      %v3686 = vsel %vm1785, %v3585, 0
      %v3689 = vsel %vm1785, %v3586, 0
      %v3692 = vsel %vm1785, %v3587, 0
      %v3695 = vsel %vm1785, %v3588, 0
      %3697 = vmatprep.subr.mxu0 0.0
      %3698 = vmatpush1.msra.mxu0 0.0
      %3699 = vmatprep.subr.mxu0 0.0
      %3700 = vmatpush1.msra.mxu0 0.0
      %3701 = vmatprep.subr.mxu0 0.0
      %3702 = vmatpush1.msra.mxu0 0.0
      %3703 = vmatprep.subr.mxu0 0.0
      %3704 = vmatpush1.msra.mxu0 0.0
      %3705 = vmatprep.subr.mxu0 0.0
      %3706 = vmatpush1.msra.mxu0 %v3600
      %3707 = vmatprep.subr.mxu0 0.0
      %3708 = vmatpush1.msra.mxu0 %v3599
      %3709 = vmatprep.subr.mxu0 0.0
      %3710 = vmatpush1.msra.mxu0 %v3598
      %3711 = vmatprep.subr.mxu0 0.0
      %3712 = vmatpush1.msra.mxu0 %v3597
      %3713 = vmatprep.subr.mxu0 0.0
      %3714 = vmatpush1.msra.mxu0 %v3596
      %3715 = vmatprep.subr.mxu0 0.0
      %3716 = vmatpush1.msra.mxu0 %v3595
      %3717 = vmatprep.subr.mxu0 0.0
      %3718 = vmatpush1.msra.mxu0 %v3594
      %3719 = vmatprep.subr.mxu0 0.0
      %3720 = vmatpush1.msra.mxu0 %v3593
      %3721 = vmatprep.subr.mxu0 0.0
      %3722 = vmatpush1.msra.mxu0 %v3592
      %3723 = vmatprep.subr.mxu0 0.0
      %3724 = vmatpush1.msra.mxu0 %v3591
      %3725 = vmatprep.subr.mxu0 0.0
      %3726 = vmatpush1.msra.mxu0 %v3590
      %3727 = vmatprep.subr.mxu0 0.0
      %3728 = vmatpush1.msra.mxu0 %v3589
      %3729 = vmatprep.subr.mxu0 0.0
      %3730 = vmatpush2.msra.mxu0 0.0
      %3731 = vmatprep.subr.mxu0 0.0
      %3732 = vmatpush2.msra.mxu0 0.0
      %3733 = vmatprep.subr.mxu0 0.0
      %3734 = vmatpush2.msra.mxu0 0.0
      %3735 = vmatprep.subr.mxu0 0.0
      %3736 = vmatpush2.msra.mxu0 0.0
      %3737 = vmatprep.subr.mxu0 0.0
      %3738 = vmatpush2.msra.mxu0 0.0
      %3739 = vmatprep.subr.mxu0 0.0
      %3740 = vmatpush2.msra.mxu0 0.0
      %3741 = vmatprep.subr.mxu0 0.0
      %3742 = vmatpush2.msra.mxu0 0.0
      %3743 = vmatprep.subr.mxu0 0.0
      %3744 = vmatpush2.msra.mxu0 0.0
      %3745 = vmatprep.subr.mxu0 0.0
      %3746 = vmatpush2.msra.mxu0 0.0
      %3747 = vmatprep.subr.mxu0 0.0
      %3748 = vmatpush2.msra.mxu0 0.0
      %3749 = vmatprep.subr.mxu0 0.0
      %3750 = vmatpush2.msra.mxu0 0.0
      %3751 = vmatprep.subr.mxu0 0.0
      %3752 = vmatpush2.msra.mxu0 0.0
      %3753 = vmatprep.subr.mxu0 0.0
      %3754 = vmatpush2.msra.mxu0 0.0
      %3755 = vmatprep.subr.mxu0 0.0
      %3756 = vmatpush2.msra.mxu0 0.0
      %3757 = vmatprep.subr.mxu0 0.0
      %3758 = vmatpush2.msra.mxu0 0.0
      %3759 = vmatprep.subr.mxu0 0.0
      %3760 = vmatpush2.msra.mxu0 0.0
      %3761 = vmatprep.mubr.f32.mxu0 0.0
      %3762 = vmatmul.mubr.f32.gmra.mxu0 %v3602
      %v3763 = vpop.f32.mrf.mxu0
      %v3764 = vadd.f32 0.0, %v3763
      %v3765 = vpop.f32.mrf.mxu0
      %3766 = vmatprep.mubr.f32.mxu0 0.0
      %3767 = vmatmul.mubr.f32.gmra.mxu0 %v3605
      %v3768 = vpop.f32.mrf.mxu0
      %v3769 = vadd.f32 0.0, %v3768
      %v3770 = vpop.f32.mrf.mxu0
      %3771 = vmatprep.mubr.f32.mxu0 0.0
      %3772 = vmatmul.mubr.f32.gmra.mxu0 %v3608
      %v3773 = vpop.f32.mrf.mxu0
      %v3774 = vadd.f32 0.0, %v3773
      %v3775 = vpop.f32.mrf.mxu0
      %3776 = vmatprep.mubr.f32.mxu0 0.0
      %3777 = vmatmul.mubr.f32.gmra.mxu0 %v3611
      %v3778 = vpop.f32.mrf.mxu0
      %v3779 = vadd.f32 0.0, %v3778
      %v3780 = vpop.f32.mrf.mxu0
      %3781 = vmatprep.mubr.f32.mxu0 0.0
      %3782 = vmatmul.mubr.f32.gmra.mxu0 %v3614
      %v3783 = vpop.f32.mrf.mxu0
      %v3784 = vadd.f32 0.0, %v3783
      %v3785 = vpop.f32.mrf.mxu0
      %3786 = vmatprep.mubr.f32.mxu0 0.0
      %3787 = vmatmul.mubr.f32.gmra.mxu0 %v3617
      %v3788 = vpop.f32.mrf.mxu0
      %v3789 = vadd.f32 0.0, %v3788
      %v3790 = vpop.f32.mrf.mxu0
      %3791 = vmatprep.mubr.f32.mxu0 0.0
      %3792 = vmatmul.mubr.f32.gmra.mxu0 %v3620
      %v3793 = vpop.f32.mrf.mxu0
      %v3794 = vadd.f32 0.0, %v3793
      %v3795 = vpop.f32.mrf.mxu0
      %3796 = vmatprep.mubr.f32.mxu0 0.0
      %3797 = vmatmul.mubr.f32.gmra.mxu0 %v3623
      %v3798 = vpop.f32.mrf.mxu0
      %v3799 = vadd.f32 0.0, %v3798
      %v3800 = vpop.f32.mrf.mxu0
      %3801 = vmatprep.mubr.f32.mxu0 0.0
      %3802 = vmatmul.mubr.f32.gmra.mxu0 %v3626
      %v3803 = vpop.f32.mrf.mxu0
      %v3804 = vadd.f32 0.0, %v3803
      %v3805 = vpop.f32.mrf.mxu0
      %3806 = vmatprep.mubr.f32.mxu0 0.0
      %3807 = vmatmul.mubr.f32.gmra.mxu0 %v3629
      %v3808 = vpop.f32.mrf.mxu0
      %v3809 = vadd.f32 0.0, %v3808
      %v3810 = vpop.f32.mrf.mxu0
      %3811 = vmatprep.mubr.f32.mxu0 0.0
      %3812 = vmatmul.mubr.f32.gmra.mxu0 %v3632
      %v3813 = vpop.f32.mrf.mxu0
      %v3814 = vadd.f32 0.0, %v3813
      %v3815 = vpop.f32.mrf.mxu0
      %3816 = vmatprep.mubr.f32.mxu0 0.0
      %3817 = vmatmul.mubr.f32.gmra.mxu0 %v3635
      %v3818 = vpop.f32.mrf.mxu0
      %v3819 = vadd.f32 0.0, %v3818
      %v3820 = vpop.f32.mrf.mxu0
      %3821 = vmatprep.mubr.f32.mxu0 0.0
      %3822 = vmatmul.mubr.f32.gmra.mxu0 %v3638
      %v3823 = vpop.f32.mrf.mxu0
      %v3824 = vadd.f32 0.0, %v3823
      %v3825 = vpop.f32.mrf.mxu0
      %3826 = vmatprep.mubr.f32.mxu0 0.0
      %3827 = vmatmul.mubr.f32.gmra.mxu0 %v3641
      %v3828 = vpop.f32.mrf.mxu0
      %v3829 = vadd.f32 0.0, %v3828
      %v3830 = vpop.f32.mrf.mxu0
      %3831 = vmatprep.mubr.f32.mxu0 0.0
      %3832 = vmatmul.mubr.f32.gmra.mxu0 %v3644
      %v3833 = vpop.f32.mrf.mxu0
      %v3834 = vadd.f32 0.0, %v3833
      %v3835 = vpop.f32.mrf.mxu0
      %3836 = vmatprep.mubr.f32.mxu0 0.0
      %3837 = vmatmul.mubr.f32.gmra.mxu0 %v3647
      %v3838 = vpop.f32.mrf.mxu0
      %v3839 = vadd.f32 0.0, %v3838
      %v3840 = vpop.f32.mrf.mxu0
      %3841 = vmatprep.mubr.f32.mxu0 0.0
      %3842 = vmatmul.mubr.f32.gmra.mxu0 %v3650
      %v3843 = vpop.f32.mrf.mxu0
      %v3844 = vadd.f32 0.0, %v3843
      %v3845 = vpop.f32.mrf.mxu0
      %3846 = vmatprep.mubr.f32.mxu0 0.0
      %3847 = vmatmul.mubr.f32.gmra.mxu0 %v3653
      %v3848 = vpop.f32.mrf.mxu0
      %v3849 = vadd.f32 0.0, %v3848
      %v3850 = vpop.f32.mrf.mxu0
      %3851 = vmatprep.mubr.f32.mxu0 0.0
      %3852 = vmatmul.mubr.f32.gmra.mxu0 %v3656
      %v3853 = vpop.f32.mrf.mxu0
      %v3854 = vadd.f32 0.0, %v3853
      %v3855 = vpop.f32.mrf.mxu0
      %3856 = vmatprep.mubr.f32.mxu0 0.0
      %3857 = vmatmul.mubr.f32.gmra.mxu0 %v3659
      %v3858 = vpop.f32.mrf.mxu0
      %v3859 = vadd.f32 0.0, %v3858
      %v3860 = vpop.f32.mrf.mxu0
      %3861 = vmatprep.mubr.f32.mxu0 0.0
      %3862 = vmatmul.mubr.f32.gmra.mxu0 %v3662
      %v3863 = vpop.f32.mrf.mxu0
      %v3864 = vadd.f32 0.0, %v3863
      %v3865 = vpop.f32.mrf.mxu0
      %3866 = vmatprep.mubr.f32.mxu0 0.0
      %3867 = vmatmul.mubr.f32.gmra.mxu0 %v3665
      %v3868 = vpop.f32.mrf.mxu0
      %v3869 = vadd.f32 0.0, %v3868
      %v3870 = vpop.f32.mrf.mxu0
      %3871 = vmatprep.mubr.f32.mxu0 0.0
      %3872 = vmatmul.mubr.f32.gmra.mxu0 %v3668
      %v3873 = vpop.f32.mrf.mxu0
      %v3874 = vadd.f32 0.0, %v3873
      %v3875 = vpop.f32.mrf.mxu0
      %3876 = vmatprep.mubr.f32.mxu0 0.0
      %3877 = vmatmul.mubr.f32.gmra.mxu0 %v3671
      %v3878 = vpop.f32.mrf.mxu0
      %v3879 = vadd.f32 0.0, %v3878
      %v3880 = vpop.f32.mrf.mxu0
      %3881 = vmatprep.mubr.f32.mxu0 0.0
      %3882 = vmatmul.mubr.f32.gmra.mxu0 %v3674
      %v3883 = vpop.f32.mrf.mxu0
      %v3884 = vadd.f32 0.0, %v3883
      %v3885 = vpop.f32.mrf.mxu0
      %3886 = vmatprep.mubr.f32.mxu0 0.0
      %3887 = vmatmul.mubr.f32.gmra.mxu0 %v3677
      %v3888 = vpop.f32.mrf.mxu0
      %v3889 = vadd.f32 0.0, %v3888
      %v3890 = vpop.f32.mrf.mxu0
      %3891 = vmatprep.mubr.f32.mxu0 0.0
      %3892 = vmatmul.mubr.f32.gmra.mxu0 %v3680
      %v3893 = vpop.f32.mrf.mxu0
      %v3894 = vadd.f32 0.0, %v3893
      %v3895 = vpop.f32.mrf.mxu0
      %3896 = vmatprep.mubr.f32.mxu0 0.0
      %3897 = vmatmul.mubr.f32.gmra.mxu0 %v3683
      %v3898 = vpop.f32.mrf.mxu0
      %v3899 = vadd.f32 0.0, %v3898
      %v3900 = vpop.f32.mrf.mxu0
      %3901 = vmatprep.mubr.f32.mxu0 0.0
      %3902 = vmatmul.mubr.f32.gmra.mxu0 %v3686
      %v3903 = vpop.f32.mrf.mxu0
      %v3904 = vadd.f32 0.0, %v3903
      %v3905 = vpop.f32.mrf.mxu0
      %3906 = vmatprep.mubr.f32.mxu0 0.0
      %3907 = vmatmul.mubr.f32.gmra.mxu0 %v3689
      %v3908 = vpop.f32.mrf.mxu0
      %v3909 = vadd.f32 0.0, %v3908
      %v3910 = vpop.f32.mrf.mxu0
      %3911 = vmatprep.mubr.f32.mxu0 0.0
      %3912 = vmatmul.mubr.f32.gmra.mxu0 %v3692
      %v3913 = vpop.f32.mrf.mxu0
      %v3914 = vadd.f32 0.0, %v3913
      %v3915 = vpop.f32.mrf.mxu0
      %3916 = vmatprep.mubr.f32.mxu0 0.0
      %3917 = vmatmul.mubr.f32.gmra.mxu0 %v3695
      %v3918 = vpop.f32.mrf.mxu0
      %v3919 = vadd.f32 0.0, %v3918
      %v3920 = vpop.f32.mrf.mxu0
      %3921 = vdwg.mxu0
      %s3922 = scalar_lea.vmem %s4, 96
      %v3923 = vld [vmem:[%s3922] sm:$0xff]
      %v3924 = vld [vmem:[%s3922 + $0x8] sm:$0xff]
      %v3925 = vld [vmem:[%s3922 + $0x10] sm:$0xff]
      %v3926 = vld [vmem:[%s3922 + $0x18] sm:$0xff]
      %v3927 = vld [vmem:[%s3922 + $0x20] sm:$0xff]
      %v3928 = vld [vmem:[%s3922 + $0x28] sm:$0xff]
      %v3929 = vld [vmem:[%s3922 + $0x30] sm:$0xff]
      %v3930 = vld [vmem:[%s3922 + $0x38] sm:$0xff]
      %v3931 = vld [vmem:[%s3922 + $0x40] sm:$0xff]
      %v3932 = vld [vmem:[%s3922 + $0x48] sm:$0xff]
      %v3933 = vld [vmem:[%s3922 + $0x50] sm:$0xff]
      %v3934 = vld [vmem:[%s3922 + $0x58] sm:$0xff]
      %3935 = vmatprep.subr.mxu0 0.0
      %3936 = vmatpush1.msra.mxu0 0.0
      %3937 = vmatprep.subr.mxu0 0.0
      %3938 = vmatpush1.msra.mxu0 0.0
      %3939 = vmatprep.subr.mxu0 0.0
      %3940 = vmatpush1.msra.mxu0 0.0
      %3941 = vmatprep.subr.mxu0 0.0
      %3942 = vmatpush1.msra.mxu0 0.0
      %3943 = vmatprep.subr.mxu0 0.0
      %3944 = vmatpush1.msra.mxu0 %v3934
      %3945 = vmatprep.subr.mxu0 0.0
      %3946 = vmatpush1.msra.mxu0 %v3933
      %3947 = vmatprep.subr.mxu0 0.0
      %3948 = vmatpush1.msra.mxu0 %v3932
      %3949 = vmatprep.subr.mxu0 0.0
      %3950 = vmatpush1.msra.mxu0 %v3931
      %3951 = vmatprep.subr.mxu0 0.0
      %3952 = vmatpush1.msra.mxu0 %v3930
      %3953 = vmatprep.subr.mxu0 0.0
      %3954 = vmatpush1.msra.mxu0 %v3929
      %3955 = vmatprep.subr.mxu0 0.0
      %3956 = vmatpush1.msra.mxu0 %v3928
      %3957 = vmatprep.subr.mxu0 0.0
      %3958 = vmatpush1.msra.mxu0 %v3927
      %3959 = vmatprep.subr.mxu0 0.0
      %3960 = vmatpush1.msra.mxu0 %v3926
      %3961 = vmatprep.subr.mxu0 0.0
      %3962 = vmatpush1.msra.mxu0 %v3925
      %3963 = vmatprep.subr.mxu0 0.0
      %3964 = vmatpush1.msra.mxu0 %v3924
      %3965 = vmatprep.subr.mxu0 0.0
      %3966 = vmatpush1.msra.mxu0 %v3923
      %3967 = vmatprep.subr.mxu0 0.0
      %3968 = vmatpush2.msra.mxu0 0.0
      %3969 = vmatprep.subr.mxu0 0.0
      %3970 = vmatpush2.msra.mxu0 0.0
      %3971 = vmatprep.subr.mxu0 0.0
      %3972 = vmatpush2.msra.mxu0 0.0
      %3973 = vmatprep.subr.mxu0 0.0
      %3974 = vmatpush2.msra.mxu0 0.0
      %3975 = vmatprep.subr.mxu0 0.0
      %3976 = vmatpush2.msra.mxu0 0.0
      %3977 = vmatprep.subr.mxu0 0.0
      %3978 = vmatpush2.msra.mxu0 0.0
      %3979 = vmatprep.subr.mxu0 0.0
      %3980 = vmatpush2.msra.mxu0 0.0
      %3981 = vmatprep.subr.mxu0 0.0
      %3982 = vmatpush2.msra.mxu0 0.0
      %3983 = vmatprep.subr.mxu0 0.0
      %3984 = vmatpush2.msra.mxu0 0.0
      %3985 = vmatprep.subr.mxu0 0.0
      %3986 = vmatpush2.msra.mxu0 0.0
      %3987 = vmatprep.subr.mxu0 0.0
      %3988 = vmatpush2.msra.mxu0 0.0
      %3989 = vmatprep.subr.mxu0 0.0
      %3990 = vmatpush2.msra.mxu0 0.0
      %3991 = vmatprep.subr.mxu0 0.0
      %3992 = vmatpush2.msra.mxu0 0.0
      %3993 = vmatprep.subr.mxu0 0.0
      %3994 = vmatpush2.msra.mxu0 0.0
      %3995 = vmatprep.subr.mxu0 0.0
      %3996 = vmatpush2.msra.mxu0 0.0
      %3997 = vmatprep.subr.mxu0 0.0
      %3998 = vmatpush2.msra.mxu0 0.0
      %3999 = vmatprep.mubr.f32.mxu0 0.0
      %4000 = vmatmul.mubr.f32.gmra.mxu0 %v3602
      %v4001 = vpop.f32.mrf.mxu0
      %v4002 = vadd.f32 0.0, %v4001
      %v4003 = vpop.f32.mrf.mxu0
      %4004 = vmatprep.mubr.f32.mxu0 0.0
      %4005 = vmatmul.mubr.f32.gmra.mxu0 %v3605
      %v4006 = vpop.f32.mrf.mxu0
      %v4007 = vadd.f32 0.0, %v4006
      %v4008 = vpop.f32.mrf.mxu0
      %4009 = vmatprep.mubr.f32.mxu0 0.0
      %4010 = vmatmul.mubr.f32.gmra.mxu0 %v3608
      %v4011 = vpop.f32.mrf.mxu0
      %v4012 = vadd.f32 0.0, %v4011
      %v4013 = vpop.f32.mrf.mxu0
      %4014 = vmatprep.mubr.f32.mxu0 0.0
      %4015 = vmatmul.mubr.f32.gmra.mxu0 %v3611
      %v4016 = vpop.f32.mrf.mxu0
      %v4017 = vadd.f32 0.0, %v4016
      %v4018 = vpop.f32.mrf.mxu0
      %4019 = vmatprep.mubr.f32.mxu0 0.0
      %4020 = vmatmul.mubr.f32.gmra.mxu0 %v3614
      %v4021 = vpop.f32.mrf.mxu0
      %v4022 = vadd.f32 0.0, %v4021
      %v4023 = vpop.f32.mrf.mxu0
      %4024 = vmatprep.mubr.f32.mxu0 0.0
      %4025 = vmatmul.mubr.f32.gmra.mxu0 %v3617
      %v4026 = vpop.f32.mrf.mxu0
      %v4027 = vadd.f32 0.0, %v4026
      %v4028 = vpop.f32.mrf.mxu0
      %4029 = vmatprep.mubr.f32.mxu0 0.0
      %4030 = vmatmul.mubr.f32.gmra.mxu0 %v3620
      %v4031 = vpop.f32.mrf.mxu0
      %v4032 = vadd.f32 0.0, %v4031
      %v4033 = vpop.f32.mrf.mxu0
      %4034 = vmatprep.mubr.f32.mxu0 0.0
      %4035 = vmatmul.mubr.f32.gmra.mxu0 %v3623
      %v4036 = vpop.f32.mrf.mxu0
      %v4037 = vadd.f32 0.0, %v4036
      %v4038 = vpop.f32.mrf.mxu0
      %4039 = vmatprep.mubr.f32.mxu0 0.0
      %4040 = vmatmul.mubr.f32.gmra.mxu0 %v3626
      %v4041 = vpop.f32.mrf.mxu0
      %v4042 = vadd.f32 0.0, %v4041
      %v4043 = vpop.f32.mrf.mxu0
      %4044 = vmatprep.mubr.f32.mxu0 0.0
      %4045 = vmatmul.mubr.f32.gmra.mxu0 %v3629
      %v4046 = vpop.f32.mrf.mxu0
      %v4047 = vadd.f32 0.0, %v4046
      %v4048 = vpop.f32.mrf.mxu0
      %4049 = vmatprep.mubr.f32.mxu0 0.0
      %4050 = vmatmul.mubr.f32.gmra.mxu0 %v3632
      %v4051 = vpop.f32.mrf.mxu0
      %v4052 = vadd.f32 0.0, %v4051
      %v4053 = vpop.f32.mrf.mxu0
      %4054 = vmatprep.mubr.f32.mxu0 0.0
      %4055 = vmatmul.mubr.f32.gmra.mxu0 %v3635
      %v4056 = vpop.f32.mrf.mxu0
      %v4057 = vadd.f32 0.0, %v4056
      %v4058 = vpop.f32.mrf.mxu0
      %4059 = vmatprep.mubr.f32.mxu0 0.0
      %4060 = vmatmul.mubr.f32.gmra.mxu0 %v3638
      %v4061 = vpop.f32.mrf.mxu0
      %v4062 = vadd.f32 0.0, %v4061
      %v4063 = vpop.f32.mrf.mxu0
      %4064 = vmatprep.mubr.f32.mxu0 0.0
      %4065 = vmatmul.mubr.f32.gmra.mxu0 %v3641
      %v4066 = vpop.f32.mrf.mxu0
      %v4067 = vadd.f32 0.0, %v4066
      %v4068 = vpop.f32.mrf.mxu0
      %4069 = vmatprep.mubr.f32.mxu0 0.0
      %4070 = vmatmul.mubr.f32.gmra.mxu0 %v3644
      %v4071 = vpop.f32.mrf.mxu0
      %v4072 = vadd.f32 0.0, %v4071
      %v4073 = vpop.f32.mrf.mxu0
      %4074 = vmatprep.mubr.f32.mxu0 0.0
      %4075 = vmatmul.mubr.f32.gmra.mxu0 %v3647
      %v4076 = vpop.f32.mrf.mxu0
      %v4077 = vadd.f32 0.0, %v4076
      %v4078 = vpop.f32.mrf.mxu0
      %4079 = vmatprep.mubr.f32.mxu0 0.0
      %4080 = vmatmul.mubr.f32.gmra.mxu0 %v3650
      %v4081 = vpop.f32.mrf.mxu0
      %v4082 = vadd.f32 0.0, %v4081
      %v4083 = vpop.f32.mrf.mxu0
      %4084 = vmatprep.mubr.f32.mxu0 0.0
      %4085 = vmatmul.mubr.f32.gmra.mxu0 %v3653
      %v4086 = vpop.f32.mrf.mxu0
      %v4087 = vadd.f32 0.0, %v4086
      %v4088 = vpop.f32.mrf.mxu0
      %4089 = vmatprep.mubr.f32.mxu0 0.0
      %4090 = vmatmul.mubr.f32.gmra.mxu0 %v3656
      %v4091 = vpop.f32.mrf.mxu0
      %v4092 = vadd.f32 0.0, %v4091
      %v4093 = vpop.f32.mrf.mxu0
      %4094 = vmatprep.mubr.f32.mxu0 0.0
      %4095 = vmatmul.mubr.f32.gmra.mxu0 %v3659
      %v4096 = vpop.f32.mrf.mxu0
      %v4097 = vadd.f32 0.0, %v4096
      %v4098 = vpop.f32.mrf.mxu0
      %4099 = vmatprep.mubr.f32.mxu0 0.0
      %4100 = vmatmul.mubr.f32.gmra.mxu0 %v3662
      %v4101 = vpop.f32.mrf.mxu0
      %v4102 = vadd.f32 0.0, %v4101
      %v4103 = vpop.f32.mrf.mxu0
      %4104 = vmatprep.mubr.f32.mxu0 0.0
      %4105 = vmatmul.mubr.f32.gmra.mxu0 %v3665
      %v4106 = vpop.f32.mrf.mxu0
      %v4107 = vadd.f32 0.0, %v4106
      %v4108 = vpop.f32.mrf.mxu0
      %4109 = vmatprep.mubr.f32.mxu0 0.0
      %4110 = vmatmul.mubr.f32.gmra.mxu0 %v3668
      %v4111 = vpop.f32.mrf.mxu0
      %v4112 = vadd.f32 0.0, %v4111
      %v4113 = vpop.f32.mrf.mxu0
      %4114 = vmatprep.mubr.f32.mxu0 0.0
      %4115 = vmatmul.mubr.f32.gmra.mxu0 %v3671
      %v4116 = vpop.f32.mrf.mxu0
      %v4117 = vadd.f32 0.0, %v4116
      %v4118 = vpop.f32.mrf.mxu0
      %4119 = vmatprep.mubr.f32.mxu0 0.0
      %4120 = vmatmul.mubr.f32.gmra.mxu0 %v3674
      %v4121 = vpop.f32.mrf.mxu0
      %v4122 = vadd.f32 0.0, %v4121
      %v4123 = vpop.f32.mrf.mxu0
      %4124 = vmatprep.mubr.f32.mxu0 0.0
      %4125 = vmatmul.mubr.f32.gmra.mxu0 %v3677
      %v4126 = vpop.f32.mrf.mxu0
      %v4127 = vadd.f32 0.0, %v4126
      %v4128 = vpop.f32.mrf.mxu0
      %4129 = vmatprep.mubr.f32.mxu0 0.0
      %4130 = vmatmul.mubr.f32.gmra.mxu0 %v3680
      %v4131 = vpop.f32.mrf.mxu0
      %v4132 = vadd.f32 0.0, %v4131
      %v4133 = vpop.f32.mrf.mxu0
      %4134 = vmatprep.mubr.f32.mxu0 0.0
      %4135 = vmatmul.mubr.f32.gmra.mxu0 %v3683
      %v4136 = vpop.f32.mrf.mxu0
      %v4137 = vadd.f32 0.0, %v4136
      %v4138 = vpop.f32.mrf.mxu0
      %4139 = vmatprep.mubr.f32.mxu0 0.0
      %4140 = vmatmul.mubr.f32.gmra.mxu0 %v3686
      %v4141 = vpop.f32.mrf.mxu0
      %v4142 = vadd.f32 0.0, %v4141
      %v4143 = vpop.f32.mrf.mxu0
      %4144 = vmatprep.mubr.f32.mxu0 0.0
      %4145 = vmatmul.mubr.f32.gmra.mxu0 %v3689
      %v4146 = vpop.f32.mrf.mxu0
      %v4147 = vadd.f32 0.0, %v4146
      %v4148 = vpop.f32.mrf.mxu0
      %4149 = vmatprep.mubr.f32.mxu0 0.0
      %4150 = vmatmul.mubr.f32.gmra.mxu0 %v3692
      %v4151 = vpop.f32.mrf.mxu0
      %v4152 = vadd.f32 0.0, %v4151
      %v4153 = vpop.f32.mrf.mxu0
      %4154 = vmatprep.mubr.f32.mxu0 0.0
      %4155 = vmatmul.mubr.f32.gmra.mxu0 %v3695
      %v4156 = vpop.f32.mrf.mxu0
      %v4157 = vadd.f32 0.0, %v4156
      %v4158 = vpop.f32.mrf.mxu0
      %4159 = vdwg.mxu0
      %s4160 = scalar_lea.vmem %s4, 192
      %v4161 = vld [vmem:[%s4160] sm:$0xff]
      %v4162 = vld [vmem:[%s4160 + $0x8] sm:$0xff]
      %v4163 = vld [vmem:[%s4160 + $0x10] sm:$0xff]
      %v4164 = vld [vmem:[%s4160 + $0x18] sm:$0xff]
      %v4165 = vld [vmem:[%s4160 + $0x20] sm:$0xff]
      %v4166 = vld [vmem:[%s4160 + $0x28] sm:$0xff]
      %v4167 = vld [vmem:[%s4160 + $0x30] sm:$0xff]
      %v4168 = vld [vmem:[%s4160 + $0x38] sm:$0xff]
      %v4169 = vld [vmem:[%s4160 + $0x40] sm:$0xff]
      %v4170 = vld [vmem:[%s4160 + $0x48] sm:$0xff]
      %v4171 = vld [vmem:[%s4160 + $0x50] sm:$0xff]
      %v4172 = vld [vmem:[%s4160 + $0x58] sm:$0xff]
      %4173 = vmatprep.subr.mxu0 0.0
      %4174 = vmatpush1.msra.mxu0 0.0
      %4175 = vmatprep.subr.mxu0 0.0
      %4176 = vmatpush1.msra.mxu0 0.0
      %4177 = vmatprep.subr.mxu0 0.0
      %4178 = vmatpush1.msra.mxu0 0.0
      %4179 = vmatprep.subr.mxu0 0.0
      %4180 = vmatpush1.msra.mxu0 0.0
      %4181 = vmatprep.subr.mxu0 0.0
      %4182 = vmatpush1.msra.mxu0 %v4172
      %4183 = vmatprep.subr.mxu0 0.0
      %4184 = vmatpush1.msra.mxu0 %v4171
      %4185 = vmatprep.subr.mxu0 0.0
      %4186 = vmatpush1.msra.mxu0 %v4170
      %4187 = vmatprep.subr.mxu0 0.0
      %4188 = vmatpush1.msra.mxu0 %v4169
      %4189 = vmatprep.subr.mxu0 0.0
      %4190 = vmatpush1.msra.mxu0 %v4168
      %4191 = vmatprep.subr.mxu0 0.0
      %4192 = vmatpush1.msra.mxu0 %v4167
      %4193 = vmatprep.subr.mxu0 0.0
      %4194 = vmatpush1.msra.mxu0 %v4166
      %4195 = vmatprep.subr.mxu0 0.0
      %4196 = vmatpush1.msra.mxu0 %v4165
      %4197 = vmatprep.subr.mxu0 0.0
      %4198 = vmatpush1.msra.mxu0 %v4164
      %4199 = vmatprep.subr.mxu0 0.0
      %4200 = vmatpush1.msra.mxu0 %v4163
      %4201 = vmatprep.subr.mxu0 0.0
      %4202 = vmatpush1.msra.mxu0 %v4162
      %4203 = vmatprep.subr.mxu0 0.0
      %4204 = vmatpush1.msra.mxu0 %v4161
      %4205 = vmatprep.subr.mxu0 0.0
      %4206 = vmatpush2.msra.mxu0 0.0
      %4207 = vmatprep.subr.mxu0 0.0
      %4208 = vmatpush2.msra.mxu0 0.0
      %4209 = vmatprep.subr.mxu0 0.0
      %4210 = vmatpush2.msra.mxu0 0.0
      %4211 = vmatprep.subr.mxu0 0.0
      %4212 = vmatpush2.msra.mxu0 0.0
      %4213 = vmatprep.subr.mxu0 0.0
      %4214 = vmatpush2.msra.mxu0 0.0
      %4215 = vmatprep.subr.mxu0 0.0
      %4216 = vmatpush2.msra.mxu0 0.0
      %4217 = vmatprep.subr.mxu0 0.0
      %4218 = vmatpush2.msra.mxu0 0.0
      %4219 = vmatprep.subr.mxu0 0.0
      %4220 = vmatpush2.msra.mxu0 0.0
      %4221 = vmatprep.subr.mxu0 0.0
      %4222 = vmatpush2.msra.mxu0 0.0
      %4223 = vmatprep.subr.mxu0 0.0
      %4224 = vmatpush2.msra.mxu0 0.0
      %4225 = vmatprep.subr.mxu0 0.0
      %4226 = vmatpush2.msra.mxu0 0.0
      %4227 = vmatprep.subr.mxu0 0.0
      %4228 = vmatpush2.msra.mxu0 0.0
      %4229 = vmatprep.subr.mxu0 0.0
      %4230 = vmatpush2.msra.mxu0 0.0
      %4231 = vmatprep.subr.mxu0 0.0
      %4232 = vmatpush2.msra.mxu0 0.0
      %4233 = vmatprep.subr.mxu0 0.0
      %4234 = vmatpush2.msra.mxu0 0.0
      %4235 = vmatprep.subr.mxu0 0.0
      %4236 = vmatpush2.msra.mxu0 0.0
      %4237 = vmatprep.mubr.f32.mxu0 0.0
      %4238 = vmatmul.mubr.f32.gmra.mxu0 %v3602
      %v4239 = vpop.f32.mrf.mxu0
      %v4240 = vadd.f32 0.0, %v4239
      %v4241 = vpop.f32.mrf.mxu0
      %4242 = vmatprep.mubr.f32.mxu0 0.0
      %4243 = vmatmul.mubr.f32.gmra.mxu0 %v3605
      %v4244 = vpop.f32.mrf.mxu0
      %v4245 = vadd.f32 0.0, %v4244
      %v4246 = vpop.f32.mrf.mxu0
      %4247 = vmatprep.mubr.f32.mxu0 0.0
      %4248 = vmatmul.mubr.f32.gmra.mxu0 %v3608
      %v4249 = vpop.f32.mrf.mxu0
      %v4250 = vadd.f32 0.0, %v4249
      %v4251 = vpop.f32.mrf.mxu0
      %4252 = vmatprep.mubr.f32.mxu0 0.0
      %4253 = vmatmul.mubr.f32.gmra.mxu0 %v3611
      %v4254 = vpop.f32.mrf.mxu0
      %v4255 = vadd.f32 0.0, %v4254
      %v4256 = vpop.f32.mrf.mxu0
      %4257 = vmatprep.mubr.f32.mxu0 0.0
      %4258 = vmatmul.mubr.f32.gmra.mxu0 %v3614
      %v4259 = vpop.f32.mrf.mxu0
      %v4260 = vadd.f32 0.0, %v4259
      %v4261 = vpop.f32.mrf.mxu0
      %4262 = vmatprep.mubr.f32.mxu0 0.0
      %4263 = vmatmul.mubr.f32.gmra.mxu0 %v3617
      %v4264 = vpop.f32.mrf.mxu0
      %v4265 = vadd.f32 0.0, %v4264
      %v4266 = vpop.f32.mrf.mxu0
      %4267 = vmatprep.mubr.f32.mxu0 0.0
      %4268 = vmatmul.mubr.f32.gmra.mxu0 %v3620
      %v4269 = vpop.f32.mrf.mxu0
      %v4270 = vadd.f32 0.0, %v4269
      %v4271 = vpop.f32.mrf.mxu0
      %4272 = vmatprep.mubr.f32.mxu0 0.0
      %4273 = vmatmul.mubr.f32.gmra.mxu0 %v3623
      %v4274 = vpop.f32.mrf.mxu0
      %v4275 = vadd.f32 0.0, %v4274
      %v4276 = vpop.f32.mrf.mxu0
      %4277 = vmatprep.mubr.f32.mxu0 0.0
      %4278 = vmatmul.mubr.f32.gmra.mxu0 %v3626
      %v4279 = vpop.f32.mrf.mxu0
      %v4280 = vadd.f32 0.0, %v4279
      %v4281 = vpop.f32.mrf.mxu0
      %4282 = vmatprep.mubr.f32.mxu0 0.0
      %4283 = vmatmul.mubr.f32.gmra.mxu0 %v3629
      %v4284 = vpop.f32.mrf.mxu0
      %v4285 = vadd.f32 0.0, %v4284
      %v4286 = vpop.f32.mrf.mxu0
      %4287 = vmatprep.mubr.f32.mxu0 0.0
      %4288 = vmatmul.mubr.f32.gmra.mxu0 %v3632
      %v4289 = vpop.f32.mrf.mxu0
      %v4290 = vadd.f32 0.0, %v4289
      %v4291 = vpop.f32.mrf.mxu0
      %4292 = vmatprep.mubr.f32.mxu0 0.0
      %4293 = vmatmul.mubr.f32.gmra.mxu0 %v3635
      %v4294 = vpop.f32.mrf.mxu0
      %v4295 = vadd.f32 0.0, %v4294
      %v4296 = vpop.f32.mrf.mxu0
      %4297 = vmatprep.mubr.f32.mxu0 0.0
      %4298 = vmatmul.mubr.f32.gmra.mxu0 %v3638
      %v4299 = vpop.f32.mrf.mxu0
      %v4300 = vadd.f32 0.0, %v4299
      %v4301 = vpop.f32.mrf.mxu0
      %4302 = vmatprep.mubr.f32.mxu0 0.0
      %4303 = vmatmul.mubr.f32.gmra.mxu0 %v3641
      %v4304 = vpop.f32.mrf.mxu0
      %v4305 = vadd.f32 0.0, %v4304
      %v4306 = vpop.f32.mrf.mxu0
      %4307 = vmatprep.mubr.f32.mxu0 0.0
      %4308 = vmatmul.mubr.f32.gmra.mxu0 %v3644
      %v4309 = vpop.f32.mrf.mxu0
      %v4310 = vadd.f32 0.0, %v4309
      %v4311 = vpop.f32.mrf.mxu0
      %4312 = vmatprep.mubr.f32.mxu0 0.0
      %4313 = vmatmul.mubr.f32.gmra.mxu0 %v3647
      %v4314 = vpop.f32.mrf.mxu0
      %v4315 = vadd.f32 0.0, %v4314
      %v4316 = vpop.f32.mrf.mxu0
      %4317 = vmatprep.mubr.f32.mxu0 0.0
      %4318 = vmatmul.mubr.f32.gmra.mxu0 %v3650
      %v4319 = vpop.f32.mrf.mxu0
      %v4320 = vadd.f32 0.0, %v4319
      %v4321 = vpop.f32.mrf.mxu0
      %4322 = vmatprep.mubr.f32.mxu0 0.0
      %4323 = vmatmul.mubr.f32.gmra.mxu0 %v3653
      %v4324 = vpop.f32.mrf.mxu0
      %v4325 = vadd.f32 0.0, %v4324
      %v4326 = vpop.f32.mrf.mxu0
      %4327 = vmatprep.mubr.f32.mxu0 0.0
      %4328 = vmatmul.mubr.f32.gmra.mxu0 %v3656
      %v4329 = vpop.f32.mrf.mxu0
      %v4330 = vadd.f32 0.0, %v4329
      %v4331 = vpop.f32.mrf.mxu0
      %4332 = vmatprep.mubr.f32.mxu0 0.0
      %4333 = vmatmul.mubr.f32.gmra.mxu0 %v3659
      %v4334 = vpop.f32.mrf.mxu0
      %v4335 = vadd.f32 0.0, %v4334
      %v4336 = vpop.f32.mrf.mxu0
      %4337 = vmatprep.mubr.f32.mxu0 0.0
      %4338 = vmatmul.mubr.f32.gmra.mxu0 %v3662
      %v4339 = vpop.f32.mrf.mxu0
      %v4340 = vadd.f32 0.0, %v4339
      %v4341 = vpop.f32.mrf.mxu0
      %4342 = vmatprep.mubr.f32.mxu0 0.0
      %4343 = vmatmul.mubr.f32.gmra.mxu0 %v3665
      %v4344 = vpop.f32.mrf.mxu0
      %v4345 = vadd.f32 0.0, %v4344
      %v4346 = vpop.f32.mrf.mxu0
      %4347 = vmatprep.mubr.f32.mxu0 0.0
      %4348 = vmatmul.mubr.f32.gmra.mxu0 %v3668
      %v4349 = vpop.f32.mrf.mxu0
      %v4350 = vadd.f32 0.0, %v4349
      %v4351 = vpop.f32.mrf.mxu0
      %4352 = vmatprep.mubr.f32.mxu0 0.0
      %4353 = vmatmul.mubr.f32.gmra.mxu0 %v3671
      %v4354 = vpop.f32.mrf.mxu0
      %v4355 = vadd.f32 0.0, %v4354
      %v4356 = vpop.f32.mrf.mxu0
      %4357 = vmatprep.mubr.f32.mxu0 0.0
      %4358 = vmatmul.mubr.f32.gmra.mxu0 %v3674
      %v4359 = vpop.f32.mrf.mxu0
      %v4360 = vadd.f32 0.0, %v4359
      %v4361 = vpop.f32.mrf.mxu0
      %4362 = vmatprep.mubr.f32.mxu0 0.0
      %4363 = vmatmul.mubr.f32.gmra.mxu0 %v3677
      %v4364 = vpop.f32.mrf.mxu0
      %v4365 = vadd.f32 0.0, %v4364
      %v4366 = vpop.f32.mrf.mxu0
      %4367 = vmatprep.mubr.f32.mxu0 0.0
      %4368 = vmatmul.mubr.f32.gmra.mxu0 %v3680
      %v4369 = vpop.f32.mrf.mxu0
      %v4370 = vadd.f32 0.0, %v4369
      %v4371 = vpop.f32.mrf.mxu0
      %4372 = vmatprep.mubr.f32.mxu0 0.0
      %4373 = vmatmul.mubr.f32.gmra.mxu0 %v3683
      %v4374 = vpop.f32.mrf.mxu0
      %v4375 = vadd.f32 0.0, %v4374
      %v4376 = vpop.f32.mrf.mxu0
      %4377 = vmatprep.mubr.f32.mxu0 0.0
      %4378 = vmatmul.mubr.f32.gmra.mxu0 %v3686
      %v4379 = vpop.f32.mrf.mxu0
      %v4380 = vadd.f32 0.0, %v4379
      %v4381 = vpop.f32.mrf.mxu0
      %4382 = vmatprep.mubr.f32.mxu0 0.0
      %4383 = vmatmul.mubr.f32.gmra.mxu0 %v3689
      %v4384 = vpop.f32.mrf.mxu0
      %v4385 = vadd.f32 0.0, %v4384
      %v4386 = vpop.f32.mrf.mxu0
      %4387 = vmatprep.mubr.f32.mxu0 0.0
      %4388 = vmatmul.mubr.f32.gmra.mxu0 %v3692
      %v4389 = vpop.f32.mrf.mxu0
      %v4390 = vadd.f32 0.0, %v4389
      %v4391 = vpop.f32.mrf.mxu0
      %4392 = vmatprep.mubr.f32.mxu0 0.0
      %4393 = vmatmul.mubr.f32.gmra.mxu0 %v3695
      %v4394 = vpop.f32.mrf.mxu0
      %v4395 = vadd.f32 0.0, %v4394
      %v4396 = vpop.f32.mrf.mxu0
      %4397 = vdwg.mxu0
      %v4398 = vmul.f32 %v3914, %v2647
      %v4399 = vmul.f32 %v3919, %v2648
      %v4400 = vmul.f32 %v3764, %v2649
      %v4401 = vmul.f32 %v3769, %v2650
      %v4402 = vmul.f32 %v3774, %v2651
      %v4403 = vmul.f32 %v3779, %v2652
      %v4404 = vmul.f32 %v3784, %v2653
      %v4405 = vmul.f32 %v3789, %v2654
      %v4406 = vmul.f32 %v3794, %v2655
      %v4407 = vmul.f32 %v3799, %v2656
      %v4408 = vmul.f32 %v3804, %v2657
      %v4409 = vmul.f32 %v3809, %v2658
      %v4410 = vmul.f32 %v3814, %v2659
      %v4411 = vmul.f32 %v3819, %v2660
      %v4412 = vmul.f32 %v3824, %v2661
      %v4413 = vmul.f32 %v3829, %v2662
      %v4414 = vmul.f32 %v3834, %v2663
      %v4415 = vmul.f32 %v3839, %v2664
      %v4416 = vmul.f32 %v3844, %v2665
      %v4417 = vmul.f32 %v3849, %v2666
      %v4418 = vmul.f32 %v3854, %v2667
      %v4419 = vmul.f32 %v3859, %v2668
      %v4420 = vmul.f32 %v3864, %v2669
      %v4421 = vmul.f32 %v3869, %v2670
      %v4422 = vmul.f32 %v3874, %v2671
      %v4423 = vmul.f32 %v3879, %v2672
      %v4424 = vmul.f32 %v3884, %v2673
      %v4425 = vmul.f32 %v3889, %v2674
      %v4426 = vmul.f32 %v3894, %v2675
      %v4427 = vmul.f32 %v3899, %v2676
      %v4428 = vmul.f32 %v3904, %v2677
      %v4429 = vmul.f32 %v3909, %v2678
      %v4430 = vadd.f32 %v4398, %v4002
      %v4431 = vadd.f32 %v4399, %v4007
      %v4432 = vadd.f32 %v4400, %v4012
      %v4433 = vadd.f32 %v4401, %v4017
      %v4434 = vadd.f32 %v4402, %v4022
      %v4435 = vadd.f32 %v4403, %v4027
      %v4436 = vadd.f32 %v4404, %v4032
      %v4437 = vadd.f32 %v4405, %v4037
      %v4438 = vadd.f32 %v4406, %v4042
      %v4439 = vadd.f32 %v4407, %v4047
      %v4440 = vadd.f32 %v4408, %v4052
      %v4441 = vadd.f32 %v4409, %v4057
      %v4442 = vadd.f32 %v4410, %v4062
      %v4443 = vadd.f32 %v4411, %v4067
      %v4444 = vadd.f32 %v4412, %v4072
      %v4445 = vadd.f32 %v4413, %v4077
      %v4446 = vadd.f32 %v4414, %v4082
      %v4447 = vadd.f32 %v4415, %v4087
      %v4448 = vadd.f32 %v4416, %v4092
      %v4449 = vadd.f32 %v4417, %v4097
      %v4450 = vadd.f32 %v4418, %v4102
      %v4451 = vadd.f32 %v4419, %v4107
      %v4452 = vadd.f32 %v4420, %v4112
      %v4453 = vadd.f32 %v4421, %v4117
      %v4454 = vadd.f32 %v4422, %v4122
      %v4455 = vadd.f32 %v4423, %v4127
      %v4456 = vadd.f32 %v4424, %v4132
      %v4457 = vadd.f32 %v4425, %v4137
      %v4458 = vadd.f32 %v4426, %v4142
      %v4459 = vadd.f32 %v4427, %v4147
      %v4460 = vadd.f32 %v4428, %v4152
      %v4461 = vadd.f32 %v4429, %v4157
      %v4462 = vmul.f32 %v4250, %v2807
      %v4463 = vmul.f32 %v4255, %v2808
      %v4464 = vmul.f32 %v4260, %v2809
      %v4465 = vmul.f32 %v4265, %v2810
      %v4466 = vmul.f32 %v4270, %v2811
      %v4467 = vmul.f32 %v4275, %v2812
      %v4468 = vmul.f32 %v4280, %v2813
      %v4469 = vmul.f32 %v4285, %v2814
      %v4470 = vmul.f32 %v4290, %v2815
      %v4471 = vmul.f32 %v4295, %v2816
      %v4472 = vmul.f32 %v4300, %v2817
      %v4473 = vmul.f32 %v4305, %v2818
      %v4474 = vmul.f32 %v4310, %v2819
      %v4475 = vmul.f32 %v4315, %v2820
      %v4476 = vmul.f32 %v4320, %v2821
      %v4477 = vmul.f32 %v4325, %v2822
      %v4478 = vmul.f32 %v4330, %v2823
      %v4479 = vmul.f32 %v4335, %v2824
      %v4480 = vmul.f32 %v4340, %v2825
      %v4481 = vmul.f32 %v4345, %v2826
      %v4482 = vmul.f32 %v4350, %v2827
      %v4483 = vmul.f32 %v4355, %v2828
      %v4484 = vmul.f32 %v4360, %v2829
      %v4485 = vmul.f32 %v4365, %v2830
      %v4486 = vmul.f32 %v4370, %v2831
      %v4487 = vmul.f32 %v4375, %v2832
      %v4488 = vmul.f32 %v4380, %v2833
      %v4489 = vmul.f32 %v4385, %v2834
      %v4490 = vmul.f32 %v4390, %v2835
      %v4491 = vmul.f32 %v4395, %v2836
      %v4492 = vmul.f32 %v4240, %v2837
      %v4493 = vmul.f32 %v4245, %v2838
      %v4494 = vadd.f32 %v4430, %v4462
      %v4495 = vadd.f32 %v4431, %v4463
      %v4496 = vadd.f32 %v4432, %v4464
      %v4497 = vadd.f32 %v4433, %v4465
      %v4498 = vadd.f32 %v4434, %v4466
      %v4499 = vadd.f32 %v4435, %v4467
      %v4500 = vadd.f32 %v4436, %v4468
      %v4501 = vadd.f32 %v4437, %v4469
      %v4502 = vadd.f32 %v4438, %v4470
      %v4503 = vadd.f32 %v4439, %v4471
      %v4504 = vadd.f32 %v4440, %v4472
      %v4505 = vadd.f32 %v4441, %v4473
      %v4506 = vadd.f32 %v4442, %v4474
      %v4507 = vadd.f32 %v4443, %v4475
      %v4508 = vadd.f32 %v4444, %v4476
      %v4509 = vadd.f32 %v4445, %v4477
      %v4510 = vadd.f32 %v4446, %v4478
      %v4511 = vadd.f32 %v4447, %v4479
      %v4512 = vadd.f32 %v4448, %v4480
      %v4513 = vadd.f32 %v4449, %v4481
      %v4514 = vadd.f32 %v4450, %v4482
      %v4515 = vadd.f32 %v4451, %v4483
      %v4516 = vadd.f32 %v4452, %v4484
      %v4517 = vadd.f32 %v4453, %v4485
      %v4518 = vadd.f32 %v4454, %v4486
      %v4519 = vadd.f32 %v4455, %v4487
      %v4520 = vadd.f32 %v4456, %v4488
      %v4521 = vadd.f32 %v4457, %v4489
      %v4522 = vadd.f32 %v4458, %v4490
      %v4523 = vadd.f32 %v4459, %v4491
      %v4524 = vadd.f32 %v4460, %v4492
      %v4525 = vadd.f32 %v4461, %v4493
      %v4526 = vld [vmem:[%s5] sm:$0x1]
      %v4528 = vlaneseq
      %v4529 = vshrl.u32 %v4528, 7
      %v4530 = vsub.s32 0, %v4529
      %v4531 = vrot.slane %v4526, %v4530
      %v4533 = vmul.f32 %v4494, %v4531
      %v4534 = vmul.f32 %v4495, %v4531
      %v4535 = vmul.f32 %v4496, %v4531
      %v4536 = vmul.f32 %v4497, %v4531
      %v4537 = vmul.f32 %v4498, %v4531
      %v4538 = vmul.f32 %v4499, %v4531
      %v4539 = vmul.f32 %v4500, %v4531
      %v4540 = vmul.f32 %v4501, %v4531
      %v4541 = vmul.f32 %v4502, %v4531
      %v4542 = vmul.f32 %v4503, %v4531
      %v4543 = vmul.f32 %v4504, %v4531
      %v4544 = vmul.f32 %v4505, %v4531
      %v4545 = vmul.f32 %v4506, %v4531
      %v4546 = vmul.f32 %v4507, %v4531
      %v4547 = vmul.f32 %v4508, %v4531
      %v4548 = vmul.f32 %v4509, %v4531
      %v4549 = vmul.f32 %v4510, %v4531
      %v4550 = vmul.f32 %v4511, %v4531
      %v4551 = vmul.f32 %v4512, %v4531
      %v4552 = vmul.f32 %v4513, %v4531
      %v4553 = vmul.f32 %v4514, %v4531
      %v4554 = vmul.f32 %v4515, %v4531
      %v4555 = vmul.f32 %v4516, %v4531
      %v4556 = vmul.f32 %v4517, %v4531
      %v4557 = vmul.f32 %v4518, %v4531
      %v4558 = vmul.f32 %v4519, %v4531
      %v4559 = vmul.f32 %v4520, %v4531
      %v4560 = vmul.f32 %v4521, %v4531
      %v4561 = vmul.f32 %v4522, %v4531
      %v4562 = vmul.f32 %v4523, %v4531
      %v4563 = vmul.f32 %v4524, %v4531
      %v4564 = vmul.f32 %v4525, %v4531
      %v4565 = vld [vmem:[%s6] sm:$0x1]
      %v4567 = vlaneseq
      %v4568 = vshrl.u32 %v4567, 7
      %v4569 = vsub.s32 0, %v4568
      %v4570 = vrot.slane %v4565, %v4569
      %v4572 = vadd.f32 %v4533, %v4570
      %v4573 = vadd.f32 %v4534, %v4570
      %v4574 = vadd.f32 %v4535, %v4570
      %v4575 = vadd.f32 %v4536, %v4570
      %v4576 = vadd.f32 %v4537, %v4570
      %v4577 = vadd.f32 %v4538, %v4570
      %v4578 = vadd.f32 %v4539, %v4570
      %v4579 = vadd.f32 %v4540, %v4570
      %v4580 = vadd.f32 %v4541, %v4570
      %v4581 = vadd.f32 %v4542, %v4570
      %v4582 = vadd.f32 %v4543, %v4570
      %v4583 = vadd.f32 %v4544, %v4570
      %v4584 = vadd.f32 %v4545, %v4570
      %v4585 = vadd.f32 %v4546, %v4570
      %v4586 = vadd.f32 %v4547, %v4570
      %v4587 = vadd.f32 %v4548, %v4570
      %v4588 = vadd.f32 %v4549, %v4570
      %v4589 = vadd.f32 %v4550, %v4570
      %v4590 = vadd.f32 %v4551, %v4570
      %v4591 = vadd.f32 %v4552, %v4570
      %v4592 = vadd.f32 %v4553, %v4570
      %v4593 = vadd.f32 %v4554, %v4570
      %v4594 = vadd.f32 %v4555, %v4570
      %v4595 = vadd.f32 %v4556, %v4570
      %v4596 = vadd.f32 %v4557, %v4570
      %v4597 = vadd.f32 %v4558, %v4570
      %v4598 = vadd.f32 %v4559, %v4570
      %v4599 = vadd.f32 %v4560, %v4570
      %v4600 = vadd.f32 %v4561, %v4570
      %v4601 = vadd.f32 %v4562, %v4570
      %v4602 = vadd.f32 %v4563, %v4570
      %v4603 = vadd.f32 %v4564, %v4570
      %v4604 = vsel %vm1707, %v4572, 0.0
      %v4605 = vsel %vm1707, %v4573, 0.0
      %v4606 = vadd.f32 %v4604, %v4605
      %v4607 = vsel %vm1707, %v4574, 0.0
      %v4608 = vadd.f32 %v4606, %v4607
      %v4609 = vsel %vm1707, %v4575, 0.0
      %v4610 = vadd.f32 %v4608, %v4609
      %v4611 = vsel %vm1707, %v4576, 0.0
      %v4612 = vadd.f32 %v4610, %v4611
      %v4613 = vsel %vm1707, %v4577, 0.0
      %v4614 = vadd.f32 %v4612, %v4613
      %v4615 = vsel %vm1707, %v4578, 0.0
      %v4616 = vadd.f32 %v4614, %v4615
      %v4617 = vsel %vm1707, %v4579, 0.0
      %v4618 = vadd.f32 %v4616, %v4617
      %v4619 = vsel %vm1707, %v4580, 0.0
      %v4620 = vadd.f32 %v4618, %v4619
      %v4621 = vsel %vm1707, %v4581, 0.0
      %v4622 = vadd.f32 %v4620, %v4621
      %v4623 = vsel %vm1707, %v4582, 0.0
      %v4624 = vadd.f32 %v4622, %v4623
      %v4625 = vsel %vm1707, %v4583, 0.0
      %v4626 = vadd.f32 %v4624, %v4625
      %v4627 = vsel %vm1707, %v4584, 0.0
      %v4628 = vadd.f32 %v4626, %v4627
      %v4629 = vsel %vm1707, %v4585, 0.0
      %v4630 = vadd.f32 %v4628, %v4629
      %v4631 = vsel %vm1707, %v4586, 0.0
      %v4632 = vadd.f32 %v4630, %v4631
      %v4633 = vsel %vm1707, %v4587, 0.0
      %v4634 = vadd.f32 %v4632, %v4633
      %v4635 = vsel %vm1707, %v4588, 0.0
      %v4636 = vadd.f32 %v4634, %v4635
      %v4637 = vsel %vm1707, %v4589, 0.0
      %v4638 = vadd.f32 %v4636, %v4637
      %v4639 = vsel %vm1707, %v4590, 0.0
      %v4640 = vadd.f32 %v4638, %v4639
      %v4641 = vsel %vm1707, %v4591, 0.0
      %v4642 = vadd.f32 %v4640, %v4641
      %v4643 = vsel %vm1707, %v4592, 0.0
      %v4644 = vadd.f32 %v4642, %v4643
      %v4645 = vsel %vm1707, %v4593, 0.0
      %v4646 = vadd.f32 %v4644, %v4645
      %v4647 = vsel %vm1707, %v4594, 0.0
      %v4648 = vadd.f32 %v4646, %v4647
      %v4649 = vsel %vm1707, %v4595, 0.0
      %v4650 = vadd.f32 %v4648, %v4649
      %v4651 = vsel %vm1707, %v4596, 0.0
      %v4652 = vadd.f32 %v4650, %v4651
      %v4653 = vsel %vm1707, %v4597, 0.0
      %v4654 = vadd.f32 %v4652, %v4653
      %v4655 = vsel %vm1707, %v4598, 0.0
      %v4656 = vadd.f32 %v4654, %v4655
      %v4657 = vsel %vm1707, %v4599, 0.0
      %v4658 = vadd.f32 %v4656, %v4657
      %v4659 = vsel %vm1707, %v4600, 0.0
      %v4660 = vadd.f32 %v4658, %v4659
      %v4661 = vsel %vm1707, %v4601, 0.0
      %v4662 = vadd.f32 %v4660, %v4661
      %v4663 = vsel %vm1707, %v4602, 0.0
      %v4664 = vadd.f32 %v4662, %v4663
      %v4665 = vsel %vm1707, %v4603, 0.0
      %v4666 = vadd.f32 %v4664, %v4665
      %v4667 = vrot.slane %v4666, 4
      %v4668 = vadd.f32 %v4666, %v4667
      %v4669 = vrot.slane %v4668, 2
      %v4670 = vadd.f32 %v4668, %v4669
      %v4671 = vrot.slane %v4670, 1
      %v4672 = vadd.f32 %v4670, %v4671
      %v4673 = vrcp.pop 256.0
      %v4674 = vmul.f32 %v4672, %v4673
      %v4675 = vsel %vm1707, %v4572, -inf
      %v4676 = vsel %vm1707, %v4573, -inf
      %v4677 = vsel %vm1707, %v4574, -inf
      %v4678 = vsel %vm1707, %v4575, -inf
      %v4679 = vsel %vm1707, %v4576, -inf
      %v4680 = vmax.f32 %v4675, %v4679
      %v4681 = vsel %vm1707, %v4577, -inf
      %v4682 = vmax.f32 %v4676, %v4681
      %v4683 = vsel %vm1707, %v4578, -inf
      %v4684 = vmax.f32 %v4677, %v4683
      %v4685 = vsel %vm1707, %v4579, -inf
      %v4686 = vmax.f32 %v4678, %v4685
      %v4687 = vsel %vm1707, %v4580, -inf
      %v4688 = vmax.f32 %v4680, %v4687
      %v4689 = vsel %vm1707, %v4581, -inf
      %v4690 = vmax.f32 %v4682, %v4689
      %v4691 = vsel %vm1707, %v4582, -inf
      %v4692 = vmax.f32 %v4684, %v4691
      %v4693 = vsel %vm1707, %v4583, -inf
      %v4694 = vmax.f32 %v4686, %v4693
      %v4695 = vsel %vm1707, %v4584, -inf
      %v4696 = vmax.f32 %v4688, %v4695
      %v4697 = vsel %vm1707, %v4585, -inf
      %v4698 = vmax.f32 %v4690, %v4697
      %v4699 = vsel %vm1707, %v4586, -inf
      %v4700 = vmax.f32 %v4692, %v4699
      %v4701 = vsel %vm1707, %v4587, -inf
      %v4702 = vmax.f32 %v4694, %v4701
      %v4703 = vsel %vm1707, %v4588, -inf
      %v4704 = vmax.f32 %v4696, %v4703
      %v4705 = vsel %vm1707, %v4589, -inf
      %v4706 = vmax.f32 %v4698, %v4705
      %v4707 = vsel %vm1707, %v4590, -inf
      %v4708 = vmax.f32 %v4700, %v4707
      %v4709 = vsel %vm1707, %v4591, -inf
      %v4710 = vmax.f32 %v4702, %v4709
      %v4711 = vsel %vm1707, %v4592, -inf
      %v4712 = vmax.f32 %v4704, %v4711
      %v4713 = vsel %vm1707, %v4593, -inf
      %v4714 = vmax.f32 %v4706, %v4713
      %v4715 = vsel %vm1707, %v4594, -inf
      %v4716 = vmax.f32 %v4708, %v4715
      %v4717 = vsel %vm1707, %v4595, -inf
      %v4718 = vmax.f32 %v4710, %v4717
      %v4719 = vsel %vm1707, %v4596, -inf
      %v4720 = vmax.f32 %v4712, %v4719
      %v4721 = vsel %vm1707, %v4597, -inf
      %v4722 = vmax.f32 %v4714, %v4721
      %v4723 = vsel %vm1707, %v4598, -inf
      %v4724 = vmax.f32 %v4716, %v4723
      %v4725 = vsel %vm1707, %v4599, -inf
      %v4726 = vmax.f32 %v4718, %v4725
      %v4727 = vsel %vm1707, %v4600, -inf
      %v4728 = vmax.f32 %v4720, %v4727
      %v4729 = vsel %vm1707, %v4601, -inf
      %v4730 = vmax.f32 %v4722, %v4729
      %v4731 = vsel %vm1707, %v4602, -inf
      %v4732 = vmax.f32 %v4724, %v4731
      %v4733 = vsel %vm1707, %v4603, -inf
      %v4734 = vmax.f32 %v4726, %v4733
      %v4735 = vmax.f32 %v4728, %v4730
      %v4736 = vmax.f32 %v4732, %v4734
      %v4737 = vmax.f32 %v4735, %v4736
      %v4738 = vrot.slane %v4737, 4
      %v4739 = vmax.f32 %v4737, %v4738
      %v4740 = vrot.slane %v4739, 2
      %v4741 = vmax.f32 %v4739, %v4740
      %v4742 = vrot.slane %v4741, 1
      %v4743 = vmax.f32 %v4741, %v4742
      %v4744 = vld [vmem:[%s7] sm:$0x3]
      %v4745 = vmul.f32 %v4674, %v4744
      %vm4746 = vcmask 254976
      %v4747 = vsel %vm4746, %v4745, 0.0
      %4748 = vadd.xlane.f32.xlu0 %v4747
      %v4749 = vpop.xlane.xlu0 %4748
      %v4750 = vmax.f32 %v4749, 0.0
      %v4751 = vld [vmem:[%s8] sm:$0x3]
      %v4752 = vmul.f32 %v4750, %v4751
      %v4753 = vsel %vm4746, %v4752, 0.0
      %v4754 = vrot.slane %v4753, 4
      %v4755 = vadd.f32 %v4753, %v4754
      %v4756 = vrot.slane %v4755, 2
      %v4757 = vadd.f32 %v4755, %v4756
      %v4758 = vrot.slane %v4757, 1
      %v4759 = vadd.f32 %v4757, %v4758
      %v4760 = vmul.f32 %v4743, %v4744
      %v4761 = vsel %vm4746, %v4760, 0.0
      %4762 = vadd.xlane.f32.xlu0 %v4761
      %v4763 = vpop.xlane.xlu0 %4762
      %v4764 = vmax.f32 %v4763, 0.0
      %v4765 = vmul.f32 %v4764, %v4751
      %v4766 = vsel %vm4746, %v4765, 0.0
      %v4767 = vrot.slane %v4766, 4
      %v4768 = vadd.f32 %v4766, %v4767
      %v4769 = vrot.slane %v4768, 2
      %v4770 = vadd.f32 %v4768, %v4769
      %v4771 = vrot.slane %v4770, 1
      %v4772 = vadd.f32 %v4770, %v4771
      %v4773 = vadd.f32 %v4759, %v4772
      %v4774 = vxor.u32 %v4773, 2147483648
      %v4775 = vmul.f32 %v4774, 1.442695
      %v4776 = vpow.pop %v4775
      %v4777 = vadd.f32 %v4776, 1.0
      %v4778 = vrcp.pop %v4777
      %v4779 = vmul.f32 1.0, %v4778
      %v4780 = vmul.f32 %v4779, %v4572
      %v4781 = vmul.f32 %v4779, %v4573
      %v4782 = vmul.f32 %v4779, %v4574
      %v4783 = vmul.f32 %v4779, %v4575
      %v4784 = vmul.f32 %v4779, %v4576
      %v4785 = vmul.f32 %v4779, %v4577
      %v4786 = vmul.f32 %v4779, %v4578
      %v4787 = vmul.f32 %v4779, %v4579
      %v4788 = vmul.f32 %v4779, %v4580
      %v4789 = vmul.f32 %v4779, %v4581
      %v4790 = vmul.f32 %v4779, %v4582
      %v4791 = vmul.f32 %v4779, %v4583
      %v4792 = vmul.f32 %v4779, %v4584
      %v4793 = vmul.f32 %v4779, %v4585
      %v4794 = vmul.f32 %v4779, %v4586
      %v4795 = vmul.f32 %v4779, %v4587
      %v4796 = vmul.f32 %v4779, %v4588
      %v4797 = vmul.f32 %v4779, %v4589
      %v4798 = vmul.f32 %v4779, %v4590
      %v4799 = vmul.f32 %v4779, %v4591
      %v4800 = vmul.f32 %v4779, %v4592
      %v4801 = vmul.f32 %v4779, %v4593
      %v4802 = vmul.f32 %v4779, %v4594
      %v4803 = vmul.f32 %v4779, %v4595
      %v4804 = vmul.f32 %v4779, %v4596
      %v4805 = vmul.f32 %v4779, %v4597
      %v4806 = vmul.f32 %v4779, %v4598
      %v4807 = vmul.f32 %v4779, %v4599
      %v4808 = vmul.f32 %v4779, %v4600
      %v4809 = vmul.f32 %v4779, %v4601
      %v4810 = vmul.f32 %v4779, %v4602
      %v4811 = vmul.f32 %v4779, %v4603
      %v4812 = vsel %vm1707, %v4780, 0.0
      %4813 = vadd.xlane.f32.xlu0 %v4812
      %v4814 = vpop.xlane.xlu0 %4813
      %v4815 = vsel %vm1707, %v4781, 0.0
      %4816 = vadd.xlane.f32.xlu0 %v4815
      %v4817 = vpop.xlane.xlu0 %4816
      %v4818 = vsel %vm1707, %v4782, 0.0
      %4819 = vadd.xlane.f32.xlu0 %v4818
      %v4820 = vpop.xlane.xlu0 %4819
      %v4821 = vsel %vm1707, %v4783, 0.0
      %4822 = vadd.xlane.f32.xlu0 %v4821
      %v4823 = vpop.xlane.xlu0 %4822
      %v4824 = vsel %vm1707, %v4784, 0.0
      %4825 = vadd.xlane.f32.xlu0 %v4824
      %v4826 = vpop.xlane.xlu0 %4825
      %v4827 = vsel %vm1707, %v4785, 0.0
      %4828 = vadd.xlane.f32.xlu0 %v4827
      %v4829 = vpop.xlane.xlu0 %4828
      %v4830 = vsel %vm1707, %v4786, 0.0
      %4831 = vadd.xlane.f32.xlu0 %v4830
      %v4832 = vpop.xlane.xlu0 %4831
      %v4833 = vsel %vm1707, %v4787, 0.0
      %4834 = vadd.xlane.f32.xlu0 %v4833
      %v4835 = vpop.xlane.xlu0 %4834
      %v4836 = vsel %vm1707, %v4788, 0.0
      %4837 = vadd.xlane.f32.xlu0 %v4836
      %v4838 = vpop.xlane.xlu0 %4837
      %v4839 = vsel %vm1707, %v4789, 0.0
      %4840 = vadd.xlane.f32.xlu0 %v4839
      %v4841 = vpop.xlane.xlu0 %4840
      %v4842 = vsel %vm1707, %v4790, 0.0
      %4843 = vadd.xlane.f32.xlu0 %v4842
      %v4844 = vpop.xlane.xlu0 %4843
      %v4845 = vsel %vm1707, %v4791, 0.0
      %4846 = vadd.xlane.f32.xlu0 %v4845
      %v4847 = vpop.xlane.xlu0 %4846
      %v4848 = vsel %vm1707, %v4792, 0.0
      %4849 = vadd.xlane.f32.xlu0 %v4848
      %v4850 = vpop.xlane.xlu0 %4849
      %v4851 = vsel %vm1707, %v4793, 0.0
      %4852 = vadd.xlane.f32.xlu0 %v4851
      %v4853 = vpop.xlane.xlu0 %4852
      %v4854 = vsel %vm1707, %v4794, 0.0
      %4855 = vadd.xlane.f32.xlu0 %v4854
      %v4856 = vpop.xlane.xlu0 %4855
      %v4857 = vsel %vm1707, %v4795, 0.0
      %4858 = vadd.xlane.f32.xlu0 %v4857
      %v4859 = vpop.xlane.xlu0 %4858
      %v4860 = vsel %vm1707, %v4796, 0.0
      %4861 = vadd.xlane.f32.xlu0 %v4860
      %v4862 = vpop.xlane.xlu0 %4861
      %v4863 = vsel %vm1707, %v4797, 0.0
      %4864 = vadd.xlane.f32.xlu0 %v4863
      %v4865 = vpop.xlane.xlu0 %4864
      %v4866 = vsel %vm1707, %v4798, 0.0
      %4867 = vadd.xlane.f32.xlu0 %v4866
      %v4868 = vpop.xlane.xlu0 %4867
      %v4869 = vsel %vm1707, %v4799, 0.0
      %4870 = vadd.xlane.f32.xlu0 %v4869
      %v4871 = vpop.xlane.xlu0 %4870
      %v4872 = vsel %vm1707, %v4800, 0.0
      %4873 = vadd.xlane.f32.xlu0 %v4872
      %v4874 = vpop.xlane.xlu0 %4873
      %v4875 = vsel %vm1707, %v4801, 0.0
      %4876 = vadd.xlane.f32.xlu0 %v4875
      %v4877 = vpop.xlane.xlu0 %4876
      %v4878 = vsel %vm1707, %v4802, 0.0
      %4879 = vadd.xlane.f32.xlu0 %v4878
      %v4880 = vpop.xlane.xlu0 %4879
      %v4881 = vsel %vm1707, %v4803, 0.0
      %4882 = vadd.xlane.f32.xlu0 %v4881
      %v4883 = vpop.xlane.xlu0 %4882
      %v4884 = vsel %vm1707, %v4804, 0.0
      %4885 = vadd.xlane.f32.xlu0 %v4884
      %v4886 = vpop.xlane.xlu0 %4885
      %v4887 = vsel %vm1707, %v4805, 0.0
      %4888 = vadd.xlane.f32.xlu0 %v4887
      %v4889 = vpop.xlane.xlu0 %4888
      %v4890 = vsel %vm1707, %v4806, 0.0
      %4891 = vadd.xlane.f32.xlu0 %v4890
      %v4892 = vpop.xlane.xlu0 %4891
      %v4893 = vsel %vm1707, %v4807, 0.0
      %4894 = vadd.xlane.f32.xlu0 %v4893
      %v4895 = vpop.xlane.xlu0 %4894
      %v4896 = vsel %vm1707, %v4808, 0.0
      %4897 = vadd.xlane.f32.xlu0 %v4896
      %v4898 = vpop.xlane.xlu0 %4897
      %v4899 = vsel %vm1707, %v4809, 0.0
      %4900 = vadd.xlane.f32.xlu0 %v4899
      %v4901 = vpop.xlane.xlu0 %4900
      %v4902 = vsel %vm1707, %v4810, 0.0
      %4903 = vadd.xlane.f32.xlu0 %v4902
      %v4904 = vpop.xlane.xlu0 %4903
      %v4905 = vsel %vm1707, %v4811, 0.0
      %4906 = vadd.xlane.f32.xlu0 %v4905
      %v4907 = vpop.xlane.xlu0 %4906
      %v4908 = vrcp.pop 32.0
      %v4909 = vmul.f32 %v4814, %v4908
      %v4910 = vmul.f32 %v4817, %v4908
      %v4911 = vmul.f32 %v4820, %v4908
      %v4912 = vmul.f32 %v4823, %v4908
      %v4913 = vmul.f32 %v4826, %v4908
      %v4914 = vmul.f32 %v4829, %v4908
      %v4915 = vmul.f32 %v4832, %v4908
      %v4916 = vmul.f32 %v4835, %v4908
      %v4917 = vmul.f32 %v4838, %v4908
      %v4918 = vmul.f32 %v4841, %v4908
      %v4919 = vmul.f32 %v4844, %v4908
      %v4920 = vmul.f32 %v4847, %v4908
      %v4921 = vmul.f32 %v4850, %v4908
      %v4922 = vmul.f32 %v4853, %v4908
      %v4923 = vmul.f32 %v4856, %v4908
      %v4924 = vmul.f32 %v4859, %v4908
      %v4925 = vmul.f32 %v4862, %v4908
      %v4926 = vmul.f32 %v4865, %v4908
      %v4927 = vmul.f32 %v4868, %v4908
      %v4928 = vmul.f32 %v4871, %v4908
      %v4929 = vmul.f32 %v4874, %v4908
      %v4930 = vmul.f32 %v4877, %v4908
      %v4931 = vmul.f32 %v4880, %v4908
      %v4932 = vmul.f32 %v4883, %v4908
      %v4933 = vmul.f32 %v4886, %v4908
      %v4934 = vmul.f32 %v4889, %v4908
      %v4935 = vmul.f32 %v4892, %v4908
      %v4936 = vmul.f32 %v4895, %v4908
      %v4937 = vmul.f32 %v4898, %v4908
      %v4938 = vmul.f32 %v4901, %v4908
      %v4939 = vmul.f32 %v4904, %v4908
      %v4940 = vmul.f32 %v4907, %v4908
      %v4941 = vadd.f32 %v4909, 1.0
      %v4942 = vadd.f32 %v4910, 1.0
      %v4943 = vadd.f32 %v4911, 1.0
      %v4944 = vadd.f32 %v4912, 1.0
      %v4945 = vadd.f32 %v4913, 1.0
      %v4946 = vadd.f32 %v4914, 1.0
      %v4947 = vadd.f32 %v4915, 1.0
      %v4948 = vadd.f32 %v4916, 1.0
      %v4949 = vadd.f32 %v4917, 1.0
      %v4950 = vadd.f32 %v4918, 1.0
      %v4951 = vadd.f32 %v4919, 1.0
      %v4952 = vadd.f32 %v4920, 1.0
      %v4953 = vadd.f32 %v4921, 1.0
      %v4954 = vadd.f32 %v4922, 1.0
      %v4955 = vadd.f32 %v4923, 1.0
      %v4956 = vadd.f32 %v4924, 1.0
      %v4957 = vadd.f32 %v4925, 1.0
      %v4958 = vadd.f32 %v4926, 1.0
      %v4959 = vadd.f32 %v4927, 1.0
      %v4960 = vadd.f32 %v4928, 1.0
      %v4961 = vadd.f32 %v4929, 1.0
      %v4962 = vadd.f32 %v4930, 1.0
      %v4963 = vadd.f32 %v4931, 1.0
      %v4964 = vadd.f32 %v4932, 1.0
      %v4965 = vadd.f32 %v4933, 1.0
      %v4966 = vadd.f32 %v4934, 1.0
      %v4967 = vadd.f32 %v4935, 1.0
      %v4968 = vadd.f32 %v4936, 1.0
      %v4969 = vadd.f32 %v4937, 1.0
      %v4970 = vadd.f32 %v4938, 1.0
      %v4971 = vadd.f32 %v4939, 1.0
      %v4972 = vadd.f32 %v4940, 1.0
      %v4973 = vsel %vm1707, %v4780, -inf
      %4974 = vmax.xlane.f32.xlu0 %v4973
      %v4975 = vpop.xlane.xlu0 %4974
      %v4976 = vsel %vm1707, %v4781, -inf
      %4977 = vmax.xlane.f32.xlu0 %v4976
      %v4978 = vpop.xlane.xlu0 %4977
      %v4979 = vsel %vm1707, %v4782, -inf
      %4980 = vmax.xlane.f32.xlu0 %v4979
      %v4981 = vpop.xlane.xlu0 %4980
      %v4982 = vsel %vm1707, %v4783, -inf
      %4983 = vmax.xlane.f32.xlu0 %v4982
      %v4984 = vpop.xlane.xlu0 %4983
      %v4985 = vsel %vm1707, %v4784, -inf
      %4986 = vmax.xlane.f32.xlu0 %v4985
      %v4987 = vpop.xlane.xlu0 %4986
      %v4988 = vsel %vm1707, %v4785, -inf
      %4989 = vmax.xlane.f32.xlu0 %v4988
      %v4990 = vpop.xlane.xlu0 %4989
      %v4991 = vsel %vm1707, %v4786, -inf
      %4992 = vmax.xlane.f32.xlu0 %v4991
      %v4993 = vpop.xlane.xlu0 %4992
      %v4994 = vsel %vm1707, %v4787, -inf
      %4995 = vmax.xlane.f32.xlu0 %v4994
      %v4996 = vpop.xlane.xlu0 %4995
      %v4997 = vsel %vm1707, %v4788, -inf
      %4998 = vmax.xlane.f32.xlu0 %v4997
      %v4999 = vpop.xlane.xlu0 %4998
      %v5000 = vsel %vm1707, %v4789, -inf
      %5001 = vmax.xlane.f32.xlu0 %v5000
      %v5002 = vpop.xlane.xlu0 %5001
      %v5003 = vsel %vm1707, %v4790, -inf
      %5004 = vmax.xlane.f32.xlu0 %v5003
      %v5005 = vpop.xlane.xlu0 %5004
      %v5006 = vsel %vm1707, %v4791, -inf
      %5007 = vmax.xlane.f32.xlu0 %v5006
      %v5008 = vpop.xlane.xlu0 %5007
      %v5009 = vsel %vm1707, %v4792, -inf
      %5010 = vmax.xlane.f32.xlu0 %v5009
      %v5011 = vpop.xlane.xlu0 %5010
      %v5012 = vsel %vm1707, %v4793, -inf
      %5013 = vmax.xlane.f32.xlu0 %v5012
      %v5014 = vpop.xlane.xlu0 %5013
      %v5015 = vsel %vm1707, %v4794, -inf
      %5016 = vmax.xlane.f32.xlu0 %v5015
      %v5017 = vpop.xlane.xlu0 %5016
      %v5018 = vsel %vm1707, %v4795, -inf
      %5019 = vmax.xlane.f32.xlu0 %v5018
      %v5020 = vpop.xlane.xlu0 %5019
      %v5021 = vsel %vm1707, %v4796, -inf
      %5022 = vmax.xlane.f32.xlu0 %v5021
      %v5023 = vpop.xlane.xlu0 %5022
      %v5024 = vsel %vm1707, %v4797, -inf
      %5025 = vmax.xlane.f32.xlu0 %v5024
      %v5026 = vpop.xlane.xlu0 %5025
      %v5027 = vsel %vm1707, %v4798, -inf
      %5028 = vmax.xlane.f32.xlu0 %v5027
      %v5029 = vpop.xlane.xlu0 %5028
      %v5030 = vsel %vm1707, %v4799, -inf
      %5031 = vmax.xlane.f32.xlu0 %v5030
      %v5032 = vpop.xlane.xlu0 %5031
      %v5033 = vsel %vm1707, %v4800, -inf
      %5034 = vmax.xlane.f32.xlu0 %v5033
      %v5035 = vpop.xlane.xlu0 %5034
      %v5036 = vsel %vm1707, %v4801, -inf
      %5037 = vmax.xlane.f32.xlu0 %v5036
      %v5038 = vpop.xlane.xlu0 %5037
      %v5039 = vsel %vm1707, %v4802, -inf
      %5040 = vmax.xlane.f32.xlu0 %v5039
      %v5041 = vpop.xlane.xlu0 %5040
      %v5042 = vsel %vm1707, %v4803, -inf
      %5043 = vmax.xlane.f32.xlu0 %v5042
      %v5044 = vpop.xlane.xlu0 %5043
      %v5045 = vsel %vm1707, %v4804, -inf
      %5046 = vmax.xlane.f32.xlu0 %v5045
      %v5047 = vpop.xlane.xlu0 %5046
      %v5048 = vsel %vm1707, %v4805, -inf
      %5049 = vmax.xlane.f32.xlu0 %v5048
      %v5050 = vpop.xlane.xlu0 %5049
      %v5051 = vsel %vm1707, %v4806, -inf
      %5052 = vmax.xlane.f32.xlu0 %v5051
      %v5053 = vpop.xlane.xlu0 %5052
      %v5054 = vsel %vm1707, %v4807, -inf
      %5055 = vmax.xlane.f32.xlu0 %v5054
      %v5056 = vpop.xlane.xlu0 %5055
      %v5057 = vsel %vm1707, %v4808, -inf
      %5058 = vmax.xlane.f32.xlu0 %v5057
      %v5059 = vpop.xlane.xlu0 %5058
      %v5060 = vsel %vm1707, %v4809, -inf
      %5061 = vmax.xlane.f32.xlu0 %v5060
      %v5062 = vpop.xlane.xlu0 %5061
      %v5063 = vsel %vm1707, %v4810, -inf
      %5064 = vmax.xlane.f32.xlu0 %v5063
      %v5065 = vpop.xlane.xlu0 %5064
      %v5066 = vsel %vm1707, %v4811, -inf
      %5067 = vmax.xlane.f32.xlu0 %v5066
      %v5068 = vpop.xlane.xlu0 %5067
      %v5069 = vadd.f32 %v4975, 1.0
      %v5070 = vadd.f32 %v4978, 1.0
      %v5071 = vadd.f32 %v4981, 1.0
      %v5072 = vadd.f32 %v4984, 1.0
      %v5073 = vadd.f32 %v4987, 1.0
      %v5074 = vadd.f32 %v4990, 1.0
      %v5075 = vadd.f32 %v4993, 1.0
      %v5076 = vadd.f32 %v4996, 1.0
      %v5077 = vadd.f32 %v4999, 1.0
      %v5078 = vadd.f32 %v5002, 1.0
      %v5079 = vadd.f32 %v5005, 1.0
      %v5080 = vadd.f32 %v5008, 1.0
      %v5081 = vadd.f32 %v5011, 1.0
      %v5082 = vadd.f32 %v5014, 1.0
      %v5083 = vadd.f32 %v5017, 1.0
      %v5084 = vadd.f32 %v5020, 1.0
      %v5085 = vadd.f32 %v5023, 1.0
      %v5086 = vadd.f32 %v5026, 1.0
      %v5087 = vadd.f32 %v5029, 1.0
      %v5088 = vadd.f32 %v5032, 1.0
      %v5089 = vadd.f32 %v5035, 1.0
      %v5090 = vadd.f32 %v5038, 1.0
      %v5091 = vadd.f32 %v5041, 1.0
      %v5092 = vadd.f32 %v5044, 1.0
      %v5093 = vadd.f32 %v5047, 1.0
      %v5094 = vadd.f32 %v5050, 1.0
      %v5095 = vadd.f32 %v5053, 1.0
      %v5096 = vadd.f32 %v5056, 1.0
      %v5097 = vadd.f32 %v5059, 1.0
      %v5098 = vadd.f32 %v5062, 1.0
      %v5099 = vadd.f32 %v5065, 1.0
      %v5100 = vadd.f32 %v5068, 1.0
      %v5133 = vlaneseq
      %v5134 = vand.u32 %v5133, 127
      %v5135 = vlaneseq
      %v5136 = vshrl.u32 %v5135, 7
      %v5137 = vsub.s32 %v5134, %v5136
      %v5138 = vrot.slane %v4941, %v5137
      %v5139 = vadd.s32 %v5134, 4294967288
      %v5140 = vlaneseq
      %v5141 = vshrl.u32 %v5140, 7
      %v5142 = vsub.s32 %v5139, %v5141
      %v5143 = vrot.slane %v4942, %v5142
      %vm5144 = vcmask 130112
      %v5145 = vsel %vm5144, %v5143, %v5138
      %v5146 = vlaneseq
      %v5147 = vshrl.u32 %v5146, 7
      %v5148 = vsub.s32 %v5134, %v5147
      %v5149 = vrot.slane %v4943, %v5148
      %v5150 = vlaneseq
      %v5151 = vshrl.u32 %v5150, 7
      %v5152 = vsub.s32 %v5139, %v5151
      %v5153 = vrot.slane %v4944, %v5152
      %v5154 = vsel %vm5144, %v5153, %v5149
      %v5155 = vlaneseq
      %v5156 = vshrl.u32 %v5155, 7
      %v5157 = vsub.s32 %v5134, %v5156
      %v5158 = vrot.slane %v4945, %v5157
      %v5159 = vlaneseq
      %v5160 = vshrl.u32 %v5159, 7
      %v5161 = vsub.s32 %v5139, %v5160
      %v5162 = vrot.slane %v4946, %v5161
      %v5163 = vsel %vm5144, %v5162, %v5158
      %v5164 = vlaneseq
      %v5165 = vshrl.u32 %v5164, 7
      %v5166 = vsub.s32 %v5134, %v5165
      %v5167 = vrot.slane %v4947, %v5166
      %v5168 = vlaneseq
      %v5169 = vshrl.u32 %v5168, 7
      %v5170 = vsub.s32 %v5139, %v5169
      %v5171 = vrot.slane %v4948, %v5170
      %v5172 = vsel %vm5144, %v5171, %v5167
      %v5173 = vlaneseq
      %v5174 = vshrl.u32 %v5173, 7
      %v5175 = vsub.s32 %v5134, %v5174
      %v5176 = vrot.slane %v4949, %v5175
      %v5177 = vlaneseq
      %v5178 = vshrl.u32 %v5177, 7
      %v5179 = vsub.s32 %v5139, %v5178
      %v5180 = vrot.slane %v4950, %v5179
      %v5181 = vsel %vm5144, %v5180, %v5176
      %v5182 = vlaneseq
      %v5183 = vshrl.u32 %v5182, 7
      %v5184 = vsub.s32 %v5134, %v5183
      %v5185 = vrot.slane %v4951, %v5184
      %v5186 = vlaneseq
      %v5187 = vshrl.u32 %v5186, 7
      %v5188 = vsub.s32 %v5139, %v5187
      %v5189 = vrot.slane %v4952, %v5188
      %v5190 = vsel %vm5144, %v5189, %v5185
      %v5191 = vlaneseq
      %v5192 = vshrl.u32 %v5191, 7
      %v5193 = vsub.s32 %v5134, %v5192
      %v5194 = vrot.slane %v4953, %v5193
      %v5195 = vlaneseq
      %v5196 = vshrl.u32 %v5195, 7
      %v5197 = vsub.s32 %v5139, %v5196
      %v5198 = vrot.slane %v4954, %v5197
      %v5199 = vsel %vm5144, %v5198, %v5194
      %v5200 = vlaneseq
      %v5201 = vshrl.u32 %v5200, 7
      %v5202 = vsub.s32 %v5134, %v5201
      %v5203 = vrot.slane %v4955, %v5202
      %v5204 = vlaneseq
      %v5205 = vshrl.u32 %v5204, 7
      %v5206 = vsub.s32 %v5139, %v5205
      %v5207 = vrot.slane %v4956, %v5206
      %v5208 = vsel %vm5144, %v5207, %v5203
      %v5209 = vlaneseq
      %v5210 = vshrl.u32 %v5209, 7
      %v5211 = vsub.s32 %v5134, %v5210
      %v5212 = vrot.slane %v4957, %v5211
      %v5213 = vlaneseq
      %v5214 = vshrl.u32 %v5213, 7
      %v5215 = vsub.s32 %v5139, %v5214
      %v5216 = vrot.slane %v4958, %v5215
      %v5217 = vsel %vm5144, %v5216, %v5212
      %v5218 = vlaneseq
      %v5219 = vshrl.u32 %v5218, 7
      %v5220 = vsub.s32 %v5134, %v5219
      %v5221 = vrot.slane %v4959, %v5220
      %v5222 = vlaneseq
      %v5223 = vshrl.u32 %v5222, 7
      %v5224 = vsub.s32 %v5139, %v5223
      %v5225 = vrot.slane %v4960, %v5224
      %v5226 = vsel %vm5144, %v5225, %v5221
      %v5227 = vlaneseq
      %v5228 = vshrl.u32 %v5227, 7
      %v5229 = vsub.s32 %v5134, %v5228
      %v5230 = vrot.slane %v4961, %v5229
      %v5231 = vlaneseq
      %v5232 = vshrl.u32 %v5231, 7
      %v5233 = vsub.s32 %v5139, %v5232
      %v5234 = vrot.slane %v4962, %v5233
      %v5235 = vsel %vm5144, %v5234, %v5230
      %v5236 = vlaneseq
      %v5237 = vshrl.u32 %v5236, 7
      %v5238 = vsub.s32 %v5134, %v5237
      %v5239 = vrot.slane %v4963, %v5238
      %v5240 = vlaneseq
      %v5241 = vshrl.u32 %v5240, 7
      %v5242 = vsub.s32 %v5139, %v5241
      %v5243 = vrot.slane %v4964, %v5242
      %v5244 = vsel %vm5144, %v5243, %v5239
      %v5245 = vlaneseq
      %v5246 = vshrl.u32 %v5245, 7
      %v5247 = vsub.s32 %v5134, %v5246
      %v5248 = vrot.slane %v4965, %v5247
      %v5249 = vlaneseq
      %v5250 = vshrl.u32 %v5249, 7
      %v5251 = vsub.s32 %v5139, %v5250
      %v5252 = vrot.slane %v4966, %v5251
      %v5253 = vsel %vm5144, %v5252, %v5248
      %v5254 = vlaneseq
      %v5255 = vshrl.u32 %v5254, 7
      %v5256 = vsub.s32 %v5134, %v5255
      %v5257 = vrot.slane %v4967, %v5256
      %v5258 = vlaneseq
      %v5259 = vshrl.u32 %v5258, 7
      %v5260 = vsub.s32 %v5139, %v5259
      %v5261 = vrot.slane %v4968, %v5260
      %v5262 = vsel %vm5144, %v5261, %v5257
      %v5263 = vlaneseq
      %v5264 = vshrl.u32 %v5263, 7
      %v5265 = vsub.s32 %v5134, %v5264
      %v5266 = vrot.slane %v4969, %v5265
      %v5267 = vlaneseq
      %v5268 = vshrl.u32 %v5267, 7
      %v5269 = vsub.s32 %v5139, %v5268
      %v5270 = vrot.slane %v4970, %v5269
      %v5271 = vsel %vm5144, %v5270, %v5266
      %v5272 = vlaneseq
      %v5273 = vshrl.u32 %v5272, 7
      %v5274 = vsub.s32 %v5134, %v5273
      %v5275 = vrot.slane %v4971, %v5274
      %v5276 = vlaneseq
      %v5277 = vshrl.u32 %v5276, 7
      %v5278 = vsub.s32 %v5139, %v5277
      %v5279 = vrot.slane %v4972, %v5278
      %v5280 = vsel %vm5144, %v5279, %v5275
      %vm5281 = vcmask 1041409
      %v5282 = vsel %vm5281, %v5154, %v5145
      %vm5283 = vcmask 1042434
      %v5284 = vsel %vm5283, %v5163, %v5282
      %vm5285 = vcmask 1043459
      %v5286 = vsel %vm5285, %v5172, %v5284
      %vm5287 = vcmask 1044484
      %v5288 = vsel %vm5287, %v5181, %v5286
      %vm5289 = vcmask 1045509
      %v5290 = vsel %vm5289, %v5190, %v5288
      %vm5291 = vcmask 1046534
      %v5292 = vsel %vm5291, %v5199, %v5290
      %vm5293 = vcmask 1047559
      %v5294 = vsel %vm5293, %v5208, %v5292
      %v5295 = vsel %vm5281, %v5226, %v5217
      %v5296 = vsel %vm5283, %v5235, %v5295
      %v5297 = vsel %vm5285, %v5244, %v5296
      %v5298 = vsel %vm5287, %v5253, %v5297
      %v5299 = vsel %vm5289, %v5262, %v5298
      %v5300 = vsel %vm5291, %v5271, %v5299
      %v5301 = vsel %vm5293, %v5280, %v5300
      %v5336 = vadd.s32 %v5134, 4294967280
      %v5337 = vlaneseq
      %v5338 = vshrl.u32 %v5337, 7
      %v5339 = vsub.s32 %v5336, %v5338
      %v5340 = vrot.slane %v5069, %v5339
      %v5341 = vadd.s32 %v5134, 4294967272
      %v5342 = vlaneseq
      %v5343 = vshrl.u32 %v5342, 7
      %v5344 = vsub.s32 %v5341, %v5343
      %v5345 = vrot.slane %v5070, %v5344
      %vm5346 = vcmask 261312
      %v5347 = vsel %vm5346, %v5345, %v5340
      %v5348 = vlaneseq
      %v5349 = vshrl.u32 %v5348, 7
      %v5350 = vsub.s32 %v5336, %v5349
      %v5351 = vrot.slane %v5071, %v5350
      %v5352 = vlaneseq
      %v5353 = vshrl.u32 %v5352, 7
      %v5354 = vsub.s32 %v5341, %v5353
      %v5355 = vrot.slane %v5072, %v5354
      %v5356 = vsel %vm5346, %v5355, %v5351
      %v5357 = vlaneseq
      %v5358 = vshrl.u32 %v5357, 7
      %v5359 = vsub.s32 %v5336, %v5358
      %v5360 = vrot.slane %v5073, %v5359
      %v5361 = vlaneseq
      %v5362 = vshrl.u32 %v5361, 7
      %v5363 = vsub.s32 %v5341, %v5362
      %v5364 = vrot.slane %v5074, %v5363
      %v5365 = vsel %vm5346, %v5364, %v5360
      %v5366 = vlaneseq
      %v5367 = vshrl.u32 %v5366, 7
      %v5368 = vsub.s32 %v5336, %v5367
      %v5369 = vrot.slane %v5075, %v5368
      %v5370 = vlaneseq
      %v5371 = vshrl.u32 %v5370, 7
      %v5372 = vsub.s32 %v5341, %v5371
      %v5373 = vrot.slane %v5076, %v5372
      %v5374 = vsel %vm5346, %v5373, %v5369
      %v5375 = vlaneseq
      %v5376 = vshrl.u32 %v5375, 7
      %v5377 = vsub.s32 %v5336, %v5376
      %v5378 = vrot.slane %v5077, %v5377
      %v5379 = vlaneseq
      %v5380 = vshrl.u32 %v5379, 7
      %v5381 = vsub.s32 %v5341, %v5380
      %v5382 = vrot.slane %v5078, %v5381
      %v5383 = vsel %vm5346, %v5382, %v5378
      %v5384 = vlaneseq
      %v5385 = vshrl.u32 %v5384, 7
      %v5386 = vsub.s32 %v5336, %v5385
      %v5387 = vrot.slane %v5079, %v5386
      %v5388 = vlaneseq
      %v5389 = vshrl.u32 %v5388, 7
      %v5390 = vsub.s32 %v5341, %v5389
      %v5391 = vrot.slane %v5080, %v5390
      %v5392 = vsel %vm5346, %v5391, %v5387
      %v5393 = vlaneseq
      %v5394 = vshrl.u32 %v5393, 7
      %v5395 = vsub.s32 %v5336, %v5394
      %v5396 = vrot.slane %v5081, %v5395
      %v5397 = vlaneseq
      %v5398 = vshrl.u32 %v5397, 7
      %v5399 = vsub.s32 %v5341, %v5398
      %v5400 = vrot.slane %v5082, %v5399
      %v5401 = vsel %vm5346, %v5400, %v5396
      %v5402 = vlaneseq
      %v5403 = vshrl.u32 %v5402, 7
      %v5404 = vsub.s32 %v5336, %v5403
      %v5405 = vrot.slane %v5083, %v5404
      %v5406 = vlaneseq
      %v5407 = vshrl.u32 %v5406, 7
      %v5408 = vsub.s32 %v5341, %v5407
      %v5409 = vrot.slane %v5084, %v5408
      %v5410 = vsel %vm5346, %v5409, %v5405
      %v5411 = vlaneseq
      %v5412 = vshrl.u32 %v5411, 7
      %v5413 = vsub.s32 %v5336, %v5412
      %v5414 = vrot.slane %v5085, %v5413
      %v5415 = vlaneseq
      %v5416 = vshrl.u32 %v5415, 7
      %v5417 = vsub.s32 %v5341, %v5416
      %v5418 = vrot.slane %v5086, %v5417
      %v5419 = vsel %vm5346, %v5418, %v5414
      %v5420 = vlaneseq
      %v5421 = vshrl.u32 %v5420, 7
      %v5422 = vsub.s32 %v5336, %v5421
      %v5423 = vrot.slane %v5087, %v5422
      %v5424 = vlaneseq
      %v5425 = vshrl.u32 %v5424, 7
      %v5426 = vsub.s32 %v5341, %v5425
      %v5427 = vrot.slane %v5088, %v5426
      %v5428 = vsel %vm5346, %v5427, %v5423
      %v5429 = vlaneseq
      %v5430 = vshrl.u32 %v5429, 7
      %v5431 = vsub.s32 %v5336, %v5430
      %v5432 = vrot.slane %v5089, %v5431
      %v5433 = vlaneseq
      %v5434 = vshrl.u32 %v5433, 7
      %v5435 = vsub.s32 %v5341, %v5434
      %v5436 = vrot.slane %v5090, %v5435
      %v5437 = vsel %vm5346, %v5436, %v5432
      %v5438 = vlaneseq
      %v5439 = vshrl.u32 %v5438, 7
      %v5440 = vsub.s32 %v5336, %v5439
      %v5441 = vrot.slane %v5091, %v5440
      %v5442 = vlaneseq
      %v5443 = vshrl.u32 %v5442, 7
      %v5444 = vsub.s32 %v5341, %v5443
      %v5445 = vrot.slane %v5092, %v5444
      %v5446 = vsel %vm5346, %v5445, %v5441
      %v5447 = vlaneseq
      %v5448 = vshrl.u32 %v5447, 7
      %v5449 = vsub.s32 %v5336, %v5448
      %v5450 = vrot.slane %v5093, %v5449
      %v5451 = vlaneseq
      %v5452 = vshrl.u32 %v5451, 7
      %v5453 = vsub.s32 %v5341, %v5452
      %v5454 = vrot.slane %v5094, %v5453
      %v5455 = vsel %vm5346, %v5454, %v5450
      %v5456 = vlaneseq
      %v5457 = vshrl.u32 %v5456, 7
      %v5458 = vsub.s32 %v5336, %v5457
      %v5459 = vrot.slane %v5095, %v5458
      %v5460 = vlaneseq
      %v5461 = vshrl.u32 %v5460, 7
      %v5462 = vsub.s32 %v5341, %v5461
      %v5463 = vrot.slane %v5096, %v5462
      %v5464 = vsel %vm5346, %v5463, %v5459
      %v5465 = vlaneseq
      %v5466 = vshrl.u32 %v5465, 7
      %v5467 = vsub.s32 %v5336, %v5466
      %v5468 = vrot.slane %v5097, %v5467
      %v5469 = vlaneseq
      %v5470 = vshrl.u32 %v5469, 7
      %v5471 = vsub.s32 %v5341, %v5470
      %v5472 = vrot.slane %v5098, %v5471
      %v5473 = vsel %vm5346, %v5472, %v5468
      %v5474 = vlaneseq
      %v5475 = vshrl.u32 %v5474, 7
      %v5476 = vsub.s32 %v5336, %v5475
      %v5477 = vrot.slane %v5099, %v5476
      %v5478 = vlaneseq
      %v5479 = vshrl.u32 %v5478, 7
      %v5480 = vsub.s32 %v5341, %v5479
      %v5481 = vrot.slane %v5100, %v5480
      %v5482 = vsel %vm5346, %v5481, %v5477
      %v5483 = vsel %vm5281, %v5356, %v5347
      %v5484 = vsel %vm5283, %v5365, %v5483
      %v5485 = vsel %vm5285, %v5374, %v5484
      %v5486 = vsel %vm5287, %v5383, %v5485
      %v5487 = vsel %vm5289, %v5392, %v5486
      %v5488 = vsel %vm5291, %v5401, %v5487
      %v5489 = vsel %vm5293, %v5410, %v5488
      %v5490 = vsel %vm5281, %v5428, %v5419
      %v5491 = vsel %vm5283, %v5437, %v5490
      %v5492 = vsel %vm5285, %v5446, %v5491
      %v5493 = vsel %vm5287, %v5455, %v5492
      %v5494 = vsel %vm5289, %v5464, %v5493
      %v5495 = vsel %vm5291, %v5473, %v5494
      %v5496 = vsel %vm5293, %v5482, %v5495
      %vm5499 = vcmask 130048
      %v5500 = vsel %vm5499, %v5294, %v5489
      %v5501 = vsel %vm5499, %v5301, %v5496
      %v5502 = vrot.slane %v5500, 5
      %v5503 = vrot.slane %v5501, 5
      %vm5504 = vcmp.lt.s32.totalorder %v393, 3
      %v5505 = vsel %vm5504, %v5502, %v5503
      %v5506 = vsel %vm5504, %v5503, %v5502
      %vm5507 = vcmp.ge.s32.totalorder %v393, 3
      %vm5508 = vcmp.ge.s32.totalorder %v394, 3
      %v5509 = vsel %vm5507, 1, 0
      %v5510 = vsel %vm5508, 1, 0
      %v5511 = vcvt.s32.f32 %v5509
      %v5512 = vcvt.s32.f32 %v5510
      %v5513 = vmul.f32 %v5506, %v5511
      %v5514 = vmul.f32 %v5505, %v5512
      %v5515 = vrot.slane %v5500, 6
      %v5516 = vrot.slane %v5501, 6
      %vm5517 = vcmp.lt.s32.totalorder %v393, 2
      %v5518 = vsel %vm5517, %v5515, %v5516
      %v5519 = vsel %vm5517, %v5516, %v5515
      %vm5520 = vcmp.ge.s32.totalorder %v393, 2
      %vm5521 = vcmp.ge.s32.totalorder %v394, 2
      %v5522 = vsel %vm5520, 1, 0
      %v5523 = vsel %vm5521, 1, 0
      %v5524 = vcvt.s32.f32 %v5522
      %v5525 = vcvt.s32.f32 %v5523
      %v5526 = vmul.f32 %v5519, %v5524
      %v5527 = vmul.f32 %v5518, %v5525
      %v5528 = vrot.slane %v5500, 7
      %v5529 = vrot.slane %v5501, 7
      %v5530 = vsel %vm1033, %v5528, %v5529
      %v5531 = vsel %vm1033, %v5529, %v5528
      %v5532 = vmul.f32 %v5531, %v1130
      %v5533 = vmul.f32 %v5530, %v1131
      %v5534 = vrot.slane %v5500, 1
      %v5535 = vrot.slane %v5501, 1
      %v5536 = vsel %vm1258, %v5534, %v5535
      %v5537 = vsel %vm1258, %v5535, %v5534
      %vm5538 = vcmp.lt.s32.totalorder %v393, 15
      %vm5539 = vcmp.lt.s32.totalorder %v394, 15
      %v5540 = vsel %vm5538, 1, 0
      %v5541 = vsel %vm5539, 1, 0
      %v5542 = vcvt.s32.f32 %v5540
      %v5543 = vcvt.s32.f32 %v5541
      %v5544 = vmul.f32 %v5536, %v5542
      %v5545 = vmul.f32 %v5537, %v5543
      %v5546 = vrot.slane %v5500, 2
      %v5547 = vrot.slane %v5501, 2
      %vm5548 = vcmp.lt.s32.totalorder %v393, 6
      %v5549 = vsel %vm5548, %v5546, %v5547
      %v5550 = vsel %vm5548, %v5547, %v5546
      %vm5551 = vcmp.lt.s32.totalorder %v393, 14
      %vm5552 = vcmp.lt.s32.totalorder %v394, 14
      %v5553 = vsel %vm5551, 1, 0
      %v5554 = vsel %vm5552, 1, 0
      %v5555 = vcvt.s32.f32 %v5553
      %v5556 = vcvt.s32.f32 %v5554
      %v5557 = vmul.f32 %v5549, %v5555
      %v5558 = vmul.f32 %v5550, %v5556
      %v5559 = vrot.slane %v5500, 3
      %v5560 = vrot.slane %v5501, 3
      %vm5561 = vcmp.lt.s32.totalorder %v393, 5
      %v5562 = vsel %vm5561, %v5559, %v5560
      %v5563 = vsel %vm5561, %v5560, %v5559
      %vm5564 = vcmp.lt.s32.totalorder %v393, 13
      %vm5565 = vcmp.lt.s32.totalorder %v394, 13
      %v5566 = vsel %vm5564, 1, 0
      %v5567 = vsel %vm5565, 1, 0
      %v5568 = vcvt.s32.f32 %v5566
      %v5569 = vcvt.s32.f32 %v5567
      %v5570 = vmul.f32 %v5562, %v5568
      %v5571 = vmul.f32 %v5563, %v5569
      %5574 = vrot.lane.b32.xlu0 %v5526, 32
      %v5575 = vpop.permute.xlu0 %5574
      %5576 = vrot.lane.b32.xlu0 %v5527, 32
      %v5577 = vpop.permute.xlu0 %5576
      %5582 = vrot.lane.b32.xlu0 %v5532, 64
      %v5583 = vpop.permute.xlu0 %5582
      %5584 = vrot.lane.b32.xlu0 %v5533, 64
      %v5585 = vpop.permute.xlu0 %5584
      %5590 = vrot.lane.b32.xlu0 %v5500, 96
      %v5591 = vpop.permute.xlu0 %5590
      %5592 = vrot.lane.b32.xlu0 %v5501, 96
      %v5593 = vpop.permute.xlu0 %5592
      %5598 = vrot.lane.b32.xlu0 %v5557, 32
      %v5599 = vpop.permute.xlu0 %5598
      %5600 = vrot.lane.b32.xlu0 %v5558, 32
      %v5601 = vpop.permute.xlu0 %5600
      %5606 = vrot.lane.b32.xlu0 %v5570, 64
      %v5607 = vpop.permute.xlu0 %5606
      %5608 = vrot.lane.b32.xlu0 %v5571, 64
      %v5609 = vpop.permute.xlu0 %5608
      %v5612 = vsel %vm1707, %v5513, %v5575
      %v5613 = vsel %vm1707, %v5514, %v5577
      %v5614 = vsel %vm1740, %v5612, %v5583
      %v5615 = vsel %vm1740, %v5613, %v5585
      %v5616 = vsel %vm1785, %v5614, %v5591
      %v5617 = vsel %vm1785, %v5615, %v5593
      %v5618 = vsel %vm1707, %v5544, %v5599
      %v5619 = vsel %vm1707, %v5545, %v5601
      %v5620 = vsel %vm1740, %v5618, %v5607
      %v5621 = vsel %vm1740, %v5619, %v5609
      %v5622 = vld [vmem:[%s9] sm:$0xff]
      %v5623 = vld [vmem:[%s9 + $0x8] sm:$0xff]
      %v5624 = vld [vmem:[%s9 + $0x10] sm:$0xff]
      %v5625 = vld [vmem:[%s9 + $0x18] sm:$0xff]
      %v5626 = vld [vmem:[%s9 + $0x20] sm:$0xff]
      %v5627 = vld [vmem:[%s9 + $0x28] sm:$0xff]
      %v5628 = vld [vmem:[%s9 + $0x30] sm:$0xff]
      %v5629 = vld [vmem:[%s9 + $0x38] sm:$0xff]
      %v5630 = vld [vmem:[%s9 + $0x40] sm:$0xff]
      %v5631 = vld [vmem:[%s9 + $0x48] sm:$0xff]
      %v5632 = vld [vmem:[%s9 + $0x50] sm:$0xff]
      %v5633 = vld [vmem:[%s9 + $0x58] sm:$0xff]
      %v5634 = vld [vmem:[%s9 + $0x60] sm:$0xff]
      %v5635 = vld [vmem:[%s9 + $0x68] sm:$0xff]
      %v5636 = vld [vmem:[%s9 + $0x70] sm:$0xff]
      %v5637 = vld [vmem:[%s9 + $0x78] sm:$0xff]
      %v5638 = vld [vmem:[%s9 + $0x80] sm:$0xff]
      %v5639 = vld [vmem:[%s9 + $0x88] sm:$0xff]
      %v5640 = vld [vmem:[%s9 + $0x90] sm:$0xff]
      %v5641 = vld [vmem:[%s9 + $0x98] sm:$0xff]
      %v5642 = vld [vmem:[%s9 + $0xa0] sm:$0xff]
      %v5643 = vld [vmem:[%s9 + $0xa8] sm:$0xff]
      %v5644 = vld [vmem:[%s9 + $0xb0] sm:$0xff]
      %v5645 = vld [vmem:[%s9 + $0xb8] sm:$0xff]
      %v5646 = vld [vmem:[%s9 + $0xc0] sm:$0xff]
      %v5647 = vld [vmem:[%s9 + $0xc8] sm:$0xff]
      %v5648 = vld [vmem:[%s9 + $0xd0] sm:$0xff]
      %v5649 = vld [vmem:[%s9 + $0xd8] sm:$0xff]
      %v5651 = vsel %vm1785, %v5620, 0
      %v5654 = vsel %vm1785, %v5621, 0
      %5656 = vmatprep.subr.mxu0 0.0
      %5657 = vmatpush1.msra.mxu0 %v5637
      %5658 = vmatprep.subr.mxu0 0.0
      %5659 = vmatpush1.msra.mxu0 %v5636
      %5660 = vmatprep.subr.mxu0 0.0
      %5661 = vmatpush1.msra.mxu0 %v5635
      %5662 = vmatprep.subr.mxu0 0.0
      %5663 = vmatpush1.msra.mxu0 %v5634
      %5664 = vmatprep.subr.mxu0 0.0
      %5665 = vmatpush1.msra.mxu0 %v5633
      %5666 = vmatprep.subr.mxu0 0.0
      %5667 = vmatpush1.msra.mxu0 %v5632
      %5668 = vmatprep.subr.mxu0 0.0
      %5669 = vmatpush1.msra.mxu0 %v5631
      %5670 = vmatprep.subr.mxu0 0.0
      %5671 = vmatpush1.msra.mxu0 %v5630
      %5672 = vmatprep.subr.mxu0 0.0
      %5673 = vmatpush1.msra.mxu0 %v5629
      %5674 = vmatprep.subr.mxu0 0.0
      %5675 = vmatpush1.msra.mxu0 %v5628
      %5676 = vmatprep.subr.mxu0 0.0
      %5677 = vmatpush1.msra.mxu0 %v5627
      %5678 = vmatprep.subr.mxu0 0.0
      %5679 = vmatpush1.msra.mxu0 %v5626
      %5680 = vmatprep.subr.mxu0 0.0
      %5681 = vmatpush1.msra.mxu0 %v5625
      %5682 = vmatprep.subr.mxu0 0.0
      %5683 = vmatpush1.msra.mxu0 %v5624
      %5684 = vmatprep.subr.mxu0 0.0
      %5685 = vmatpush1.msra.mxu0 %v5623
      %5686 = vmatprep.subr.mxu0 0.0
      %5687 = vmatpush1.msra.mxu0 %v5622
      %5688 = vmatprep.subr.mxu0 0.0
      %5689 = vmatpush2.msra.mxu0 0.0
      %5690 = vmatprep.subr.mxu0 0.0
      %5691 = vmatpush2.msra.mxu0 0.0
      %5692 = vmatprep.subr.mxu0 0.0
      %5693 = vmatpush2.msra.mxu0 0.0
      %5694 = vmatprep.subr.mxu0 0.0
      %5695 = vmatpush2.msra.mxu0 0.0
      %5696 = vmatprep.subr.mxu0 0.0
      %5697 = vmatpush2.msra.mxu0 %v5649
      %5698 = vmatprep.subr.mxu0 0.0
      %5699 = vmatpush2.msra.mxu0 %v5648
      %5700 = vmatprep.subr.mxu0 0.0
      %5701 = vmatpush2.msra.mxu0 %v5647
      %5702 = vmatprep.subr.mxu0 0.0
      %5703 = vmatpush2.msra.mxu0 %v5646
      %5704 = vmatprep.subr.mxu0 0.0
      %5705 = vmatpush2.msra.mxu0 %v5645
      %5706 = vmatprep.subr.mxu0 0.0
      %5707 = vmatpush2.msra.mxu0 %v5644
      %5708 = vmatprep.subr.mxu0 0.0
      %5709 = vmatpush2.msra.mxu0 %v5643
      %5710 = vmatprep.subr.mxu0 0.0
      %5711 = vmatpush2.msra.mxu0 %v5642
      %5712 = vmatprep.subr.mxu0 0.0
      %5713 = vmatpush2.msra.mxu0 %v5641
      %5714 = vmatprep.subr.mxu0 0.0
      %5715 = vmatpush2.msra.mxu0 %v5640
      %5716 = vmatprep.subr.mxu0 0.0
      %5717 = vmatpush2.msra.mxu0 %v5639
      %5718 = vmatprep.subr.mxu0 0.0
      %5719 = vmatpush2.msra.mxu0 %v5638
      %5720 = vmatprep.mubr.f32.mxu0 %v5651
      %5721 = vmatmul.mubr.f32.gmra.mxu0 %v5616
      %v5722 = vpop.f32.mrf.mxu0
      %v5723 = vadd.f32 0.0, %v5722
      %v5724 = vpop.f32.mrf.mxu0
      %5725 = vmatprep.mubr.f32.mxu0 %v5654
      %5726 = vmatmul.mubr.f32.gmra.mxu0 %v5617
      %v5727 = vpop.f32.mrf.mxu0
      %v5728 = vadd.f32 0.0, %v5727
      %v5729 = vpop.f32.mrf.mxu0
      %5730 = vdwg.mxu0
      %v5731 = vxor.u32 %v5723, 2147483648
      %v5732 = vxor.u32 %v5728, 2147483648
      %v5733 = vmul.f32 %v5731, 1.442695
      %v5734 = vpow.pop %v5733
      %v5735 = vmul.f32 %v5732, 1.442695
      %v5736 = vpow.pop %v5735
      %v5737 = vadd.f32 %v5734, 1.0
      %v5738 = vadd.f32 %v5736, 1.0
      %v5739 = vrcp.pop %v5737
      %v5740 = vmul.f32 1.0, %v5739
      %v5741 = vrcp.pop %v5738
      %v5742 = vmul.f32 1.0, %v5741
      %v5743 = vadd.f32 %v4780, %v360
      %v5744 = vadd.f32 %v4781, %v361
      %v5745 = vadd.f32 %v4782, %v362
      %v5746 = vadd.f32 %v4783, %v363
      %v5747 = vadd.f32 %v4784, %v364
      %v5748 = vadd.f32 %v4785, %v365
      %v5749 = vadd.f32 %v4786, %v366
      %v5750 = vadd.f32 %v4787, %v367
      %v5751 = vadd.f32 %v4788, %v368
      %v5752 = vadd.f32 %v4789, %v369
      %v5753 = vadd.f32 %v4790, %v370
      %v5754 = vadd.f32 %v4791, %v371
      %v5755 = vadd.f32 %v4792, %v372
      %v5756 = vadd.f32 %v4793, %v373
      %v5757 = vadd.f32 %v4794, %v374
      %v5758 = vadd.f32 %v4795, %v375
      %v5759 = vadd.f32 %v4796, %v376
      %v5760 = vadd.f32 %v4797, %v377
      %v5761 = vadd.f32 %v4798, %v378
      %v5762 = vadd.f32 %v4799, %v379
      %v5763 = vadd.f32 %v4800, %v380
      %v5764 = vadd.f32 %v4801, %v381
      %v5765 = vadd.f32 %v4802, %v382
      %v5766 = vadd.f32 %v4803, %v383
      %v5767 = vadd.f32 %v4804, %v384
      %v5768 = vadd.f32 %v4805, %v385
      %v5769 = vadd.f32 %v4806, %v386
      %v5770 = vadd.f32 %v4807, %v387
      %v5771 = vadd.f32 %v4808, %v388
      %v5772 = vadd.f32 %v4809, %v389
      %v5773 = vadd.f32 %v4810, %v390
      %v5774 = vadd.f32 %v4811, %v391
      %v5775 = vadd.f32 %v5743, 1.0
      %v5776 = vadd.f32 %v5744, 1.0
      %v5777 = vadd.f32 %v5745, 1.0
      %v5778 = vadd.f32 %v5746, 1.0
      %v5779 = vadd.f32 %v5747, 1.0
      %v5780 = vadd.f32 %v5748, 1.0
      %v5781 = vadd.f32 %v5749, 1.0
      %v5782 = vadd.f32 %v5750, 1.0
      %v5783 = vadd.f32 %v5751, 1.0
      %v5784 = vadd.f32 %v5752, 1.0
      %v5785 = vadd.f32 %v5753, 1.0
      %v5786 = vadd.f32 %v5754, 1.0
      %v5787 = vadd.f32 %v5755, 1.0
      %v5788 = vadd.f32 %v5756, 1.0
      %v5789 = vadd.f32 %v5757, 1.0
      %v5790 = vadd.f32 %v5758, 1.0
      %v5791 = vadd.f32 %v5759, 1.0
      %v5792 = vadd.f32 %v5760, 1.0
      %v5793 = vadd.f32 %v5761, 1.0
      %v5794 = vadd.f32 %v5762, 1.0
      %v5795 = vadd.f32 %v5763, 1.0
      %v5796 = vadd.f32 %v5764, 1.0
      %v5797 = vadd.f32 %v5765, 1.0
      %v5798 = vadd.f32 %v5766, 1.0
      %v5799 = vadd.f32 %v5767, 1.0
      %v5800 = vadd.f32 %v5768, 1.0
      %v5801 = vadd.f32 %v5769, 1.0
      %v5802 = vadd.f32 %v5770, 1.0
      %v5803 = vadd.f32 %v5771, 1.0
      %v5804 = vadd.f32 %v5772, 1.0
      %v5805 = vadd.f32 %v5773, 1.0
      %v5806 = vadd.f32 %v5774, 1.0
      %5808 = vset.pattern.permute.xlu0 0
      %5809 = vperm.xlu0 %5808, %v5740
      %v5810 = vpop.permute.xlu0 %5809
      %5812 = vset.pattern.permute.xlu0 0
      %5813 = vperm.xlu0 %5812, %v5742
      %v5814 = vpop.permute.xlu0 %5813
      %v5815 = vrot.slane %v5810, 1
      %v5816 = vrot.slane %v5810, 2
      %v5817 = vrot.slane %v5810, 3
      %v5818 = vrot.slane %v5810, 4
      %v5819 = vrot.slane %v5810, 5
      %v5820 = vrot.slane %v5810, 6
      %v5821 = vrot.slane %v5810, 7
      %v5822 = vrot.slane %v5814, 1
      %v5823 = vrot.slane %v5814, 2
      %v5824 = vrot.slane %v5814, 3
      %v5825 = vrot.slane %v5814, 4
      %v5826 = vrot.slane %v5814, 5
      %v5827 = vrot.slane %v5814, 6
      %v5828 = vrot.slane %v5814, 7
      %v5845 = vadd.f32 %v5775, %v5810
      %v5846 = vadd.f32 %v5777, %v5815
      %v5847 = vadd.f32 %v5779, %v5816
      %v5848 = vadd.f32 %v5781, %v5817
      %v5849 = vadd.f32 %v5783, %v5818
      %v5850 = vadd.f32 %v5785, %v5819
      %v5851 = vadd.f32 %v5787, %v5820
      %v5852 = vadd.f32 %v5789, %v5821
      %v5853 = vadd.f32 %v5791, %v5814
      %v5854 = vadd.f32 %v5793, %v5822
      %v5855 = vadd.f32 %v5795, %v5823
      %v5856 = vadd.f32 %v5797, %v5824
      %v5857 = vadd.f32 %v5799, %v5825
      %v5858 = vadd.f32 %v5801, %v5826
      %v5859 = vadd.f32 %v5803, %v5827
      %v5860 = vadd.f32 %v5805, %v5828
      %5861 = vset.pattern.permute.xlu0 1
      %5862 = vperm.xlu0 %5861, %v5740
      %v5863 = vpop.permute.xlu0 %5862
      %5864 = vset.pattern.permute.xlu0 1
      %5865 = vperm.xlu0 %5864, %v5742
      %v5866 = vpop.permute.xlu0 %5865
      %v5867 = vrot.slane %v5863, 7
      %v5868 = vrot.slane %v5863, 1
      %v5869 = vrot.slane %v5863, 2
      %v5870 = vrot.slane %v5863, 3
      %v5871 = vrot.slane %v5863, 4
      %v5872 = vrot.slane %v5863, 5
      %v5873 = vrot.slane %v5863, 6
      %v5874 = vrot.slane %v5866, 7
      %v5875 = vrot.slane %v5866, 1
      %v5876 = vrot.slane %v5866, 2
      %v5877 = vrot.slane %v5866, 3
      %v5878 = vrot.slane %v5866, 4
      %v5879 = vrot.slane %v5866, 5
      %v5880 = vrot.slane %v5866, 6
      %v5897 = vadd.f32 %v5775, %v5867
      %v5898 = vadd.f32 %v5777, %v5863
      %v5899 = vadd.f32 %v5779, %v5868
      %v5900 = vadd.f32 %v5781, %v5869
      %v5901 = vadd.f32 %v5783, %v5870
      %v5902 = vadd.f32 %v5785, %v5871
      %v5903 = vadd.f32 %v5787, %v5872
      %v5904 = vadd.f32 %v5789, %v5873
      %v5905 = vadd.f32 %v5791, %v5874
      %v5906 = vadd.f32 %v5793, %v5866
      %v5907 = vadd.f32 %v5795, %v5875
      %v5908 = vadd.f32 %v5797, %v5876
      %v5909 = vadd.f32 %v5799, %v5877
      %v5910 = vadd.f32 %v5801, %v5878
      %v5911 = vadd.f32 %v5803, %v5879
      %v5912 = vadd.f32 %v5805, %v5880
      %5913 = vset.pattern.permute.xlu0 2
      %5914 = vperm.xlu0 %5913, %v5740
      %v5915 = vpop.permute.xlu0 %5914
      %5916 = vset.pattern.permute.xlu0 2
      %5917 = vperm.xlu0 %5916, %v5742
      %v5918 = vpop.permute.xlu0 %5917
      %v5919 = vrot.slane %v5915, 6
      %v5920 = vrot.slane %v5915, 7
      %v5921 = vrot.slane %v5915, 1
      %v5922 = vrot.slane %v5915, 2
      %v5923 = vrot.slane %v5915, 3
      %v5924 = vrot.slane %v5915, 4
      %v5925 = vrot.slane %v5915, 5
      %v5926 = vrot.slane %v5918, 6
      %v5927 = vrot.slane %v5918, 7
      %v5928 = vrot.slane %v5918, 1
      %v5929 = vrot.slane %v5918, 2
      %v5930 = vrot.slane %v5918, 3
      %v5931 = vrot.slane %v5918, 4
      %v5932 = vrot.slane %v5918, 5
      %v5949 = vadd.f32 %v5775, %v5919
      %v5950 = vadd.f32 %v5777, %v5920
      %v5951 = vadd.f32 %v5779, %v5915
      %v5952 = vadd.f32 %v5781, %v5921
      %v5953 = vadd.f32 %v5783, %v5922
      %v5954 = vadd.f32 %v5785, %v5923
      %v5955 = vadd.f32 %v5787, %v5924
      %v5956 = vadd.f32 %v5789, %v5925
      %v5957 = vadd.f32 %v5791, %v5926
      %v5958 = vadd.f32 %v5793, %v5927
      %v5959 = vadd.f32 %v5795, %v5918
      %v5960 = vadd.f32 %v5797, %v5928
      %v5961 = vadd.f32 %v5799, %v5929
      %v5962 = vadd.f32 %v5801, %v5930
      %v5963 = vadd.f32 %v5803, %v5931
      %v5964 = vadd.f32 %v5805, %v5932
      %5965 = vset.pattern.permute.xlu0 3
      %5966 = vperm.xlu0 %5965, %v5740
      %v5967 = vpop.permute.xlu0 %5966
      %5968 = vset.pattern.permute.xlu0 3
      %5969 = vperm.xlu0 %5968, %v5742
      %v5970 = vpop.permute.xlu0 %5969
      %v5971 = vrot.slane %v5967, 5
      %v5972 = vrot.slane %v5967, 6
      %v5973 = vrot.slane %v5967, 7
      %v5974 = vrot.slane %v5967, 1
      %v5975 = vrot.slane %v5967, 2
      %v5976 = vrot.slane %v5967, 3
      %v5977 = vrot.slane %v5967, 4
      %v5978 = vrot.slane %v5970, 5
      %v5979 = vrot.slane %v5970, 6
      %v5980 = vrot.slane %v5970, 7
      %v5981 = vrot.slane %v5970, 1
      %v5982 = vrot.slane %v5970, 2
      %v5983 = vrot.slane %v5970, 3
      %v5984 = vrot.slane %v5970, 4
      %v6001 = vadd.f32 %v5775, %v5971
      %v6002 = vadd.f32 %v5777, %v5972
      %v6003 = vadd.f32 %v5779, %v5973
      %v6004 = vadd.f32 %v5781, %v5967
      %v6005 = vadd.f32 %v5783, %v5974
      %v6006 = vadd.f32 %v5785, %v5975
      %v6007 = vadd.f32 %v5787, %v5976
      %v6008 = vadd.f32 %v5789, %v5977
      %v6009 = vadd.f32 %v5791, %v5978
      %v6010 = vadd.f32 %v5793, %v5979
      %v6011 = vadd.f32 %v5795, %v5980
      %v6012 = vadd.f32 %v5797, %v5970
      %v6013 = vadd.f32 %v5799, %v5981
      %v6014 = vadd.f32 %v5801, %v5982
      %v6015 = vadd.f32 %v5803, %v5983
      %v6016 = vadd.f32 %v5805, %v5984
      %6017 = vset.pattern.permute.xlu0 4
      %6018 = vperm.xlu0 %6017, %v5740
      %v6019 = vpop.permute.xlu0 %6018
      %6020 = vset.pattern.permute.xlu0 4
      %6021 = vperm.xlu0 %6020, %v5742
      %v6022 = vpop.permute.xlu0 %6021
      %v6023 = vrot.slane %v6019, 4
      %v6024 = vrot.slane %v6019, 5
      %v6025 = vrot.slane %v6019, 6
      %v6026 = vrot.slane %v6019, 7
      %v6027 = vrot.slane %v6019, 1
      %v6028 = vrot.slane %v6019, 2
      %v6029 = vrot.slane %v6019, 3
      %v6030 = vrot.slane %v6022, 4
      %v6031 = vrot.slane %v6022, 5
      %v6032 = vrot.slane %v6022, 6
      %v6033 = vrot.slane %v6022, 7
      %v6034 = vrot.slane %v6022, 1
      %v6035 = vrot.slane %v6022, 2
      %v6036 = vrot.slane %v6022, 3
      %v6053 = vadd.f32 %v5775, %v6023
      %v6054 = vadd.f32 %v5777, %v6024
      %v6055 = vadd.f32 %v5779, %v6025
      %v6056 = vadd.f32 %v5781, %v6026
      %v6057 = vadd.f32 %v5783, %v6019
      %v6058 = vadd.f32 %v5785, %v6027
      %v6059 = vadd.f32 %v5787, %v6028
      %v6060 = vadd.f32 %v5789, %v6029
      %v6061 = vadd.f32 %v5791, %v6030
      %v6062 = vadd.f32 %v5793, %v6031
      %v6063 = vadd.f32 %v5795, %v6032
      %v6064 = vadd.f32 %v5797, %v6033
      %v6065 = vadd.f32 %v5799, %v6022
      %v6066 = vadd.f32 %v5801, %v6034
      %v6067 = vadd.f32 %v5803, %v6035
      %v6068 = vadd.f32 %v5805, %v6036
      %6069 = vset.pattern.permute.xlu0 5
      %6070 = vperm.xlu0 %6069, %v5740
      %v6071 = vpop.permute.xlu0 %6070
      %6072 = vset.pattern.permute.xlu0 5
      %6073 = vperm.xlu0 %6072, %v5742
      %v6074 = vpop.permute.xlu0 %6073
      %v6075 = vrot.slane %v6071, 3
      %v6076 = vrot.slane %v6071, 4
      %v6077 = vrot.slane %v6071, 5
      %v6078 = vrot.slane %v6071, 6
      %v6079 = vrot.slane %v6071, 7
      %v6080 = vrot.slane %v6071, 1
      %v6081 = vrot.slane %v6071, 2
      %v6082 = vrot.slane %v6074, 3
      %v6083 = vrot.slane %v6074, 4
      %v6084 = vrot.slane %v6074, 5
      %v6085 = vrot.slane %v6074, 6
      %v6086 = vrot.slane %v6074, 7
      %v6087 = vrot.slane %v6074, 1
      %v6088 = vrot.slane %v6074, 2
      %v6105 = vadd.f32 %v5775, %v6075
      %v6106 = vadd.f32 %v5777, %v6076
      %v6107 = vadd.f32 %v5779, %v6077
      %v6108 = vadd.f32 %v5781, %v6078
      %v6109 = vadd.f32 %v5783, %v6079
      %v6110 = vadd.f32 %v5785, %v6071
      %v6111 = vadd.f32 %v5787, %v6080
      %v6112 = vadd.f32 %v5789, %v6081
      %v6113 = vadd.f32 %v5791, %v6082
      %v6114 = vadd.f32 %v5793, %v6083
      %v6115 = vadd.f32 %v5795, %v6084
      %v6116 = vadd.f32 %v5797, %v6085
      %v6117 = vadd.f32 %v5799, %v6086
      %v6118 = vadd.f32 %v5801, %v6074
      %v6119 = vadd.f32 %v5803, %v6087
      %v6120 = vadd.f32 %v5805, %v6088
      %6121 = vset.pattern.permute.xlu0 6
      %6122 = vperm.xlu0 %6121, %v5740
      %v6123 = vpop.permute.xlu0 %6122
      %6124 = vset.pattern.permute.xlu0 6
      %6125 = vperm.xlu0 %6124, %v5742
      %v6126 = vpop.permute.xlu0 %6125
      %v6127 = vrot.slane %v6123, 2
      %v6128 = vrot.slane %v6123, 3
      %v6129 = vrot.slane %v6123, 4
      %v6130 = vrot.slane %v6123, 5
      %v6131 = vrot.slane %v6123, 6
      %v6132 = vrot.slane %v6123, 7
      %v6133 = vrot.slane %v6123, 1
      %v6134 = vrot.slane %v6126, 2
      %v6135 = vrot.slane %v6126, 3
      %v6136 = vrot.slane %v6126, 4
      %v6137 = vrot.slane %v6126, 5
      %v6138 = vrot.slane %v6126, 6
      %v6139 = vrot.slane %v6126, 7
      %v6140 = vrot.slane %v6126, 1
      %v6157 = vadd.f32 %v5775, %v6127
      %v6158 = vadd.f32 %v5777, %v6128
      %v6159 = vadd.f32 %v5779, %v6129
      %v6160 = vadd.f32 %v5781, %v6130
      %v6161 = vadd.f32 %v5783, %v6131
      %v6162 = vadd.f32 %v5785, %v6132
      %v6163 = vadd.f32 %v5787, %v6123
      %v6164 = vadd.f32 %v5789, %v6133
      %v6165 = vadd.f32 %v5791, %v6134
      %v6166 = vadd.f32 %v5793, %v6135
      %v6167 = vadd.f32 %v5795, %v6136
      %v6168 = vadd.f32 %v5797, %v6137
      %v6169 = vadd.f32 %v5799, %v6138
      %v6170 = vadd.f32 %v5801, %v6139
      %v6171 = vadd.f32 %v5803, %v6126
      %v6172 = vadd.f32 %v5805, %v6140
      %6173 = vset.pattern.permute.xlu0 7
      %6174 = vperm.xlu0 %6173, %v5740
      %v6175 = vpop.permute.xlu0 %6174
      %6176 = vset.pattern.permute.xlu0 7
      %6177 = vperm.xlu0 %6176, %v5742
      %v6178 = vpop.permute.xlu0 %6177
      %v6179 = vrot.slane %v6175, 1
      %v6180 = vrot.slane %v6175, 2
      %v6181 = vrot.slane %v6175, 3
      %v6182 = vrot.slane %v6175, 4
      %v6183 = vrot.slane %v6175, 5
      %v6184 = vrot.slane %v6175, 6
      %v6185 = vrot.slane %v6175, 7
      %v6186 = vrot.slane %v6178, 1
      %v6187 = vrot.slane %v6178, 2
      %v6188 = vrot.slane %v6178, 3
      %v6189 = vrot.slane %v6178, 4
      %v6190 = vrot.slane %v6178, 5
      %v6191 = vrot.slane %v6178, 6
      %v6192 = vrot.slane %v6178, 7
      %v6209 = vadd.f32 %v5775, %v6179
      %v6210 = vadd.f32 %v5777, %v6180
      %v6211 = vadd.f32 %v5779, %v6181
      %v6212 = vadd.f32 %v5781, %v6182
      %v6213 = vadd.f32 %v5783, %v6183
      %v6214 = vadd.f32 %v5785, %v6184
      %v6215 = vadd.f32 %v5787, %v6185
      %v6216 = vadd.f32 %v5789, %v6175
      %v6217 = vadd.f32 %v5791, %v6186
      %v6218 = vadd.f32 %v5793, %v6187
      %v6219 = vadd.f32 %v5795, %v6188
      %v6220 = vadd.f32 %v5797, %v6189
      %v6221 = vadd.f32 %v5799, %v6190
      %v6222 = vadd.f32 %v5801, %v6191
      %v6223 = vadd.f32 %v5803, %v6192
      %v6224 = vadd.f32 %v5805, %v6178
      %6225 = vset.pattern.permute.xlu0 8
      %6226 = vperm.xlu0 %6225, %v5740
      %v6227 = vpop.permute.xlu0 %6226
      %6228 = vset.pattern.permute.xlu0 8
      %6229 = vperm.xlu0 %6228, %v5742
      %v6230 = vpop.permute.xlu0 %6229
      %v6231 = vrot.slane %v6227, 1
      %v6232 = vrot.slane %v6227, 2
      %v6233 = vrot.slane %v6227, 3
      %v6234 = vrot.slane %v6227, 4
      %v6235 = vrot.slane %v6227, 5
      %v6236 = vrot.slane %v6227, 6
      %v6237 = vrot.slane %v6227, 7
      %v6238 = vrot.slane %v6230, 1
      %v6239 = vrot.slane %v6230, 2
      %v6240 = vrot.slane %v6230, 3
      %v6241 = vrot.slane %v6230, 4
      %v6242 = vrot.slane %v6230, 5
      %v6243 = vrot.slane %v6230, 6
      %v6244 = vrot.slane %v6230, 7
      %v6261 = vadd.f32 %v5776, %v6227
      %v6262 = vadd.f32 %v5778, %v6231
      %v6263 = vadd.f32 %v5780, %v6232
      %v6264 = vadd.f32 %v5782, %v6233
      %v6265 = vadd.f32 %v5784, %v6234
      %v6266 = vadd.f32 %v5786, %v6235
      %v6267 = vadd.f32 %v5788, %v6236
      %v6268 = vadd.f32 %v5790, %v6237
      %v6269 = vadd.f32 %v5792, %v6230
      %v6270 = vadd.f32 %v5794, %v6238
      %v6271 = vadd.f32 %v5796, %v6239
      %v6272 = vadd.f32 %v5798, %v6240
      %v6273 = vadd.f32 %v5800, %v6241
      %v6274 = vadd.f32 %v5802, %v6242
      %v6275 = vadd.f32 %v5804, %v6243
      %v6276 = vadd.f32 %v5806, %v6244
      %6277 = vset.pattern.permute.xlu0 9
      %6278 = vperm.xlu0 %6277, %v5740
      %v6279 = vpop.permute.xlu0 %6278
      %6280 = vset.pattern.permute.xlu0 9
      %6281 = vperm.xlu0 %6280, %v5742
      %v6282 = vpop.permute.xlu0 %6281
      %v6283 = vrot.slane %v6279, 7
      %v6284 = vrot.slane %v6279, 1
      %v6285 = vrot.slane %v6279, 2
      %v6286 = vrot.slane %v6279, 3
      %v6287 = vrot.slane %v6279, 4
      %v6288 = vrot.slane %v6279, 5
      %v6289 = vrot.slane %v6279, 6
      %v6290 = vrot.slane %v6282, 7
      %v6291 = vrot.slane %v6282, 1
      %v6292 = vrot.slane %v6282, 2
      %v6293 = vrot.slane %v6282, 3
      %v6294 = vrot.slane %v6282, 4
      %v6295 = vrot.slane %v6282, 5
      %v6296 = vrot.slane %v6282, 6
      %v6313 = vadd.f32 %v5776, %v6283
      %v6314 = vadd.f32 %v5778, %v6279
      %v6315 = vadd.f32 %v5780, %v6284
      %v6316 = vadd.f32 %v5782, %v6285
      %v6317 = vadd.f32 %v5784, %v6286
      %v6318 = vadd.f32 %v5786, %v6287
      %v6319 = vadd.f32 %v5788, %v6288
      %v6320 = vadd.f32 %v5790, %v6289
      %v6321 = vadd.f32 %v5792, %v6290
      %v6322 = vadd.f32 %v5794, %v6282
      %v6323 = vadd.f32 %v5796, %v6291
      %v6324 = vadd.f32 %v5798, %v6292
      %v6325 = vadd.f32 %v5800, %v6293
      %v6326 = vadd.f32 %v5802, %v6294
      %v6327 = vadd.f32 %v5804, %v6295
      %v6328 = vadd.f32 %v5806, %v6296
      %6329 = vset.pattern.permute.xlu0 10
      %6330 = vperm.xlu0 %6329, %v5740
      %v6331 = vpop.permute.xlu0 %6330
      %6332 = vset.pattern.permute.xlu0 10
      %6333 = vperm.xlu0 %6332, %v5742
      %v6334 = vpop.permute.xlu0 %6333
      %v6335 = vrot.slane %v6331, 6
      %v6336 = vrot.slane %v6331, 7
      %v6337 = vrot.slane %v6331, 1
      %v6338 = vrot.slane %v6331, 2
      %v6339 = vrot.slane %v6331, 3
      %v6340 = vrot.slane %v6331, 4
      %v6341 = vrot.slane %v6331, 5
      %v6342 = vrot.slane %v6334, 6
      %v6343 = vrot.slane %v6334, 7
      %v6344 = vrot.slane %v6334, 1
      %v6345 = vrot.slane %v6334, 2
      %v6346 = vrot.slane %v6334, 3
      %v6347 = vrot.slane %v6334, 4
      %v6348 = vrot.slane %v6334, 5
      %v6365 = vadd.f32 %v5776, %v6335
      %v6366 = vadd.f32 %v5778, %v6336
      %v6367 = vadd.f32 %v5780, %v6331
      %v6368 = vadd.f32 %v5782, %v6337
      %v6369 = vadd.f32 %v5784, %v6338
      %v6370 = vadd.f32 %v5786, %v6339
      %v6371 = vadd.f32 %v5788, %v6340
      %v6372 = vadd.f32 %v5790, %v6341
      %v6373 = vadd.f32 %v5792, %v6342
      %v6374 = vadd.f32 %v5794, %v6343
      %v6375 = vadd.f32 %v5796, %v6334
      %v6376 = vadd.f32 %v5798, %v6344
      %v6377 = vadd.f32 %v5800, %v6345
      %v6378 = vadd.f32 %v5802, %v6346
      %v6379 = vadd.f32 %v5804, %v6347
      %v6380 = vadd.f32 %v5806, %v6348
      %6381 = vset.pattern.permute.xlu0 11
      %6382 = vperm.xlu0 %6381, %v5740
      %v6383 = vpop.permute.xlu0 %6382
      %6384 = vset.pattern.permute.xlu0 11
      %6385 = vperm.xlu0 %6384, %v5742
      %v6386 = vpop.permute.xlu0 %6385
      %v6387 = vrot.slane %v6383, 5
      %v6388 = vrot.slane %v6383, 6
      %v6389 = vrot.slane %v6383, 7
      %v6390 = vrot.slane %v6383, 1
      %v6391 = vrot.slane %v6383, 2
      %v6392 = vrot.slane %v6383, 3
      %v6393 = vrot.slane %v6383, 4
      %v6394 = vrot.slane %v6386, 5
      %v6395 = vrot.slane %v6386, 6
      %v6396 = vrot.slane %v6386, 7
      %v6397 = vrot.slane %v6386, 1
      %v6398 = vrot.slane %v6386, 2
      %v6399 = vrot.slane %v6386, 3
      %v6400 = vrot.slane %v6386, 4
      %v6417 = vadd.f32 %v5776, %v6387
      %v6418 = vadd.f32 %v5778, %v6388
      %v6419 = vadd.f32 %v5780, %v6389
      %v6420 = vadd.f32 %v5782, %v6383
      %v6421 = vadd.f32 %v5784, %v6390
      %v6422 = vadd.f32 %v5786, %v6391
      %v6423 = vadd.f32 %v5788, %v6392
      %v6424 = vadd.f32 %v5790, %v6393
      %v6425 = vadd.f32 %v5792, %v6394
      %v6426 = vadd.f32 %v5794, %v6395
      %v6427 = vadd.f32 %v5796, %v6396
      %v6428 = vadd.f32 %v5798, %v6386
      %v6429 = vadd.f32 %v5800, %v6397
      %v6430 = vadd.f32 %v5802, %v6398
      %v6431 = vadd.f32 %v5804, %v6399
      %v6432 = vadd.f32 %v5806, %v6400
      %6433 = vset.pattern.permute.xlu0 12
      %6434 = vperm.xlu0 %6433, %v5740
      %v6435 = vpop.permute.xlu0 %6434
      %6436 = vset.pattern.permute.xlu0 12
      %6437 = vperm.xlu0 %6436, %v5742
      %v6438 = vpop.permute.xlu0 %6437
      %v6439 = vrot.slane %v6435, 4
      %v6440 = vrot.slane %v6435, 5
      %v6441 = vrot.slane %v6435, 6
      %v6442 = vrot.slane %v6435, 7
      %v6443 = vrot.slane %v6435, 1
      %v6444 = vrot.slane %v6435, 2
      %v6445 = vrot.slane %v6435, 3
      %v6446 = vrot.slane %v6438, 4
      %v6447 = vrot.slane %v6438, 5
      %v6448 = vrot.slane %v6438, 6
      %v6449 = vrot.slane %v6438, 7
      %v6450 = vrot.slane %v6438, 1
      %v6451 = vrot.slane %v6438, 2
      %v6452 = vrot.slane %v6438, 3
      %v6469 = vadd.f32 %v5776, %v6439
      %v6470 = vadd.f32 %v5778, %v6440
      %v6471 = vadd.f32 %v5780, %v6441
      %v6472 = vadd.f32 %v5782, %v6442
      %v6473 = vadd.f32 %v5784, %v6435
      %v6474 = vadd.f32 %v5786, %v6443
      %v6475 = vadd.f32 %v5788, %v6444
      %v6476 = vadd.f32 %v5790, %v6445
      %v6477 = vadd.f32 %v5792, %v6446
      %v6478 = vadd.f32 %v5794, %v6447
      %v6479 = vadd.f32 %v5796, %v6448
      %v6480 = vadd.f32 %v5798, %v6449
      %v6481 = vadd.f32 %v5800, %v6438
      %v6482 = vadd.f32 %v5802, %v6450
      %v6483 = vadd.f32 %v5804, %v6451
      %v6484 = vadd.f32 %v5806, %v6452
      %6485 = vset.pattern.permute.xlu0 13
      %6486 = vperm.xlu0 %6485, %v5740
      %v6487 = vpop.permute.xlu0 %6486
      %6488 = vset.pattern.permute.xlu0 13
      %6489 = vperm.xlu0 %6488, %v5742
      %v6490 = vpop.permute.xlu0 %6489
      %v6491 = vrot.slane %v6487, 3
      %v6492 = vrot.slane %v6487, 4
      %v6493 = vrot.slane %v6487, 5
      %v6494 = vrot.slane %v6487, 6
      %v6495 = vrot.slane %v6487, 7
      %v6496 = vrot.slane %v6487, 1
      %v6497 = vrot.slane %v6487, 2
      %v6498 = vrot.slane %v6490, 3
      %v6499 = vrot.slane %v6490, 4
      %v6500 = vrot.slane %v6490, 5
      %v6501 = vrot.slane %v6490, 6
      %v6502 = vrot.slane %v6490, 7
      %v6503 = vrot.slane %v6490, 1
      %v6504 = vrot.slane %v6490, 2
      %v6521 = vadd.f32 %v5776, %v6491
      %v6522 = vadd.f32 %v5778, %v6492
      %v6523 = vadd.f32 %v5780, %v6493
      %v6524 = vadd.f32 %v5782, %v6494
      %v6525 = vadd.f32 %v5784, %v6495
      %v6526 = vadd.f32 %v5786, %v6487
      %v6527 = vadd.f32 %v5788, %v6496
      %v6528 = vadd.f32 %v5790, %v6497
      %v6529 = vadd.f32 %v5792, %v6498
      %v6530 = vadd.f32 %v5794, %v6499
      %v6531 = vadd.f32 %v5796, %v6500
      %v6532 = vadd.f32 %v5798, %v6501
      %v6533 = vadd.f32 %v5800, %v6502
      %v6534 = vadd.f32 %v5802, %v6490
      %v6535 = vadd.f32 %v5804, %v6503
      %v6536 = vadd.f32 %v5806, %v6504
      %6537 = vset.pattern.permute.xlu0 14
      %6538 = vperm.xlu0 %6537, %v5740
      %v6539 = vpop.permute.xlu0 %6538
      %6540 = vset.pattern.permute.xlu0 14
      %6541 = vperm.xlu0 %6540, %v5742
      %v6542 = vpop.permute.xlu0 %6541
      %v6543 = vrot.slane %v6539, 2
      %v6544 = vrot.slane %v6539, 3
      %v6545 = vrot.slane %v6539, 4
      %v6546 = vrot.slane %v6539, 5
      %v6547 = vrot.slane %v6539, 6
      %v6548 = vrot.slane %v6539, 7
      %v6549 = vrot.slane %v6539, 1
      %v6550 = vrot.slane %v6542, 2
      %v6551 = vrot.slane %v6542, 3
      %v6552 = vrot.slane %v6542, 4
      %v6553 = vrot.slane %v6542, 5
      %v6554 = vrot.slane %v6542, 6
      %v6555 = vrot.slane %v6542, 7
      %v6556 = vrot.slane %v6542, 1
      %v6573 = vadd.f32 %v5776, %v6543
      %v6574 = vadd.f32 %v5778, %v6544
      %v6575 = vadd.f32 %v5780, %v6545
      %v6576 = vadd.f32 %v5782, %v6546
      %v6577 = vadd.f32 %v5784, %v6547
      %v6578 = vadd.f32 %v5786, %v6548
      %v6579 = vadd.f32 %v5788, %v6539
      %v6580 = vadd.f32 %v5790, %v6549
      %v6581 = vadd.f32 %v5792, %v6550
      %v6582 = vadd.f32 %v5794, %v6551
      %v6583 = vadd.f32 %v5796, %v6552
      %v6584 = vadd.f32 %v5798, %v6553
      %v6585 = vadd.f32 %v5800, %v6554
      %v6586 = vadd.f32 %v5802, %v6555
      %v6587 = vadd.f32 %v5804, %v6542
      %v6588 = vadd.f32 %v5806, %v6556
      %6589 = vset.pattern.permute.xlu0 15
      %6590 = vperm.xlu0 %6589, %v5740
      %v6591 = vpop.permute.xlu0 %6590
      %6592 = vset.pattern.permute.xlu0 15
      %6593 = vperm.xlu0 %6592, %v5742
      %v6594 = vpop.permute.xlu0 %6593
      %v6595 = vrot.slane %v6591, 1
      %v6596 = vrot.slane %v6591, 2
      %v6597 = vrot.slane %v6591, 3
      %v6598 = vrot.slane %v6591, 4
      %v6599 = vrot.slane %v6591, 5
      %v6600 = vrot.slane %v6591, 6
      %v6601 = vrot.slane %v6591, 7
      %v6602 = vrot.slane %v6594, 1
      %v6603 = vrot.slane %v6594, 2
      %v6604 = vrot.slane %v6594, 3
      %v6605 = vrot.slane %v6594, 4
      %v6606 = vrot.slane %v6594, 5
      %v6607 = vrot.slane %v6594, 6
      %v6608 = vrot.slane %v6594, 7
      %v6625 = vadd.f32 %v5776, %v6595
      %v6626 = vadd.f32 %v5778, %v6596
      %v6627 = vadd.f32 %v5780, %v6597
      %v6628 = vadd.f32 %v5782, %v6598
      %v6629 = vadd.f32 %v5784, %v6599
      %v6630 = vadd.f32 %v5786, %v6600
      %v6631 = vadd.f32 %v5788, %v6601
      %v6632 = vadd.f32 %v5790, %v6591
      %v6633 = vadd.f32 %v5792, %v6602
      %v6634 = vadd.f32 %v5794, %v6603
      %v6635 = vadd.f32 %v5796, %v6604
      %v6636 = vadd.f32 %v5798, %v6605
      %v6637 = vadd.f32 %v5800, %v6606
      %v6638 = vadd.f32 %v5802, %v6607
      %v6639 = vadd.f32 %v5804, %v6608
      %v6640 = vadd.f32 %v5806, %v6594
      %v6657 = vrot.slane %v5846, 7
      %v6658 = vsel %vm5281, %v6657, %v5845
      %v6659 = vrot.slane %v5847, 6
      %v6660 = vsel %vm5283, %v6659, %v6658
      %v6661 = vrot.slane %v5848, 5
      %v6662 = vsel %vm5285, %v6661, %v6660
      %v6663 = vrot.slane %v5849, 4
      %v6664 = vsel %vm5287, %v6663, %v6662
      %v6665 = vrot.slane %v5850, 3
      %v6666 = vsel %vm5289, %v6665, %v6664
      %v6667 = vrot.slane %v5851, 2
      %v6668 = vsel %vm5291, %v6667, %v6666
      %v6669 = vrot.slane %v5852, 1
      %v6670 = vsel %vm5293, %v6669, %v6668
      %v6671 = vrot.slane %v5854, 7
      %v6672 = vsel %vm5281, %v6671, %v5853
      %v6673 = vrot.slane %v5855, 6
      %v6674 = vsel %vm5283, %v6673, %v6672
      %v6675 = vrot.slane %v5856, 5
      %v6676 = vsel %vm5285, %v6675, %v6674
      %v6677 = vrot.slane %v5857, 4
      %v6678 = vsel %vm5287, %v6677, %v6676
      %v6679 = vrot.slane %v5858, 3
      %v6680 = vsel %vm5289, %v6679, %v6678
      %v6681 = vrot.slane %v5859, 2
      %v6682 = vsel %vm5291, %v6681, %v6680
      %v6683 = vrot.slane %v5860, 1
      %v6684 = vsel %vm5293, %v6683, %v6682
      %v6703 = vrot.slane %v5897, 1
      %v6704 = vsel %vm5281, %v5898, %v6703
      %v6705 = vrot.slane %v5899, 7
      %v6706 = vsel %vm5283, %v6705, %v6704
      %v6707 = vrot.slane %v5900, 6
      %v6708 = vsel %vm5285, %v6707, %v6706
      %v6709 = vrot.slane %v5901, 5
      %v6710 = vsel %vm5287, %v6709, %v6708
      %v6711 = vrot.slane %v5902, 4
      %v6712 = vsel %vm5289, %v6711, %v6710
      %v6713 = vrot.slane %v5903, 3
      %v6714 = vsel %vm5291, %v6713, %v6712
      %v6715 = vrot.slane %v5904, 2
      %v6716 = vsel %vm5293, %v6715, %v6714
      %v6717 = vrot.slane %v5905, 1
      %v6718 = vsel %vm5281, %v5906, %v6717
      %v6719 = vrot.slane %v5907, 7
      %v6720 = vsel %vm5283, %v6719, %v6718
      %v6721 = vrot.slane %v5908, 6
      %v6722 = vsel %vm5285, %v6721, %v6720
      %v6723 = vrot.slane %v5909, 5
      %v6724 = vsel %vm5287, %v6723, %v6722
      %v6725 = vrot.slane %v5910, 4
      %v6726 = vsel %vm5289, %v6725, %v6724
      %v6727 = vrot.slane %v5911, 3
      %v6728 = vsel %vm5291, %v6727, %v6726
      %v6729 = vrot.slane %v5912, 2
      %v6730 = vsel %vm5293, %v6729, %v6728
      %6731 = vrot.lane.b32.xlu0 %v6716, 32
      %v6732 = vpop.permute.xlu0 %6731
      %6733 = vrot.lane.b32.xlu0 %v6730, 32
      %v6734 = vpop.permute.xlu0 %6733
      %v6753 = vrot.slane %v5949, 2
      %v6754 = vrot.slane %v5950, 1
      %v6755 = vsel %vm5281, %v6754, %v6753
      %v6756 = vsel %vm5283, %v5951, %v6755
      %v6757 = vrot.slane %v5952, 7
      %v6758 = vsel %vm5285, %v6757, %v6756
      %v6759 = vrot.slane %v5953, 6
      %v6760 = vsel %vm5287, %v6759, %v6758
      %v6761 = vrot.slane %v5954, 5
      %v6762 = vsel %vm5289, %v6761, %v6760
      %v6763 = vrot.slane %v5955, 4
      %v6764 = vsel %vm5291, %v6763, %v6762
      %v6765 = vrot.slane %v5956, 3
      %v6766 = vsel %vm5293, %v6765, %v6764
      %v6767 = vrot.slane %v5957, 2
      %v6768 = vrot.slane %v5958, 1
      %v6769 = vsel %vm5281, %v6768, %v6767
      %v6770 = vsel %vm5283, %v5959, %v6769
      %v6771 = vrot.slane %v5960, 7
      %v6772 = vsel %vm5285, %v6771, %v6770
      %v6773 = vrot.slane %v5961, 6
      %v6774 = vsel %vm5287, %v6773, %v6772
      %v6775 = vrot.slane %v5962, 5
      %v6776 = vsel %vm5289, %v6775, %v6774
      %v6777 = vrot.slane %v5963, 4
      %v6778 = vsel %vm5291, %v6777, %v6776
      %v6779 = vrot.slane %v5964, 3
      %v6780 = vsel %vm5293, %v6779, %v6778
      %6781 = vrot.lane.b32.xlu0 %v6766, 64
      %v6782 = vpop.permute.xlu0 %6781
      %6783 = vrot.lane.b32.xlu0 %v6780, 64
      %v6784 = vpop.permute.xlu0 %6783
      %v6803 = vrot.slane %v6001, 3
      %v6804 = vrot.slane %v6002, 2
      %v6805 = vsel %vm5281, %v6804, %v6803
      %v6806 = vrot.slane %v6003, 1
      %v6807 = vsel %vm5283, %v6806, %v6805
      %v6808 = vsel %vm5285, %v6004, %v6807
      %v6809 = vrot.slane %v6005, 7
      %v6810 = vsel %vm5287, %v6809, %v6808
      %v6811 = vrot.slane %v6006, 6
      %v6812 = vsel %vm5289, %v6811, %v6810
      %v6813 = vrot.slane %v6007, 5
      %v6814 = vsel %vm5291, %v6813, %v6812
      %v6815 = vrot.slane %v6008, 4
      %v6816 = vsel %vm5293, %v6815, %v6814
      %v6817 = vrot.slane %v6009, 3
      %v6818 = vrot.slane %v6010, 2
      %v6819 = vsel %vm5281, %v6818, %v6817
      %v6820 = vrot.slane %v6011, 1
      %v6821 = vsel %vm5283, %v6820, %v6819
      %v6822 = vsel %vm5285, %v6012, %v6821
      %v6823 = vrot.slane %v6013, 7
      %v6824 = vsel %vm5287, %v6823, %v6822
      %v6825 = vrot.slane %v6014, 6
      %v6826 = vsel %vm5289, %v6825, %v6824
      %v6827 = vrot.slane %v6015, 5
      %v6828 = vsel %vm5291, %v6827, %v6826
      %v6829 = vrot.slane %v6016, 4
      %v6830 = vsel %vm5293, %v6829, %v6828
      %6831 = vrot.lane.b32.xlu0 %v6816, 96
      %v6832 = vpop.permute.xlu0 %6831
      %6833 = vrot.lane.b32.xlu0 %v6830, 96
      %v6834 = vpop.permute.xlu0 %6833
      %v6853 = vrot.slane %v6053, 4
      %v6854 = vrot.slane %v6054, 3
      %v6855 = vsel %vm5281, %v6854, %v6853
      %v6856 = vrot.slane %v6055, 2
      %v6857 = vsel %vm5283, %v6856, %v6855
      %v6858 = vrot.slane %v6056, 1
      %v6859 = vsel %vm5285, %v6858, %v6857
      %v6860 = vsel %vm5287, %v6057, %v6859
      %v6861 = vrot.slane %v6058, 7
      %v6862 = vsel %vm5289, %v6861, %v6860
      %v6863 = vrot.slane %v6059, 6
      %v6864 = vsel %vm5291, %v6863, %v6862
      %v6865 = vrot.slane %v6060, 5
      %v6866 = vsel %vm5293, %v6865, %v6864
      %v6867 = vrot.slane %v6061, 4
      %v6868 = vrot.slane %v6062, 3
      %v6869 = vsel %vm5281, %v6868, %v6867
      %v6870 = vrot.slane %v6063, 2
      %v6871 = vsel %vm5283, %v6870, %v6869
      %v6872 = vrot.slane %v6064, 1
      %v6873 = vsel %vm5285, %v6872, %v6871
      %v6874 = vsel %vm5287, %v6065, %v6873
      %v6875 = vrot.slane %v6066, 7
      %v6876 = vsel %vm5289, %v6875, %v6874
      %v6877 = vrot.slane %v6067, 6
      %v6878 = vsel %vm5291, %v6877, %v6876
      %v6879 = vrot.slane %v6068, 5
      %v6880 = vsel %vm5293, %v6879, %v6878
      %v6899 = vrot.slane %v6105, 5
      %v6900 = vrot.slane %v6106, 4
      %v6901 = vsel %vm5281, %v6900, %v6899
      %v6902 = vrot.slane %v6107, 3
      %v6903 = vsel %vm5283, %v6902, %v6901
      %v6904 = vrot.slane %v6108, 2
      %v6905 = vsel %vm5285, %v6904, %v6903
      %v6906 = vrot.slane %v6109, 1
      %v6907 = vsel %vm5287, %v6906, %v6905
      %v6908 = vsel %vm5289, %v6110, %v6907
      %v6909 = vrot.slane %v6111, 7
      %v6910 = vsel %vm5291, %v6909, %v6908
      %v6911 = vrot.slane %v6112, 6
      %v6912 = vsel %vm5293, %v6911, %v6910
      %v6913 = vrot.slane %v6113, 5
      %v6914 = vrot.slane %v6114, 4
      %v6915 = vsel %vm5281, %v6914, %v6913
      %v6916 = vrot.slane %v6115, 3
      %v6917 = vsel %vm5283, %v6916, %v6915
      %v6918 = vrot.slane %v6116, 2
      %v6919 = vsel %vm5285, %v6918, %v6917
      %v6920 = vrot.slane %v6117, 1
      %v6921 = vsel %vm5287, %v6920, %v6919
      %v6922 = vsel %vm5289, %v6118, %v6921
      %v6923 = vrot.slane %v6119, 7
      %v6924 = vsel %vm5291, %v6923, %v6922
      %v6925 = vrot.slane %v6120, 6
      %v6926 = vsel %vm5293, %v6925, %v6924
      %6927 = vrot.lane.b32.xlu0 %v6912, 32
      %v6928 = vpop.permute.xlu0 %6927
      %6929 = vrot.lane.b32.xlu0 %v6926, 32
      %v6930 = vpop.permute.xlu0 %6929
      %v6949 = vrot.slane %v6157, 6
      %v6950 = vrot.slane %v6158, 5
      %v6951 = vsel %vm5281, %v6950, %v6949
      %v6952 = vrot.slane %v6159, 4
      %v6953 = vsel %vm5283, %v6952, %v6951
      %v6954 = vrot.slane %v6160, 3
      %v6955 = vsel %vm5285, %v6954, %v6953
      %v6956 = vrot.slane %v6161, 2
      %v6957 = vsel %vm5287, %v6956, %v6955
      %v6958 = vrot.slane %v6162, 1
      %v6959 = vsel %vm5289, %v6958, %v6957
      %v6960 = vsel %vm5291, %v6163, %v6959
      %v6961 = vrot.slane %v6164, 7
      %v6962 = vsel %vm5293, %v6961, %v6960
      %v6963 = vrot.slane %v6165, 6
      %v6964 = vrot.slane %v6166, 5
      %v6965 = vsel %vm5281, %v6964, %v6963
      %v6966 = vrot.slane %v6167, 4
      %v6967 = vsel %vm5283, %v6966, %v6965
      %v6968 = vrot.slane %v6168, 3
      %v6969 = vsel %vm5285, %v6968, %v6967
      %v6970 = vrot.slane %v6169, 2
      %v6971 = vsel %vm5287, %v6970, %v6969
      %v6972 = vrot.slane %v6170, 1
      %v6973 = vsel %vm5289, %v6972, %v6971
      %v6974 = vsel %vm5291, %v6171, %v6973
      %v6975 = vrot.slane %v6172, 7
      %v6976 = vsel %vm5293, %v6975, %v6974
      %6977 = vrot.lane.b32.xlu0 %v6962, 64
      %v6978 = vpop.permute.xlu0 %6977
      %6979 = vrot.lane.b32.xlu0 %v6976, 64
      %v6980 = vpop.permute.xlu0 %6979
      %v6999 = vrot.slane %v6209, 7
      %v7000 = vrot.slane %v6210, 6
      %v7001 = vsel %vm5281, %v7000, %v6999
      %v7002 = vrot.slane %v6211, 5
      %v7003 = vsel %vm5283, %v7002, %v7001
      %v7004 = vrot.slane %v6212, 4
      %v7005 = vsel %vm5285, %v7004, %v7003
      %v7006 = vrot.slane %v6213, 3
      %v7007 = vsel %vm5287, %v7006, %v7005
      %v7008 = vrot.slane %v6214, 2
      %v7009 = vsel %vm5289, %v7008, %v7007
      %v7010 = vrot.slane %v6215, 1
      %v7011 = vsel %vm5291, %v7010, %v7009
      %v7012 = vsel %vm5293, %v6216, %v7011
      %v7013 = vrot.slane %v6217, 7
      %v7014 = vrot.slane %v6218, 6
      %v7015 = vsel %vm5281, %v7014, %v7013
      %v7016 = vrot.slane %v6219, 5
      %v7017 = vsel %vm5283, %v7016, %v7015
      %v7018 = vrot.slane %v6220, 4
      %v7019 = vsel %vm5285, %v7018, %v7017
      %v7020 = vrot.slane %v6221, 3
      %v7021 = vsel %vm5287, %v7020, %v7019
      %v7022 = vrot.slane %v6222, 2
      %v7023 = vsel %vm5289, %v7022, %v7021
      %v7024 = vrot.slane %v6223, 1
      %v7025 = vsel %vm5291, %v7024, %v7023
      %v7026 = vsel %vm5293, %v6224, %v7025
      %7027 = vrot.lane.b32.xlu0 %v7012, 96
      %v7028 = vpop.permute.xlu0 %7027
      %7029 = vrot.lane.b32.xlu0 %v7026, 96
      %v7030 = vpop.permute.xlu0 %7029
      %v7049 = vrot.slane %v6262, 7
      %v7050 = vsel %vm5281, %v7049, %v6261
      %v7051 = vrot.slane %v6263, 6
      %v7052 = vsel %vm5283, %v7051, %v7050
      %v7053 = vrot.slane %v6264, 5
      %v7054 = vsel %vm5285, %v7053, %v7052
      %v7055 = vrot.slane %v6265, 4
      %v7056 = vsel %vm5287, %v7055, %v7054
      %v7057 = vrot.slane %v6266, 3
      %v7058 = vsel %vm5289, %v7057, %v7056
      %v7059 = vrot.slane %v6267, 2
      %v7060 = vsel %vm5291, %v7059, %v7058
      %v7061 = vrot.slane %v6268, 1
      %v7062 = vsel %vm5293, %v7061, %v7060
      %v7063 = vrot.slane %v6270, 7
      %v7064 = vsel %vm5281, %v7063, %v6269
      %v7065 = vrot.slane %v6271, 6
      %v7066 = vsel %vm5283, %v7065, %v7064
      %v7067 = vrot.slane %v6272, 5
      %v7068 = vsel %vm5285, %v7067, %v7066
      %v7069 = vrot.slane %v6273, 4
      %v7070 = vsel %vm5287, %v7069, %v7068
      %v7071 = vrot.slane %v6274, 3
      %v7072 = vsel %vm5289, %v7071, %v7070
      %v7073 = vrot.slane %v6275, 2
      %v7074 = vsel %vm5291, %v7073, %v7072
      %v7075 = vrot.slane %v6276, 1
      %v7076 = vsel %vm5293, %v7075, %v7074
      %v7095 = vrot.slane %v6313, 1
      %v7096 = vsel %vm5281, %v6314, %v7095
      %v7097 = vrot.slane %v6315, 7
      %v7098 = vsel %vm5283, %v7097, %v7096
      %v7099 = vrot.slane %v6316, 6
      %v7100 = vsel %vm5285, %v7099, %v7098
      %v7101 = vrot.slane %v6317, 5
      %v7102 = vsel %vm5287, %v7101, %v7100
      %v7103 = vrot.slane %v6318, 4
      %v7104 = vsel %vm5289, %v7103, %v7102
      %v7105 = vrot.slane %v6319, 3
      %v7106 = vsel %vm5291, %v7105, %v7104
      %v7107 = vrot.slane %v6320, 2
      %v7108 = vsel %vm5293, %v7107, %v7106
      %v7109 = vrot.slane %v6321, 1
      %v7110 = vsel %vm5281, %v6322, %v7109
      %v7111 = vrot.slane %v6323, 7
      %v7112 = vsel %vm5283, %v7111, %v7110
      %v7113 = vrot.slane %v6324, 6
      %v7114 = vsel %vm5285, %v7113, %v7112
      %v7115 = vrot.slane %v6325, 5
      %v7116 = vsel %vm5287, %v7115, %v7114
      %v7117 = vrot.slane %v6326, 4
      %v7118 = vsel %vm5289, %v7117, %v7116
      %v7119 = vrot.slane %v6327, 3
      %v7120 = vsel %vm5291, %v7119, %v7118
      %v7121 = vrot.slane %v6328, 2
      %v7122 = vsel %vm5293, %v7121, %v7120
      %7123 = vrot.lane.b32.xlu0 %v7108, 32
      %v7124 = vpop.permute.xlu0 %7123
      %7125 = vrot.lane.b32.xlu0 %v7122, 32
      %v7126 = vpop.permute.xlu0 %7125
      %v7145 = vrot.slane %v6365, 2
      %v7146 = vrot.slane %v6366, 1
      %v7147 = vsel %vm5281, %v7146, %v7145
      %v7148 = vsel %vm5283, %v6367, %v7147
      %v7149 = vrot.slane %v6368, 7
      %v7150 = vsel %vm5285, %v7149, %v7148
      %v7151 = vrot.slane %v6369, 6
      %v7152 = vsel %vm5287, %v7151, %v7150
      %v7153 = vrot.slane %v6370, 5
      %v7154 = vsel %vm5289, %v7153, %v7152
      %v7155 = vrot.slane %v6371, 4
      %v7156 = vsel %vm5291, %v7155, %v7154
      %v7157 = vrot.slane %v6372, 3
      %v7158 = vsel %vm5293, %v7157, %v7156
      %v7159 = vrot.slane %v6373, 2
      %v7160 = vrot.slane %v6374, 1
      %v7161 = vsel %vm5281, %v7160, %v7159
      %v7162 = vsel %vm5283, %v6375, %v7161
      %v7163 = vrot.slane %v6376, 7
      %v7164 = vsel %vm5285, %v7163, %v7162
      %v7165 = vrot.slane %v6377, 6
      %v7166 = vsel %vm5287, %v7165, %v7164
      %v7167 = vrot.slane %v6378, 5
      %v7168 = vsel %vm5289, %v7167, %v7166
      %v7169 = vrot.slane %v6379, 4
      %v7170 = vsel %vm5291, %v7169, %v7168
      %v7171 = vrot.slane %v6380, 3
      %v7172 = vsel %vm5293, %v7171, %v7170
      %7173 = vrot.lane.b32.xlu0 %v7158, 64
      %v7174 = vpop.permute.xlu0 %7173
      %7175 = vrot.lane.b32.xlu0 %v7172, 64
      %v7176 = vpop.permute.xlu0 %7175
      %v7195 = vrot.slane %v6417, 3
      %v7196 = vrot.slane %v6418, 2
      %v7197 = vsel %vm5281, %v7196, %v7195
      %v7198 = vrot.slane %v6419, 1
      %v7199 = vsel %vm5283, %v7198, %v7197
      %v7200 = vsel %vm5285, %v6420, %v7199
      %v7201 = vrot.slane %v6421, 7
      %v7202 = vsel %vm5287, %v7201, %v7200
      %v7203 = vrot.slane %v6422, 6
      %v7204 = vsel %vm5289, %v7203, %v7202
      %v7205 = vrot.slane %v6423, 5
      %v7206 = vsel %vm5291, %v7205, %v7204
      %v7207 = vrot.slane %v6424, 4
      %v7208 = vsel %vm5293, %v7207, %v7206
      %v7209 = vrot.slane %v6425, 3
      %v7210 = vrot.slane %v6426, 2
      %v7211 = vsel %vm5281, %v7210, %v7209
      %v7212 = vrot.slane %v6427, 1
      %v7213 = vsel %vm5283, %v7212, %v7211
      %v7214 = vsel %vm5285, %v6428, %v7213
      %v7215 = vrot.slane %v6429, 7
      %v7216 = vsel %vm5287, %v7215, %v7214
      %v7217 = vrot.slane %v6430, 6
      %v7218 = vsel %vm5289, %v7217, %v7216
      %v7219 = vrot.slane %v6431, 5
      %v7220 = vsel %vm5291, %v7219, %v7218
      %v7221 = vrot.slane %v6432, 4
      %v7222 = vsel %vm5293, %v7221, %v7220
      %7223 = vrot.lane.b32.xlu0 %v7208, 96
      %v7224 = vpop.permute.xlu0 %7223
      %7225 = vrot.lane.b32.xlu0 %v7222, 96
      %v7226 = vpop.permute.xlu0 %7225
      %v7245 = vrot.slane %v6469, 4
      %v7246 = vrot.slane %v6470, 3
      %v7247 = vsel %vm5281, %v7246, %v7245
      %v7248 = vrot.slane %v6471, 2
      %v7249 = vsel %vm5283, %v7248, %v7247
      %v7250 = vrot.slane %v6472, 1
      %v7251 = vsel %vm5285, %v7250, %v7249
      %v7252 = vsel %vm5287, %v6473, %v7251
      %v7253 = vrot.slane %v6474, 7
      %v7254 = vsel %vm5289, %v7253, %v7252
      %v7255 = vrot.slane %v6475, 6
      %v7256 = vsel %vm5291, %v7255, %v7254
      %v7257 = vrot.slane %v6476, 5
      %v7258 = vsel %vm5293, %v7257, %v7256
      %v7259 = vrot.slane %v6477, 4
      %v7260 = vrot.slane %v6478, 3
      %v7261 = vsel %vm5281, %v7260, %v7259
      %v7262 = vrot.slane %v6479, 2
      %v7263 = vsel %vm5283, %v7262, %v7261
      %v7264 = vrot.slane %v6480, 1
      %v7265 = vsel %vm5285, %v7264, %v7263
      %v7266 = vsel %vm5287, %v6481, %v7265
      %v7267 = vrot.slane %v6482, 7
      %v7268 = vsel %vm5289, %v7267, %v7266
      %v7269 = vrot.slane %v6483, 6
      %v7270 = vsel %vm5291, %v7269, %v7268
      %v7271 = vrot.slane %v6484, 5
      %v7272 = vsel %vm5293, %v7271, %v7270
      %v7291 = vrot.slane %v6521, 5
      %v7292 = vrot.slane %v6522, 4
      %v7293 = vsel %vm5281, %v7292, %v7291
      %v7294 = vrot.slane %v6523, 3
      %v7295 = vsel %vm5283, %v7294, %v7293
      %v7296 = vrot.slane %v6524, 2
      %v7297 = vsel %vm5285, %v7296, %v7295
      %v7298 = vrot.slane %v6525, 1
      %v7299 = vsel %vm5287, %v7298, %v7297
      %v7300 = vsel %vm5289, %v6526, %v7299
      %v7301 = vrot.slane %v6527, 7
      %v7302 = vsel %vm5291, %v7301, %v7300
      %v7303 = vrot.slane %v6528, 6
      %v7304 = vsel %vm5293, %v7303, %v7302
      %v7305 = vrot.slane %v6529, 5
      %v7306 = vrot.slane %v6530, 4
      %v7307 = vsel %vm5281, %v7306, %v7305
      %v7308 = vrot.slane %v6531, 3
      %v7309 = vsel %vm5283, %v7308, %v7307
      %v7310 = vrot.slane %v6532, 2
      %v7311 = vsel %vm5285, %v7310, %v7309
      %v7312 = vrot.slane %v6533, 1
      %v7313 = vsel %vm5287, %v7312, %v7311
      %v7314 = vsel %vm5289, %v6534, %v7313
      %v7315 = vrot.slane %v6535, 7
      %v7316 = vsel %vm5291, %v7315, %v7314
      %v7317 = vrot.slane %v6536, 6
      %v7318 = vsel %vm5293, %v7317, %v7316
      %7319 = vrot.lane.b32.xlu0 %v7304, 32
      %v7320 = vpop.permute.xlu0 %7319
      %7321 = vrot.lane.b32.xlu0 %v7318, 32
      %v7322 = vpop.permute.xlu0 %7321
      %v7341 = vrot.slane %v6573, 6
      %v7342 = vrot.slane %v6574, 5
      %v7343 = vsel %vm5281, %v7342, %v7341
      %v7344 = vrot.slane %v6575, 4
      %v7345 = vsel %vm5283, %v7344, %v7343
      %v7346 = vrot.slane %v6576, 3
      %v7347 = vsel %vm5285, %v7346, %v7345
      %v7348 = vrot.slane %v6577, 2
      %v7349 = vsel %vm5287, %v7348, %v7347
      %v7350 = vrot.slane %v6578, 1
      %v7351 = vsel %vm5289, %v7350, %v7349
      %v7352 = vsel %vm5291, %v6579, %v7351
      %v7353 = vrot.slane %v6580, 7
      %v7354 = vsel %vm5293, %v7353, %v7352
      %v7355 = vrot.slane %v6581, 6
      %v7356 = vrot.slane %v6582, 5
      %v7357 = vsel %vm5281, %v7356, %v7355
      %v7358 = vrot.slane %v6583, 4
      %v7359 = vsel %vm5283, %v7358, %v7357
      %v7360 = vrot.slane %v6584, 3
      %v7361 = vsel %vm5285, %v7360, %v7359
      %v7362 = vrot.slane %v6585, 2
      %v7363 = vsel %vm5287, %v7362, %v7361
      %v7364 = vrot.slane %v6586, 1
      %v7365 = vsel %vm5289, %v7364, %v7363
      %v7366 = vsel %vm5291, %v6587, %v7365
      %v7367 = vrot.slane %v6588, 7
      %v7368 = vsel %vm5293, %v7367, %v7366
      %7369 = vrot.lane.b32.xlu0 %v7354, 64
      %v7370 = vpop.permute.xlu0 %7369
      %7371 = vrot.lane.b32.xlu0 %v7368, 64
      %v7372 = vpop.permute.xlu0 %7371
      %v7391 = vrot.slane %v6625, 7
      %v7392 = vrot.slane %v6626, 6
      %v7393 = vsel %vm5281, %v7392, %v7391
      %v7394 = vrot.slane %v6627, 5
      %v7395 = vsel %vm5283, %v7394, %v7393
      %v7396 = vrot.slane %v6628, 4
      %v7397 = vsel %vm5285, %v7396, %v7395
      %v7398 = vrot.slane %v6629, 3
      %v7399 = vsel %vm5287, %v7398, %v7397
      %v7400 = vrot.slane %v6630, 2
      %v7401 = vsel %vm5289, %v7400, %v7399
      %v7402 = vrot.slane %v6631, 1
      %v7403 = vsel %vm5291, %v7402, %v7401
      %v7404 = vsel %vm5293, %v6632, %v7403
      %v7405 = vrot.slane %v6633, 7
      %v7406 = vrot.slane %v6634, 6
      %v7407 = vsel %vm5281, %v7406, %v7405
      %v7408 = vrot.slane %v6635, 5
      %v7409 = vsel %vm5283, %v7408, %v7407
      %v7410 = vrot.slane %v6636, 4
      %v7411 = vsel %vm5285, %v7410, %v7409
      %v7412 = vrot.slane %v6637, 3
      %v7413 = vsel %vm5287, %v7412, %v7411
      %v7414 = vrot.slane %v6638, 2
      %v7415 = vsel %vm5289, %v7414, %v7413
      %v7416 = vrot.slane %v6639, 1
      %v7417 = vsel %vm5291, %v7416, %v7415
      %v7418 = vsel %vm5293, %v6640, %v7417
      %7419 = vrot.lane.b32.xlu0 %v7404, 96
      %v7420 = vpop.permute.xlu0 %7419
      %7421 = vrot.lane.b32.xlu0 %v7418, 96
      %v7422 = vpop.permute.xlu0 %7421
      %v7425 = vsel %vm1707, %v6670, %v6732
      %v7426 = vsel %vm1707, %v6684, %v6734
      %v7427 = vsel %vm1740, %v7425, %v6782
      %v7428 = vsel %vm1740, %v7426, %v6784
      %v7429 = vsel %vm1785, %v7427, %v6832
      %v7430 = vsel %vm1785, %v7428, %v6834
      %v7431 = vsel %vm1707, %v6866, %v6928
      %v7432 = vsel %vm1707, %v6880, %v6930
      %v7433 = vsel %vm1740, %v7431, %v6978
      %v7434 = vsel %vm1740, %v7432, %v6980
      %v7435 = vsel %vm1785, %v7433, %v7028
      %v7436 = vsel %vm1785, %v7434, %v7030
      %v7437 = vsel %vm1707, %v7062, %v7124
      %v7438 = vsel %vm1707, %v7076, %v7126
      %v7439 = vsel %vm1740, %v7437, %v7174
      %v7440 = vsel %vm1740, %v7438, %v7176
      %v7441 = vsel %vm1785, %v7439, %v7224
      %v7442 = vsel %vm1785, %v7440, %v7226
      %v7443 = vsel %vm1707, %v7258, %v7320
      %v7444 = vsel %vm1707, %v7272, %v7322
      %v7445 = vsel %vm1740, %v7443, %v7370
      %v7446 = vsel %vm1740, %v7444, %v7372
      %v7447 = vsel %vm1785, %v7445, %v7420
      %v7448 = vsel %vm1785, %v7446, %v7422
      %v7449 = vmax.f32 %v7429, 0.0
      %v7450 = vmax.f32 %v7435, 0.0
      %v7451 = vmax.f32 %v7441, 0.0
      %v7452 = vmax.f32 %v7447, 0.0
      %v7453 = vmax.f32 %v7430, 0.0
      %v7454 = vmax.f32 %v7436, 0.0
      %v7455 = vmax.f32 %v7442, 0.0
      %v7456 = vmax.f32 %v7448, 0.0
      %7457 = vst [vmem:[%s359] sm:$0xff] %v7449
      %7458 = vst [vmem:[%s359 + $0x8] sm:$0xff] %v7450
      %7459 = vst [vmem:[%s359 + $0x10] sm:$0xff] %v7451
      %7460 = vst [vmem:[%s359 + $0x18] sm:$0xff] %v7452
      %7461 = vst [vmem:[%s359 + $0x20] sm:$0xff] %v7453
      %7462 = vst [vmem:[%s359 + $0x28] sm:$0xff] %v7454
      %7463 = vst [vmem:[%s359 + $0x30] sm:$0xff] %v7455
      %7464 = vst [vmem:[%s359 + $0x38] sm:$0xff] %v7456
      %p7465 = scmp.lt.s32.totalorder %s21, 1
      %s7466 = scalar_select %p7465, %s21, 1
      %s7467 = smul.addr %s7466, 8
      %s7468 = smul.addr %s7467, 8
      %s7469 = scalar_lea.vmem %s10, %s7468
      // Predicated region
      $region61: #{residual_block_forward.1} parent=59 // pred_check
        %p7470 = pneg %p254
      $region62: #{residual_block_forward.1} parent=59 // pred_check_branch
        %7472 = sbr.rel (%p7470) target = $region64
      $region63: #{residual_block_forward.1} parent=59 // pred_region
        _
      $region64: #{residual_block_forward.1} parent=59 // pred_fallthru
        _
    $region60: #{residual_block_forward.1} parent=5 // pred_fallthru
      _
    %p7473 = scmp.le.s32.totalorder 2, %s16
    // Predicated region
    $region65: #{residual_block_forward.1} parent=5 // pred_check
      %p7474 = pneg %p7473
    $region66: #{residual_block_forward.1} parent=5 // pred_check_branch
      %7476 = sbr.rel (%p7474) target = $region68
    $region67: #{residual_block_forward.1} parent=5 // pred_region
      %s7477 = ssub.s32 %s16, 2
      // Predicated region
      $region69: #{residual_block_forward.1} parent=67 // pred_check
        %p7478 = pneg %p260
      $region70: #{residual_block_forward.1} parent=67 // pred_check_branch
        %7480 = sbr.rel (%p7478) target = $region72
      $region71: #{residual_block_forward.1} parent=67 // pred_region
        %p7481 = scmp.lt.s32.totalorder %s22, 1
        %s7482 = scalar_select %p7481, %s22, 1
        %s7483 = smul.addr %s7482, 8
        %s7484 = smul.addr %s7483, 8
        %s7485 = scalar_lea.vmem %s10, %s7484
      $region72: #{residual_block_forward.1} parent=67 // pred_fallthru
        _
    $region68: #{residual_block_forward.1} parent=5 // pred_fallthru
      _
  $region6: #{residual_block_forward.1} parent=0 // loop_footer
    %s20 = sadd.s32 1, %s16
  $region7: #{residual_block_forward.1} parent=0 // loop_footer_branch
    %15 = sbr.rel target = $region3
  $region8: #{residual_block_forward.1} parent=0 // loop_exit
    _

</llo_original>
